<compile_context>
chip_gen: v7x
topology: tpu7x:2x2x1
jax: 0.10.0
libtpu: 0.0.40
codegen_flags: <defaults>
</compile_context>

<pallas_src>
import functools

import jax
import jax.numpy as jnp
from jax.experimental import pallas as pl
from jax.experimental.pallas import tpu as pltpu

EPS = 1e-6

# ----------------------------- model config --------------------------------
B, C, T, H, W = 2, 3, 4, 16, 16     # small video input
PATCH = 4                           # non-overlapping patch embed
DIM = 32                            # embedding dim
MLP_DIM = 4 * DIM                   # mlp ratio 4
DEPTH = 2                           # transformer blocks


# ----------------------------- shared math ----------------------------------
def _layernorm(x, g, b):
    mu = jnp.mean(x, axis=-1, keepdims=True)
    var = jnp.mean((x - mu) ** 2, axis=-1, keepdims=True)
    return (x - mu) * jax.lax.rsqrt(var + EPS) * g + b


# ----------------------------- fused kernel ---------------------------------
def fused_mvit_kernel(patches_ref, pw_ref, pb_ref, ln_ref,
                      wqkv_ref, bqkv_ref, wo_ref, bo_ref,
                      w1_ref, b1_ref, w2_ref, b2_ref,
                      ng_ref, nb_ref, o_ref, *, bt, n, dim, depth, bsz, t):
    scale = 1.0 / (float(dim) ** 0.5)

    # ---- patch embedding: (BT*N, K) @ (K, D) + (1, D) -> (BT*N, D) ----
    tok = (jnp.dot(patches_ref[...], pw_ref[...],
                   preferred_element_type=jnp.float32) + pb_ref[...])

    # ---- transformer blocks (statically unrolled, DEPTH is tiny) ----
    for L in range(depth):
        ln = ln_ref[L]                       # (4, D): ln1g, ln1b, ln2g, ln2b
        ln1g, ln1b = ln[0:1, :], ln[1:2, :]
        ln2g, ln2b = ln[2:3, :], ln[3:4, :]

        # --- attention branch ---
        h = _layernorm(tok, ln1g, ln1b)                       # (BT*N, D)
        qkv = (jnp.dot(h, wqkv_ref[L],
                       preferred_element_type=jnp.float32) + bqkv_ref[L])
        q = qkv[:, 0 * dim:1 * dim]
        k = qkv[:, 1 * dim:2 * dim]
        v = qkv[:, 2 * dim:3 * dim]
        q3 = q.reshape(bt, n, dim)
        k3 = k.reshape(bt, n, dim)
        v3 = v.reshape(bt, n, dim)

        s = jnp.einsum("bnd,bmd->bnm", q3, k3,
                       preferred_element_type=jnp.float32) * scale
        s = s - jnp.max(s, axis=-1, keepdims=True)
        p = jnp.exp(s)
        p = p * pl.reciprocal(jnp.sum(p, axis=-1, keepdims=True), approx=False)
        attn = jnp.einsum("bnm,bmd->bnd", p, v3,
                          preferred_element_type=jnp.float32) + q3   # residual-q (MViTv2 style)
        attn = attn.reshape(bt * n, dim)
        attn = (jnp.dot(attn, wo_ref[L],
                        preferred_element_type=jnp.float32) + bo_ref[L])
        tok = tok + attn

        # --- MLP branch ---
        h2 = _layernorm(tok, ln2g, ln2b)
        m = (jnp.dot(h2, w1_ref[L],
                     preferred_element_type=jnp.float32) + b1_ref[L])
        m = jax.nn.gelu(m, approximate=True)
        m = (jnp.dot(m, w2_ref[L],
                     preferred_element_type=jnp.float32) + b2_ref[L])
        tok = tok + m

    # ---- final LayerNorm + token mean + temporal mean -> (B, D) ----
    hfin = _layernorm(tok, ng_ref[...], nb_ref[...])          # (BT*N, D)
    feats = hfin.reshape(bsz, t * n, dim)
    o_ref[...] = jnp.sum(feats, axis=1) * (1.0 / float(t * n))


# ----------------------------- wrapper ---------------------------------------
def forward(x, params):
    """x: (B, C, T, H, W) float32 -> (B, DIM) float32 (return_pooled=True)."""
    b, c, t, h, w = x.shape
    p = PATCH
    # permute(0,2,1,3,4).reshape(B*T, C, H, W) -- exactly as the PyTorch module
    xf = jnp.transpose(x, (0, 2, 1, 3, 4)).reshape(b * t, c, h, w)
    bt = b * t
    ph, pw = h // p, w // p
    n = ph * pw
    # im2col of non-overlapping patches (Conv2d stride=kernel=P equivalent)
    patches = (xf.reshape(bt, c, ph, p, pw, p)
                 .transpose(0, 2, 4, 1, 3, 5)
                 .reshape(bt * n, c * p * p))

    kernel = functools.partial(fused_mvit_kernel, bt=bt, n=n, dim=DIM,
                               depth=DEPTH, bsz=b, t=t)
    # Single grid-less pallas_call: all operands are loaded whole into VMEM.
    return pl.pallas_call(
        kernel,
        out_shape=jax.ShapeDtypeStruct((b, DIM), jnp.float32),
        compiler_params=pltpu.CompilerParams(vmem_limit_bytes=32 * 1024 * 1024),
    )(patches,
      params["patch_w"], params["patch_b"], params["ln"],
      params["wqkv"], params["bqkv"], params["wo"], params["bo"],
      params["w1"], params["b1"], params["w2"], params["b2"],
      params["norm_g"], params["norm_b"])


# ----------------------------- reference (plain JAX) -------------------------
def forward_ref(x, params):
    b, c, t, h, w = x.shape
    p = PATCH
    xf = jnp.transpose(x, (0, 2, 1, 3, 4)).reshape(b * t, c, h, w)
    bt = b * t
    ph, pw = h // p, w // p
    n = ph * pw
    patches = (xf.reshape(bt, c, ph, p, pw, p)
                 .transpose(0, 2, 4, 1, 3, 5)
                 .reshape(bt * n, c * p * p))
    tok = (patches @ params["patch_w"] + params["patch_b"]).reshape(bt, n, DIM)
    for L in range(DEPTH):
        ln1g, ln1b = params["ln"][L, 0], params["ln"][L, 1]
        ln2g, ln2b = params["ln"][L, 2], params["ln"][L, 3]
        hh = _layernorm(tok, ln1g, ln1b)
        qkv = hh @ params["wqkv"][L] + params["bqkv"][L, 0]
        q = qkv[..., 0 * DIM:1 * DIM]
        k = qkv[..., 1 * DIM:2 * DIM]
        v = qkv[..., 2 * DIM:3 * DIM]
        s = jnp.einsum("bnd,bmd->bnm", q, k) / (float(DIM) ** 0.5)
        s = s - jnp.max(s, axis=-1, keepdims=True)
        pr = jnp.exp(s)
        pr = pr / jnp.sum(pr, axis=-1, keepdims=True)
        attn = jnp.einsum("bnm,bmd->bnd", pr, v) + q
        attn = attn @ params["wo"][L] + params["bo"][L, 0]
        tok = tok + attn
        h2 = _layernorm(tok, ln2g, ln2b)
        m = jax.nn.gelu(h2 @ params["w1"][L] + params["b1"][L, 0],
                        approximate=True)
        tok = tok + m @ params["w2"][L] + params["b2"][L, 0]
    feats = tok.reshape(b, t, n, DIM)
    feats = _layernorm(feats, params["norm_g"][0], params["norm_b"][0])
    feats = feats.mean(axis=2)      # token mean (features.mean(dim=1))
    return feats.mean(axis=1)       # temporal mean


# ----------------------------- deterministic params --------------------------
def init_params(key):
    kdim = C * PATCH * PATCH

    def nrm(k, shape):
        return (0.02 * jax.random.normal(k, shape)).astype(jnp.float32)

    keys = jax.random.split(key, 1 + 6 * DEPTH)

    # Per-block weights stacked along a leading DEPTH axis; qkv fused.
    wqkv, bqkv, wo, bo, w1, b1, w2, b2, ln = [], [], [], [], [], [], [], [], []
    for i in range(DEPTH):
        ks = keys[1 + 6 * i: 1 + 6 * (i + 1)]
        wq = nrm(ks[0], (DIM, DIM))
        wk = nrm(ks[1], (DIM, DIM))
        wv = nrm(ks[2], (DIM, DIM))
        wqkv.append(jnp.concatenate([wq, wk, wv], axis=1))       # (DIM, 3*DIM)
        bqkv.append(jnp.zeros((1, 3 * DIM), jnp.float32))
        wo.append(nrm(ks[3], (DIM, DIM)))
        bo.append(jnp.zeros((1, DIM), jnp.float32))
        w1.append(nrm(ks[4], (DIM, MLP_DIM)))
        b1.append(jnp.zeros((1, MLP_DIM), jnp.float32))
        w2.append(nrm(ks[5], (MLP_DIM, DIM)))
        b2.append(jnp.zeros((1, DIM), jnp.float32))
        # rows: ln1g, ln1b, ln2g, ln2b
        ln.append(jnp.stack([jnp.ones((DIM,), jnp.float32),
                             jnp.zeros((DIM,), jnp.float32),
                             jnp.ones((DIM,), jnp.float32),
                             jnp.zeros((DIM,), jnp.float32)], axis=0))

    return {
        "patch_w": nrm(keys[0], (kdim, DIM)),  # conv weight flattened & transposed
        "patch_b": jnp.zeros((1, DIM), jnp.float32),
        "norm_g": jnp.ones((1, DIM), jnp.float32),
        "norm_b": jnp.zeros((1, DIM), jnp.float32),
        "ln": jnp.stack(ln),          # (DEPTH, 4, DIM)
        "wqkv": jnp.stack(wqkv),      # (DEPTH, DIM, 3*DIM)
        "bqkv": jnp.stack(bqkv),      # (DEPTH, 1, 3*DIM)
        "wo": jnp.stack(wo),          # (DEPTH, DIM, DIM)
        "bo": jnp.stack(bo),          # (DEPTH, 1, DIM)
        "w1": jnp.stack(w1),          # (DEPTH, DIM, MLP_DIM)
        "b1": jnp.stack(b1),          # (DEPTH, 1, MLP_DIM)
        "w2": jnp.stack(w2),          # (DEPTH, MLP_DIM, DIM)
        "b2": jnp.stack(b2),          # (DEPTH, 1, DIM)
    }


if __name__ == "__main__":
    key = jax.random.PRNGKey(0)
    kx, kp = jax.random.split(key)
    x = jax.random.normal(kx, (B, C, T, H, W), dtype=jnp.float32)
    params = init_params(kp)

    out = jax.block_until_ready(forward(x, params))
    ref = jax.block_until_ready(forward_ref(x, params))

    assert out.shape == (B, DIM), out.shape
    assert out.dtype == jnp.float32
    assert jnp.all(jnp.isfinite(out))
    assert jnp.allclose(out, ref, atol=1e-4, rtol=1e-4), float(
        jnp.max(jnp.abs(out - ref)))
    print("KERNEL_OK")
</pallas_src>

<mosaic_0001>
module attributes {stable_mosaic.version = 11 : i64} {
  func.func @fused_mvit_kernel(%arg0: memref<128x48xf32, #tpu.memory_space<vmem>>, %arg1: memref<48x32xf32, #tpu.memory_space<vmem>>, %arg2: memref<1x32xf32, #tpu.memory_space<vmem>>, %arg3: memref<2x4x32xf32, #tpu.memory_space<vmem>>, %arg4: memref<2x32x96xf32, #tpu.memory_space<vmem>>, %arg5: memref<2x1x96xf32, #tpu.memory_space<vmem>>, %arg6: memref<2x32x32xf32, #tpu.memory_space<vmem>>, %arg7: memref<2x1x32xf32, #tpu.memory_space<vmem>>, %arg8: memref<2x32x128xf32, #tpu.memory_space<vmem>>, %arg9: memref<2x1x128xf32, #tpu.memory_space<vmem>>, %arg10: memref<2x128x32xf32, #tpu.memory_space<vmem>>, %arg11: memref<2x1x32xf32, #tpu.memory_space<vmem>>, %arg12: memref<1x32xf32, #tpu.memory_space<vmem>>, %arg13: memref<1x32xf32, #tpu.memory_space<vmem>>, %arg14: memref<2x32xf32, #tpu.memory_space<vmem>>) attributes {dimension_semantics = [], scalar_prefetch = 0 : i64, scratch_operands = 0 : i64, tpu.core_type = #tpu.core_type<tc>} {
    %c0 = arith.constant 0 : index
    %c0_0 = arith.constant 0 : index
    %0 = vector.load %arg0[%c0, %c0_0] : memref<128x48xf32, #tpu.memory_space<vmem>>, vector<128x48xf32>
    %c0_1 = arith.constant 0 : index
    %c0_2 = arith.constant 0 : index
    %1 = vector.load %arg1[%c0_1, %c0_2] : memref<48x32xf32, #tpu.memory_space<vmem>>, vector<48x32xf32>
    %cst = arith.constant dense<0.000000e+00> : vector<128x32xf32>
    %2 = tpu.matmul %0, %1, %cst {dimension_numbers = #tpu.dot_dimension_numbers<[1], [0], [0], [1], [0, 0, 1, 1], [], []>} : vector<128x48xf32>, vector<48x32xf32>, vector<128x32xf32> -> vector<128x32xf32>
    %c0_3 = arith.constant 0 : index
    %c0_4 = arith.constant 0 : index
    %3 = vector.load %arg2[%c0_3, %c0_4] : memref<1x32xf32, #tpu.memory_space<vmem>>, vector<1x32xf32>
    %4 = vector.broadcast %3 : vector<1x32xf32> to vector<128x32xf32>
    %5 = arith.addf %2, %4 : vector<128x32xf32>
    %c0_5 = arith.constant 0 : index
    %c0_6 = arith.constant 0 : index
    %c0_7 = arith.constant 0 : index
    %6 = vector.load %arg3[%c0_5, %c0_6, %c0_7] : memref<2x4x32xf32, #tpu.memory_space<vmem>>, vector<1x4x32xf32>
    %7 = vector.shape_cast %6 : vector<1x4x32xf32> to vector<4x32xf32>
    %8 = vector.extract_strided_slice %7 {offsets = [0, 0], sizes = [1, 32], strides = [1, 1]} : vector<4x32xf32> to vector<1x32xf32>
    %9 = vector.extract_strided_slice %7 {offsets = [1, 0], sizes = [1, 32], strides = [1, 1]} : vector<4x32xf32> to vector<1x32xf32>
    %10 = vector.extract_strided_slice %7 {offsets = [2, 0], sizes = [1, 32], strides = [1, 1]} : vector<4x32xf32> to vector<1x32xf32>
    %11 = vector.extract_strided_slice %7 {offsets = [3, 0], sizes = [1, 32], strides = [1, 1]} : vector<4x32xf32> to vector<1x32xf32>
    %cst_8 = arith.constant dense<0.000000e+00> : vector<128xf32>
    %12 = vector.multi_reduction <add>, %5, %cst_8 [1] : vector<128x32xf32> to vector<128xf32>
    %13 = vector.shape_cast %12 : vector<128xf32> to vector<128x1xf32>
    %cst_9 = arith.constant 3.200000e+01 : f32
    %14 = vector.broadcast %cst_9 : f32 to vector<128x1xf32>
    %15 = arith.divf %13, %14 : vector<128x1xf32>
    %16 = vector.broadcast %15 : vector<128x1xf32> to vector<128x32xf32>
    %17 = arith.subf %5, %16 : vector<128x32xf32>
    %18 = arith.mulf %17, %17 : vector<128x32xf32>
    %cst_10 = arith.constant dense<0.000000e+00> : vector<128xf32>
    %19 = vector.multi_reduction <add>, %18, %cst_10 [1] : vector<128x32xf32> to vector<128xf32>
    %20 = vector.shape_cast %19 : vector<128xf32> to vector<128x1xf32>
    %cst_11 = arith.constant 3.200000e+01 : f32
    %21 = vector.broadcast %cst_11 : f32 to vector<128x1xf32>
    %22 = arith.divf %20, %21 : vector<128x1xf32>
    %23 = vector.broadcast %15 : vector<128x1xf32> to vector<128x32xf32>
    %24 = arith.subf %5, %23 : vector<128x32xf32>
    %cst_12 = arith.constant 9.99999997E-7 : f32
    %25 = vector.broadcast %cst_12 : f32 to vector<128x1xf32>
    %26 = arith.addf %22, %25 : vector<128x1xf32>
    %27 = math.rsqrt %26 : vector<128x1xf32>
    %28 = vector.broadcast %27 : vector<128x1xf32> to vector<128x32xf32>
    %29 = arith.mulf %24, %28 : vector<128x32xf32>
    %30 = vector.broadcast %8 : vector<1x32xf32> to vector<128x32xf32>
    %31 = arith.mulf %29, %30 : vector<128x32xf32>
    %32 = vector.broadcast %9 : vector<1x32xf32> to vector<128x32xf32>
    %33 = arith.addf %31, %32 : vector<128x32xf32>
    %c0_13 = arith.constant 0 : index
    %c0_14 = arith.constant 0 : index
    %c0_15 = arith.constant 0 : index
    %34 = vector.load %arg4[%c0_13, %c0_14, %c0_15] : memref<2x32x96xf32, #tpu.memory_space<vmem>>, vector<1x32x96xf32>
    %35 = vector.shape_cast %34 : vector<1x32x96xf32> to vector<32x96xf32>
    %cst_16 = arith.constant dense<0.000000e+00> : vector<128x96xf32>
    %36 = tpu.matmul %33, %35, %cst_16 {dimension_numbers = #tpu.dot_dimension_numbers<[1], [0], [0], [1], [0, 0, 1, 1], [], []>} : vector<128x32xf32>, vector<32x96xf32>, vector<128x96xf32> -> vector<128x96xf32>
    %c0_17 = arith.constant 0 : index
    %c0_18 = arith.constant 0 : index
    %c0_19 = arith.constant 0 : index
    %37 = vector.load %arg5[%c0_17, %c0_18, %c0_19] : memref<2x1x96xf32, #tpu.memory_space<vmem>>, vector<1x1x96xf32>
    %38 = vector.shape_cast %37 : vector<1x1x96xf32> to vector<1x96xf32>
    %39 = vector.broadcast %38 : vector<1x96xf32> to vector<128x96xf32>
    %40 = arith.addf %36, %39 : vector<128x96xf32>
    %41 = vector.extract_strided_slice %40 {offsets = [0, 0], sizes = [128, 32], strides = [1, 1]} : vector<128x96xf32> to vector<128x32xf32>
    %42 = vector.extract_strided_slice %40 {offsets = [0, 32], sizes = [128, 32], strides = [1, 1]} : vector<128x96xf32> to vector<128x32xf32>
    %43 = vector.extract_strided_slice %40 {offsets = [0, 64], sizes = [128, 32], strides = [1, 1]} : vector<128x96xf32> to vector<128x32xf32>
    %44 = vector.shape_cast %41 : vector<128x32xf32> to vector<8x16x32xf32>
    %45 = vector.shape_cast %42 : vector<128x32xf32> to vector<8x16x32xf32>
    %46 = vector.shape_cast %43 : vector<128x32xf32> to vector<8x16x32xf32>
    "tpu.trace_start"() <{level = 10 : i32, message = "bnd,bmd->bnm"}> : () -> ()
    %cst_20 = arith.constant dense<0.000000e+00> : vector<8x16x16xf32>
    %47 = tpu.matmul %44, %45, %cst_20 {dimension_numbers = #tpu.dot_dimension_numbers<[2], [2], [1], [1], [0, 0, 0, 1, 1, 1], [0], [0]>} : vector<8x16x32xf32>, vector<8x16x32xf32>, vector<8x16x16xf32> -> vector<8x16x16xf32>
    "tpu.trace_stop"() : () -> ()
    %cst_21 = arith.constant 0.176776692 : f32
    %48 = vector.broadcast %cst_21 : f32 to vector<8x16x16xf32>
    %49 = arith.mulf %47, %48 : vector<8x16x16xf32>
    %cst_22 = arith.constant dense<0xFF800000> : vector<8x16xf32>
    %50 = vector.multi_reduction <maximumf>, %49, %cst_22 [2] : vector<8x16x16xf32> to vector<8x16xf32>
    %51 = vector.shape_cast %50 : vector<8x16xf32> to vector<8x16x1xf32>
    %52 = vector.broadcast %51 : vector<8x16x1xf32> to vector<8x16x16xf32>
    %53 = arith.subf %49, %52 : vector<8x16x16xf32>
    %54 = math.exp %53 : vector<8x16x16xf32>
    %cst_23 = arith.constant dense<0.000000e+00> : vector<8x16xf32>
    %55 = vector.multi_reduction <add>, %54, %cst_23 [2] : vector<8x16x16xf32> to vector<8x16xf32>
    %56 = vector.shape_cast %55 : vector<8x16xf32> to vector<8x16x1xf32>
    %57 = tpu.reciprocal %56 : vector<8x16x1xf32> -> vector<8x16x1xf32>
    %58 = vector.broadcast %57 : vector<8x16x1xf32> to vector<8x16x16xf32>
    %59 = arith.mulf %54, %58 : vector<8x16x16xf32>
    "tpu.trace_start"() <{level = 10 : i32, message = "bnm,bmd->bnd"}> : () -> ()
    %cst_24 = arith.constant dense<0.000000e+00> : vector<8x16x32xf32>
    %60 = tpu.matmul %59, %46, %cst_24 {dimension_numbers = #tpu.dot_dimension_numbers<[2], [1], [1], [2], [0, 0, 0, 1, 1, 2], [0], [0]>} : vector<8x16x16xf32>, vector<8x16x32xf32>, vector<8x16x32xf32> -> vector<8x16x32xf32>
    "tpu.trace_stop"() : () -> ()
    %61 = arith.addf %60, %44 : vector<8x16x32xf32>
    %62 = vector.shape_cast %61 : vector<8x16x32xf32> to vector<128x32xf32>
    %c0_25 = arith.constant 0 : index
    %c0_26 = arith.constant 0 : index
    %c0_27 = arith.constant 0 : index
    %63 = vector.load %arg6[%c0_25, %c0_26, %c0_27] : memref<2x32x32xf32, #tpu.memory_space<vmem>>, vector<1x32x32xf32>
    %64 = vector.shape_cast %63 : vector<1x32x32xf32> to vector<32x32xf32>
    %cst_28 = arith.constant dense<0.000000e+00> : vector<128x32xf32>
    %65 = tpu.matmul %62, %64, %cst_28 {dimension_numbers = #tpu.dot_dimension_numbers<[1], [0], [0], [1], [0, 0, 1, 1], [], []>} : vector<128x32xf32>, vector<32x32xf32>, vector<128x32xf32> -> vector<128x32xf32>
    %c0_29 = arith.constant 0 : index
    %c0_30 = arith.constant 0 : index
    %c0_31 = arith.constant 0 : index
    %66 = vector.load %arg7[%c0_29, %c0_30, %c0_31] : memref<2x1x32xf32, #tpu.memory_space<vmem>>, vector<1x1x32xf32>
    %67 = vector.shape_cast %66 : vector<1x1x32xf32> to vector<1x32xf32>
    %68 = vector.broadcast %67 : vector<1x32xf32> to vector<128x32xf32>
    %69 = arith.addf %65, %68 : vector<128x32xf32>
    %70 = arith.addf %5, %69 : vector<128x32xf32>
    %cst_32 = arith.constant dense<0.000000e+00> : vector<128xf32>
    %71 = vector.multi_reduction <add>, %70, %cst_32 [1] : vector<128x32xf32> to vector<128xf32>
    %72 = vector.shape_cast %71 : vector<128xf32> to vector<128x1xf32>
    %cst_33 = arith.constant 3.200000e+01 : f32
    %73 = vector.broadcast %cst_33 : f32 to vector<128x1xf32>
    %74 = arith.divf %72, %73 : vector<128x1xf32>
    %75 = vector.broadcast %74 : vector<128x1xf32> to vector<128x32xf32>
    %76 = arith.subf %70, %75 : vector<128x32xf32>
    %77 = arith.mulf %76, %76 : vector<128x32xf32>
    %cst_34 = arith.constant dense<0.000000e+00> : vector<128xf32>
    %78 = vector.multi_reduction <add>, %77, %cst_34 [1] : vector<128x32xf32> to vector<128xf32>
    %79 = vector.shape_cast %78 : vector<128xf32> to vector<128x1xf32>
    %cst_35 = arith.constant 3.200000e+01 : f32
    %80 = vector.broadcast %cst_35 : f32 to vector<128x1xf32>
    %81 = arith.divf %79, %80 : vector<128x1xf32>
    %82 = vector.broadcast %74 : vector<128x1xf32> to vector<128x32xf32>
    %83 = arith.subf %70, %82 : vector<128x32xf32>
    %cst_36 = arith.constant 9.99999997E-7 : f32
    %84 = vector.broadcast %cst_36 : f32 to vector<128x1xf32>
    %85 = arith.addf %81, %84 : vector<128x1xf32>
    %86 = math.rsqrt %85 : vector<128x1xf32>
    %87 = vector.broadcast %86 : vector<128x1xf32> to vector<128x32xf32>
    %88 = arith.mulf %83, %87 : vector<128x32xf32>
    %89 = vector.broadcast %10 : vector<1x32xf32> to vector<128x32xf32>
    %90 = arith.mulf %88, %89 : vector<128x32xf32>
    %91 = vector.broadcast %11 : vector<1x32xf32> to vector<128x32xf32>
    %92 = arith.addf %90, %91 : vector<128x32xf32>
    %c0_37 = arith.constant 0 : index
    %c0_38 = arith.constant 0 : index
    %c0_39 = arith.constant 0 : index
    %93 = vector.load %arg8[%c0_37, %c0_38, %c0_39] : memref<2x32x128xf32, #tpu.memory_space<vmem>>, vector<1x32x128xf32>
    %94 = vector.shape_cast %93 : vector<1x32x128xf32> to vector<32x128xf32>
    %cst_40 = arith.constant dense<0.000000e+00> : vector<128x128xf32>
    %95 = tpu.matmul %92, %94, %cst_40 {dimension_numbers = #tpu.dot_dimension_numbers<[1], [0], [0], [1], [0, 0, 1, 1], [], []>} : vector<128x32xf32>, vector<32x128xf32>, vector<128x128xf32> -> vector<128x128xf32>
    %c0_41 = arith.constant 0 : index
    %c0_42 = arith.constant 0 : index
    %c0_43 = arith.constant 0 : index
    %96 = vector.load %arg9[%c0_41, %c0_42, %c0_43] : memref<2x1x128xf32, #tpu.memory_space<vmem>>, vector<1x1x128xf32>
    %97 = vector.shape_cast %96 : vector<1x1x128xf32> to vector<1x128xf32>
    %98 = vector.broadcast %97 : vector<1x128xf32> to vector<128x128xf32>
    %99 = arith.addf %95, %98 : vector<128x128xf32>
    %100 = arith.mulf %99, %99 : vector<128x128xf32>
    %101 = arith.mulf %99, %100 : vector<128x128xf32>
    %cst_44 = arith.constant 4.471500e-02 : f32
    %102 = vector.broadcast %cst_44 : f32 to vector<128x128xf32>
    %103 = arith.mulf %102, %101 : vector<128x128xf32>
    %104 = arith.addf %99, %103 : vector<128x128xf32>
    %cst_45 = arith.constant 0.797884583 : f32
    %105 = vector.broadcast %cst_45 : f32 to vector<128x128xf32>
    %106 = arith.mulf %105, %104 : vector<128x128xf32>
    %107 = math.tanh %106 : vector<128x128xf32>
    %cst_46 = arith.constant 1.000000e+00 : f32
    %108 = vector.broadcast %cst_46 : f32 to vector<128x128xf32>
    %109 = arith.addf %108, %107 : vector<128x128xf32>
    %cst_47 = arith.constant 5.000000e-01 : f32
    %110 = vector.broadcast %cst_47 : f32 to vector<128x128xf32>
    %111 = arith.mulf %110, %109 : vector<128x128xf32>
    %112 = arith.mulf %99, %111 : vector<128x128xf32>
    %c0_48 = arith.constant 0 : index
    %c0_49 = arith.constant 0 : index
    %c0_50 = arith.constant 0 : index
    %113 = vector.load %arg10[%c0_48, %c0_49, %c0_50] : memref<2x128x32xf32, #tpu.memory_space<vmem>>, vector<1x128x32xf32>
    %114 = vector.shape_cast %113 : vector<1x128x32xf32> to vector<128x32xf32>
    %cst_51 = arith.constant dense<0.000000e+00> : vector<128x32xf32>
    %115 = tpu.matmul %112, %114, %cst_51 {dimension_numbers = #tpu.dot_dimension_numbers<[1], [0], [0], [1], [0, 0, 1, 1], [], []>} : vector<128x128xf32>, vector<128x32xf32>, vector<128x32xf32> -> vector<128x32xf32>
    %c0_52 = arith.constant 0 : index
    %c0_53 = arith.constant 0 : index
    %c0_54 = arith.constant 0 : index
    %116 = vector.load %arg11[%c0_52, %c0_53, %c0_54] : memref<2x1x32xf32, #tpu.memory_space<vmem>>, vector<1x1x32xf32>
    %117 = vector.shape_cast %116 : vector<1x1x32xf32> to vector<1x32xf32>
    %118 = vector.broadcast %117 : vector<1x32xf32> to vector<128x32xf32>
    %119 = arith.addf %115, %118 : vector<128x32xf32>
    %120 = arith.addf %70, %119 : vector<128x32xf32>
    %c1 = arith.constant 1 : index
    %c0_55 = arith.constant 0 : index
    %c0_56 = arith.constant 0 : index
    %121 = vector.load %arg3[%c1, %c0_55, %c0_56] : memref<2x4x32xf32, #tpu.memory_space<vmem>>, vector<1x4x32xf32>
    %122 = vector.shape_cast %121 : vector<1x4x32xf32> to vector<4x32xf32>
    %123 = vector.extract_strided_slice %122 {offsets = [0, 0], sizes = [1, 32], strides = [1, 1]} : vector<4x32xf32> to vector<1x32xf32>
    %124 = vector.extract_strided_slice %122 {offsets = [1, 0], sizes = [1, 32], strides = [1, 1]} : vector<4x32xf32> to vector<1x32xf32>
    %125 = vector.extract_strided_slice %122 {offsets = [2, 0], sizes = [1, 32], strides = [1, 1]} : vector<4x32xf32> to vector<1x32xf32>
    %126 = vector.extract_strided_slice %122 {offsets = [3, 0], sizes = [1, 32], strides = [1, 1]} : vector<4x32xf32> to vector<1x32xf32>
    %cst_57 = arith.constant dense<0.000000e+00> : vector<128xf32>
    %127 = vector.multi_reduction <add>, %120, %cst_57 [1] : vector<128x32xf32> to vector<128xf32>
    %128 = vector.shape_cast %127 : vector<128xf32> to vector<128x1xf32>
    %cst_58 = arith.constant 3.200000e+01 : f32
    %129 = vector.broadcast %cst_58 : f32 to vector<128x1xf32>
    %130 = arith.divf %128, %129 : vector<128x1xf32>
    %131 = vector.broadcast %130 : vector<128x1xf32> to vector<128x32xf32>
    %132 = arith.subf %120, %131 : vector<128x32xf32>
    %133 = arith.mulf %132, %132 : vector<128x32xf32>
    %cst_59 = arith.constant dense<0.000000e+00> : vector<128xf32>
    %134 = vector.multi_reduction <add>, %133, %cst_59 [1] : vector<128x32xf32> to vector<128xf32>
    %135 = vector.shape_cast %134 : vector<128xf32> to vector<128x1xf32>
    %cst_60 = arith.constant 3.200000e+01 : f32
    %136 = vector.broadcast %cst_60 : f32 to vector<128x1xf32>
    %137 = arith.divf %135, %136 : vector<128x1xf32>
    %138 = vector.broadcast %130 : vector<128x1xf32> to vector<128x32xf32>
    %139 = arith.subf %120, %138 : vector<128x32xf32>
    %cst_61 = arith.constant 9.99999997E-7 : f32
    %140 = vector.broadcast %cst_61 : f32 to vector<128x1xf32>
    %141 = arith.addf %137, %140 : vector<128x1xf32>
    %142 = math.rsqrt %141 : vector<128x1xf32>
    %143 = vector.broadcast %142 : vector<128x1xf32> to vector<128x32xf32>
    %144 = arith.mulf %139, %143 : vector<128x32xf32>
    %145 = vector.broadcast %123 : vector<1x32xf32> to vector<128x32xf32>
    %146 = arith.mulf %144, %145 : vector<128x32xf32>
    %147 = vector.broadcast %124 : vector<1x32xf32> to vector<128x32xf32>
    %148 = arith.addf %146, %147 : vector<128x32xf32>
    %c1_62 = arith.constant 1 : index
    %c0_63 = arith.constant 0 : index
    %c0_64 = arith.constant 0 : index
    %149 = vector.load %arg4[%c1_62, %c0_63, %c0_64] : memref<2x32x96xf32, #tpu.memory_space<vmem>>, vector<1x32x96xf32>
    %150 = vector.shape_cast %149 : vector<1x32x96xf32> to vector<32x96xf32>
    %cst_65 = arith.constant dense<0.000000e+00> : vector<128x96xf32>
    %151 = tpu.matmul %148, %150, %cst_65 {dimension_numbers = #tpu.dot_dimension_numbers<[1], [0], [0], [1], [0, 0, 1, 1], [], []>} : vector<128x32xf32>, vector<32x96xf32>, vector<128x96xf32> -> vector<128x96xf32>
    %c1_66 = arith.constant 1 : index
    %c0_67 = arith.constant 0 : index
    %c0_68 = arith.constant 0 : index
    %152 = vector.load %arg5[%c1_66, %c0_67, %c0_68] : memref<2x1x96xf32, #tpu.memory_space<vmem>>, vector<1x1x96xf32>
    %153 = vector.shape_cast %152 : vector<1x1x96xf32> to vector<1x96xf32>
    %154 = vector.broadcast %153 : vector<1x96xf32> to vector<128x96xf32>
    %155 = arith.addf %151, %154 : vector<128x96xf32>
    %156 = vector.extract_strided_slice %155 {offsets = [0, 0], sizes = [128, 32], strides = [1, 1]} : vector<128x96xf32> to vector<128x32xf32>
    %157 = vector.extract_strided_slice %155 {offsets = [0, 32], sizes = [128, 32], strides = [1, 1]} : vector<128x96xf32> to vector<128x32xf32>
    %158 = vector.extract_strided_slice %155 {offsets = [0, 64], sizes = [128, 32], strides = [1, 1]} : vector<128x96xf32> to vector<128x32xf32>
    %159 = vector.shape_cast %156 : vector<128x32xf32> to vector<8x16x32xf32>
    %160 = vector.shape_cast %157 : vector<128x32xf32> to vector<8x16x32xf32>
    %161 = vector.shape_cast %158 : vector<128x32xf32> to vector<8x16x32xf32>
    "tpu.trace_start"() <{level = 10 : i32, message = "bnd,bmd->bnm"}> : () -> ()
    %cst_69 = arith.constant dense<0.000000e+00> : vector<8x16x16xf32>
    %162 = tpu.matmul %159, %160, %cst_69 {dimension_numbers = #tpu.dot_dimension_numbers<[2], [2], [1], [1], [0, 0, 0, 1, 1, 1], [0], [0]>} : vector<8x16x32xf32>, vector<8x16x32xf32>, vector<8x16x16xf32> -> vector<8x16x16xf32>
    "tpu.trace_stop"() : () -> ()
    %cst_70 = arith.constant 0.176776692 : f32
    %163 = vector.broadcast %cst_70 : f32 to vector<8x16x16xf32>
    %164 = arith.mulf %162, %163 : vector<8x16x16xf32>
    %cst_71 = arith.constant dense<0xFF800000> : vector<8x16xf32>
    %165 = vector.multi_reduction <maximumf>, %164, %cst_71 [2] : vector<8x16x16xf32> to vector<8x16xf32>
    %166 = vector.shape_cast %165 : vector<8x16xf32> to vector<8x16x1xf32>
    %167 = vector.broadcast %166 : vector<8x16x1xf32> to vector<8x16x16xf32>
    %168 = arith.subf %164, %167 : vector<8x16x16xf32>
    %169 = math.exp %168 : vector<8x16x16xf32>
    %cst_72 = arith.constant dense<0.000000e+00> : vector<8x16xf32>
    %170 = vector.multi_reduction <add>, %169, %cst_72 [2] : vector<8x16x16xf32> to vector<8x16xf32>
    %171 = vector.shape_cast %170 : vector<8x16xf32> to vector<8x16x1xf32>
    %172 = tpu.reciprocal %171 : vector<8x16x1xf32> -> vector<8x16x1xf32>
    %173 = vector.broadcast %172 : vector<8x16x1xf32> to vector<8x16x16xf32>
    %174 = arith.mulf %169, %173 : vector<8x16x16xf32>
    "tpu.trace_start"() <{level = 10 : i32, message = "bnm,bmd->bnd"}> : () -> ()
    %cst_73 = arith.constant dense<0.000000e+00> : vector<8x16x32xf32>
    %175 = tpu.matmul %174, %161, %cst_73 {dimension_numbers = #tpu.dot_dimension_numbers<[2], [1], [1], [2], [0, 0, 0, 1, 1, 2], [0], [0]>} : vector<8x16x16xf32>, vector<8x16x32xf32>, vector<8x16x32xf32> -> vector<8x16x32xf32>
    "tpu.trace_stop"() : () -> ()
    %176 = arith.addf %175, %159 : vector<8x16x32xf32>
    %177 = vector.shape_cast %176 : vector<8x16x32xf32> to vector<128x32xf32>
    %c1_74 = arith.constant 1 : index
    %c0_75 = arith.constant 0 : index
    %c0_76 = arith.constant 0 : index
    %178 = vector.load %arg6[%c1_74, %c0_75, %c0_76] : memref<2x32x32xf32, #tpu.memory_space<vmem>>, vector<1x32x32xf32>
    %179 = vector.shape_cast %178 : vector<1x32x32xf32> to vector<32x32xf32>
    %cst_77 = arith.constant dense<0.000000e+00> : vector<128x32xf32>
    %180 = tpu.matmul %177, %179, %cst_77 {dimension_numbers = #tpu.dot_dimension_numbers<[1], [0], [0], [1], [0, 0, 1, 1], [], []>} : vector<128x32xf32>, vector<32x32xf32>, vector<128x32xf32> -> vector<128x32xf32>
    %c1_78 = arith.constant 1 : index
    %c0_79 = arith.constant 0 : index
    %c0_80 = arith.constant 0 : index
    %181 = vector.load %arg7[%c1_78, %c0_79, %c0_80] : memref<2x1x32xf32, #tpu.memory_space<vmem>>, vector<1x1x32xf32>
    %182 = vector.shape_cast %181 : vector<1x1x32xf32> to vector<1x32xf32>
    %183 = vector.broadcast %182 : vector<1x32xf32> to vector<128x32xf32>
    %184 = arith.addf %180, %183 : vector<128x32xf32>
    %185 = arith.addf %120, %184 : vector<128x32xf32>
    %cst_81 = arith.constant dense<0.000000e+00> : vector<128xf32>
    %186 = vector.multi_reduction <add>, %185, %cst_81 [1] : vector<128x32xf32> to vector<128xf32>
    %187 = vector.shape_cast %186 : vector<128xf32> to vector<128x1xf32>
    %cst_82 = arith.constant 3.200000e+01 : f32
    %188 = vector.broadcast %cst_82 : f32 to vector<128x1xf32>
    %189 = arith.divf %187, %188 : vector<128x1xf32>
    %190 = vector.broadcast %189 : vector<128x1xf32> to vector<128x32xf32>
    %191 = arith.subf %185, %190 : vector<128x32xf32>
    %192 = arith.mulf %191, %191 : vector<128x32xf32>
    %cst_83 = arith.constant dense<0.000000e+00> : vector<128xf32>
    %193 = vector.multi_reduction <add>, %192, %cst_83 [1] : vector<128x32xf32> to vector<128xf32>
    %194 = vector.shape_cast %193 : vector<128xf32> to vector<128x1xf32>
    %cst_84 = arith.constant 3.200000e+01 : f32
    %195 = vector.broadcast %cst_84 : f32 to vector<128x1xf32>
    %196 = arith.divf %194, %195 : vector<128x1xf32>
    %197 = vector.broadcast %189 : vector<128x1xf32> to vector<128x32xf32>
    %198 = arith.subf %185, %197 : vector<128x32xf32>
    %cst_85 = arith.constant 9.99999997E-7 : f32
    %199 = vector.broadcast %cst_85 : f32 to vector<128x1xf32>
    %200 = arith.addf %196, %199 : vector<128x1xf32>
    %201 = math.rsqrt %200 : vector<128x1xf32>
    %202 = vector.broadcast %201 : vector<128x1xf32> to vector<128x32xf32>
    %203 = arith.mulf %198, %202 : vector<128x32xf32>
    %204 = vector.broadcast %125 : vector<1x32xf32> to vector<128x32xf32>
    %205 = arith.mulf %203, %204 : vector<128x32xf32>
    %206 = vector.broadcast %126 : vector<1x32xf32> to vector<128x32xf32>
    %207 = arith.addf %205, %206 : vector<128x32xf32>
    %c1_86 = arith.constant 1 : index
    %c0_87 = arith.constant 0 : index
    %c0_88 = arith.constant 0 : index
    %208 = vector.load %arg8[%c1_86, %c0_87, %c0_88] : memref<2x32x128xf32, #tpu.memory_space<vmem>>, vector<1x32x128xf32>
    %209 = vector.shape_cast %208 : vector<1x32x128xf32> to vector<32x128xf32>
    %cst_89 = arith.constant dense<0.000000e+00> : vector<128x128xf32>
    %210 = tpu.matmul %207, %209, %cst_89 {dimension_numbers = #tpu.dot_dimension_numbers<[1], [0], [0], [1], [0, 0, 1, 1], [], []>} : vector<128x32xf32>, vector<32x128xf32>, vector<128x128xf32> -> vector<128x128xf32>
    %c1_90 = arith.constant 1 : index
    %c0_91 = arith.constant 0 : index
    %c0_92 = arith.constant 0 : index
    %211 = vector.load %arg9[%c1_90, %c0_91, %c0_92] : memref<2x1x128xf32, #tpu.memory_space<vmem>>, vector<1x1x128xf32>
    %212 = vector.shape_cast %211 : vector<1x1x128xf32> to vector<1x128xf32>
    %213 = vector.broadcast %212 : vector<1x128xf32> to vector<128x128xf32>
    %214 = arith.addf %210, %213 : vector<128x128xf32>
    %215 = arith.mulf %214, %214 : vector<128x128xf32>
    %216 = arith.mulf %214, %215 : vector<128x128xf32>
    %cst_93 = arith.constant 4.471500e-02 : f32
    %217 = vector.broadcast %cst_93 : f32 to vector<128x128xf32>
    %218 = arith.mulf %217, %216 : vector<128x128xf32>
    %219 = arith.addf %214, %218 : vector<128x128xf32>
    %cst_94 = arith.constant 0.797884583 : f32
    %220 = vector.broadcast %cst_94 : f32 to vector<128x128xf32>
    %221 = arith.mulf %220, %219 : vector<128x128xf32>
    %222 = math.tanh %221 : vector<128x128xf32>
    %cst_95 = arith.constant 1.000000e+00 : f32
    %223 = vector.broadcast %cst_95 : f32 to vector<128x128xf32>
    %224 = arith.addf %223, %222 : vector<128x128xf32>
    %cst_96 = arith.constant 5.000000e-01 : f32
    %225 = vector.broadcast %cst_96 : f32 to vector<128x128xf32>
    %226 = arith.mulf %225, %224 : vector<128x128xf32>
    %227 = arith.mulf %214, %226 : vector<128x128xf32>
    %c1_97 = arith.constant 1 : index
    %c0_98 = arith.constant 0 : index
    %c0_99 = arith.constant 0 : index
    %228 = vector.load %arg10[%c1_97, %c0_98, %c0_99] : memref<2x128x32xf32, #tpu.memory_space<vmem>>, vector<1x128x32xf32>
    %229 = vector.shape_cast %228 : vector<1x128x32xf32> to vector<128x32xf32>
    %cst_100 = arith.constant dense<0.000000e+00> : vector<128x32xf32>
    %230 = tpu.matmul %227, %229, %cst_100 {dimension_numbers = #tpu.dot_dimension_numbers<[1], [0], [0], [1], [0, 0, 1, 1], [], []>} : vector<128x128xf32>, vector<128x32xf32>, vector<128x32xf32> -> vector<128x32xf32>
    %c1_101 = arith.constant 1 : index
    %c0_102 = arith.constant 0 : index
    %c0_103 = arith.constant 0 : index
    %231 = vector.load %arg11[%c1_101, %c0_102, %c0_103] : memref<2x1x32xf32, #tpu.memory_space<vmem>>, vector<1x1x32xf32>
    %232 = vector.shape_cast %231 : vector<1x1x32xf32> to vector<1x32xf32>
    %233 = vector.broadcast %232 : vector<1x32xf32> to vector<128x32xf32>
    %234 = arith.addf %230, %233 : vector<128x32xf32>
    %235 = arith.addf %185, %234 : vector<128x32xf32>
    %c0_104 = arith.constant 0 : index
    %c0_105 = arith.constant 0 : index
    %236 = vector.load %arg12[%c0_104, %c0_105] : memref<1x32xf32, #tpu.memory_space<vmem>>, vector<1x32xf32>
    %c0_106 = arith.constant 0 : index
    %c0_107 = arith.constant 0 : index
    %237 = vector.load %arg13[%c0_106, %c0_107] : memref<1x32xf32, #tpu.memory_space<vmem>>, vector<1x32xf32>
    %cst_108 = arith.constant dense<0.000000e+00> : vector<128xf32>
    %238 = vector.multi_reduction <add>, %235, %cst_108 [1] : vector<128x32xf32> to vector<128xf32>
    %239 = vector.shape_cast %238 : vector<128xf32> to vector<128x1xf32>
    %cst_109 = arith.constant 3.200000e+01 : f32
    %240 = vector.broadcast %cst_109 : f32 to vector<128x1xf32>
    %241 = arith.divf %239, %240 : vector<128x1xf32>
    %242 = vector.broadcast %241 : vector<128x1xf32> to vector<128x32xf32>
    %243 = arith.subf %235, %242 : vector<128x32xf32>
    %244 = arith.mulf %243, %243 : vector<128x32xf32>
    %cst_110 = arith.constant dense<0.000000e+00> : vector<128xf32>
    %245 = vector.multi_reduction <add>, %244, %cst_110 [1] : vector<128x32xf32> to vector<128xf32>
    %246 = vector.shape_cast %245 : vector<128xf32> to vector<128x1xf32>
    %cst_111 = arith.constant 3.200000e+01 : f32
    %247 = vector.broadcast %cst_111 : f32 to vector<128x1xf32>
    %248 = arith.divf %246, %247 : vector<128x1xf32>
    %249 = vector.broadcast %241 : vector<128x1xf32> to vector<128x32xf32>
    %250 = arith.subf %235, %249 : vector<128x32xf32>
    %cst_112 = arith.constant 9.99999997E-7 : f32
    %251 = vector.broadcast %cst_112 : f32 to vector<128x1xf32>
    %252 = arith.addf %248, %251 : vector<128x1xf32>
    %253 = math.rsqrt %252 : vector<128x1xf32>
    %254 = vector.broadcast %253 : vector<128x1xf32> to vector<128x32xf32>
    %255 = arith.mulf %250, %254 : vector<128x32xf32>
    %256 = vector.broadcast %236 : vector<1x32xf32> to vector<128x32xf32>
    %257 = arith.mulf %255, %256 : vector<128x32xf32>
    %258 = vector.broadcast %237 : vector<1x32xf32> to vector<128x32xf32>
    %259 = arith.addf %257, %258 : vector<128x32xf32>
    %260 = vector.shape_cast %259 : vector<128x32xf32> to vector<2x64x32xf32>
    %cst_113 = arith.constant dense<0.000000e+00> : vector<2x32xf32>
    %261 = vector.multi_reduction <add>, %260, %cst_113 [1] : vector<2x64x32xf32> to vector<2x32xf32>
    %cst_114 = arith.constant 1.562500e-02 : f32
    %262 = vector.broadcast %cst_114 : f32 to vector<2x32xf32>
    %263 = arith.mulf %261, %262 : vector<2x32xf32>
    %c0_115 = arith.constant 0 : index
    %c0_116 = arith.constant 0 : index
    %264 = vector.load %arg14[%c0_115, %c0_116] : memref<2x32xf32, #tpu.memory_space<vmem>>, vector<2x32xf32>
    tpu.vector_store %arg14[%c0_115, %c0_116], %263 {strides = array<i32>} : memref<2x32xf32, #tpu.memory_space<vmem>>, vector<2x32xf32>,
    return
  }
}

</mosaic_0001>

<llo_original>
// kernel: tpu_custom_call.1
$region0: #{tpu_custom_call.1}
  #allocation0 [shape = 'u32[]', space=smem, size = 0x4, offset = 0x4, fixed_abs, tag = 'smem constant byte address 0x4 - core index']
  #allocation1 [shape = 'u32[144,128]{1,0:T(1,128)}', space=vmem, size = 0x12000, scoped, tag = 'internal scratch']
  %s0 = inlined_call_operand.vmem [shape: f32[128,48], index: 0, kind: input, shape index: {}]
  %s1 = inlined_call_operand.vmem [shape: f32[48,32], index: 1, kind: input, shape index: {}]
  %s2 = inlined_call_operand.vmem [shape: f32[1,32], index: 2, kind: input, shape index: {}]
  %s3 = inlined_call_operand.vmem [shape: f32[2,4,32], index: 3, kind: input, shape index: {}]
  %s4 = inlined_call_operand.vmem [shape: f32[2,32,96], index: 4, kind: input, shape index: {}]
  %s5 = inlined_call_operand.vmem [shape: f32[2,1,96], index: 5, kind: input, shape index: {}]
  %s6 = inlined_call_operand.vmem [shape: f32[2,32,32], index: 6, kind: input, shape index: {}]
  %s7 = inlined_call_operand.vmem [shape: f32[2,1,32], index: 7, kind: input, shape index: {}]
  %s8 = inlined_call_operand.vmem [shape: f32[2,32,128], index: 8, kind: input, shape index: {}]
  %s9 = inlined_call_operand.vmem [shape: f32[2,1,128], index: 9, kind: input, shape index: {}]
  %s10 = inlined_call_operand.vmem [shape: f32[2,128,32], index: 10, kind: input, shape index: {}]
  %s11 = inlined_call_operand.vmem [shape: f32[2,1,32], index: 11, kind: input, shape index: {}]
  %s12 = inlined_call_operand.vmem [shape: f32[1,32], index: 12, kind: input, shape index: {}]
  %s13 = inlined_call_operand.vmem [shape: f32[1,32], index: 13, kind: input, shape index: {}]
  %s14 = inlined_call_operand.hbm [shape: f32[2,32], index: 14, kind: output, shape index: {}]
  %s15 = sld [smem:[#allocation0]]
  $region66: #{tpu_custom_call.1} parent=0
    _
  %s17 = ssub.s32 1, %s15
  %s18 = scalar_select 0, %s17, %s15
  $region1: #{tpu_custom_call.1} parent=0
    #allocation2 [shape = 'u8[1024]{0}', space=vmem, size = 0x400, scoped, tag = 'output window, operand 0, single buffered']
    #allocation3 [shape = 's32[1]{0}', space=sflag, size = 0x4, scoped, tag = 'scoped memory for tpu_custom_call.1']
    %19 = vsyncpa [#allocation3], 0
    // Predicated region
    $region2: #{tpu_custom_call.1} parent=1 // pred_check
      _
    $region3: #{tpu_custom_call.1} parent=1 // pred_check_branch
      %21 = sbr.rel (0) target = $region5
    $region4: #{tpu_custom_call.1} parent=1 // pred_region
      _
    $region5: #{tpu_custom_call.1} parent=1 // pred_fallthru
      _
    // Predicated region
    $region6: #{tpu_custom_call.1} parent=1 // pred_check
      _
    $region7: #{tpu_custom_call.1} parent=1 // pred_check_branch
      %23 = sbr.rel (0) target = $region9
    $region8: #{tpu_custom_call.1} parent=1 // pred_region
      _
    $region9: #{tpu_custom_call.1} parent=1 // pred_fallthru
      _
    // Predicated region
    $region10: #{tpu_custom_call.1} parent=1 // pred_check
      _
    $region11: #{tpu_custom_call.1} parent=1 // pred_check_branch
      %25 = sbr.rel (0) target = $region13
    $region12: #{tpu_custom_call.1} parent=1 // pred_region
      _
    $region13: #{tpu_custom_call.1} parent=1 // pred_fallthru
      _
    // Predicated region
    $region14: #{tpu_custom_call.1} parent=1 // pred_check
      _
    $region15: #{tpu_custom_call.1} parent=1 // pred_check_branch
      %27 = sbr.rel (0) target = $region17
    $region16: #{tpu_custom_call.1} parent=1 // pred_region
      _
    $region17: #{tpu_custom_call.1} parent=1 // pred_fallthru
      _
    // Predicated region
    $region18: #{tpu_custom_call.1} parent=1 // pred_check
      _
    $region19: #{tpu_custom_call.1} parent=1 // pred_check_branch
      %29 = sbr.rel (0) target = $region21
    $region20: #{tpu_custom_call.1} parent=1 // pred_region
      _
    $region21: #{tpu_custom_call.1} parent=1 // pred_fallthru
      _
    // Predicated region
    $region22: #{tpu_custom_call.1} parent=1 // pred_check
      _
    $region23: #{tpu_custom_call.1} parent=1 // pred_check_branch
      %31 = sbr.rel (0) target = $region25
    $region24: #{tpu_custom_call.1} parent=1 // pred_region
      _
    $region25: #{tpu_custom_call.1} parent=1 // pred_fallthru
      _
    // Predicated region
    $region26: #{tpu_custom_call.1} parent=1 // pred_check
      _
    $region27: #{tpu_custom_call.1} parent=1 // pred_check_branch
      %33 = sbr.rel (0) target = $region29
    $region28: #{tpu_custom_call.1} parent=1 // pred_region
      _
    $region29: #{tpu_custom_call.1} parent=1 // pred_fallthru
      _
    // Predicated region
    $region30: #{tpu_custom_call.1} parent=1 // pred_check
      _
    $region31: #{tpu_custom_call.1} parent=1 // pred_check_branch
      %35 = sbr.rel (0) target = $region33
    $region32: #{tpu_custom_call.1} parent=1 // pred_region
      _
    $region33: #{tpu_custom_call.1} parent=1 // pred_fallthru
      _
    // Predicated region
    $region34: #{tpu_custom_call.1} parent=1 // pred_check
      _
    $region35: #{tpu_custom_call.1} parent=1 // pred_check_branch
      %37 = sbr.rel (0) target = $region37
    $region36: #{tpu_custom_call.1} parent=1 // pred_region
      _
    $region37: #{tpu_custom_call.1} parent=1 // pred_fallthru
      _
    // Predicated region
    $region38: #{tpu_custom_call.1} parent=1 // pred_check
      _
    $region39: #{tpu_custom_call.1} parent=1 // pred_check_branch
      %39 = sbr.rel (0) target = $region41
    $region40: #{tpu_custom_call.1} parent=1 // pred_region
      _
    $region41: #{tpu_custom_call.1} parent=1 // pred_fallthru
      _
    // Predicated region
    $region42: #{tpu_custom_call.1} parent=1 // pred_check
      _
    $region43: #{tpu_custom_call.1} parent=1 // pred_check_branch
      %41 = sbr.rel (0) target = $region45
    $region44: #{tpu_custom_call.1} parent=1 // pred_region
      _
    $region45: #{tpu_custom_call.1} parent=1 // pred_fallthru
      _
    // Predicated region
    $region46: #{tpu_custom_call.1} parent=1 // pred_check
      _
    $region47: #{tpu_custom_call.1} parent=1 // pred_check_branch
      %43 = sbr.rel (0) target = $region49
    $region48: #{tpu_custom_call.1} parent=1 // pred_region
      _
    $region49: #{tpu_custom_call.1} parent=1 // pred_fallthru
      _
    // Predicated region
    $region50: #{tpu_custom_call.1} parent=1 // pred_check
      _
    $region51: #{tpu_custom_call.1} parent=1 // pred_check_branch
      %45 = sbr.rel (0) target = $region53
    $region52: #{tpu_custom_call.1} parent=1 // pred_region
      _
    $region53: #{tpu_custom_call.1} parent=1 // pred_fallthru
      _
    // Predicated region
    $region54: #{tpu_custom_call.1} parent=1 // pred_check
      _
    $region55: #{tpu_custom_call.1} parent=1 // pred_check_branch
      %47 = sbr.rel (0) target = $region57
    $region56: #{tpu_custom_call.1} parent=1 // pred_region
      _
    $region57: #{tpu_custom_call.1} parent=1 // pred_fallthru
      _
    %v48 = vld [vmem:[%s0] sm:$0xff]
    %v49 = vld [vmem:[%s0 + $0x8] sm:$0xff]
    %v50 = vld [vmem:[%s0 + $0x10] sm:$0xff]
    %v51 = vld [vmem:[%s0 + $0x18] sm:$0xff]
    %v52 = vld [vmem:[%s0 + $0x20] sm:$0xff]
    %v53 = vld [vmem:[%s0 + $0x28] sm:$0xff]
    %v54 = vld [vmem:[%s0 + $0x30] sm:$0xff]
    %v55 = vld [vmem:[%s0 + $0x38] sm:$0xff]
    %v56 = vld [vmem:[%s0 + $0x40] sm:$0xff]
    %v57 = vld [vmem:[%s0 + $0x48] sm:$0xff]
    %v58 = vld [vmem:[%s0 + $0x50] sm:$0xff]
    %v59 = vld [vmem:[%s0 + $0x58] sm:$0xff]
    %v60 = vld [vmem:[%s0 + $0x60] sm:$0xff]
    %v61 = vld [vmem:[%s0 + $0x68] sm:$0xff]
    %v62 = vld [vmem:[%s0 + $0x70] sm:$0xff]
    %v63 = vld [vmem:[%s0 + $0x78] sm:$0xff]
    %v64 = vld [vmem:[%s1] sm:$0xff]
    %v65 = vld [vmem:[%s1 + $0x8] sm:$0xff]
    %v66 = vld [vmem:[%s1 + $0x10] sm:$0xff]
    %v67 = vld [vmem:[%s1 + $0x18] sm:$0xff]
    %v68 = vld [vmem:[%s1 + $0x20] sm:$0xff]
    %v69 = vld [vmem:[%s1 + $0x28] sm:$0xff]
    %v70 = vld [vmem:[%s2] sm:$0x1]
    %v72 = vlaneseq
    %v73 = vshrl.u32 %v72, 7
    %v74 = vsub.s32 0, %v73
    %v75 = vrot.slane %v70, %v74
    %vm77 = vcmask 392192
    %v79 = vsel %vm77, %v48, 0
    %v82 = vsel %vm77, %v49, 0
    %v85 = vsel %vm77, %v50, 0
    %v88 = vsel %vm77, %v51, 0
    %v91 = vsel %vm77, %v52, 0
    %v94 = vsel %vm77, %v53, 0
    %v97 = vsel %vm77, %v54, 0
    %v100 = vsel %vm77, %v55, 0
    %v103 = vsel %vm77, %v56, 0
    %v106 = vsel %vm77, %v57, 0
    %v109 = vsel %vm77, %v58, 0
    %v112 = vsel %vm77, %v59, 0
    %v115 = vsel %vm77, %v60, 0
    %v118 = vsel %vm77, %v61, 0
    %v121 = vsel %vm77, %v62, 0
    %v124 = vsel %vm77, %v63, 0
    %126 = vmatprep.subr.mxu0 0.0
    %127 = vmatpush1.msra.mxu0 %v64
    %128 = vmatprep.subr.mxu0 0.0
    %129 = vmatpush1.msra.mxu0 %v65
    %130 = vmatprep.subr.mxu0 0.0
    %131 = vmatpush1.msra.mxu0 %v66
    %132 = vmatprep.subr.mxu0 0.0
    %133 = vmatpush1.msra.mxu0 %v67
    %134 = vmatprep.subr.mxu0 0.0
    %135 = vmatpush1.msra.mxu0 %v68
    %136 = vmatprep.subr.mxu0 0.0
    %137 = vmatpush1.msra.mxu0 %v69
    %138 = vmatprep.subr.mxu0 0.0
    %139 = vmatpush1.msra.mxu0 0.0
    %140 = vmatprep.subr.mxu0 0.0
    %141 = vmatpush1.msra.mxu0 0.0
    %142 = vmatprep.subr.mxu0 0.0
    %143 = vmatpush1.msra.mxu0 0.0
    %144 = vmatprep.subr.mxu0 0.0
    %145 = vmatpush1.msra.mxu0 0.0
    %146 = vmatprep.subr.mxu0 0.0
    %147 = vmatpush1.msra.mxu0 0.0
    %148 = vmatprep.subr.mxu0 0.0
    %149 = vmatpush1.msra.mxu0 0.0
    %150 = vmatprep.subr.mxu0 0.0
    %151 = vmatpush1.msra.mxu0 0.0
    %152 = vmatprep.subr.mxu0 0.0
    %153 = vmatpush1.msra.mxu0 0.0
    %154 = vmatprep.subr.mxu0 0.0
    %155 = vmatpush1.msra.mxu0 0.0
    %156 = vmatprep.subr.mxu0 0.0
    %157 = vmatpush1.msra.mxu0 0.0
    %158 = vmatprep.subr.mxu0 0.0
    %159 = vmatpush1.msra.mxu0 0.0
    %160 = vmatprep.subr.mxu0 0.0
    %161 = vmatpush1.msra.mxu0 0.0
    %162 = vmatprep.subr.mxu0 0.0
    %163 = vmatpush1.msra.mxu0 0.0
    %164 = vmatprep.subr.mxu0 0.0
    %165 = vmatpush1.msra.mxu0 0.0
    %166 = vmatprep.subr.mxu0 0.0
    %167 = vmatpush1.msra.mxu0 0.0
    %168 = vmatprep.subr.mxu0 0.0
    %169 = vmatpush1.msra.mxu0 0.0
    %170 = vmatprep.subr.mxu0 0.0
    %171 = vmatpush1.msra.mxu0 0.0
    %172 = vmatprep.subr.mxu0 0.0
    %173 = vmatpush1.msra.mxu0 0.0
    %174 = vmatprep.subr.mxu0 0.0
    %175 = vmatpush1.msra.mxu0 0.0
    %176 = vmatprep.subr.mxu0 0.0
    %177 = vmatpush1.msra.mxu0 0.0
    %178 = vmatprep.subr.mxu0 0.0
    %179 = vmatpush1.msra.mxu0 0.0
    %180 = vmatprep.subr.mxu0 0.0
    %181 = vmatpush1.msra.mxu0 0.0
    %182 = vmatprep.subr.mxu0 0.0
    %183 = vmatpush1.msra.mxu0 0.0
    %184 = vmatprep.subr.mxu0 0.0
    %185 = vmatpush1.msra.mxu0 0.0
    %186 = vmatprep.subr.mxu0 0.0
    %187 = vmatpush1.msra.mxu0 0.0
    %188 = vmatprep.subr.mxu0 0.0
    %189 = vmatpush1.msra.mxu0 0.0
    %190 = vmatprep.mubr.f32.mxu0 0.0
    %191 = vmatmul.mubr.f32.gmra.mrb[0].mxu0 %v79
    %v192 = vpop.f32.mrb[0].mxu0
    %v193 = vadd.f32 %v75, %v192
    %v194 = vpop.f32.mrb[0].mxu0
    %195 = vmatprep.mubr.f32.mxu0 0.0
    %196 = vmatmul.mubr.f32.gmra.mrb[0].mxu0 %v82
    %v197 = vpop.f32.mrb[0].mxu0
    %v198 = vadd.f32 %v75, %v197
    %v199 = vpop.f32.mrb[0].mxu0
    %200 = vmatprep.mubr.f32.mxu0 0.0
    %201 = vmatmul.mubr.f32.gmra.mrb[0].mxu0 %v85
    %v202 = vpop.f32.mrb[0].mxu0
    %v203 = vadd.f32 %v75, %v202
    %v204 = vpop.f32.mrb[0].mxu0
    %205 = vmatprep.mubr.f32.mxu0 0.0
    %206 = vmatmul.mubr.f32.gmra.mrb[0].mxu0 %v88
    %v207 = vpop.f32.mrb[0].mxu0
    %v208 = vadd.f32 %v75, %v207
    %v209 = vpop.f32.mrb[0].mxu0
    %210 = vmatprep.mubr.f32.mxu0 0.0
    %211 = vmatmul.mubr.f32.gmra.mrb[0].mxu0 %v91
    %v212 = vpop.f32.mrb[0].mxu0
    %v213 = vadd.f32 %v75, %v212
    %v214 = vpop.f32.mrb[0].mxu0
    %215 = vmatprep.mubr.f32.mxu0 0.0
    %216 = vmatmul.mubr.f32.gmra.mrb[0].mxu0 %v94
    %v217 = vpop.f32.mrb[0].mxu0
    %v218 = vadd.f32 %v75, %v217
    %v219 = vpop.f32.mrb[0].mxu0
    %220 = vmatprep.mubr.f32.mxu0 0.0
    %221 = vmatmul.mubr.f32.gmra.mrb[0].mxu0 %v97
    %v222 = vpop.f32.mrb[0].mxu0
    %v223 = vadd.f32 %v75, %v222
    %v224 = vpop.f32.mrb[0].mxu0
    %225 = vmatprep.mubr.f32.mxu0 0.0
    %226 = vmatmul.mubr.f32.gmra.mrb[0].mxu0 %v100
    %v227 = vpop.f32.mrb[0].mxu0
    %v228 = vadd.f32 %v75, %v227
    %v229 = vpop.f32.mrb[0].mxu0
    %230 = vmatprep.mubr.f32.mxu0 0.0
    %231 = vmatmul.mubr.f32.gmra.mrb[0].mxu0 %v103
    %v232 = vpop.f32.mrb[0].mxu0
    %v233 = vadd.f32 %v75, %v232
    %v234 = vpop.f32.mrb[0].mxu0
    %235 = vmatprep.mubr.f32.mxu0 0.0
    %236 = vmatmul.mubr.f32.gmra.mrb[0].mxu0 %v106
    %v237 = vpop.f32.mrb[0].mxu0
    %v238 = vadd.f32 %v75, %v237
    %v239 = vpop.f32.mrb[0].mxu0
    %240 = vmatprep.mubr.f32.mxu0 0.0
    %241 = vmatmul.mubr.f32.gmra.mrb[0].mxu0 %v109
    %v242 = vpop.f32.mrb[0].mxu0
    %v243 = vadd.f32 %v75, %v242
    %v244 = vpop.f32.mrb[0].mxu0
    %245 = vmatprep.mubr.f32.mxu0 0.0
    %246 = vmatmul.mubr.f32.gmra.mrb[0].mxu0 %v112
    %v247 = vpop.f32.mrb[0].mxu0
    %v248 = vadd.f32 %v75, %v247
    %v249 = vpop.f32.mrb[0].mxu0
    %250 = vmatprep.mubr.f32.mxu0 0.0
    %251 = vmatmul.mubr.f32.gmra.mrb[0].mxu0 %v115
    %v252 = vpop.f32.mrb[0].mxu0
    %v253 = vadd.f32 %v75, %v252
    %v254 = vpop.f32.mrb[0].mxu0
    %255 = vmatprep.mubr.f32.mxu0 0.0
    %256 = vmatmul.mubr.f32.gmra.mrb[0].mxu0 %v118
    %v257 = vpop.f32.mrb[0].mxu0
    %v258 = vadd.f32 %v75, %v257
    %v259 = vpop.f32.mrb[0].mxu0
    %260 = vmatprep.mubr.f32.mxu0 0.0
    %261 = vmatmul.mubr.f32.gmra.mrb[0].mxu0 %v121
    %v262 = vpop.f32.mrb[0].mxu0
    %v263 = vadd.f32 %v75, %v262
    %v264 = vpop.f32.mrb[0].mxu0
    %265 = vmatprep.mubr.f32.mxu0 0.0
    %266 = vmatmul.mubr.f32.gmra.mrb[0].mxu0 %v124
    %v267 = vpop.f32.mrb[0].mxu0
    %v268 = vadd.f32 %v75, %v267
    %v269 = vpop.f32.mrb[0].mxu0
    %270 = vdwg.mxu0
    %v271 = vld [vmem:[%s3] sm:$0xf]
    %vm272 = vcmask 261120
    %v273 = vsel %vm272, %v193, 0.0
    %274 = vadd.xlane.f32.xlu0 %v273
    %v275 = vpop.xlane.xlu0 %274
    %v276 = vsel %vm272, %v198, 0.0
    %277 = vadd.xlane.f32.xlu0 %v276
    %v278 = vpop.xlane.xlu0 %277
    %v279 = vsel %vm272, %v203, 0.0
    %280 = vadd.xlane.f32.xlu0 %v279
    %v281 = vpop.xlane.xlu0 %280
    %v282 = vsel %vm272, %v208, 0.0
    %283 = vadd.xlane.f32.xlu0 %v282
    %v284 = vpop.xlane.xlu0 %283
    %v285 = vsel %vm272, %v213, 0.0
    %286 = vadd.xlane.f32.xlu0 %v285
    %v287 = vpop.xlane.xlu0 %286
    %v288 = vsel %vm272, %v218, 0.0
    %289 = vadd.xlane.f32.xlu0 %v288
    %v290 = vpop.xlane.xlu0 %289
    %v291 = vsel %vm272, %v223, 0.0
    %292 = vadd.xlane.f32.xlu0 %v291
    %v293 = vpop.xlane.xlu0 %292
    %v294 = vsel %vm272, %v228, 0.0
    %295 = vadd.xlane.f32.xlu0 %v294
    %v296 = vpop.xlane.xlu0 %295
    %v297 = vsel %vm272, %v233, 0.0
    %298 = vadd.xlane.f32.xlu0 %v297
    %v299 = vpop.xlane.xlu0 %298
    %v300 = vsel %vm272, %v238, 0.0
    %301 = vadd.xlane.f32.xlu0 %v300
    %v302 = vpop.xlane.xlu0 %301
    %v303 = vsel %vm272, %v243, 0.0
    %304 = vadd.xlane.f32.xlu0 %v303
    %v305 = vpop.xlane.xlu0 %304
    %v306 = vsel %vm272, %v248, 0.0
    %307 = vadd.xlane.f32.xlu0 %v306
    %v308 = vpop.xlane.xlu0 %307
    %v309 = vsel %vm272, %v253, 0.0
    %310 = vadd.xlane.f32.xlu0 %v309
    %v311 = vpop.xlane.xlu0 %310
    %v312 = vsel %vm272, %v258, 0.0
    %313 = vadd.xlane.f32.xlu0 %v312
    %v314 = vpop.xlane.xlu0 %313
    %v315 = vsel %vm272, %v263, 0.0
    %316 = vadd.xlane.f32.xlu0 %v315
    %v317 = vpop.xlane.xlu0 %316
    %v318 = vsel %vm272, %v268, 0.0
    %319 = vadd.xlane.f32.xlu0 %v318
    %v320 = vpop.xlane.xlu0 %319
    %v321 = vrcp.pop 32.0
    %v322 = vmul.f32 %v275, %v321
    %v323 = vmul.f32 %v278, %v321
    %v324 = vmul.f32 %v281, %v321
    %v325 = vmul.f32 %v284, %v321
    %v326 = vmul.f32 %v287, %v321
    %v327 = vmul.f32 %v290, %v321
    %v328 = vmul.f32 %v293, %v321
    %v329 = vmul.f32 %v296, %v321
    %v330 = vmul.f32 %v299, %v321
    %v331 = vmul.f32 %v302, %v321
    %v332 = vmul.f32 %v305, %v321
    %v333 = vmul.f32 %v308, %v321
    %v334 = vmul.f32 %v311, %v321
    %v335 = vmul.f32 %v314, %v321
    %v336 = vmul.f32 %v317, %v321
    %v337 = vmul.f32 %v320, %v321
    %v338 = vsub.f32 %v193, %v322
    %v339 = vsub.f32 %v198, %v323
    %v340 = vsub.f32 %v203, %v324
    %v341 = vsub.f32 %v208, %v325
    %v342 = vsub.f32 %v213, %v326
    %v343 = vsub.f32 %v218, %v327
    %v344 = vsub.f32 %v223, %v328
    %v345 = vsub.f32 %v228, %v329
    %v346 = vsub.f32 %v233, %v330
    %v347 = vsub.f32 %v238, %v331
    %v348 = vsub.f32 %v243, %v332
    %v349 = vsub.f32 %v248, %v333
    %v350 = vsub.f32 %v253, %v334
    %v351 = vsub.f32 %v258, %v335
    %v352 = vsub.f32 %v263, %v336
    %v353 = vsub.f32 %v268, %v337
    %v354 = vmul.f32 %v338, %v338
    %v355 = vmul.f32 %v339, %v339
    %v356 = vmul.f32 %v340, %v340
    %v357 = vmul.f32 %v341, %v341
    %v358 = vmul.f32 %v342, %v342
    %v359 = vmul.f32 %v343, %v343
    %v360 = vmul.f32 %v344, %v344
    %v361 = vmul.f32 %v345, %v345
    %v362 = vmul.f32 %v346, %v346
    %v363 = vmul.f32 %v347, %v347
    %v364 = vmul.f32 %v348, %v348
    %v365 = vmul.f32 %v349, %v349
    %v366 = vmul.f32 %v350, %v350
    %v367 = vmul.f32 %v351, %v351
    %v368 = vmul.f32 %v352, %v352
    %v369 = vmul.f32 %v353, %v353
    %v370 = vsel %vm272, %v354, 0.0
    %371 = vadd.xlane.f32.xlu0 %v370
    %v372 = vpop.xlane.xlu0 %371
    %v373 = vsel %vm272, %v355, 0.0
    %374 = vadd.xlane.f32.xlu0 %v373
    %v375 = vpop.xlane.xlu0 %374
    %v376 = vsel %vm272, %v356, 0.0
    %377 = vadd.xlane.f32.xlu0 %v376
    %v378 = vpop.xlane.xlu0 %377
    %v379 = vsel %vm272, %v357, 0.0
    %380 = vadd.xlane.f32.xlu0 %v379
    %v381 = vpop.xlane.xlu0 %380
    %v382 = vsel %vm272, %v358, 0.0
    %383 = vadd.xlane.f32.xlu0 %v382
    %v384 = vpop.xlane.xlu0 %383
    %v385 = vsel %vm272, %v359, 0.0
    %386 = vadd.xlane.f32.xlu0 %v385
    %v387 = vpop.xlane.xlu0 %386
    %v388 = vsel %vm272, %v360, 0.0
    %389 = vadd.xlane.f32.xlu0 %v388
    %v390 = vpop.xlane.xlu0 %389
    %v391 = vsel %vm272, %v361, 0.0
    %392 = vadd.xlane.f32.xlu0 %v391
    %v393 = vpop.xlane.xlu0 %392
    %v394 = vsel %vm272, %v362, 0.0
    %395 = vadd.xlane.f32.xlu0 %v394
    %v396 = vpop.xlane.xlu0 %395
    %v397 = vsel %vm272, %v363, 0.0
    %398 = vadd.xlane.f32.xlu0 %v397
    %v399 = vpop.xlane.xlu0 %398
    %v400 = vsel %vm272, %v364, 0.0
    %401 = vadd.xlane.f32.xlu0 %v400
    %v402 = vpop.xlane.xlu0 %401
    %v403 = vsel %vm272, %v365, 0.0
    %404 = vadd.xlane.f32.xlu0 %v403
    %v405 = vpop.xlane.xlu0 %404
    %v406 = vsel %vm272, %v366, 0.0
    %407 = vadd.xlane.f32.xlu0 %v406
    %v408 = vpop.xlane.xlu0 %407
    %v409 = vsel %vm272, %v367, 0.0
    %410 = vadd.xlane.f32.xlu0 %v409
    %v411 = vpop.xlane.xlu0 %410
    %v412 = vsel %vm272, %v368, 0.0
    %413 = vadd.xlane.f32.xlu0 %v412
    %v414 = vpop.xlane.xlu0 %413
    %v415 = vsel %vm272, %v369, 0.0
    %416 = vadd.xlane.f32.xlu0 %v415
    %v417 = vpop.xlane.xlu0 %416
    %v418 = vmul.f32 %v372, %v321
    %v419 = vmul.f32 %v375, %v321
    %v420 = vmul.f32 %v378, %v321
    %v421 = vmul.f32 %v381, %v321
    %v422 = vmul.f32 %v384, %v321
    %v423 = vmul.f32 %v387, %v321
    %v424 = vmul.f32 %v390, %v321
    %v425 = vmul.f32 %v393, %v321
    %v426 = vmul.f32 %v396, %v321
    %v427 = vmul.f32 %v399, %v321
    %v428 = vmul.f32 %v402, %v321
    %v429 = vmul.f32 %v405, %v321
    %v430 = vmul.f32 %v408, %v321
    %v431 = vmul.f32 %v411, %v321
    %v432 = vmul.f32 %v414, %v321
    %v433 = vmul.f32 %v417, %v321
    %v434 = vadd.f32 %v418, 1e-06
    %v435 = vadd.f32 %v419, 1e-06
    %v436 = vadd.f32 %v420, 1e-06
    %v437 = vadd.f32 %v421, 1e-06
    %v438 = vadd.f32 %v422, 1e-06
    %v439 = vadd.f32 %v423, 1e-06
    %v440 = vadd.f32 %v424, 1e-06
    %v441 = vadd.f32 %v425, 1e-06
    %v442 = vadd.f32 %v426, 1e-06
    %v443 = vadd.f32 %v427, 1e-06
    %v444 = vadd.f32 %v428, 1e-06
    %v445 = vadd.f32 %v429, 1e-06
    %v446 = vadd.f32 %v430, 1e-06
    %v447 = vadd.f32 %v431, 1e-06
    %v448 = vadd.f32 %v432, 1e-06
    %v449 = vadd.f32 %v433, 1e-06
    %v450 = vrsqrt.pop %v434
    %v451 = vrsqrt.pop %v435
    %v452 = vrsqrt.pop %v436
    %v453 = vrsqrt.pop %v437
    %v454 = vrsqrt.pop %v438
    %v455 = vrsqrt.pop %v439
    %v456 = vrsqrt.pop %v440
    %v457 = vrsqrt.pop %v441
    %v458 = vrsqrt.pop %v442
    %v459 = vrsqrt.pop %v443
    %v460 = vrsqrt.pop %v444
    %v461 = vrsqrt.pop %v445
    %v462 = vrsqrt.pop %v446
    %v463 = vrsqrt.pop %v447
    %v464 = vrsqrt.pop %v448
    %v465 = vrsqrt.pop %v449
    %v466 = vmul.f32 %v338, %v450
    %v467 = vmul.f32 %v339, %v451
    %v468 = vmul.f32 %v340, %v452
    %v469 = vmul.f32 %v341, %v453
    %v470 = vmul.f32 %v342, %v454
    %v471 = vmul.f32 %v343, %v455
    %v472 = vmul.f32 %v344, %v456
    %v473 = vmul.f32 %v345, %v457
    %v474 = vmul.f32 %v346, %v458
    %v475 = vmul.f32 %v347, %v459
    %v476 = vmul.f32 %v348, %v460
    %v477 = vmul.f32 %v349, %v461
    %v478 = vmul.f32 %v350, %v462
    %v479 = vmul.f32 %v351, %v463
    %v480 = vmul.f32 %v352, %v464
    %v481 = vmul.f32 %v353, %v465
    %v482 = vlaneseq
    %v483 = vshrl.u32 %v482, 7
    %v484 = vsub.s32 0, %v483
    %v485 = vrot.slane %v271, %v484
    %v486 = vmul.f32 %v466, %v485
    %v487 = vmul.f32 %v467, %v485
    %v488 = vmul.f32 %v468, %v485
    %v489 = vmul.f32 %v469, %v485
    %v490 = vmul.f32 %v470, %v485
    %v491 = vmul.f32 %v471, %v485
    %v492 = vmul.f32 %v472, %v485
    %v493 = vmul.f32 %v473, %v485
    %v494 = vmul.f32 %v474, %v485
    %v495 = vmul.f32 %v475, %v485
    %v496 = vmul.f32 %v476, %v485
    %v497 = vmul.f32 %v477, %v485
    %v498 = vmul.f32 %v478, %v485
    %v499 = vmul.f32 %v479, %v485
    %v500 = vmul.f32 %v480, %v485
    %v501 = vmul.f32 %v481, %v485
    %v502 = vlaneseq
    %v503 = vshrl.u32 %v502, 7
    %v504 = vsub.s32 1, %v503
    %v505 = vrot.slane %v271, %v504
    %v506 = vadd.f32 %v486, %v505
    %v507 = vadd.f32 %v487, %v505
    %v508 = vadd.f32 %v488, %v505
    %v509 = vadd.f32 %v489, %v505
    %v510 = vadd.f32 %v490, %v505
    %v511 = vadd.f32 %v491, %v505
    %v512 = vadd.f32 %v492, %v505
    %v513 = vadd.f32 %v493, %v505
    %v514 = vadd.f32 %v494, %v505
    %v515 = vadd.f32 %v495, %v505
    %v516 = vadd.f32 %v496, %v505
    %v517 = vadd.f32 %v497, %v505
    %v518 = vadd.f32 %v498, %v505
    %v519 = vadd.f32 %v499, %v505
    %v520 = vadd.f32 %v500, %v505
    %v521 = vadd.f32 %v501, %v505
    %v522 = vld [vmem:[%s4] sm:$0xff]
    %v523 = vld [vmem:[%s4 + $0x8] sm:$0xff]
    %v524 = vld [vmem:[%s4 + $0x10] sm:$0xff]
    %v525 = vld [vmem:[%s4 + $0x18] sm:$0xff]
    %v526 = vld [vmem:[%s5] sm:$0x1]
    %v528 = vlaneseq
    %v529 = vshrl.u32 %v528, 7
    %v530 = vsub.s32 0, %v529
    %v531 = vrot.slane %v526, %v530
    %v534 = vsel %vm272, %v506, 0
    %v537 = vsel %vm272, %v507, 0
    %v540 = vsel %vm272, %v508, 0
    %v543 = vsel %vm272, %v509, 0
    %v546 = vsel %vm272, %v510, 0
    %v549 = vsel %vm272, %v511, 0
    %v552 = vsel %vm272, %v512, 0
    %v555 = vsel %vm272, %v513, 0
    %v558 = vsel %vm272, %v514, 0
    %v561 = vsel %vm272, %v515, 0
    %v564 = vsel %vm272, %v516, 0
    %v567 = vsel %vm272, %v517, 0
    %v570 = vsel %vm272, %v518, 0
    %v573 = vsel %vm272, %v519, 0
    %v576 = vsel %vm272, %v520, 0
    %v579 = vsel %vm272, %v521, 0
    %581 = vmatprep.subr.mxu0 0.0
    %582 = vmatpush1.msra.mxu0 %v522
    %583 = vmatprep.subr.mxu0 0.0
    %584 = vmatpush1.msra.mxu0 %v523
    %585 = vmatprep.subr.mxu0 0.0
    %586 = vmatpush1.msra.mxu0 %v524
    %587 = vmatprep.subr.mxu0 0.0
    %588 = vmatpush1.msra.mxu0 %v525
    %589 = vmatprep.subr.mxu0 0.0
    %590 = vmatpush1.msra.mxu0 0.0
    %591 = vmatprep.subr.mxu0 0.0
    %592 = vmatpush1.msra.mxu0 0.0
    %593 = vmatprep.subr.mxu0 0.0
    %594 = vmatpush1.msra.mxu0 0.0
    %595 = vmatprep.subr.mxu0 0.0
    %596 = vmatpush1.msra.mxu0 0.0
    %597 = vmatprep.subr.mxu0 0.0
    %598 = vmatpush1.msra.mxu0 0.0
    %599 = vmatprep.subr.mxu0 0.0
    %600 = vmatpush1.msra.mxu0 0.0
    %601 = vmatprep.subr.mxu0 0.0
    %602 = vmatpush1.msra.mxu0 0.0
    %603 = vmatprep.subr.mxu0 0.0
    %604 = vmatpush1.msra.mxu0 0.0
    %605 = vmatprep.subr.mxu0 0.0
    %606 = vmatpush1.msra.mxu0 0.0
    %607 = vmatprep.subr.mxu0 0.0
    %608 = vmatpush1.msra.mxu0 0.0
    %609 = vmatprep.subr.mxu0 0.0
    %610 = vmatpush1.msra.mxu0 0.0
    %611 = vmatprep.subr.mxu0 0.0
    %612 = vmatpush1.msra.mxu0 0.0
    %613 = vmatprep.subr.mxu0 0.0
    %614 = vmatpush1.msra.mxu0 0.0
    %615 = vmatprep.subr.mxu0 0.0
    %616 = vmatpush1.msra.mxu0 0.0
    %617 = vmatprep.subr.mxu0 0.0
    %618 = vmatpush1.msra.mxu0 0.0
    %619 = vmatprep.subr.mxu0 0.0
    %620 = vmatpush1.msra.mxu0 0.0
    %621 = vmatprep.subr.mxu0 0.0
    %622 = vmatpush1.msra.mxu0 0.0
    %623 = vmatprep.subr.mxu0 0.0
    %624 = vmatpush1.msra.mxu0 0.0
    %625 = vmatprep.subr.mxu0 0.0
    %626 = vmatpush1.msra.mxu0 0.0
    %627 = vmatprep.subr.mxu0 0.0
    %628 = vmatpush1.msra.mxu0 0.0
    %629 = vmatprep.subr.mxu0 0.0
    %630 = vmatpush1.msra.mxu0 0.0
    %631 = vmatprep.subr.mxu0 0.0
    %632 = vmatpush1.msra.mxu0 0.0
    %633 = vmatprep.subr.mxu0 0.0
    %634 = vmatpush1.msra.mxu0 0.0
    %635 = vmatprep.subr.mxu0 0.0
    %636 = vmatpush1.msra.mxu0 0.0
    %637 = vmatprep.subr.mxu0 0.0
    %638 = vmatpush1.msra.mxu0 0.0
    %639 = vmatprep.subr.mxu0 0.0
    %640 = vmatpush1.msra.mxu0 0.0
    %641 = vmatprep.subr.mxu0 0.0
    %642 = vmatpush1.msra.mxu0 0.0
    %643 = vmatprep.subr.mxu0 0.0
    %644 = vmatpush1.msra.mxu0 0.0
    %645 = vmatprep.mubr.f32.mxu0 0.0
    %646 = vmatmul.mubr.f32.gmra.mrb[0].mxu0 %v534
    %v647 = vpop.f32.mrb[0].mxu0
    %v648 = vadd.f32 %v531, %v647
    %v649 = vpop.f32.mrb[0].mxu0
    %650 = vmatprep.mubr.f32.mxu0 0.0
    %651 = vmatmul.mubr.f32.gmra.mrb[0].mxu0 %v537
    %v652 = vpop.f32.mrb[0].mxu0
    %v653 = vadd.f32 %v531, %v652
    %v654 = vpop.f32.mrb[0].mxu0
    %655 = vmatprep.mubr.f32.mxu0 0.0
    %656 = vmatmul.mubr.f32.gmra.mrb[0].mxu0 %v540
    %v657 = vpop.f32.mrb[0].mxu0
    %v658 = vadd.f32 %v531, %v657
    %v659 = vpop.f32.mrb[0].mxu0
    %660 = vmatprep.mubr.f32.mxu0 0.0
    %661 = vmatmul.mubr.f32.gmra.mrb[0].mxu0 %v543
    %v662 = vpop.f32.mrb[0].mxu0
    %v663 = vadd.f32 %v531, %v662
    %v664 = vpop.f32.mrb[0].mxu0
    %665 = vmatprep.mubr.f32.mxu0 0.0
    %666 = vmatmul.mubr.f32.gmra.mrb[0].mxu0 %v546
    %v667 = vpop.f32.mrb[0].mxu0
    %v668 = vadd.f32 %v531, %v667
    %v669 = vpop.f32.mrb[0].mxu0
    %670 = vmatprep.mubr.f32.mxu0 0.0
    %671 = vmatmul.mubr.f32.gmra.mrb[0].mxu0 %v549
    %v672 = vpop.f32.mrb[0].mxu0
    %v673 = vadd.f32 %v531, %v672
    %v674 = vpop.f32.mrb[0].mxu0
    %675 = vmatprep.mubr.f32.mxu0 0.0
    %676 = vmatmul.mubr.f32.gmra.mrb[0].mxu0 %v552
    %v677 = vpop.f32.mrb[0].mxu0
    %v678 = vadd.f32 %v531, %v677
    %v679 = vpop.f32.mrb[0].mxu0
    %680 = vmatprep.mubr.f32.mxu0 0.0
    %681 = vmatmul.mubr.f32.gmra.mrb[0].mxu0 %v555
    %v682 = vpop.f32.mrb[0].mxu0
    %v683 = vadd.f32 %v531, %v682
    %v684 = vpop.f32.mrb[0].mxu0
    %685 = vmatprep.mubr.f32.mxu0 0.0
    %686 = vmatmul.mubr.f32.gmra.mrb[0].mxu0 %v558
    %v687 = vpop.f32.mrb[0].mxu0
    %v688 = vadd.f32 %v531, %v687
    %v689 = vpop.f32.mrb[0].mxu0
    %690 = vmatprep.mubr.f32.mxu0 0.0
    %691 = vmatmul.mubr.f32.gmra.mrb[0].mxu0 %v561
    %v692 = vpop.f32.mrb[0].mxu0
    %v693 = vadd.f32 %v531, %v692
    %v694 = vpop.f32.mrb[0].mxu0
    %695 = vmatprep.mubr.f32.mxu0 0.0
    %696 = vmatmul.mubr.f32.gmra.mrb[0].mxu0 %v564
    %v697 = vpop.f32.mrb[0].mxu0
    %v698 = vadd.f32 %v531, %v697
    %v699 = vpop.f32.mrb[0].mxu0
    %700 = vmatprep.mubr.f32.mxu0 0.0
    %701 = vmatmul.mubr.f32.gmra.mrb[0].mxu0 %v567
    %v702 = vpop.f32.mrb[0].mxu0
    %v703 = vadd.f32 %v531, %v702
    %v704 = vpop.f32.mrb[0].mxu0
    %705 = vmatprep.mubr.f32.mxu0 0.0
    %706 = vmatmul.mubr.f32.gmra.mrb[0].mxu0 %v570
    %v707 = vpop.f32.mrb[0].mxu0
    %v708 = vadd.f32 %v531, %v707
    %v709 = vpop.f32.mrb[0].mxu0
    %710 = vmatprep.mubr.f32.mxu0 0.0
    %711 = vmatmul.mubr.f32.gmra.mrb[0].mxu0 %v573
    %v712 = vpop.f32.mrb[0].mxu0
    %v713 = vadd.f32 %v531, %v712
    %v714 = vpop.f32.mrb[0].mxu0
    %715 = vmatprep.mubr.f32.mxu0 0.0
    %716 = vmatmul.mubr.f32.gmra.mrb[0].mxu0 %v576
    %v717 = vpop.f32.mrb[0].mxu0
    %v718 = vadd.f32 %v531, %v717
    %v719 = vpop.f32.mrb[0].mxu0
    %720 = vmatprep.mubr.f32.mxu0 0.0
    %721 = vmatmul.mubr.f32.gmra.mrb[0].mxu0 %v579
    %v722 = vpop.f32.mrb[0].mxu0
    %v723 = vadd.f32 %v531, %v722
    %v724 = vpop.f32.mrb[0].mxu0
    %725 = vdwg.mxu0
    %728 = vrot.lane.b32.xlu0 %v648, 96
    %v729 = vpop.permute.xlu0 %728
    %730 = vrot.lane.b32.xlu0 %v653, 96
    %v731 = vpop.permute.xlu0 %730
    %v732 = vsel %vm272, %v648, 0
    %v734 = vsel %vm272, %v653, 0
    %v736 = vsel %vm272, %v729, 0
    %v738 = vsel %vm272, %v731, 0
    %740 = vmatprep.subr.mxu0 0.0
    %741 = vmatpush1.xpose.msra.mxu0 %v736
    %742 = vmatprep.subr.mxu0 0.0
    %743 = vmatpush1.xpose.msra.mxu0 %v738
    %744 = vmatprep.subr.mxu0 0.0
    %745 = vmatpush1.xpose.msra.mxu0 0.0
    %746 = vmatprep.subr.mxu0 0.0
    %747 = vmatpush1.xpose.msra.mxu0 0.0
    %748 = vmatprep.subr.mxu0 0.0
    %749 = vmatpush1.xpose.msra.mxu0 0.0
    %750 = vmatprep.subr.mxu0 0.0
    %751 = vmatpush1.xpose.msra.mxu0 0.0
    %752 = vmatprep.subr.mxu0 0.0
    %753 = vmatpush1.xpose.msra.mxu0 0.0
    %754 = vmatprep.subr.mxu0 0.0
    %755 = vmatpush1.xpose.msra.mxu0 0.0
    %756 = vmatprep.subr.mxu0 0.0
    %757 = vmatpush1.xpose.msra.mxu0 0.0
    %758 = vmatprep.subr.mxu0 0.0
    %759 = vmatpush1.xpose.msra.mxu0 0.0
    %760 = vmatprep.subr.mxu0 0.0
    %761 = vmatpush1.xpose.msra.mxu0 0.0
    %762 = vmatprep.subr.mxu0 0.0
    %763 = vmatpush1.xpose.msra.mxu0 0.0
    %764 = vmatprep.subr.mxu0 0.0
    %765 = vmatpush1.xpose.msra.mxu0 0.0
    %766 = vmatprep.subr.mxu0 0.0
    %767 = vmatpush1.xpose.msra.mxu0 0.0
    %768 = vmatprep.subr.mxu0 0.0
    %769 = vmatpush1.xpose.msra.mxu0 0.0
    %770 = vmatprep.subr.mxu0 0.0
    %771 = vmatpush1.xpose.msra.mxu0 0.0
    %772 = vmatprep.subr.mxu0 0.0
    %773 = vmatpush1.xpose.msra.mxu0 0.0
    %774 = vmatprep.subr.mxu0 0.0
    %775 = vmatpush1.xpose.msra.mxu0 0.0
    %776 = vmatprep.subr.mxu0 0.0
    %777 = vmatpush1.xpose.msra.mxu0 0.0
    %778 = vmatprep.subr.mxu0 0.0
    %779 = vmatpush1.xpose.msra.mxu0 0.0
    %780 = vmatprep.subr.mxu0 0.0
    %781 = vmatpush1.xpose.msra.mxu0 0.0
    %782 = vmatprep.subr.mxu0 0.0
    %783 = vmatpush1.xpose.msra.mxu0 0.0
    %784 = vmatprep.subr.mxu0 0.0
    %785 = vmatpush1.xpose.msra.mxu0 0.0
    %786 = vmatprep.subr.mxu0 0.0
    %787 = vmatpush1.xpose.msra.mxu0 0.0
    %788 = vmatprep.subr.mxu0 0.0
    %789 = vmatpush1.xpose.msra.mxu0 0.0
    %790 = vmatprep.subr.mxu0 0.0
    %791 = vmatpush1.xpose.msra.mxu0 0.0
    %792 = vmatprep.subr.mxu0 0.0
    %793 = vmatpush1.xpose.msra.mxu0 0.0
    %794 = vmatprep.subr.mxu0 0.0
    %795 = vmatpush1.xpose.msra.mxu0 0.0
    %796 = vmatprep.subr.mxu0 0.0
    %797 = vmatpush1.xpose.msra.mxu0 0.0
    %798 = vmatprep.subr.mxu0 0.0
    %799 = vmatpush1.xpose.msra.mxu0 0.0
    %800 = vmatprep.subr.mxu0 0.0
    %801 = vmatpush1.xpose.msra.mxu0 0.0
    %802 = vmatprep.subr.mxu0 0.0
    %803 = vmatpush1.xpose.msra.mxu0 0.0
    %804 = vmatprep.mubr.f32.mxu0 0.0
    %805 = vmatmul.mubr.f32.gmra.mrb[0].mxu0 %v732
    %v806 = vpop.f32.mrb[0].mxu0
    %v807 = vadd.f32 0.0, %v806
    %v808 = vpop.f32.mrb[0].mxu0
    %809 = vmatprep.mubr.f32.mxu0 0.0
    %810 = vmatmul.mubr.f32.gmra.mrb[0].mxu0 %v734
    %v811 = vpop.f32.mrb[0].mxu0
    %v812 = vadd.f32 0.0, %v811
    %v813 = vpop.f32.mrb[0].mxu0
    %814 = vdwg.mxu0
    %817 = vrot.lane.b32.xlu0 %v658, 96
    %v818 = vpop.permute.xlu0 %817
    %819 = vrot.lane.b32.xlu0 %v663, 96
    %v820 = vpop.permute.xlu0 %819
    %v821 = vsel %vm272, %v658, 0
    %v823 = vsel %vm272, %v663, 0
    %v825 = vsel %vm272, %v818, 0
    %v827 = vsel %vm272, %v820, 0
    %829 = vmatprep.subr.mxu0 0.0
    %830 = vmatpush1.xpose.msra.mxu0 %v825
    %831 = vmatprep.subr.mxu0 0.0
    %832 = vmatpush1.xpose.msra.mxu0 %v827
    %833 = vmatprep.subr.mxu0 0.0
    %834 = vmatpush1.xpose.msra.mxu0 0.0
    %835 = vmatprep.subr.mxu0 0.0
    %836 = vmatpush1.xpose.msra.mxu0 0.0
    %837 = vmatprep.subr.mxu0 0.0
    %838 = vmatpush1.xpose.msra.mxu0 0.0
    %839 = vmatprep.subr.mxu0 0.0
    %840 = vmatpush1.xpose.msra.mxu0 0.0
    %841 = vmatprep.subr.mxu0 0.0
    %842 = vmatpush1.xpose.msra.mxu0 0.0
    %843 = vmatprep.subr.mxu0 0.0
    %844 = vmatpush1.xpose.msra.mxu0 0.0
    %845 = vmatprep.subr.mxu0 0.0
    %846 = vmatpush1.xpose.msra.mxu0 0.0
    %847 = vmatprep.subr.mxu0 0.0
    %848 = vmatpush1.xpose.msra.mxu0 0.0
    %849 = vmatprep.subr.mxu0 0.0
    %850 = vmatpush1.xpose.msra.mxu0 0.0
    %851 = vmatprep.subr.mxu0 0.0
    %852 = vmatpush1.xpose.msra.mxu0 0.0
    %853 = vmatprep.subr.mxu0 0.0
    %854 = vmatpush1.xpose.msra.mxu0 0.0
    %855 = vmatprep.subr.mxu0 0.0
    %856 = vmatpush1.xpose.msra.mxu0 0.0
    %857 = vmatprep.subr.mxu0 0.0
    %858 = vmatpush1.xpose.msra.mxu0 0.0
    %859 = vmatprep.subr.mxu0 0.0
    %860 = vmatpush1.xpose.msra.mxu0 0.0
    %861 = vmatprep.subr.mxu0 0.0
    %862 = vmatpush1.xpose.msra.mxu0 0.0
    %863 = vmatprep.subr.mxu0 0.0
    %864 = vmatpush1.xpose.msra.mxu0 0.0
    %865 = vmatprep.subr.mxu0 0.0
    %866 = vmatpush1.xpose.msra.mxu0 0.0
    %867 = vmatprep.subr.mxu0 0.0
    %868 = vmatpush1.xpose.msra.mxu0 0.0
    %869 = vmatprep.subr.mxu0 0.0
    %870 = vmatpush1.xpose.msra.mxu0 0.0
    %871 = vmatprep.subr.mxu0 0.0
    %872 = vmatpush1.xpose.msra.mxu0 0.0
    %873 = vmatprep.subr.mxu0 0.0
    %874 = vmatpush1.xpose.msra.mxu0 0.0
    %875 = vmatprep.subr.mxu0 0.0
    %876 = vmatpush1.xpose.msra.mxu0 0.0
    %877 = vmatprep.subr.mxu0 0.0
    %878 = vmatpush1.xpose.msra.mxu0 0.0
    %879 = vmatprep.subr.mxu0 0.0
    %880 = vmatpush1.xpose.msra.mxu0 0.0
    %881 = vmatprep.subr.mxu0 0.0
    %882 = vmatpush1.xpose.msra.mxu0 0.0
    %883 = vmatprep.subr.mxu0 0.0
    %884 = vmatpush1.xpose.msra.mxu0 0.0
    %885 = vmatprep.subr.mxu0 0.0
    %886 = vmatpush1.xpose.msra.mxu0 0.0
    %887 = vmatprep.subr.mxu0 0.0
    %888 = vmatpush1.xpose.msra.mxu0 0.0
    %889 = vmatprep.subr.mxu0 0.0
    %890 = vmatpush1.xpose.msra.mxu0 0.0
    %891 = vmatprep.subr.mxu0 0.0
    %892 = vmatpush1.xpose.msra.mxu0 0.0
    %893 = vmatprep.mubr.f32.mxu0 0.0
    %894 = vmatmul.mubr.f32.gmra.mrb[0].mxu0 %v821
    %v895 = vpop.f32.mrb[0].mxu0
    %v896 = vadd.f32 0.0, %v895
    %v897 = vpop.f32.mrb[0].mxu0
    %898 = vmatprep.mubr.f32.mxu0 0.0
    %899 = vmatmul.mubr.f32.gmra.mrb[0].mxu0 %v823
    %v900 = vpop.f32.mrb[0].mxu0
    %v901 = vadd.f32 0.0, %v900
    %v902 = vpop.f32.mrb[0].mxu0
    %903 = vdwg.mxu0
    %906 = vrot.lane.b32.xlu0 %v668, 96
    %v907 = vpop.permute.xlu0 %906
    %908 = vrot.lane.b32.xlu0 %v673, 96
    %v909 = vpop.permute.xlu0 %908
    %v910 = vsel %vm272, %v668, 0
    %v912 = vsel %vm272, %v673, 0
    %v914 = vsel %vm272, %v907, 0
    %v916 = vsel %vm272, %v909, 0
    %918 = vmatprep.subr.mxu0 0.0
    %919 = vmatpush1.xpose.msra.mxu0 %v914
    %920 = vmatprep.subr.mxu0 0.0
    %921 = vmatpush1.xpose.msra.mxu0 %v916
    %922 = vmatprep.subr.mxu0 0.0
    %923 = vmatpush1.xpose.msra.mxu0 0.0
    %924 = vmatprep.subr.mxu0 0.0
    %925 = vmatpush1.xpose.msra.mxu0 0.0
    %926 = vmatprep.subr.mxu0 0.0
    %927 = vmatpush1.xpose.msra.mxu0 0.0
    %928 = vmatprep.subr.mxu0 0.0
    %929 = vmatpush1.xpose.msra.mxu0 0.0
    %930 = vmatprep.subr.mxu0 0.0
    %931 = vmatpush1.xpose.msra.mxu0 0.0
    %932 = vmatprep.subr.mxu0 0.0
    %933 = vmatpush1.xpose.msra.mxu0 0.0
    %934 = vmatprep.subr.mxu0 0.0
    %935 = vmatpush1.xpose.msra.mxu0 0.0
    %936 = vmatprep.subr.mxu0 0.0
    %937 = vmatpush1.xpose.msra.mxu0 0.0
    %938 = vmatprep.subr.mxu0 0.0
    %939 = vmatpush1.xpose.msra.mxu0 0.0
    %940 = vmatprep.subr.mxu0 0.0
    %941 = vmatpush1.xpose.msra.mxu0 0.0
    %942 = vmatprep.subr.mxu0 0.0
    %943 = vmatpush1.xpose.msra.mxu0 0.0
    %944 = vmatprep.subr.mxu0 0.0
    %945 = vmatpush1.xpose.msra.mxu0 0.0
    %946 = vmatprep.subr.mxu0 0.0
    %947 = vmatpush1.xpose.msra.mxu0 0.0
    %948 = vmatprep.subr.mxu0 0.0
    %949 = vmatpush1.xpose.msra.mxu0 0.0
    %950 = vmatprep.subr.mxu0 0.0
    %951 = vmatpush1.xpose.msra.mxu0 0.0
    %952 = vmatprep.subr.mxu0 0.0
    %953 = vmatpush1.xpose.msra.mxu0 0.0
    %954 = vmatprep.subr.mxu0 0.0
    %955 = vmatpush1.xpose.msra.mxu0 0.0
    %956 = vmatprep.subr.mxu0 0.0
    %957 = vmatpush1.xpose.msra.mxu0 0.0
    %958 = vmatprep.subr.mxu0 0.0
    %959 = vmatpush1.xpose.msra.mxu0 0.0
    %960 = vmatprep.subr.mxu0 0.0
    %961 = vmatpush1.xpose.msra.mxu0 0.0
    %962 = vmatprep.subr.mxu0 0.0
    %963 = vmatpush1.xpose.msra.mxu0 0.0
    %964 = vmatprep.subr.mxu0 0.0
    %965 = vmatpush1.xpose.msra.mxu0 0.0
    %966 = vmatprep.subr.mxu0 0.0
    %967 = vmatpush1.xpose.msra.mxu0 0.0
    %968 = vmatprep.subr.mxu0 0.0
    %969 = vmatpush1.xpose.msra.mxu0 0.0
    %970 = vmatprep.subr.mxu0 0.0
    %971 = vmatpush1.xpose.msra.mxu0 0.0
    %972 = vmatprep.subr.mxu0 0.0
    %973 = vmatpush1.xpose.msra.mxu0 0.0
    %974 = vmatprep.subr.mxu0 0.0
    %975 = vmatpush1.xpose.msra.mxu0 0.0
    %976 = vmatprep.subr.mxu0 0.0
    %977 = vmatpush1.xpose.msra.mxu0 0.0
    %978 = vmatprep.subr.mxu0 0.0
    %979 = vmatpush1.xpose.msra.mxu0 0.0
    %980 = vmatprep.subr.mxu0 0.0
    %981 = vmatpush1.xpose.msra.mxu0 0.0
    %982 = vmatprep.mubr.f32.mxu0 0.0
    %983 = vmatmul.mubr.f32.gmra.mrb[0].mxu0 %v910
    %v984 = vpop.f32.mrb[0].mxu0
    %v985 = vadd.f32 0.0, %v984
    %v986 = vpop.f32.mrb[0].mxu0
    %987 = vmatprep.mubr.f32.mxu0 0.0
    %988 = vmatmul.mubr.f32.gmra.mrb[0].mxu0 %v912
    %v989 = vpop.f32.mrb[0].mxu0
    %v990 = vadd.f32 0.0, %v989
    %v991 = vpop.f32.mrb[0].mxu0
    %992 = vdwg.mxu0
    %995 = vrot.lane.b32.xlu0 %v678, 96
    %v996 = vpop.permute.xlu0 %995
    %997 = vrot.lane.b32.xlu0 %v683, 96
    %v998 = vpop.permute.xlu0 %997
    %v999 = vsel %vm272, %v678, 0
    %v1001 = vsel %vm272, %v683, 0
    %v1003 = vsel %vm272, %v996, 0
    %v1005 = vsel %vm272, %v998, 0
    %1007 = vmatprep.subr.mxu0 0.0
    %1008 = vmatpush1.xpose.msra.mxu0 %v1003
    %1009 = vmatprep.subr.mxu0 0.0
    %1010 = vmatpush1.xpose.msra.mxu0 %v1005
    %1011 = vmatprep.subr.mxu0 0.0
    %1012 = vmatpush1.xpose.msra.mxu0 0.0
    %1013 = vmatprep.subr.mxu0 0.0
    %1014 = vmatpush1.xpose.msra.mxu0 0.0
    %1015 = vmatprep.subr.mxu0 0.0
    %1016 = vmatpush1.xpose.msra.mxu0 0.0
    %1017 = vmatprep.subr.mxu0 0.0
    %1018 = vmatpush1.xpose.msra.mxu0 0.0
    %1019 = vmatprep.subr.mxu0 0.0
    %1020 = vmatpush1.xpose.msra.mxu0 0.0
    %1021 = vmatprep.subr.mxu0 0.0
    %1022 = vmatpush1.xpose.msra.mxu0 0.0
    %1023 = vmatprep.subr.mxu0 0.0
    %1024 = vmatpush1.xpose.msra.mxu0 0.0
    %1025 = vmatprep.subr.mxu0 0.0
    %1026 = vmatpush1.xpose.msra.mxu0 0.0
    %1027 = vmatprep.subr.mxu0 0.0
    %1028 = vmatpush1.xpose.msra.mxu0 0.0
    %1029 = vmatprep.subr.mxu0 0.0
    %1030 = vmatpush1.xpose.msra.mxu0 0.0
    %1031 = vmatprep.subr.mxu0 0.0
    %1032 = vmatpush1.xpose.msra.mxu0 0.0
    %1033 = vmatprep.subr.mxu0 0.0
    %1034 = vmatpush1.xpose.msra.mxu0 0.0
    %1035 = vmatprep.subr.mxu0 0.0
    %1036 = vmatpush1.xpose.msra.mxu0 0.0
    %1037 = vmatprep.subr.mxu0 0.0
    %1038 = vmatpush1.xpose.msra.mxu0 0.0
    %1039 = vmatprep.subr.mxu0 0.0
    %1040 = vmatpush1.xpose.msra.mxu0 0.0
    %1041 = vmatprep.subr.mxu0 0.0
    %1042 = vmatpush1.xpose.msra.mxu0 0.0
    %1043 = vmatprep.subr.mxu0 0.0
    %1044 = vmatpush1.xpose.msra.mxu0 0.0
    %1045 = vmatprep.subr.mxu0 0.0
    %1046 = vmatpush1.xpose.msra.mxu0 0.0
    %1047 = vmatprep.subr.mxu0 0.0
    %1048 = vmatpush1.xpose.msra.mxu0 0.0
    %1049 = vmatprep.subr.mxu0 0.0
    %1050 = vmatpush1.xpose.msra.mxu0 0.0
    %1051 = vmatprep.subr.mxu0 0.0
    %1052 = vmatpush1.xpose.msra.mxu0 0.0
    %1053 = vmatprep.subr.mxu0 0.0
    %1054 = vmatpush1.xpose.msra.mxu0 0.0
    %1055 = vmatprep.subr.mxu0 0.0
    %1056 = vmatpush1.xpose.msra.mxu0 0.0
    %1057 = vmatprep.subr.mxu0 0.0
    %1058 = vmatpush1.xpose.msra.mxu0 0.0
    %1059 = vmatprep.subr.mxu0 0.0
    %1060 = vmatpush1.xpose.msra.mxu0 0.0
    %1061 = vmatprep.subr.mxu0 0.0
    %1062 = vmatpush1.xpose.msra.mxu0 0.0
    %1063 = vmatprep.subr.mxu0 0.0
    %1064 = vmatpush1.xpose.msra.mxu0 0.0
    %1065 = vmatprep.subr.mxu0 0.0
    %1066 = vmatpush1.xpose.msra.mxu0 0.0
    %1067 = vmatprep.subr.mxu0 0.0
    %1068 = vmatpush1.xpose.msra.mxu0 0.0
    %1069 = vmatprep.subr.mxu0 0.0
    %1070 = vmatpush1.xpose.msra.mxu0 0.0
    %1071 = vmatprep.mubr.f32.mxu0 0.0
    %1072 = vmatmul.mubr.f32.gmra.mrb[0].mxu0 %v999
    %v1073 = vpop.f32.mrb[0].mxu0
    %v1074 = vadd.f32 0.0, %v1073
    %v1075 = vpop.f32.mrb[0].mxu0
    %1076 = vmatprep.mubr.f32.mxu0 0.0
    %1077 = vmatmul.mubr.f32.gmra.mrb[0].mxu0 %v1001
    %v1078 = vpop.f32.mrb[0].mxu0
    %v1079 = vadd.f32 0.0, %v1078
    %v1080 = vpop.f32.mrb[0].mxu0
    %1081 = vdwg.mxu0
    %1084 = vrot.lane.b32.xlu0 %v688, 96
    %v1085 = vpop.permute.xlu0 %1084
    %1086 = vrot.lane.b32.xlu0 %v693, 96
    %v1087 = vpop.permute.xlu0 %1086
    %v1088 = vsel %vm272, %v688, 0
    %v1090 = vsel %vm272, %v693, 0
    %v1092 = vsel %vm272, %v1085, 0
    %v1094 = vsel %vm272, %v1087, 0
    %1096 = vmatprep.subr.mxu0 0.0
    %1097 = vmatpush1.xpose.msra.mxu0 %v1092
    %1098 = vmatprep.subr.mxu0 0.0
    %1099 = vmatpush1.xpose.msra.mxu0 %v1094
    %1100 = vmatprep.subr.mxu0 0.0
    %1101 = vmatpush1.xpose.msra.mxu0 0.0
    %1102 = vmatprep.subr.mxu0 0.0
    %1103 = vmatpush1.xpose.msra.mxu0 0.0
    %1104 = vmatprep.subr.mxu0 0.0
    %1105 = vmatpush1.xpose.msra.mxu0 0.0
    %1106 = vmatprep.subr.mxu0 0.0
    %1107 = vmatpush1.xpose.msra.mxu0 0.0
    %1108 = vmatprep.subr.mxu0 0.0
    %1109 = vmatpush1.xpose.msra.mxu0 0.0
    %1110 = vmatprep.subr.mxu0 0.0
    %1111 = vmatpush1.xpose.msra.mxu0 0.0
    %1112 = vmatprep.subr.mxu0 0.0
    %1113 = vmatpush1.xpose.msra.mxu0 0.0
    %1114 = vmatprep.subr.mxu0 0.0
    %1115 = vmatpush1.xpose.msra.mxu0 0.0
    %1116 = vmatprep.subr.mxu0 0.0
    %1117 = vmatpush1.xpose.msra.mxu0 0.0
    %1118 = vmatprep.subr.mxu0 0.0
    %1119 = vmatpush1.xpose.msra.mxu0 0.0
    %1120 = vmatprep.subr.mxu0 0.0
    %1121 = vmatpush1.xpose.msra.mxu0 0.0
    %1122 = vmatprep.subr.mxu0 0.0
    %1123 = vmatpush1.xpose.msra.mxu0 0.0
    %1124 = vmatprep.subr.mxu0 0.0
    %1125 = vmatpush1.xpose.msra.mxu0 0.0
    %1126 = vmatprep.subr.mxu0 0.0
    %1127 = vmatpush1.xpose.msra.mxu0 0.0
    %1128 = vmatprep.subr.mxu0 0.0
    %1129 = vmatpush1.xpose.msra.mxu0 0.0
    %1130 = vmatprep.subr.mxu0 0.0
    %1131 = vmatpush1.xpose.msra.mxu0 0.0
    %1132 = vmatprep.subr.mxu0 0.0
    %1133 = vmatpush1.xpose.msra.mxu0 0.0
    %1134 = vmatprep.subr.mxu0 0.0
    %1135 = vmatpush1.xpose.msra.mxu0 0.0
    %1136 = vmatprep.subr.mxu0 0.0
    %1137 = vmatpush1.xpose.msra.mxu0 0.0
    %1138 = vmatprep.subr.mxu0 0.0
    %1139 = vmatpush1.xpose.msra.mxu0 0.0
    %1140 = vmatprep.subr.mxu0 0.0
    %1141 = vmatpush1.xpose.msra.mxu0 0.0
    %1142 = vmatprep.subr.mxu0 0.0
    %1143 = vmatpush1.xpose.msra.mxu0 0.0
    %1144 = vmatprep.subr.mxu0 0.0
    %1145 = vmatpush1.xpose.msra.mxu0 0.0
    %1146 = vmatprep.subr.mxu0 0.0
    %1147 = vmatpush1.xpose.msra.mxu0 0.0
    %1148 = vmatprep.subr.mxu0 0.0
    %1149 = vmatpush1.xpose.msra.mxu0 0.0
    %1150 = vmatprep.subr.mxu0 0.0
    %1151 = vmatpush1.xpose.msra.mxu0 0.0
    %1152 = vmatprep.subr.mxu0 0.0
    %1153 = vmatpush1.xpose.msra.mxu0 0.0
    %1154 = vmatprep.subr.mxu0 0.0
    %1155 = vmatpush1.xpose.msra.mxu0 0.0
    %1156 = vmatprep.subr.mxu0 0.0
    %1157 = vmatpush1.xpose.msra.mxu0 0.0
    %1158 = vmatprep.subr.mxu0 0.0
    %1159 = vmatpush1.xpose.msra.mxu0 0.0
    %1160 = vmatprep.mubr.f32.mxu0 0.0
    %1161 = vmatmul.mubr.f32.gmra.mrb[0].mxu0 %v1088
    %v1162 = vpop.f32.mrb[0].mxu0
    %v1163 = vadd.f32 0.0, %v1162
    %v1164 = vpop.f32.mrb[0].mxu0
    %1165 = vmatprep.mubr.f32.mxu0 0.0
    %1166 = vmatmul.mubr.f32.gmra.mrb[0].mxu0 %v1090
    %v1167 = vpop.f32.mrb[0].mxu0
    %v1168 = vadd.f32 0.0, %v1167
    %v1169 = vpop.f32.mrb[0].mxu0
    %1170 = vdwg.mxu0
    %1173 = vrot.lane.b32.xlu0 %v698, 96
    %v1174 = vpop.permute.xlu0 %1173
    %1175 = vrot.lane.b32.xlu0 %v703, 96
    %v1176 = vpop.permute.xlu0 %1175
    %v1177 = vsel %vm272, %v698, 0
    %v1179 = vsel %vm272, %v703, 0
    %v1181 = vsel %vm272, %v1174, 0
    %v1183 = vsel %vm272, %v1176, 0
    %1185 = vmatprep.subr.mxu0 0.0
    %1186 = vmatpush1.xpose.msra.mxu0 %v1181
    %1187 = vmatprep.subr.mxu0 0.0
    %1188 = vmatpush1.xpose.msra.mxu0 %v1183
    %1189 = vmatprep.subr.mxu0 0.0
    %1190 = vmatpush1.xpose.msra.mxu0 0.0
    %1191 = vmatprep.subr.mxu0 0.0
    %1192 = vmatpush1.xpose.msra.mxu0 0.0
    %1193 = vmatprep.subr.mxu0 0.0
    %1194 = vmatpush1.xpose.msra.mxu0 0.0
    %1195 = vmatprep.subr.mxu0 0.0
    %1196 = vmatpush1.xpose.msra.mxu0 0.0
    %1197 = vmatprep.subr.mxu0 0.0
    %1198 = vmatpush1.xpose.msra.mxu0 0.0
    %1199 = vmatprep.subr.mxu0 0.0
    %1200 = vmatpush1.xpose.msra.mxu0 0.0
    %1201 = vmatprep.subr.mxu0 0.0
    %1202 = vmatpush1.xpose.msra.mxu0 0.0
    %1203 = vmatprep.subr.mxu0 0.0
    %1204 = vmatpush1.xpose.msra.mxu0 0.0
    %1205 = vmatprep.subr.mxu0 0.0
    %1206 = vmatpush1.xpose.msra.mxu0 0.0
    %1207 = vmatprep.subr.mxu0 0.0
    %1208 = vmatpush1.xpose.msra.mxu0 0.0
    %1209 = vmatprep.subr.mxu0 0.0
    %1210 = vmatpush1.xpose.msra.mxu0 0.0
    %1211 = vmatprep.subr.mxu0 0.0
    %1212 = vmatpush1.xpose.msra.mxu0 0.0
    %1213 = vmatprep.subr.mxu0 0.0
    %1214 = vmatpush1.xpose.msra.mxu0 0.0
    %1215 = vmatprep.subr.mxu0 0.0
    %1216 = vmatpush1.xpose.msra.mxu0 0.0
    %1217 = vmatprep.subr.mxu0 0.0
    %1218 = vmatpush1.xpose.msra.mxu0 0.0
    %1219 = vmatprep.subr.mxu0 0.0
    %1220 = vmatpush1.xpose.msra.mxu0 0.0
    %1221 = vmatprep.subr.mxu0 0.0
    %1222 = vmatpush1.xpose.msra.mxu0 0.0
    %1223 = vmatprep.subr.mxu0 0.0
    %1224 = vmatpush1.xpose.msra.mxu0 0.0
    %1225 = vmatprep.subr.mxu0 0.0
    %1226 = vmatpush1.xpose.msra.mxu0 0.0
    %1227 = vmatprep.subr.mxu0 0.0
    %1228 = vmatpush1.xpose.msra.mxu0 0.0
    %1229 = vmatprep.subr.mxu0 0.0
    %1230 = vmatpush1.xpose.msra.mxu0 0.0
    %1231 = vmatprep.subr.mxu0 0.0
    %1232 = vmatpush1.xpose.msra.mxu0 0.0
    %1233 = vmatprep.subr.mxu0 0.0
    %1234 = vmatpush1.xpose.msra.mxu0 0.0
    %1235 = vmatprep.subr.mxu0 0.0
    %1236 = vmatpush1.xpose.msra.mxu0 0.0
    %1237 = vmatprep.subr.mxu0 0.0
    %1238 = vmatpush1.xpose.msra.mxu0 0.0
    %1239 = vmatprep.subr.mxu0 0.0
    %1240 = vmatpush1.xpose.msra.mxu0 0.0
    %1241 = vmatprep.subr.mxu0 0.0
    %1242 = vmatpush1.xpose.msra.mxu0 0.0
    %1243 = vmatprep.subr.mxu0 0.0
    %1244 = vmatpush1.xpose.msra.mxu0 0.0
    %1245 = vmatprep.subr.mxu0 0.0
    %1246 = vmatpush1.xpose.msra.mxu0 0.0
    %1247 = vmatprep.subr.mxu0 0.0
    %1248 = vmatpush1.xpose.msra.mxu0 0.0
    %1249 = vmatprep.mubr.f32.mxu0 0.0
    %1250 = vmatmul.mubr.f32.gmra.mrb[0].mxu0 %v1177
    %v1251 = vpop.f32.mrb[0].mxu0
    %v1252 = vadd.f32 0.0, %v1251
    %v1253 = vpop.f32.mrb[0].mxu0
    %1254 = vmatprep.mubr.f32.mxu0 0.0
    %1255 = vmatmul.mubr.f32.gmra.mrb[0].mxu0 %v1179
    %v1256 = vpop.f32.mrb[0].mxu0
    %v1257 = vadd.f32 0.0, %v1256
    %v1258 = vpop.f32.mrb[0].mxu0
    %1259 = vdwg.mxu0
    %1262 = vrot.lane.b32.xlu0 %v708, 96
    %v1263 = vpop.permute.xlu0 %1262
    %1264 = vrot.lane.b32.xlu0 %v713, 96
    %v1265 = vpop.permute.xlu0 %1264
    %v1266 = vsel %vm272, %v708, 0
    %v1268 = vsel %vm272, %v713, 0
    %v1270 = vsel %vm272, %v1263, 0
    %v1272 = vsel %vm272, %v1265, 0
    %1274 = vmatprep.subr.mxu0 0.0
    %1275 = vmatpush1.xpose.msra.mxu0 %v1270
    %1276 = vmatprep.subr.mxu0 0.0
    %1277 = vmatpush1.xpose.msra.mxu0 %v1272
    %1278 = vmatprep.subr.mxu0 0.0
    %1279 = vmatpush1.xpose.msra.mxu0 0.0
    %1280 = vmatprep.subr.mxu0 0.0
    %1281 = vmatpush1.xpose.msra.mxu0 0.0
    %1282 = vmatprep.subr.mxu0 0.0
    %1283 = vmatpush1.xpose.msra.mxu0 0.0
    %1284 = vmatprep.subr.mxu0 0.0
    %1285 = vmatpush1.xpose.msra.mxu0 0.0
    %1286 = vmatprep.subr.mxu0 0.0
    %1287 = vmatpush1.xpose.msra.mxu0 0.0
    %1288 = vmatprep.subr.mxu0 0.0
    %1289 = vmatpush1.xpose.msra.mxu0 0.0
    %1290 = vmatprep.subr.mxu0 0.0
    %1291 = vmatpush1.xpose.msra.mxu0 0.0
    %1292 = vmatprep.subr.mxu0 0.0
    %1293 = vmatpush1.xpose.msra.mxu0 0.0
    %1294 = vmatprep.subr.mxu0 0.0
    %1295 = vmatpush1.xpose.msra.mxu0 0.0
    %1296 = vmatprep.subr.mxu0 0.0
    %1297 = vmatpush1.xpose.msra.mxu0 0.0
    %1298 = vmatprep.subr.mxu0 0.0
    %1299 = vmatpush1.xpose.msra.mxu0 0.0
    %1300 = vmatprep.subr.mxu0 0.0
    %1301 = vmatpush1.xpose.msra.mxu0 0.0
    %1302 = vmatprep.subr.mxu0 0.0
    %1303 = vmatpush1.xpose.msra.mxu0 0.0
    %1304 = vmatprep.subr.mxu0 0.0
    %1305 = vmatpush1.xpose.msra.mxu0 0.0
    %1306 = vmatprep.subr.mxu0 0.0
    %1307 = vmatpush1.xpose.msra.mxu0 0.0
    %1308 = vmatprep.subr.mxu0 0.0
    %1309 = vmatpush1.xpose.msra.mxu0 0.0
    %1310 = vmatprep.subr.mxu0 0.0
    %1311 = vmatpush1.xpose.msra.mxu0 0.0
    %1312 = vmatprep.subr.mxu0 0.0
    %1313 = vmatpush1.xpose.msra.mxu0 0.0
    %1314 = vmatprep.subr.mxu0 0.0
    %1315 = vmatpush1.xpose.msra.mxu0 0.0
    %1316 = vmatprep.subr.mxu0 0.0
    %1317 = vmatpush1.xpose.msra.mxu0 0.0
    %1318 = vmatprep.subr.mxu0 0.0
    %1319 = vmatpush1.xpose.msra.mxu0 0.0
    %1320 = vmatprep.subr.mxu0 0.0
    %1321 = vmatpush1.xpose.msra.mxu0 0.0
    %1322 = vmatprep.subr.mxu0 0.0
    %1323 = vmatpush1.xpose.msra.mxu0 0.0
    %1324 = vmatprep.subr.mxu0 0.0
    %1325 = vmatpush1.xpose.msra.mxu0 0.0
    %1326 = vmatprep.subr.mxu0 0.0
    %1327 = vmatpush1.xpose.msra.mxu0 0.0
    %1328 = vmatprep.subr.mxu0 0.0
    %1329 = vmatpush1.xpose.msra.mxu0 0.0
    %1330 = vmatprep.subr.mxu0 0.0
    %1331 = vmatpush1.xpose.msra.mxu0 0.0
    %1332 = vmatprep.subr.mxu0 0.0
    %1333 = vmatpush1.xpose.msra.mxu0 0.0
    %1334 = vmatprep.subr.mxu0 0.0
    %1335 = vmatpush1.xpose.msra.mxu0 0.0
    %1336 = vmatprep.subr.mxu0 0.0
    %1337 = vmatpush1.xpose.msra.mxu0 0.0
    %1338 = vmatprep.mubr.f32.mxu0 0.0
    %1339 = vmatmul.mubr.f32.gmra.mrb[0].mxu0 %v1266
    %v1340 = vpop.f32.mrb[0].mxu0
    %v1341 = vadd.f32 0.0, %v1340
    %v1342 = vpop.f32.mrb[0].mxu0
    %1343 = vmatprep.mubr.f32.mxu0 0.0
    %1344 = vmatmul.mubr.f32.gmra.mrb[0].mxu0 %v1268
    %v1345 = vpop.f32.mrb[0].mxu0
    %v1346 = vadd.f32 0.0, %v1345
    %v1347 = vpop.f32.mrb[0].mxu0
    %1348 = vdwg.mxu0
    %1351 = vrot.lane.b32.xlu0 %v718, 96
    %v1352 = vpop.permute.xlu0 %1351
    %1353 = vrot.lane.b32.xlu0 %v723, 96
    %v1354 = vpop.permute.xlu0 %1353
    %v1355 = vsel %vm272, %v718, 0
    %v1357 = vsel %vm272, %v723, 0
    %v1359 = vsel %vm272, %v1352, 0
    %v1361 = vsel %vm272, %v1354, 0
    %1363 = vmatprep.subr.mxu0 0.0
    %1364 = vmatpush1.xpose.msra.mxu0 %v1359
    %1365 = vmatprep.subr.mxu0 0.0
    %1366 = vmatpush1.xpose.msra.mxu0 %v1361
    %1367 = vmatprep.subr.mxu0 0.0
    %1368 = vmatpush1.xpose.msra.mxu0 0.0
    %1369 = vmatprep.subr.mxu0 0.0
    %1370 = vmatpush1.xpose.msra.mxu0 0.0
    %1371 = vmatprep.subr.mxu0 0.0
    %1372 = vmatpush1.xpose.msra.mxu0 0.0
    %1373 = vmatprep.subr.mxu0 0.0
    %1374 = vmatpush1.xpose.msra.mxu0 0.0
    %1375 = vmatprep.subr.mxu0 0.0
    %1376 = vmatpush1.xpose.msra.mxu0 0.0
    %1377 = vmatprep.subr.mxu0 0.0
    %1378 = vmatpush1.xpose.msra.mxu0 0.0
    %1379 = vmatprep.subr.mxu0 0.0
    %1380 = vmatpush1.xpose.msra.mxu0 0.0
    %1381 = vmatprep.subr.mxu0 0.0
    %1382 = vmatpush1.xpose.msra.mxu0 0.0
    %1383 = vmatprep.subr.mxu0 0.0
    %1384 = vmatpush1.xpose.msra.mxu0 0.0
    %1385 = vmatprep.subr.mxu0 0.0
    %1386 = vmatpush1.xpose.msra.mxu0 0.0
    %1387 = vmatprep.subr.mxu0 0.0
    %1388 = vmatpush1.xpose.msra.mxu0 0.0
    %1389 = vmatprep.subr.mxu0 0.0
    %1390 = vmatpush1.xpose.msra.mxu0 0.0
    %1391 = vmatprep.subr.mxu0 0.0
    %1392 = vmatpush1.xpose.msra.mxu0 0.0
    %1393 = vmatprep.subr.mxu0 0.0
    %1394 = vmatpush1.xpose.msra.mxu0 0.0
    %1395 = vmatprep.subr.mxu0 0.0
    %1396 = vmatpush1.xpose.msra.mxu0 0.0
    %1397 = vmatprep.subr.mxu0 0.0
    %1398 = vmatpush1.xpose.msra.mxu0 0.0
    %1399 = vmatprep.subr.mxu0 0.0
    %1400 = vmatpush1.xpose.msra.mxu0 0.0
    %1401 = vmatprep.subr.mxu0 0.0
    %1402 = vmatpush1.xpose.msra.mxu0 0.0
    %1403 = vmatprep.subr.mxu0 0.0
    %1404 = vmatpush1.xpose.msra.mxu0 0.0
    %1405 = vmatprep.subr.mxu0 0.0
    %1406 = vmatpush1.xpose.msra.mxu0 0.0
    %1407 = vmatprep.subr.mxu0 0.0
    %1408 = vmatpush1.xpose.msra.mxu0 0.0
    %1409 = vmatprep.subr.mxu0 0.0
    %1410 = vmatpush1.xpose.msra.mxu0 0.0
    %1411 = vmatprep.subr.mxu0 0.0
    %1412 = vmatpush1.xpose.msra.mxu0 0.0
    %1413 = vmatprep.subr.mxu0 0.0
    %1414 = vmatpush1.xpose.msra.mxu0 0.0
    %1415 = vmatprep.subr.mxu0 0.0
    %1416 = vmatpush1.xpose.msra.mxu0 0.0
    %1417 = vmatprep.subr.mxu0 0.0
    %1418 = vmatpush1.xpose.msra.mxu0 0.0
    %1419 = vmatprep.subr.mxu0 0.0
    %1420 = vmatpush1.xpose.msra.mxu0 0.0
    %1421 = vmatprep.subr.mxu0 0.0
    %1422 = vmatpush1.xpose.msra.mxu0 0.0
    %1423 = vmatprep.subr.mxu0 0.0
    %1424 = vmatpush1.xpose.msra.mxu0 0.0
    %1425 = vmatprep.subr.mxu0 0.0
    %1426 = vmatpush1.xpose.msra.mxu0 0.0
    %1427 = vmatprep.mubr.f32.mxu0 0.0
    %1428 = vmatmul.mubr.f32.gmra.mrb[0].mxu0 %v1355
    %v1429 = vpop.f32.mrb[0].mxu0
    %v1430 = vadd.f32 0.0, %v1429
    %v1431 = vpop.f32.mrb[0].mxu0
    %1432 = vmatprep.mubr.f32.mxu0 0.0
    %1433 = vmatmul.mubr.f32.gmra.mrb[0].mxu0 %v1357
    %v1434 = vpop.f32.mrb[0].mxu0
    %v1435 = vadd.f32 0.0, %v1434
    %v1436 = vpop.f32.mrb[0].mxu0
    %1437 = vdwg.mxu0
    %v1438 = vmul.f32 %v807, 0.17677669
    %v1439 = vmul.f32 %v812, 0.17677669
    %v1440 = vmul.f32 %v896, 0.17677669
    %v1441 = vmul.f32 %v901, 0.17677669
    %v1442 = vmul.f32 %v985, 0.17677669
    %v1443 = vmul.f32 %v990, 0.17677669
    %v1444 = vmul.f32 %v1074, 0.17677669
    %v1445 = vmul.f32 %v1079, 0.17677669
    %v1446 = vmul.f32 %v1163, 0.17677669
    %v1447 = vmul.f32 %v1168, 0.17677669
    %v1448 = vmul.f32 %v1252, 0.17677669
    %v1449 = vmul.f32 %v1257, 0.17677669
    %v1450 = vmul.f32 %v1341, 0.17677669
    %v1451 = vmul.f32 %v1346, 0.17677669
    %v1452 = vmul.f32 %v1430, 0.17677669
    %v1453 = vmul.f32 %v1435, 0.17677669
    %vm1454 = vcmask 130048
    %v1455 = vsel %vm1454, %v1438, -inf
    %1456 = vmax.xlane.f32.xlu0 %v1455
    %v1457 = vpop.xlane.xlu0 %1456
    %v1458 = vsel %vm1454, %v1439, -inf
    %1459 = vmax.xlane.f32.xlu0 %v1458
    %v1460 = vpop.xlane.xlu0 %1459
    %v1461 = vsel %vm1454, %v1440, -inf
    %1462 = vmax.xlane.f32.xlu0 %v1461
    %v1463 = vpop.xlane.xlu0 %1462
    %v1464 = vsel %vm1454, %v1441, -inf
    %1465 = vmax.xlane.f32.xlu0 %v1464
    %v1466 = vpop.xlane.xlu0 %1465
    %v1467 = vsel %vm1454, %v1442, -inf
    %1468 = vmax.xlane.f32.xlu0 %v1467
    %v1469 = vpop.xlane.xlu0 %1468
    %v1470 = vsel %vm1454, %v1443, -inf
    %1471 = vmax.xlane.f32.xlu0 %v1470
    %v1472 = vpop.xlane.xlu0 %1471
    %v1473 = vsel %vm1454, %v1444, -inf
    %1474 = vmax.xlane.f32.xlu0 %v1473
    %v1475 = vpop.xlane.xlu0 %1474
    %v1476 = vsel %vm1454, %v1445, -inf
    %1477 = vmax.xlane.f32.xlu0 %v1476
    %v1478 = vpop.xlane.xlu0 %1477
    %v1479 = vsel %vm1454, %v1446, -inf
    %1480 = vmax.xlane.f32.xlu0 %v1479
    %v1481 = vpop.xlane.xlu0 %1480
    %v1482 = vsel %vm1454, %v1447, -inf
    %1483 = vmax.xlane.f32.xlu0 %v1482
    %v1484 = vpop.xlane.xlu0 %1483
    %v1485 = vsel %vm1454, %v1448, -inf
    %1486 = vmax.xlane.f32.xlu0 %v1485
    %v1487 = vpop.xlane.xlu0 %1486
    %v1488 = vsel %vm1454, %v1449, -inf
    %1489 = vmax.xlane.f32.xlu0 %v1488
    %v1490 = vpop.xlane.xlu0 %1489
    %v1491 = vsel %vm1454, %v1450, -inf
    %1492 = vmax.xlane.f32.xlu0 %v1491
    %v1493 = vpop.xlane.xlu0 %1492
    %v1494 = vsel %vm1454, %v1451, -inf
    %1495 = vmax.xlane.f32.xlu0 %v1494
    %v1496 = vpop.xlane.xlu0 %1495
    %v1497 = vsel %vm1454, %v1452, -inf
    %1498 = vmax.xlane.f32.xlu0 %v1497
    %v1499 = vpop.xlane.xlu0 %1498
    %v1500 = vsel %vm1454, %v1453, -inf
    %1501 = vmax.xlane.f32.xlu0 %v1500
    %v1502 = vpop.xlane.xlu0 %1501
    %v1503 = vsub.f32 %v1438, %v1457
    %v1504 = vsub.f32 %v1439, %v1460
    %v1505 = vsub.f32 %v1440, %v1463
    %v1506 = vsub.f32 %v1441, %v1466
    %v1507 = vsub.f32 %v1442, %v1469
    %v1508 = vsub.f32 %v1443, %v1472
    %v1509 = vsub.f32 %v1444, %v1475
    %v1510 = vsub.f32 %v1445, %v1478
    %v1511 = vsub.f32 %v1446, %v1481
    %v1512 = vsub.f32 %v1447, %v1484
    %v1513 = vsub.f32 %v1448, %v1487
    %v1514 = vsub.f32 %v1449, %v1490
    %v1515 = vsub.f32 %v1450, %v1493
    %v1516 = vsub.f32 %v1451, %v1496
    %v1517 = vsub.f32 %v1452, %v1499
    %v1518 = vsub.f32 %v1453, %v1502
    %v1519 = vmul.f32 %v1503, 1.442695
    %v1520 = vpow.pop %v1519
    %v1521 = vmul.f32 %v1504, 1.442695
    %v1522 = vpow.pop %v1521
    %v1523 = vmul.f32 %v1505, 1.442695
    %v1524 = vpow.pop %v1523
    %v1525 = vmul.f32 %v1506, 1.442695
    %v1526 = vpow.pop %v1525
    %v1527 = vmul.f32 %v1507, 1.442695
    %v1528 = vpow.pop %v1527
    %v1529 = vmul.f32 %v1508, 1.442695
    %v1530 = vpow.pop %v1529
    %v1531 = vmul.f32 %v1509, 1.442695
    %v1532 = vpow.pop %v1531
    %v1533 = vmul.f32 %v1510, 1.442695
    %v1534 = vpow.pop %v1533
    %v1535 = vmul.f32 %v1511, 1.442695
    %v1536 = vpow.pop %v1535
    %v1537 = vmul.f32 %v1512, 1.442695
    %v1538 = vpow.pop %v1537
    %v1539 = vmul.f32 %v1513, 1.442695
    %v1540 = vpow.pop %v1539
    %v1541 = vmul.f32 %v1514, 1.442695
    %v1542 = vpow.pop %v1541
    %v1543 = vmul.f32 %v1515, 1.442695
    %v1544 = vpow.pop %v1543
    %v1545 = vmul.f32 %v1516, 1.442695
    %v1546 = vpow.pop %v1545
    %v1547 = vmul.f32 %v1517, 1.442695
    %v1548 = vpow.pop %v1547
    %v1549 = vmul.f32 %v1518, 1.442695
    %v1550 = vpow.pop %v1549
    %v1551 = vsel %vm1454, %v1520, 0.0
    %1552 = vadd.xlane.f32.xlu0 %v1551
    %v1553 = vpop.xlane.xlu0 %1552
    %v1554 = vsel %vm1454, %v1522, 0.0
    %1555 = vadd.xlane.f32.xlu0 %v1554
    %v1556 = vpop.xlane.xlu0 %1555
    %v1557 = vsel %vm1454, %v1524, 0.0
    %1558 = vadd.xlane.f32.xlu0 %v1557
    %v1559 = vpop.xlane.xlu0 %1558
    %v1560 = vsel %vm1454, %v1526, 0.0
    %1561 = vadd.xlane.f32.xlu0 %v1560
    %v1562 = vpop.xlane.xlu0 %1561
    %v1563 = vsel %vm1454, %v1528, 0.0
    %1564 = vadd.xlane.f32.xlu0 %v1563
    %v1565 = vpop.xlane.xlu0 %1564
    %v1566 = vsel %vm1454, %v1530, 0.0
    %1567 = vadd.xlane.f32.xlu0 %v1566
    %v1568 = vpop.xlane.xlu0 %1567
    %v1569 = vsel %vm1454, %v1532, 0.0
    %1570 = vadd.xlane.f32.xlu0 %v1569
    %v1571 = vpop.xlane.xlu0 %1570
    %v1572 = vsel %vm1454, %v1534, 0.0
    %1573 = vadd.xlane.f32.xlu0 %v1572
    %v1574 = vpop.xlane.xlu0 %1573
    %v1575 = vsel %vm1454, %v1536, 0.0
    %1576 = vadd.xlane.f32.xlu0 %v1575
    %v1577 = vpop.xlane.xlu0 %1576
    %v1578 = vsel %vm1454, %v1538, 0.0
    %1579 = vadd.xlane.f32.xlu0 %v1578
    %v1580 = vpop.xlane.xlu0 %1579
    %v1581 = vsel %vm1454, %v1540, 0.0
    %1582 = vadd.xlane.f32.xlu0 %v1581
    %v1583 = vpop.xlane.xlu0 %1582
    %v1584 = vsel %vm1454, %v1542, 0.0
    %1585 = vadd.xlane.f32.xlu0 %v1584
    %v1586 = vpop.xlane.xlu0 %1585
    %v1587 = vsel %vm1454, %v1544, 0.0
    %1588 = vadd.xlane.f32.xlu0 %v1587
    %v1589 = vpop.xlane.xlu0 %1588
    %v1590 = vsel %vm1454, %v1546, 0.0
    %1591 = vadd.xlane.f32.xlu0 %v1590
    %v1592 = vpop.xlane.xlu0 %1591
    %v1593 = vsel %vm1454, %v1548, 0.0
    %1594 = vadd.xlane.f32.xlu0 %v1593
    %v1595 = vpop.xlane.xlu0 %1594
    %v1596 = vsel %vm1454, %v1550, 0.0
    %1597 = vadd.xlane.f32.xlu0 %v1596
    %v1598 = vpop.xlane.xlu0 %1597
    %v1599 = vrcp.pop %v1553
    %v1600 = vrcp.pop %v1556
    %v1601 = vrcp.pop %v1559
    %v1602 = vrcp.pop %v1562
    %v1603 = vrcp.pop %v1565
    %v1604 = vrcp.pop %v1568
    %v1605 = vrcp.pop %v1571
    %v1606 = vrcp.pop %v1574
    %v1607 = vrcp.pop %v1577
    %v1608 = vrcp.pop %v1580
    %v1609 = vrcp.pop %v1583
    %v1610 = vrcp.pop %v1586
    %v1611 = vrcp.pop %v1589
    %v1612 = vrcp.pop %v1592
    %v1613 = vrcp.pop %v1595
    %v1614 = vrcp.pop %v1598
    %v1615 = vmul.f32 %v1520, %v1599
    %v1616 = vmul.f32 %v1522, %v1600
    %v1617 = vmul.f32 %v1524, %v1601
    %v1618 = vmul.f32 %v1526, %v1602
    %v1619 = vmul.f32 %v1528, %v1603
    %v1620 = vmul.f32 %v1530, %v1604
    %v1621 = vmul.f32 %v1532, %v1605
    %v1622 = vmul.f32 %v1534, %v1606
    %v1623 = vmul.f32 %v1536, %v1607
    %v1624 = vmul.f32 %v1538, %v1608
    %v1625 = vmul.f32 %v1540, %v1609
    %v1626 = vmul.f32 %v1542, %v1610
    %v1627 = vmul.f32 %v1544, %v1611
    %v1628 = vmul.f32 %v1546, %v1612
    %v1629 = vmul.f32 %v1548, %v1613
    %v1630 = vmul.f32 %v1550, %v1614
    %1631 = vrot.lane.b32.xlu0 %v648, 64
    %v1632 = vpop.permute.xlu0 %1631
    %1633 = vrot.lane.b32.xlu0 %v653, 64
    %v1634 = vpop.permute.xlu0 %1633
    %v1638 = vsel %vm1454, %v1615, 0
    %v1641 = vsel %vm1454, %v1616, 0
    %1643 = vmatprep.subr.mxu0 0.0
    %1644 = vmatpush1.msra.mxu0 %v1632
    %1645 = vmatprep.subr.mxu0 0.0
    %1646 = vmatpush1.msra.mxu0 %v1634
    %1647 = vmatprep.subr.mxu0 0.0
    %1648 = vmatpush1.msra.mxu0 0.0
    %1649 = vmatprep.subr.mxu0 0.0
    %1650 = vmatpush1.msra.mxu0 0.0
    %1651 = vmatprep.subr.mxu0 0.0
    %1652 = vmatpush1.msra.mxu0 0.0
    %1653 = vmatprep.subr.mxu0 0.0
    %1654 = vmatpush1.msra.mxu0 0.0
    %1655 = vmatprep.subr.mxu0 0.0
    %1656 = vmatpush1.msra.mxu0 0.0
    %1657 = vmatprep.subr.mxu0 0.0
    %1658 = vmatpush1.msra.mxu0 0.0
    %1659 = vmatprep.subr.mxu0 0.0
    %1660 = vmatpush1.msra.mxu0 0.0
    %1661 = vmatprep.subr.mxu0 0.0
    %1662 = vmatpush1.msra.mxu0 0.0
    %1663 = vmatprep.subr.mxu0 0.0
    %1664 = vmatpush1.msra.mxu0 0.0
    %1665 = vmatprep.subr.mxu0 0.0
    %1666 = vmatpush1.msra.mxu0 0.0
    %1667 = vmatprep.subr.mxu0 0.0
    %1668 = vmatpush1.msra.mxu0 0.0
    %1669 = vmatprep.subr.mxu0 0.0
    %1670 = vmatpush1.msra.mxu0 0.0
    %1671 = vmatprep.subr.mxu0 0.0
    %1672 = vmatpush1.msra.mxu0 0.0
    %1673 = vmatprep.subr.mxu0 0.0
    %1674 = vmatpush1.msra.mxu0 0.0
    %1675 = vmatprep.subr.mxu0 0.0
    %1676 = vmatpush1.msra.mxu0 0.0
    %1677 = vmatprep.subr.mxu0 0.0
    %1678 = vmatpush1.msra.mxu0 0.0
    %1679 = vmatprep.subr.mxu0 0.0
    %1680 = vmatpush1.msra.mxu0 0.0
    %1681 = vmatprep.subr.mxu0 0.0
    %1682 = vmatpush1.msra.mxu0 0.0
    %1683 = vmatprep.subr.mxu0 0.0
    %1684 = vmatpush1.msra.mxu0 0.0
    %1685 = vmatprep.subr.mxu0 0.0
    %1686 = vmatpush1.msra.mxu0 0.0
    %1687 = vmatprep.subr.mxu0 0.0
    %1688 = vmatpush1.msra.mxu0 0.0
    %1689 = vmatprep.subr.mxu0 0.0
    %1690 = vmatpush1.msra.mxu0 0.0
    %1691 = vmatprep.subr.mxu0 0.0
    %1692 = vmatpush1.msra.mxu0 0.0
    %1693 = vmatprep.subr.mxu0 0.0
    %1694 = vmatpush1.msra.mxu0 0.0
    %1695 = vmatprep.subr.mxu0 0.0
    %1696 = vmatpush1.msra.mxu0 0.0
    %1697 = vmatprep.subr.mxu0 0.0
    %1698 = vmatpush1.msra.mxu0 0.0
    %1699 = vmatprep.subr.mxu0 0.0
    %1700 = vmatpush1.msra.mxu0 0.0
    %1701 = vmatprep.subr.mxu0 0.0
    %1702 = vmatpush1.msra.mxu0 0.0
    %1703 = vmatprep.subr.mxu0 0.0
    %1704 = vmatpush1.msra.mxu0 0.0
    %1705 = vmatprep.subr.mxu0 0.0
    %1706 = vmatpush1.msra.mxu0 0.0
    %1707 = vmatprep.mubr.f32.mxu0 0.0
    %1708 = vmatmul.mubr.f32.gmra.mrb[0].mxu0 %v1638
    %v1709 = vpop.f32.mrb[0].mxu0
    %v1710 = vadd.f32 %v648, %v1709
    %v1711 = vpop.f32.mrb[0].mxu0
    %1712 = vmatprep.mubr.f32.mxu0 0.0
    %1713 = vmatmul.mubr.f32.gmra.mrb[0].mxu0 %v1641
    %v1714 = vpop.f32.mrb[0].mxu0
    %v1715 = vadd.f32 %v653, %v1714
    %v1716 = vpop.f32.mrb[0].mxu0
    %1717 = vdwg.mxu0
    %1718 = vrot.lane.b32.xlu0 %v658, 64
    %v1719 = vpop.permute.xlu0 %1718
    %1720 = vrot.lane.b32.xlu0 %v663, 64
    %v1721 = vpop.permute.xlu0 %1720
    %v1725 = vsel %vm1454, %v1617, 0
    %v1728 = vsel %vm1454, %v1618, 0
    %1730 = vmatprep.subr.mxu0 0.0
    %1731 = vmatpush1.msra.mxu0 %v1719
    %1732 = vmatprep.subr.mxu0 0.0
    %1733 = vmatpush1.msra.mxu0 %v1721
    %1734 = vmatprep.subr.mxu0 0.0
    %1735 = vmatpush1.msra.mxu0 0.0
    %1736 = vmatprep.subr.mxu0 0.0
    %1737 = vmatpush1.msra.mxu0 0.0
    %1738 = vmatprep.subr.mxu0 0.0
    %1739 = vmatpush1.msra.mxu0 0.0
    %1740 = vmatprep.subr.mxu0 0.0
    %1741 = vmatpush1.msra.mxu0 0.0
    %1742 = vmatprep.subr.mxu0 0.0
    %1743 = vmatpush1.msra.mxu0 0.0
    %1744 = vmatprep.subr.mxu0 0.0
    %1745 = vmatpush1.msra.mxu0 0.0
    %1746 = vmatprep.subr.mxu0 0.0
    %1747 = vmatpush1.msra.mxu0 0.0
    %1748 = vmatprep.subr.mxu0 0.0
    %1749 = vmatpush1.msra.mxu0 0.0
    %1750 = vmatprep.subr.mxu0 0.0
    %1751 = vmatpush1.msra.mxu0 0.0
    %1752 = vmatprep.subr.mxu0 0.0
    %1753 = vmatpush1.msra.mxu0 0.0
    %1754 = vmatprep.subr.mxu0 0.0
    %1755 = vmatpush1.msra.mxu0 0.0
    %1756 = vmatprep.subr.mxu0 0.0
    %1757 = vmatpush1.msra.mxu0 0.0
    %1758 = vmatprep.subr.mxu0 0.0
    %1759 = vmatpush1.msra.mxu0 0.0
    %1760 = vmatprep.subr.mxu0 0.0
    %1761 = vmatpush1.msra.mxu0 0.0
    %1762 = vmatprep.subr.mxu0 0.0
    %1763 = vmatpush1.msra.mxu0 0.0
    %1764 = vmatprep.subr.mxu0 0.0
    %1765 = vmatpush1.msra.mxu0 0.0
    %1766 = vmatprep.subr.mxu0 0.0
    %1767 = vmatpush1.msra.mxu0 0.0
    %1768 = vmatprep.subr.mxu0 0.0
    %1769 = vmatpush1.msra.mxu0 0.0
    %1770 = vmatprep.subr.mxu0 0.0
    %1771 = vmatpush1.msra.mxu0 0.0
    %1772 = vmatprep.subr.mxu0 0.0
    %1773 = vmatpush1.msra.mxu0 0.0
    %1774 = vmatprep.subr.mxu0 0.0
    %1775 = vmatpush1.msra.mxu0 0.0
    %1776 = vmatprep.subr.mxu0 0.0
    %1777 = vmatpush1.msra.mxu0 0.0
    %1778 = vmatprep.subr.mxu0 0.0
    %1779 = vmatpush1.msra.mxu0 0.0
    %1780 = vmatprep.subr.mxu0 0.0
    %1781 = vmatpush1.msra.mxu0 0.0
    %1782 = vmatprep.subr.mxu0 0.0
    %1783 = vmatpush1.msra.mxu0 0.0
    %1784 = vmatprep.subr.mxu0 0.0
    %1785 = vmatpush1.msra.mxu0 0.0
    %1786 = vmatprep.subr.mxu0 0.0
    %1787 = vmatpush1.msra.mxu0 0.0
    %1788 = vmatprep.subr.mxu0 0.0
    %1789 = vmatpush1.msra.mxu0 0.0
    %1790 = vmatprep.subr.mxu0 0.0
    %1791 = vmatpush1.msra.mxu0 0.0
    %1792 = vmatprep.subr.mxu0 0.0
    %1793 = vmatpush1.msra.mxu0 0.0
    %1794 = vmatprep.mubr.f32.mxu0 0.0
    %1795 = vmatmul.mubr.f32.gmra.mrb[0].mxu0 %v1725
    %v1796 = vpop.f32.mrb[0].mxu0
    %v1797 = vadd.f32 %v658, %v1796
    %v1798 = vpop.f32.mrb[0].mxu0
    %1799 = vmatprep.mubr.f32.mxu0 0.0
    %1800 = vmatmul.mubr.f32.gmra.mrb[0].mxu0 %v1728
    %v1801 = vpop.f32.mrb[0].mxu0
    %v1802 = vadd.f32 %v663, %v1801
    %v1803 = vpop.f32.mrb[0].mxu0
    %1804 = vdwg.mxu0
    %1805 = vrot.lane.b32.xlu0 %v668, 64
    %v1806 = vpop.permute.xlu0 %1805
    %1807 = vrot.lane.b32.xlu0 %v673, 64
    %v1808 = vpop.permute.xlu0 %1807
    %v1812 = vsel %vm1454, %v1619, 0
    %v1815 = vsel %vm1454, %v1620, 0
    %1817 = vmatprep.subr.mxu0 0.0
    %1818 = vmatpush1.msra.mxu0 %v1806
    %1819 = vmatprep.subr.mxu0 0.0
    %1820 = vmatpush1.msra.mxu0 %v1808
    %1821 = vmatprep.subr.mxu0 0.0
    %1822 = vmatpush1.msra.mxu0 0.0
    %1823 = vmatprep.subr.mxu0 0.0
    %1824 = vmatpush1.msra.mxu0 0.0
    %1825 = vmatprep.subr.mxu0 0.0
    %1826 = vmatpush1.msra.mxu0 0.0
    %1827 = vmatprep.subr.mxu0 0.0
    %1828 = vmatpush1.msra.mxu0 0.0
    %1829 = vmatprep.subr.mxu0 0.0
    %1830 = vmatpush1.msra.mxu0 0.0
    %1831 = vmatprep.subr.mxu0 0.0
    %1832 = vmatpush1.msra.mxu0 0.0
    %1833 = vmatprep.subr.mxu0 0.0
    %1834 = vmatpush1.msra.mxu0 0.0
    %1835 = vmatprep.subr.mxu0 0.0
    %1836 = vmatpush1.msra.mxu0 0.0
    %1837 = vmatprep.subr.mxu0 0.0
    %1838 = vmatpush1.msra.mxu0 0.0
    %1839 = vmatprep.subr.mxu0 0.0
    %1840 = vmatpush1.msra.mxu0 0.0
    %1841 = vmatprep.subr.mxu0 0.0
    %1842 = vmatpush1.msra.mxu0 0.0
    %1843 = vmatprep.subr.mxu0 0.0
    %1844 = vmatpush1.msra.mxu0 0.0
    %1845 = vmatprep.subr.mxu0 0.0
    %1846 = vmatpush1.msra.mxu0 0.0
    %1847 = vmatprep.subr.mxu0 0.0
    %1848 = vmatpush1.msra.mxu0 0.0
    %1849 = vmatprep.subr.mxu0 0.0
    %1850 = vmatpush1.msra.mxu0 0.0
    %1851 = vmatprep.subr.mxu0 0.0
    %1852 = vmatpush1.msra.mxu0 0.0
    %1853 = vmatprep.subr.mxu0 0.0
    %1854 = vmatpush1.msra.mxu0 0.0
    %1855 = vmatprep.subr.mxu0 0.0
    %1856 = vmatpush1.msra.mxu0 0.0
    %1857 = vmatprep.subr.mxu0 0.0
    %1858 = vmatpush1.msra.mxu0 0.0
    %1859 = vmatprep.subr.mxu0 0.0
    %1860 = vmatpush1.msra.mxu0 0.0
    %1861 = vmatprep.subr.mxu0 0.0
    %1862 = vmatpush1.msra.mxu0 0.0
    %1863 = vmatprep.subr.mxu0 0.0
    %1864 = vmatpush1.msra.mxu0 0.0
    %1865 = vmatprep.subr.mxu0 0.0
    %1866 = vmatpush1.msra.mxu0 0.0
    %1867 = vmatprep.subr.mxu0 0.0
    %1868 = vmatpush1.msra.mxu0 0.0
    %1869 = vmatprep.subr.mxu0 0.0
    %1870 = vmatpush1.msra.mxu0 0.0
    %1871 = vmatprep.subr.mxu0 0.0
    %1872 = vmatpush1.msra.mxu0 0.0
    %1873 = vmatprep.subr.mxu0 0.0
    %1874 = vmatpush1.msra.mxu0 0.0
    %1875 = vmatprep.subr.mxu0 0.0
    %1876 = vmatpush1.msra.mxu0 0.0
    %1877 = vmatprep.subr.mxu0 0.0
    %1878 = vmatpush1.msra.mxu0 0.0
    %1879 = vmatprep.subr.mxu0 0.0
    %1880 = vmatpush1.msra.mxu0 0.0
    %1881 = vmatprep.mubr.f32.mxu0 0.0
    %1882 = vmatmul.mubr.f32.gmra.mrb[0].mxu0 %v1812
    %v1883 = vpop.f32.mrb[0].mxu0
    %v1884 = vadd.f32 %v668, %v1883
    %v1885 = vpop.f32.mrb[0].mxu0
    %1886 = vmatprep.mubr.f32.mxu0 0.0
    %1887 = vmatmul.mubr.f32.gmra.mrb[0].mxu0 %v1815
    %v1888 = vpop.f32.mrb[0].mxu0
    %v1889 = vadd.f32 %v673, %v1888
    %v1890 = vpop.f32.mrb[0].mxu0
    %1891 = vdwg.mxu0
    %1892 = vrot.lane.b32.xlu0 %v678, 64
    %v1893 = vpop.permute.xlu0 %1892
    %1894 = vrot.lane.b32.xlu0 %v683, 64
    %v1895 = vpop.permute.xlu0 %1894
    %v1899 = vsel %vm1454, %v1621, 0
    %v1902 = vsel %vm1454, %v1622, 0
    %1904 = vmatprep.subr.mxu0 0.0
    %1905 = vmatpush1.msra.mxu0 %v1893
    %1906 = vmatprep.subr.mxu0 0.0
    %1907 = vmatpush1.msra.mxu0 %v1895
    %1908 = vmatprep.subr.mxu0 0.0
    %1909 = vmatpush1.msra.mxu0 0.0
    %1910 = vmatprep.subr.mxu0 0.0
    %1911 = vmatpush1.msra.mxu0 0.0
    %1912 = vmatprep.subr.mxu0 0.0
    %1913 = vmatpush1.msra.mxu0 0.0
    %1914 = vmatprep.subr.mxu0 0.0
    %1915 = vmatpush1.msra.mxu0 0.0
    %1916 = vmatprep.subr.mxu0 0.0
    %1917 = vmatpush1.msra.mxu0 0.0
    %1918 = vmatprep.subr.mxu0 0.0
    %1919 = vmatpush1.msra.mxu0 0.0
    %1920 = vmatprep.subr.mxu0 0.0
    %1921 = vmatpush1.msra.mxu0 0.0
    %1922 = vmatprep.subr.mxu0 0.0
    %1923 = vmatpush1.msra.mxu0 0.0
    %1924 = vmatprep.subr.mxu0 0.0
    %1925 = vmatpush1.msra.mxu0 0.0
    %1926 = vmatprep.subr.mxu0 0.0
    %1927 = vmatpush1.msra.mxu0 0.0
    %1928 = vmatprep.subr.mxu0 0.0
    %1929 = vmatpush1.msra.mxu0 0.0
    %1930 = vmatprep.subr.mxu0 0.0
    %1931 = vmatpush1.msra.mxu0 0.0
    %1932 = vmatprep.subr.mxu0 0.0
    %1933 = vmatpush1.msra.mxu0 0.0
    %1934 = vmatprep.subr.mxu0 0.0
    %1935 = vmatpush1.msra.mxu0 0.0
    %1936 = vmatprep.subr.mxu0 0.0
    %1937 = vmatpush1.msra.mxu0 0.0
    %1938 = vmatprep.subr.mxu0 0.0
    %1939 = vmatpush1.msra.mxu0 0.0
    %1940 = vmatprep.subr.mxu0 0.0
    %1941 = vmatpush1.msra.mxu0 0.0
    %1942 = vmatprep.subr.mxu0 0.0
    %1943 = vmatpush1.msra.mxu0 0.0
    %1944 = vmatprep.subr.mxu0 0.0
    %1945 = vmatpush1.msra.mxu0 0.0
    %1946 = vmatprep.subr.mxu0 0.0
    %1947 = vmatpush1.msra.mxu0 0.0
    %1948 = vmatprep.subr.mxu0 0.0
    %1949 = vmatpush1.msra.mxu0 0.0
    %1950 = vmatprep.subr.mxu0 0.0
    %1951 = vmatpush1.msra.mxu0 0.0
    %1952 = vmatprep.subr.mxu0 0.0
    %1953 = vmatpush1.msra.mxu0 0.0
    %1954 = vmatprep.subr.mxu0 0.0
    %1955 = vmatpush1.msra.mxu0 0.0
    %1956 = vmatprep.subr.mxu0 0.0
    %1957 = vmatpush1.msra.mxu0 0.0
    %1958 = vmatprep.subr.mxu0 0.0
    %1959 = vmatpush1.msra.mxu0 0.0
    %1960 = vmatprep.subr.mxu0 0.0
    %1961 = vmatpush1.msra.mxu0 0.0
    %1962 = vmatprep.subr.mxu0 0.0
    %1963 = vmatpush1.msra.mxu0 0.0
    %1964 = vmatprep.subr.mxu0 0.0
    %1965 = vmatpush1.msra.mxu0 0.0
    %1966 = vmatprep.subr.mxu0 0.0
    %1967 = vmatpush1.msra.mxu0 0.0
    %1968 = vmatprep.mubr.f32.mxu0 0.0
    %1969 = vmatmul.mubr.f32.gmra.mrb[0].mxu0 %v1899
    %v1970 = vpop.f32.mrb[0].mxu0
    %v1971 = vadd.f32 %v678, %v1970
    %v1972 = vpop.f32.mrb[0].mxu0
    %1973 = vmatprep.mubr.f32.mxu0 0.0
    %1974 = vmatmul.mubr.f32.gmra.mrb[0].mxu0 %v1902
    %v1975 = vpop.f32.mrb[0].mxu0
    %v1976 = vadd.f32 %v683, %v1975
    %v1977 = vpop.f32.mrb[0].mxu0
    %1978 = vdwg.mxu0
    %1979 = vrot.lane.b32.xlu0 %v688, 64
    %v1980 = vpop.permute.xlu0 %1979
    %1981 = vrot.lane.b32.xlu0 %v693, 64
    %v1982 = vpop.permute.xlu0 %1981
    %v1986 = vsel %vm1454, %v1623, 0
    %v1989 = vsel %vm1454, %v1624, 0
    %1991 = vmatprep.subr.mxu0 0.0
    %1992 = vmatpush1.msra.mxu0 %v1980
    %1993 = vmatprep.subr.mxu0 0.0
    %1994 = vmatpush1.msra.mxu0 %v1982
    %1995 = vmatprep.subr.mxu0 0.0
    %1996 = vmatpush1.msra.mxu0 0.0
    %1997 = vmatprep.subr.mxu0 0.0
    %1998 = vmatpush1.msra.mxu0 0.0
    %1999 = vmatprep.subr.mxu0 0.0
    %2000 = vmatpush1.msra.mxu0 0.0
    %2001 = vmatprep.subr.mxu0 0.0
    %2002 = vmatpush1.msra.mxu0 0.0
    %2003 = vmatprep.subr.mxu0 0.0
    %2004 = vmatpush1.msra.mxu0 0.0
    %2005 = vmatprep.subr.mxu0 0.0
    %2006 = vmatpush1.msra.mxu0 0.0
    %2007 = vmatprep.subr.mxu0 0.0
    %2008 = vmatpush1.msra.mxu0 0.0
    %2009 = vmatprep.subr.mxu0 0.0
    %2010 = vmatpush1.msra.mxu0 0.0
    %2011 = vmatprep.subr.mxu0 0.0
    %2012 = vmatpush1.msra.mxu0 0.0
    %2013 = vmatprep.subr.mxu0 0.0
    %2014 = vmatpush1.msra.mxu0 0.0
    %2015 = vmatprep.subr.mxu0 0.0
    %2016 = vmatpush1.msra.mxu0 0.0
    %2017 = vmatprep.subr.mxu0 0.0
    %2018 = vmatpush1.msra.mxu0 0.0
    %2019 = vmatprep.subr.mxu0 0.0
    %2020 = vmatpush1.msra.mxu0 0.0
    %2021 = vmatprep.subr.mxu0 0.0
    %2022 = vmatpush1.msra.mxu0 0.0
    %2023 = vmatprep.subr.mxu0 0.0
    %2024 = vmatpush1.msra.mxu0 0.0
    %2025 = vmatprep.subr.mxu0 0.0
    %2026 = vmatpush1.msra.mxu0 0.0
    %2027 = vmatprep.subr.mxu0 0.0
    %2028 = vmatpush1.msra.mxu0 0.0
    %2029 = vmatprep.subr.mxu0 0.0
    %2030 = vmatpush1.msra.mxu0 0.0
    %2031 = vmatprep.subr.mxu0 0.0
    %2032 = vmatpush1.msra.mxu0 0.0
    %2033 = vmatprep.subr.mxu0 0.0
    %2034 = vmatpush1.msra.mxu0 0.0
    %2035 = vmatprep.subr.mxu0 0.0
    %2036 = vmatpush1.msra.mxu0 0.0
    %2037 = vmatprep.subr.mxu0 0.0
    %2038 = vmatpush1.msra.mxu0 0.0
    %2039 = vmatprep.subr.mxu0 0.0
    %2040 = vmatpush1.msra.mxu0 0.0
    %2041 = vmatprep.subr.mxu0 0.0
    %2042 = vmatpush1.msra.mxu0 0.0
    %2043 = vmatprep.subr.mxu0 0.0
    %2044 = vmatpush1.msra.mxu0 0.0
    %2045 = vmatprep.subr.mxu0 0.0
    %2046 = vmatpush1.msra.mxu0 0.0
    %2047 = vmatprep.subr.mxu0 0.0
    %2048 = vmatpush1.msra.mxu0 0.0
    %2049 = vmatprep.subr.mxu0 0.0
    %2050 = vmatpush1.msra.mxu0 0.0
    %2051 = vmatprep.subr.mxu0 0.0
    %2052 = vmatpush1.msra.mxu0 0.0
    %2053 = vmatprep.subr.mxu0 0.0
    %2054 = vmatpush1.msra.mxu0 0.0
    %2055 = vmatprep.mubr.f32.mxu0 0.0
    %2056 = vmatmul.mubr.f32.gmra.mrb[0].mxu0 %v1986
    %v2057 = vpop.f32.mrb[0].mxu0
    %v2058 = vadd.f32 %v688, %v2057
    %v2059 = vpop.f32.mrb[0].mxu0
    %2060 = vmatprep.mubr.f32.mxu0 0.0
    %2061 = vmatmul.mubr.f32.gmra.mrb[0].mxu0 %v1989
    %v2062 = vpop.f32.mrb[0].mxu0
    %v2063 = vadd.f32 %v693, %v2062
    %v2064 = vpop.f32.mrb[0].mxu0
    %2065 = vdwg.mxu0
    %2066 = vrot.lane.b32.xlu0 %v698, 64
    %v2067 = vpop.permute.xlu0 %2066
    %2068 = vrot.lane.b32.xlu0 %v703, 64
    %v2069 = vpop.permute.xlu0 %2068
    %v2073 = vsel %vm1454, %v1625, 0
    %v2076 = vsel %vm1454, %v1626, 0
    %2078 = vmatprep.subr.mxu0 0.0
    %2079 = vmatpush1.msra.mxu0 %v2067
    %2080 = vmatprep.subr.mxu0 0.0
    %2081 = vmatpush1.msra.mxu0 %v2069
    %2082 = vmatprep.subr.mxu0 0.0
    %2083 = vmatpush1.msra.mxu0 0.0
    %2084 = vmatprep.subr.mxu0 0.0
    %2085 = vmatpush1.msra.mxu0 0.0
    %2086 = vmatprep.subr.mxu0 0.0
    %2087 = vmatpush1.msra.mxu0 0.0
    %2088 = vmatprep.subr.mxu0 0.0
    %2089 = vmatpush1.msra.mxu0 0.0
    %2090 = vmatprep.subr.mxu0 0.0
    %2091 = vmatpush1.msra.mxu0 0.0
    %2092 = vmatprep.subr.mxu0 0.0
    %2093 = vmatpush1.msra.mxu0 0.0
    %2094 = vmatprep.subr.mxu0 0.0
    %2095 = vmatpush1.msra.mxu0 0.0
    %2096 = vmatprep.subr.mxu0 0.0
    %2097 = vmatpush1.msra.mxu0 0.0
    %2098 = vmatprep.subr.mxu0 0.0
    %2099 = vmatpush1.msra.mxu0 0.0
    %2100 = vmatprep.subr.mxu0 0.0
    %2101 = vmatpush1.msra.mxu0 0.0
    %2102 = vmatprep.subr.mxu0 0.0
    %2103 = vmatpush1.msra.mxu0 0.0
    %2104 = vmatprep.subr.mxu0 0.0
    %2105 = vmatpush1.msra.mxu0 0.0
    %2106 = vmatprep.subr.mxu0 0.0
    %2107 = vmatpush1.msra.mxu0 0.0
    %2108 = vmatprep.subr.mxu0 0.0
    %2109 = vmatpush1.msra.mxu0 0.0
    %2110 = vmatprep.subr.mxu0 0.0
    %2111 = vmatpush1.msra.mxu0 0.0
    %2112 = vmatprep.subr.mxu0 0.0
    %2113 = vmatpush1.msra.mxu0 0.0
    %2114 = vmatprep.subr.mxu0 0.0
    %2115 = vmatpush1.msra.mxu0 0.0
    %2116 = vmatprep.subr.mxu0 0.0
    %2117 = vmatpush1.msra.mxu0 0.0
    %2118 = vmatprep.subr.mxu0 0.0
    %2119 = vmatpush1.msra.mxu0 0.0
    %2120 = vmatprep.subr.mxu0 0.0
    %2121 = vmatpush1.msra.mxu0 0.0
    %2122 = vmatprep.subr.mxu0 0.0
    %2123 = vmatpush1.msra.mxu0 0.0
    %2124 = vmatprep.subr.mxu0 0.0
    %2125 = vmatpush1.msra.mxu0 0.0
    %2126 = vmatprep.subr.mxu0 0.0
    %2127 = vmatpush1.msra.mxu0 0.0
    %2128 = vmatprep.subr.mxu0 0.0
    %2129 = vmatpush1.msra.mxu0 0.0
    %2130 = vmatprep.subr.mxu0 0.0
    %2131 = vmatpush1.msra.mxu0 0.0
    %2132 = vmatprep.subr.mxu0 0.0
    %2133 = vmatpush1.msra.mxu0 0.0
    %2134 = vmatprep.subr.mxu0 0.0
    %2135 = vmatpush1.msra.mxu0 0.0
    %2136 = vmatprep.subr.mxu0 0.0
    %2137 = vmatpush1.msra.mxu0 0.0
    %2138 = vmatprep.subr.mxu0 0.0
    %2139 = vmatpush1.msra.mxu0 0.0
    %2140 = vmatprep.subr.mxu0 0.0
    %2141 = vmatpush1.msra.mxu0 0.0
    %2142 = vmatprep.mubr.f32.mxu0 0.0
    %2143 = vmatmul.mubr.f32.gmra.mrb[0].mxu0 %v2073
    %v2144 = vpop.f32.mrb[0].mxu0
    %v2145 = vadd.f32 %v698, %v2144
    %v2146 = vpop.f32.mrb[0].mxu0
    %2147 = vmatprep.mubr.f32.mxu0 0.0
    %2148 = vmatmul.mubr.f32.gmra.mrb[0].mxu0 %v2076
    %v2149 = vpop.f32.mrb[0].mxu0
    %v2150 = vadd.f32 %v703, %v2149
    %v2151 = vpop.f32.mrb[0].mxu0
    %2152 = vdwg.mxu0
    %2153 = vrot.lane.b32.xlu0 %v708, 64
    %v2154 = vpop.permute.xlu0 %2153
    %2155 = vrot.lane.b32.xlu0 %v713, 64
    %v2156 = vpop.permute.xlu0 %2155
    %v2160 = vsel %vm1454, %v1627, 0
    %v2163 = vsel %vm1454, %v1628, 0
    %2165 = vmatprep.subr.mxu0 0.0
    %2166 = vmatpush1.msra.mxu0 %v2154
    %2167 = vmatprep.subr.mxu0 0.0
    %2168 = vmatpush1.msra.mxu0 %v2156
    %2169 = vmatprep.subr.mxu0 0.0
    %2170 = vmatpush1.msra.mxu0 0.0
    %2171 = vmatprep.subr.mxu0 0.0
    %2172 = vmatpush1.msra.mxu0 0.0
    %2173 = vmatprep.subr.mxu0 0.0
    %2174 = vmatpush1.msra.mxu0 0.0
    %2175 = vmatprep.subr.mxu0 0.0
    %2176 = vmatpush1.msra.mxu0 0.0
    %2177 = vmatprep.subr.mxu0 0.0
    %2178 = vmatpush1.msra.mxu0 0.0
    %2179 = vmatprep.subr.mxu0 0.0
    %2180 = vmatpush1.msra.mxu0 0.0
    %2181 = vmatprep.subr.mxu0 0.0
    %2182 = vmatpush1.msra.mxu0 0.0
    %2183 = vmatprep.subr.mxu0 0.0
    %2184 = vmatpush1.msra.mxu0 0.0
    %2185 = vmatprep.subr.mxu0 0.0
    %2186 = vmatpush1.msra.mxu0 0.0
    %2187 = vmatprep.subr.mxu0 0.0
    %2188 = vmatpush1.msra.mxu0 0.0
    %2189 = vmatprep.subr.mxu0 0.0
    %2190 = vmatpush1.msra.mxu0 0.0
    %2191 = vmatprep.subr.mxu0 0.0
    %2192 = vmatpush1.msra.mxu0 0.0
    %2193 = vmatprep.subr.mxu0 0.0
    %2194 = vmatpush1.msra.mxu0 0.0
    %2195 = vmatprep.subr.mxu0 0.0
    %2196 = vmatpush1.msra.mxu0 0.0
    %2197 = vmatprep.subr.mxu0 0.0
    %2198 = vmatpush1.msra.mxu0 0.0
    %2199 = vmatprep.subr.mxu0 0.0
    %2200 = vmatpush1.msra.mxu0 0.0
    %2201 = vmatprep.subr.mxu0 0.0
    %2202 = vmatpush1.msra.mxu0 0.0
    %2203 = vmatprep.subr.mxu0 0.0
    %2204 = vmatpush1.msra.mxu0 0.0
    %2205 = vmatprep.subr.mxu0 0.0
    %2206 = vmatpush1.msra.mxu0 0.0
    %2207 = vmatprep.subr.mxu0 0.0
    %2208 = vmatpush1.msra.mxu0 0.0
    %2209 = vmatprep.subr.mxu0 0.0
    %2210 = vmatpush1.msra.mxu0 0.0
    %2211 = vmatprep.subr.mxu0 0.0
    %2212 = vmatpush1.msra.mxu0 0.0
    %2213 = vmatprep.subr.mxu0 0.0
    %2214 = vmatpush1.msra.mxu0 0.0
    %2215 = vmatprep.subr.mxu0 0.0
    %2216 = vmatpush1.msra.mxu0 0.0
    %2217 = vmatprep.subr.mxu0 0.0
    %2218 = vmatpush1.msra.mxu0 0.0
    %2219 = vmatprep.subr.mxu0 0.0
    %2220 = vmatpush1.msra.mxu0 0.0
    %2221 = vmatprep.subr.mxu0 0.0
    %2222 = vmatpush1.msra.mxu0 0.0
    %2223 = vmatprep.subr.mxu0 0.0
    %2224 = vmatpush1.msra.mxu0 0.0
    %2225 = vmatprep.subr.mxu0 0.0
    %2226 = vmatpush1.msra.mxu0 0.0
    %2227 = vmatprep.subr.mxu0 0.0
    %2228 = vmatpush1.msra.mxu0 0.0
    %2229 = vmatprep.mubr.f32.mxu0 0.0
    %2230 = vmatmul.mubr.f32.gmra.mrb[0].mxu0 %v2160
    %v2231 = vpop.f32.mrb[0].mxu0
    %v2232 = vadd.f32 %v708, %v2231
    %v2233 = vpop.f32.mrb[0].mxu0
    %2234 = vmatprep.mubr.f32.mxu0 0.0
    %2235 = vmatmul.mubr.f32.gmra.mrb[0].mxu0 %v2163
    %v2236 = vpop.f32.mrb[0].mxu0
    %v2237 = vadd.f32 %v713, %v2236
    %v2238 = vpop.f32.mrb[0].mxu0
    %2239 = vdwg.mxu0
    %2240 = vrot.lane.b32.xlu0 %v718, 64
    %v2241 = vpop.permute.xlu0 %2240
    %2242 = vrot.lane.b32.xlu0 %v723, 64
    %v2243 = vpop.permute.xlu0 %2242
    %v2247 = vsel %vm1454, %v1629, 0
    %v2250 = vsel %vm1454, %v1630, 0
    %2252 = vmatprep.subr.mxu0 0.0
    %2253 = vmatpush1.msra.mxu0 %v2241
    %2254 = vmatprep.subr.mxu0 0.0
    %2255 = vmatpush1.msra.mxu0 %v2243
    %2256 = vmatprep.subr.mxu0 0.0
    %2257 = vmatpush1.msra.mxu0 0.0
    %2258 = vmatprep.subr.mxu0 0.0
    %2259 = vmatpush1.msra.mxu0 0.0
    %2260 = vmatprep.subr.mxu0 0.0
    %2261 = vmatpush1.msra.mxu0 0.0
    %2262 = vmatprep.subr.mxu0 0.0
    %2263 = vmatpush1.msra.mxu0 0.0
    %2264 = vmatprep.subr.mxu0 0.0
    %2265 = vmatpush1.msra.mxu0 0.0
    %2266 = vmatprep.subr.mxu0 0.0
    %2267 = vmatpush1.msra.mxu0 0.0
    %2268 = vmatprep.subr.mxu0 0.0
    %2269 = vmatpush1.msra.mxu0 0.0
    %2270 = vmatprep.subr.mxu0 0.0
    %2271 = vmatpush1.msra.mxu0 0.0
    %2272 = vmatprep.subr.mxu0 0.0
    %2273 = vmatpush1.msra.mxu0 0.0
    %2274 = vmatprep.subr.mxu0 0.0
    %2275 = vmatpush1.msra.mxu0 0.0
    %2276 = vmatprep.subr.mxu0 0.0
    %2277 = vmatpush1.msra.mxu0 0.0
    %2278 = vmatprep.subr.mxu0 0.0
    %2279 = vmatpush1.msra.mxu0 0.0
    %2280 = vmatprep.subr.mxu0 0.0
    %2281 = vmatpush1.msra.mxu0 0.0
    %2282 = vmatprep.subr.mxu0 0.0
    %2283 = vmatpush1.msra.mxu0 0.0
    %2284 = vmatprep.subr.mxu0 0.0
    %2285 = vmatpush1.msra.mxu0 0.0
    %2286 = vmatprep.subr.mxu0 0.0
    %2287 = vmatpush1.msra.mxu0 0.0
    %2288 = vmatprep.subr.mxu0 0.0
    %2289 = vmatpush1.msra.mxu0 0.0
    %2290 = vmatprep.subr.mxu0 0.0
    %2291 = vmatpush1.msra.mxu0 0.0
    %2292 = vmatprep.subr.mxu0 0.0
    %2293 = vmatpush1.msra.mxu0 0.0
    %2294 = vmatprep.subr.mxu0 0.0
    %2295 = vmatpush1.msra.mxu0 0.0
    %2296 = vmatprep.subr.mxu0 0.0
    %2297 = vmatpush1.msra.mxu0 0.0
    %2298 = vmatprep.subr.mxu0 0.0
    %2299 = vmatpush1.msra.mxu0 0.0
    %2300 = vmatprep.subr.mxu0 0.0
    %2301 = vmatpush1.msra.mxu0 0.0
    %2302 = vmatprep.subr.mxu0 0.0
    %2303 = vmatpush1.msra.mxu0 0.0
    %2304 = vmatprep.subr.mxu0 0.0
    %2305 = vmatpush1.msra.mxu0 0.0
    %2306 = vmatprep.subr.mxu0 0.0
    %2307 = vmatpush1.msra.mxu0 0.0
    %2308 = vmatprep.subr.mxu0 0.0
    %2309 = vmatpush1.msra.mxu0 0.0
    %2310 = vmatprep.subr.mxu0 0.0
    %2311 = vmatpush1.msra.mxu0 0.0
    %2312 = vmatprep.subr.mxu0 0.0
    %2313 = vmatpush1.msra.mxu0 0.0
    %2314 = vmatprep.subr.mxu0 0.0
    %2315 = vmatpush1.msra.mxu0 0.0
    %2316 = vmatprep.mubr.f32.mxu0 0.0
    %2317 = vmatmul.mubr.f32.gmra.mrb[0].mxu0 %v2247
    %v2318 = vpop.f32.mrb[0].mxu0
    %v2319 = vadd.f32 %v718, %v2318
    %v2320 = vpop.f32.mrb[0].mxu0
    %2321 = vmatprep.mubr.f32.mxu0 0.0
    %2322 = vmatmul.mubr.f32.gmra.mrb[0].mxu0 %v2250
    %v2323 = vpop.f32.mrb[0].mxu0
    %v2324 = vadd.f32 %v723, %v2323
    %v2325 = vpop.f32.mrb[0].mxu0
    %2326 = vdwg.mxu0
    %v2327 = vld [vmem:[%s6] sm:$0xff]
    %v2328 = vld [vmem:[%s6 + $0x8] sm:$0xff]
    %v2329 = vld [vmem:[%s6 + $0x10] sm:$0xff]
    %v2330 = vld [vmem:[%s6 + $0x18] sm:$0xff]
    %v2331 = vld [vmem:[%s7] sm:$0x1]
    %v2333 = vlaneseq
    %v2334 = vshrl.u32 %v2333, 7
    %v2335 = vsub.s32 0, %v2334
    %v2336 = vrot.slane %v2331, %v2335
    %v2339 = vsel %vm272, %v1710, 0
    %v2342 = vsel %vm272, %v1715, 0
    %v2345 = vsel %vm272, %v1797, 0
    %v2348 = vsel %vm272, %v1802, 0
    %v2351 = vsel %vm272, %v1884, 0
    %v2354 = vsel %vm272, %v1889, 0
    %v2357 = vsel %vm272, %v1971, 0
    %v2360 = vsel %vm272, %v1976, 0
    %v2363 = vsel %vm272, %v2058, 0
    %v2366 = vsel %vm272, %v2063, 0
    %v2369 = vsel %vm272, %v2145, 0
    %v2372 = vsel %vm272, %v2150, 0
    %v2375 = vsel %vm272, %v2232, 0
    %v2378 = vsel %vm272, %v2237, 0
    %v2381 = vsel %vm272, %v2319, 0
    %v2384 = vsel %vm272, %v2324, 0
    %2386 = vmatprep.subr.mxu0 0.0
    %2387 = vmatpush1.msra.mxu0 %v2327
    %2388 = vmatprep.subr.mxu0 0.0
    %2389 = vmatpush1.msra.mxu0 %v2328
    %2390 = vmatprep.subr.mxu0 0.0
    %2391 = vmatpush1.msra.mxu0 %v2329
    %2392 = vmatprep.subr.mxu0 0.0
    %2393 = vmatpush1.msra.mxu0 %v2330
    %2394 = vmatprep.subr.mxu0 0.0
    %2395 = vmatpush1.msra.mxu0 0.0
    %2396 = vmatprep.subr.mxu0 0.0
    %2397 = vmatpush1.msra.mxu0 0.0
    %2398 = vmatprep.subr.mxu0 0.0
    %2399 = vmatpush1.msra.mxu0 0.0
    %2400 = vmatprep.subr.mxu0 0.0
    %2401 = vmatpush1.msra.mxu0 0.0
    %2402 = vmatprep.subr.mxu0 0.0
    %2403 = vmatpush1.msra.mxu0 0.0
    %2404 = vmatprep.subr.mxu0 0.0
    %2405 = vmatpush1.msra.mxu0 0.0
    %2406 = vmatprep.subr.mxu0 0.0
    %2407 = vmatpush1.msra.mxu0 0.0
    %2408 = vmatprep.subr.mxu0 0.0
    %2409 = vmatpush1.msra.mxu0 0.0
    %2410 = vmatprep.subr.mxu0 0.0
    %2411 = vmatpush1.msra.mxu0 0.0
    %2412 = vmatprep.subr.mxu0 0.0
    %2413 = vmatpush1.msra.mxu0 0.0
    %2414 = vmatprep.subr.mxu0 0.0
    %2415 = vmatpush1.msra.mxu0 0.0
    %2416 = vmatprep.subr.mxu0 0.0
    %2417 = vmatpush1.msra.mxu0 0.0
    %2418 = vmatprep.subr.mxu0 0.0
    %2419 = vmatpush1.msra.mxu0 0.0
    %2420 = vmatprep.subr.mxu0 0.0
    %2421 = vmatpush1.msra.mxu0 0.0
    %2422 = vmatprep.subr.mxu0 0.0
    %2423 = vmatpush1.msra.mxu0 0.0
    %2424 = vmatprep.subr.mxu0 0.0
    %2425 = vmatpush1.msra.mxu0 0.0
    %2426 = vmatprep.subr.mxu0 0.0
    %2427 = vmatpush1.msra.mxu0 0.0
    %2428 = vmatprep.subr.mxu0 0.0
    %2429 = vmatpush1.msra.mxu0 0.0
    %2430 = vmatprep.subr.mxu0 0.0
    %2431 = vmatpush1.msra.mxu0 0.0
    %2432 = vmatprep.subr.mxu0 0.0
    %2433 = vmatpush1.msra.mxu0 0.0
    %2434 = vmatprep.subr.mxu0 0.0
    %2435 = vmatpush1.msra.mxu0 0.0
    %2436 = vmatprep.subr.mxu0 0.0
    %2437 = vmatpush1.msra.mxu0 0.0
    %2438 = vmatprep.subr.mxu0 0.0
    %2439 = vmatpush1.msra.mxu0 0.0
    %2440 = vmatprep.subr.mxu0 0.0
    %2441 = vmatpush1.msra.mxu0 0.0
    %2442 = vmatprep.subr.mxu0 0.0
    %2443 = vmatpush1.msra.mxu0 0.0
    %2444 = vmatprep.subr.mxu0 0.0
    %2445 = vmatpush1.msra.mxu0 0.0
    %2446 = vmatprep.subr.mxu0 0.0
    %2447 = vmatpush1.msra.mxu0 0.0
    %2448 = vmatprep.subr.mxu0 0.0
    %2449 = vmatpush1.msra.mxu0 0.0
    %2450 = vmatprep.mubr.f32.mxu0 0.0
    %2451 = vmatmul.mubr.f32.gmra.mrb[0].mxu0 %v2339
    %v2452 = vpop.f32.mrb[0].mxu0
    %v2453 = vadd.f32 %v2336, %v2452
    %v2454 = vpop.f32.mrb[0].mxu0
    %2455 = vmatprep.mubr.f32.mxu0 0.0
    %2456 = vmatmul.mubr.f32.gmra.mrb[0].mxu0 %v2342
    %v2457 = vpop.f32.mrb[0].mxu0
    %v2458 = vadd.f32 %v2336, %v2457
    %v2459 = vpop.f32.mrb[0].mxu0
    %2460 = vmatprep.mubr.f32.mxu0 0.0
    %2461 = vmatmul.mubr.f32.gmra.mrb[0].mxu0 %v2345
    %v2462 = vpop.f32.mrb[0].mxu0
    %v2463 = vadd.f32 %v2336, %v2462
    %v2464 = vpop.f32.mrb[0].mxu0
    %2465 = vmatprep.mubr.f32.mxu0 0.0
    %2466 = vmatmul.mubr.f32.gmra.mrb[0].mxu0 %v2348
    %v2467 = vpop.f32.mrb[0].mxu0
    %v2468 = vadd.f32 %v2336, %v2467
    %v2469 = vpop.f32.mrb[0].mxu0
    %2470 = vmatprep.mubr.f32.mxu0 0.0
    %2471 = vmatmul.mubr.f32.gmra.mrb[0].mxu0 %v2351
    %v2472 = vpop.f32.mrb[0].mxu0
    %v2473 = vadd.f32 %v2336, %v2472
    %v2474 = vpop.f32.mrb[0].mxu0
    %2475 = vmatprep.mubr.f32.mxu0 0.0
    %2476 = vmatmul.mubr.f32.gmra.mrb[0].mxu0 %v2354
    %v2477 = vpop.f32.mrb[0].mxu0
    %v2478 = vadd.f32 %v2336, %v2477
    %v2479 = vpop.f32.mrb[0].mxu0
    %2480 = vmatprep.mubr.f32.mxu0 0.0
    %2481 = vmatmul.mubr.f32.gmra.mrb[0].mxu0 %v2357
    %v2482 = vpop.f32.mrb[0].mxu0
    %v2483 = vadd.f32 %v2336, %v2482
    %v2484 = vpop.f32.mrb[0].mxu0
    %2485 = vmatprep.mubr.f32.mxu0 0.0
    %2486 = vmatmul.mubr.f32.gmra.mrb[0].mxu0 %v2360
    %v2487 = vpop.f32.mrb[0].mxu0
    %v2488 = vadd.f32 %v2336, %v2487
    %v2489 = vpop.f32.mrb[0].mxu0
    %2490 = vmatprep.mubr.f32.mxu0 0.0
    %2491 = vmatmul.mubr.f32.gmra.mrb[0].mxu0 %v2363
    %v2492 = vpop.f32.mrb[0].mxu0
    %v2493 = vadd.f32 %v2336, %v2492
    %v2494 = vpop.f32.mrb[0].mxu0
    %2495 = vmatprep.mubr.f32.mxu0 0.0
    %2496 = vmatmul.mubr.f32.gmra.mrb[0].mxu0 %v2366
    %v2497 = vpop.f32.mrb[0].mxu0
    %v2498 = vadd.f32 %v2336, %v2497
    %v2499 = vpop.f32.mrb[0].mxu0
    %2500 = vmatprep.mubr.f32.mxu0 0.0
    %2501 = vmatmul.mubr.f32.gmra.mrb[0].mxu0 %v2369
    %v2502 = vpop.f32.mrb[0].mxu0
    %v2503 = vadd.f32 %v2336, %v2502
    %v2504 = vpop.f32.mrb[0].mxu0
    %2505 = vmatprep.mubr.f32.mxu0 0.0
    %2506 = vmatmul.mubr.f32.gmra.mrb[0].mxu0 %v2372
    %v2507 = vpop.f32.mrb[0].mxu0
    %v2508 = vadd.f32 %v2336, %v2507
    %v2509 = vpop.f32.mrb[0].mxu0
    %2510 = vmatprep.mubr.f32.mxu0 0.0
    %2511 = vmatmul.mubr.f32.gmra.mrb[0].mxu0 %v2375
    %v2512 = vpop.f32.mrb[0].mxu0
    %v2513 = vadd.f32 %v2336, %v2512
    %v2514 = vpop.f32.mrb[0].mxu0
    %2515 = vmatprep.mubr.f32.mxu0 0.0
    %2516 = vmatmul.mubr.f32.gmra.mrb[0].mxu0 %v2378
    %v2517 = vpop.f32.mrb[0].mxu0
    %v2518 = vadd.f32 %v2336, %v2517
    %v2519 = vpop.f32.mrb[0].mxu0
    %2520 = vmatprep.mubr.f32.mxu0 0.0
    %2521 = vmatmul.mubr.f32.gmra.mrb[0].mxu0 %v2381
    %v2522 = vpop.f32.mrb[0].mxu0
    %v2523 = vadd.f32 %v2336, %v2522
    %v2524 = vpop.f32.mrb[0].mxu0
    %2525 = vmatprep.mubr.f32.mxu0 0.0
    %2526 = vmatmul.mubr.f32.gmra.mrb[0].mxu0 %v2384
    %v2527 = vpop.f32.mrb[0].mxu0
    %v2528 = vadd.f32 %v2336, %v2527
    %v2529 = vpop.f32.mrb[0].mxu0
    %2530 = vdwg.mxu0
    %v2531 = vadd.f32 %v193, %v2453
    %v2532 = vadd.f32 %v198, %v2458
    %v2533 = vadd.f32 %v203, %v2463
    %v2534 = vadd.f32 %v208, %v2468
    %v2535 = vadd.f32 %v213, %v2473
    %v2536 = vadd.f32 %v218, %v2478
    %v2537 = vadd.f32 %v223, %v2483
    %v2538 = vadd.f32 %v228, %v2488
    %v2539 = vadd.f32 %v233, %v2493
    %v2540 = vadd.f32 %v238, %v2498
    %v2541 = vadd.f32 %v243, %v2503
    %v2542 = vadd.f32 %v248, %v2508
    %v2543 = vadd.f32 %v253, %v2513
    %v2544 = vadd.f32 %v258, %v2518
    %v2545 = vadd.f32 %v263, %v2523
    %v2546 = vadd.f32 %v268, %v2528
    %v2547 = vsel %vm272, %v2531, 0.0
    %2548 = vadd.xlane.f32.xlu0 %v2547
    %v2549 = vpop.xlane.xlu0 %2548
    %v2550 = vsel %vm272, %v2532, 0.0
    %2551 = vadd.xlane.f32.xlu0 %v2550
    %v2552 = vpop.xlane.xlu0 %2551
    %v2553 = vsel %vm272, %v2533, 0.0
    %2554 = vadd.xlane.f32.xlu0 %v2553
    %v2555 = vpop.xlane.xlu0 %2554
    %v2556 = vsel %vm272, %v2534, 0.0
    %2557 = vadd.xlane.f32.xlu0 %v2556
    %v2558 = vpop.xlane.xlu0 %2557
    %v2559 = vsel %vm272, %v2535, 0.0
    %2560 = vadd.xlane.f32.xlu0 %v2559
    %v2561 = vpop.xlane.xlu0 %2560
    %v2562 = vsel %vm272, %v2536, 0.0
    %2563 = vadd.xlane.f32.xlu0 %v2562
    %v2564 = vpop.xlane.xlu0 %2563
    %v2565 = vsel %vm272, %v2537, 0.0
    %2566 = vadd.xlane.f32.xlu0 %v2565
    %v2567 = vpop.xlane.xlu0 %2566
    %v2568 = vsel %vm272, %v2538, 0.0
    %2569 = vadd.xlane.f32.xlu0 %v2568
    %v2570 = vpop.xlane.xlu0 %2569
    %v2571 = vsel %vm272, %v2539, 0.0
    %2572 = vadd.xlane.f32.xlu0 %v2571
    %v2573 = vpop.xlane.xlu0 %2572
    %v2574 = vsel %vm272, %v2540, 0.0
    %2575 = vadd.xlane.f32.xlu0 %v2574
    %v2576 = vpop.xlane.xlu0 %2575
    %v2577 = vsel %vm272, %v2541, 0.0
    %2578 = vadd.xlane.f32.xlu0 %v2577
    %v2579 = vpop.xlane.xlu0 %2578
    %v2580 = vsel %vm272, %v2542, 0.0
    %2581 = vadd.xlane.f32.xlu0 %v2580
    %v2582 = vpop.xlane.xlu0 %2581
    %v2583 = vsel %vm272, %v2543, 0.0
    %2584 = vadd.xlane.f32.xlu0 %v2583
    %v2585 = vpop.xlane.xlu0 %2584
    %v2586 = vsel %vm272, %v2544, 0.0
    %2587 = vadd.xlane.f32.xlu0 %v2586
    %v2588 = vpop.xlane.xlu0 %2587
    %v2589 = vsel %vm272, %v2545, 0.0
    %2590 = vadd.xlane.f32.xlu0 %v2589
    %v2591 = vpop.xlane.xlu0 %2590
    %v2592 = vsel %vm272, %v2546, 0.0
    %2593 = vadd.xlane.f32.xlu0 %v2592
    %v2594 = vpop.xlane.xlu0 %2593
    %v2595 = vmul.f32 %v2549, %v321
    %v2596 = vmul.f32 %v2552, %v321
    %v2597 = vmul.f32 %v2555, %v321
    %v2598 = vmul.f32 %v2558, %v321
    %v2599 = vmul.f32 %v2561, %v321
    %v2600 = vmul.f32 %v2564, %v321
    %v2601 = vmul.f32 %v2567, %v321
    %v2602 = vmul.f32 %v2570, %v321
    %v2603 = vmul.f32 %v2573, %v321
    %v2604 = vmul.f32 %v2576, %v321
    %v2605 = vmul.f32 %v2579, %v321
    %v2606 = vmul.f32 %v2582, %v321
    %v2607 = vmul.f32 %v2585, %v321
    %v2608 = vmul.f32 %v2588, %v321
    %v2609 = vmul.f32 %v2591, %v321
    %v2610 = vmul.f32 %v2594, %v321
    %v2611 = vsub.f32 %v2531, %v2595
    %v2612 = vsub.f32 %v2532, %v2596
    %v2613 = vsub.f32 %v2533, %v2597
    %v2614 = vsub.f32 %v2534, %v2598
    %v2615 = vsub.f32 %v2535, %v2599
    %v2616 = vsub.f32 %v2536, %v2600
    %v2617 = vsub.f32 %v2537, %v2601
    %v2618 = vsub.f32 %v2538, %v2602
    %v2619 = vsub.f32 %v2539, %v2603
    %v2620 = vsub.f32 %v2540, %v2604
    %v2621 = vsub.f32 %v2541, %v2605
    %v2622 = vsub.f32 %v2542, %v2606
    %v2623 = vsub.f32 %v2543, %v2607
    %v2624 = vsub.f32 %v2544, %v2608
    %v2625 = vsub.f32 %v2545, %v2609
    %v2626 = vsub.f32 %v2546, %v2610
    %v2627 = vmul.f32 %v2611, %v2611
    %v2628 = vmul.f32 %v2612, %v2612
    %v2629 = vmul.f32 %v2613, %v2613
    %v2630 = vmul.f32 %v2614, %v2614
    %v2631 = vmul.f32 %v2615, %v2615
    %v2632 = vmul.f32 %v2616, %v2616
    %v2633 = vmul.f32 %v2617, %v2617
    %v2634 = vmul.f32 %v2618, %v2618
    %v2635 = vmul.f32 %v2619, %v2619
    %v2636 = vmul.f32 %v2620, %v2620
    %v2637 = vmul.f32 %v2621, %v2621
    %v2638 = vmul.f32 %v2622, %v2622
    %v2639 = vmul.f32 %v2623, %v2623
    %v2640 = vmul.f32 %v2624, %v2624
    %v2641 = vmul.f32 %v2625, %v2625
    %v2642 = vmul.f32 %v2626, %v2626
    %v2643 = vsel %vm272, %v2627, 0.0
    %2644 = vadd.xlane.f32.xlu0 %v2643
    %v2645 = vpop.xlane.xlu0 %2644
    %v2646 = vsel %vm272, %v2628, 0.0
    %2647 = vadd.xlane.f32.xlu0 %v2646
    %v2648 = vpop.xlane.xlu0 %2647
    %v2649 = vsel %vm272, %v2629, 0.0
    %2650 = vadd.xlane.f32.xlu0 %v2649
    %v2651 = vpop.xlane.xlu0 %2650
    %v2652 = vsel %vm272, %v2630, 0.0
    %2653 = vadd.xlane.f32.xlu0 %v2652
    %v2654 = vpop.xlane.xlu0 %2653
    %v2655 = vsel %vm272, %v2631, 0.0
    %2656 = vadd.xlane.f32.xlu0 %v2655
    %v2657 = vpop.xlane.xlu0 %2656
    %v2658 = vsel %vm272, %v2632, 0.0
    %2659 = vadd.xlane.f32.xlu0 %v2658
    %v2660 = vpop.xlane.xlu0 %2659
    %v2661 = vsel %vm272, %v2633, 0.0
    %2662 = vadd.xlane.f32.xlu0 %v2661
    %v2663 = vpop.xlane.xlu0 %2662
    %v2664 = vsel %vm272, %v2634, 0.0
    %2665 = vadd.xlane.f32.xlu0 %v2664
    %v2666 = vpop.xlane.xlu0 %2665
    %v2667 = vsel %vm272, %v2635, 0.0
    %2668 = vadd.xlane.f32.xlu0 %v2667
    %v2669 = vpop.xlane.xlu0 %2668
    %v2670 = vsel %vm272, %v2636, 0.0
    %2671 = vadd.xlane.f32.xlu0 %v2670
    %v2672 = vpop.xlane.xlu0 %2671
    %v2673 = vsel %vm272, %v2637, 0.0
    %2674 = vadd.xlane.f32.xlu0 %v2673
    %v2675 = vpop.xlane.xlu0 %2674
    %v2676 = vsel %vm272, %v2638, 0.0
    %2677 = vadd.xlane.f32.xlu0 %v2676
    %v2678 = vpop.xlane.xlu0 %2677
    %v2679 = vsel %vm272, %v2639, 0.0
    %2680 = vadd.xlane.f32.xlu0 %v2679
    %v2681 = vpop.xlane.xlu0 %2680
    %v2682 = vsel %vm272, %v2640, 0.0
    %2683 = vadd.xlane.f32.xlu0 %v2682
    %v2684 = vpop.xlane.xlu0 %2683
    %v2685 = vsel %vm272, %v2641, 0.0
    %2686 = vadd.xlane.f32.xlu0 %v2685
    %v2687 = vpop.xlane.xlu0 %2686
    %v2688 = vsel %vm272, %v2642, 0.0
    %2689 = vadd.xlane.f32.xlu0 %v2688
    %v2690 = vpop.xlane.xlu0 %2689
    %v2691 = vmul.f32 %v2645, %v321
    %v2692 = vmul.f32 %v2648, %v321
    %v2693 = vmul.f32 %v2651, %v321
    %v2694 = vmul.f32 %v2654, %v321
    %v2695 = vmul.f32 %v2657, %v321
    %v2696 = vmul.f32 %v2660, %v321
    %v2697 = vmul.f32 %v2663, %v321
    %v2698 = vmul.f32 %v2666, %v321
    %v2699 = vmul.f32 %v2669, %v321
    %v2700 = vmul.f32 %v2672, %v321
    %v2701 = vmul.f32 %v2675, %v321
    %v2702 = vmul.f32 %v2678, %v321
    %v2703 = vmul.f32 %v2681, %v321
    %v2704 = vmul.f32 %v2684, %v321
    %v2705 = vmul.f32 %v2687, %v321
    %v2706 = vmul.f32 %v2690, %v321
    %v2707 = vadd.f32 %v2691, 1e-06
    %v2708 = vadd.f32 %v2692, 1e-06
    %v2709 = vadd.f32 %v2693, 1e-06
    %v2710 = vadd.f32 %v2694, 1e-06
    %v2711 = vadd.f32 %v2695, 1e-06
    %v2712 = vadd.f32 %v2696, 1e-06
    %v2713 = vadd.f32 %v2697, 1e-06
    %v2714 = vadd.f32 %v2698, 1e-06
    %v2715 = vadd.f32 %v2699, 1e-06
    %v2716 = vadd.f32 %v2700, 1e-06
    %v2717 = vadd.f32 %v2701, 1e-06
    %v2718 = vadd.f32 %v2702, 1e-06
    %v2719 = vadd.f32 %v2703, 1e-06
    %v2720 = vadd.f32 %v2704, 1e-06
    %v2721 = vadd.f32 %v2705, 1e-06
    %v2722 = vadd.f32 %v2706, 1e-06
    %v2723 = vrsqrt.pop %v2707
    %v2724 = vrsqrt.pop %v2708
    %v2725 = vrsqrt.pop %v2709
    %v2726 = vrsqrt.pop %v2710
    %v2727 = vrsqrt.pop %v2711
    %v2728 = vrsqrt.pop %v2712
    %v2729 = vrsqrt.pop %v2713
    %v2730 = vrsqrt.pop %v2714
    %v2731 = vrsqrt.pop %v2715
    %v2732 = vrsqrt.pop %v2716
    %v2733 = vrsqrt.pop %v2717
    %v2734 = vrsqrt.pop %v2718
    %v2735 = vrsqrt.pop %v2719
    %v2736 = vrsqrt.pop %v2720
    %v2737 = vrsqrt.pop %v2721
    %v2738 = vrsqrt.pop %v2722
    %v2739 = vmul.f32 %v2611, %v2723
    %v2740 = vmul.f32 %v2612, %v2724
    %v2741 = vmul.f32 %v2613, %v2725
    %v2742 = vmul.f32 %v2614, %v2726
    %v2743 = vmul.f32 %v2615, %v2727
    %v2744 = vmul.f32 %v2616, %v2728
    %v2745 = vmul.f32 %v2617, %v2729
    %v2746 = vmul.f32 %v2618, %v2730
    %v2747 = vmul.f32 %v2619, %v2731
    %v2748 = vmul.f32 %v2620, %v2732
    %v2749 = vmul.f32 %v2621, %v2733
    %v2750 = vmul.f32 %v2622, %v2734
    %v2751 = vmul.f32 %v2623, %v2735
    %v2752 = vmul.f32 %v2624, %v2736
    %v2753 = vmul.f32 %v2625, %v2737
    %v2754 = vmul.f32 %v2626, %v2738
    %v2755 = vlaneseq
    %v2756 = vshrl.u32 %v2755, 7
    %v2757 = vsub.s32 2, %v2756
    %v2758 = vrot.slane %v271, %v2757
    %v2759 = vmul.f32 %v2739, %v2758
    %v2760 = vmul.f32 %v2740, %v2758
    %v2761 = vmul.f32 %v2741, %v2758
    %v2762 = vmul.f32 %v2742, %v2758
    %v2763 = vmul.f32 %v2743, %v2758
    %v2764 = vmul.f32 %v2744, %v2758
    %v2765 = vmul.f32 %v2745, %v2758
    %v2766 = vmul.f32 %v2746, %v2758
    %v2767 = vmul.f32 %v2747, %v2758
    %v2768 = vmul.f32 %v2748, %v2758
    %v2769 = vmul.f32 %v2749, %v2758
    %v2770 = vmul.f32 %v2750, %v2758
    %v2771 = vmul.f32 %v2751, %v2758
    %v2772 = vmul.f32 %v2752, %v2758
    %v2773 = vmul.f32 %v2753, %v2758
    %v2774 = vmul.f32 %v2754, %v2758
    %v2775 = vlaneseq
    %v2776 = vshrl.u32 %v2775, 7
    %v2777 = vsub.s32 3, %v2776
    %v2778 = vrot.slane %v271, %v2777
    %v2779 = vadd.f32 %v2759, %v2778
    %v2780 = vadd.f32 %v2760, %v2778
    %v2781 = vadd.f32 %v2761, %v2778
    %v2782 = vadd.f32 %v2762, %v2778
    %v2783 = vadd.f32 %v2763, %v2778
    %v2784 = vadd.f32 %v2764, %v2778
    %v2785 = vadd.f32 %v2765, %v2778
    %v2786 = vadd.f32 %v2766, %v2778
    %v2787 = vadd.f32 %v2767, %v2778
    %v2788 = vadd.f32 %v2768, %v2778
    %v2789 = vadd.f32 %v2769, %v2778
    %v2790 = vadd.f32 %v2770, %v2778
    %v2791 = vadd.f32 %v2771, %v2778
    %v2792 = vadd.f32 %v2772, %v2778
    %v2793 = vadd.f32 %v2773, %v2778
    %v2794 = vadd.f32 %v2774, %v2778
    %v2795 = vld [vmem:[%s8] sm:$0xff]
    %v2796 = vld [vmem:[%s8 + $0x8] sm:$0xff]
    %v2797 = vld [vmem:[%s8 + $0x10] sm:$0xff]
    %v2798 = vld [vmem:[%s8 + $0x18] sm:$0xff]
    %v2799 = vld [vmem:[%s9] sm:$0x1]
    %v2801 = vlaneseq
    %v2802 = vshrl.u32 %v2801, 7
    %v2803 = vsub.s32 0, %v2802
    %v2804 = vrot.slane %v2799, %v2803
    %v2807 = vsel %vm272, %v2779, 0
    %v2810 = vsel %vm272, %v2780, 0
    %v2813 = vsel %vm272, %v2781, 0
    %v2816 = vsel %vm272, %v2782, 0
    %v2819 = vsel %vm272, %v2783, 0
    %v2822 = vsel %vm272, %v2784, 0
    %v2825 = vsel %vm272, %v2785, 0
    %v2828 = vsel %vm272, %v2786, 0
    %v2831 = vsel %vm272, %v2787, 0
    %v2834 = vsel %vm272, %v2788, 0
    %v2837 = vsel %vm272, %v2789, 0
    %v2840 = vsel %vm272, %v2790, 0
    %v2843 = vsel %vm272, %v2791, 0
    %v2846 = vsel %vm272, %v2792, 0
    %v2849 = vsel %vm272, %v2793, 0
    %v2852 = vsel %vm272, %v2794, 0
    %2854 = vmatprep.subr.mxu0 0.0
    %2855 = vmatpush1.msra.mxu0 %v2795
    %2856 = vmatprep.subr.mxu0 0.0
    %2857 = vmatpush1.msra.mxu0 %v2796
    %2858 = vmatprep.subr.mxu0 0.0
    %2859 = vmatpush1.msra.mxu0 %v2797
    %2860 = vmatprep.subr.mxu0 0.0
    %2861 = vmatpush1.msra.mxu0 %v2798
    %2862 = vmatprep.subr.mxu0 0.0
    %2863 = vmatpush1.msra.mxu0 0.0
    %2864 = vmatprep.subr.mxu0 0.0
    %2865 = vmatpush1.msra.mxu0 0.0
    %2866 = vmatprep.subr.mxu0 0.0
    %2867 = vmatpush1.msra.mxu0 0.0
    %2868 = vmatprep.subr.mxu0 0.0
    %2869 = vmatpush1.msra.mxu0 0.0
    %2870 = vmatprep.subr.mxu0 0.0
    %2871 = vmatpush1.msra.mxu0 0.0
    %2872 = vmatprep.subr.mxu0 0.0
    %2873 = vmatpush1.msra.mxu0 0.0
    %2874 = vmatprep.subr.mxu0 0.0
    %2875 = vmatpush1.msra.mxu0 0.0
    %2876 = vmatprep.subr.mxu0 0.0
    %2877 = vmatpush1.msra.mxu0 0.0
    %2878 = vmatprep.subr.mxu0 0.0
    %2879 = vmatpush1.msra.mxu0 0.0
    %2880 = vmatprep.subr.mxu0 0.0
    %2881 = vmatpush1.msra.mxu0 0.0
    %2882 = vmatprep.subr.mxu0 0.0
    %2883 = vmatpush1.msra.mxu0 0.0
    %2884 = vmatprep.subr.mxu0 0.0
    %2885 = vmatpush1.msra.mxu0 0.0
    %2886 = vmatprep.subr.mxu0 0.0
    %2887 = vmatpush1.msra.mxu0 0.0
    %2888 = vmatprep.subr.mxu0 0.0
    %2889 = vmatpush1.msra.mxu0 0.0
    %2890 = vmatprep.subr.mxu0 0.0
    %2891 = vmatpush1.msra.mxu0 0.0
    %2892 = vmatprep.subr.mxu0 0.0
    %2893 = vmatpush1.msra.mxu0 0.0
    %2894 = vmatprep.subr.mxu0 0.0
    %2895 = vmatpush1.msra.mxu0 0.0
    %2896 = vmatprep.subr.mxu0 0.0
    %2897 = vmatpush1.msra.mxu0 0.0
    %2898 = vmatprep.subr.mxu0 0.0
    %2899 = vmatpush1.msra.mxu0 0.0
    %2900 = vmatprep.subr.mxu0 0.0
    %2901 = vmatpush1.msra.mxu0 0.0
    %2902 = vmatprep.subr.mxu0 0.0
    %2903 = vmatpush1.msra.mxu0 0.0
    %2904 = vmatprep.subr.mxu0 0.0
    %2905 = vmatpush1.msra.mxu0 0.0
    %2906 = vmatprep.subr.mxu0 0.0
    %2907 = vmatpush1.msra.mxu0 0.0
    %2908 = vmatprep.subr.mxu0 0.0
    %2909 = vmatpush1.msra.mxu0 0.0
    %2910 = vmatprep.subr.mxu0 0.0
    %2911 = vmatpush1.msra.mxu0 0.0
    %2912 = vmatprep.subr.mxu0 0.0
    %2913 = vmatpush1.msra.mxu0 0.0
    %2914 = vmatprep.subr.mxu0 0.0
    %2915 = vmatpush1.msra.mxu0 0.0
    %2916 = vmatprep.subr.mxu0 0.0
    %2917 = vmatpush1.msra.mxu0 0.0
    %2918 = vmatprep.mubr.f32.mxu0 0.0
    %2919 = vmatmul.mubr.f32.gmra.mrb[0].mxu0 %v2807
    %v2920 = vpop.f32.mrb[0].mxu0
    %v2921 = vadd.f32 %v2804, %v2920
    %v2922 = vpop.f32.mrb[0].mxu0
    %2923 = vmatprep.mubr.f32.mxu0 0.0
    %2924 = vmatmul.mubr.f32.gmra.mrb[0].mxu0 %v2810
    %v2925 = vpop.f32.mrb[0].mxu0
    %v2926 = vadd.f32 %v2804, %v2925
    %v2927 = vpop.f32.mrb[0].mxu0
    %2928 = vmatprep.mubr.f32.mxu0 0.0
    %2929 = vmatmul.mubr.f32.gmra.mrb[0].mxu0 %v2813
    %v2930 = vpop.f32.mrb[0].mxu0
    %v2931 = vadd.f32 %v2804, %v2930
    %v2932 = vpop.f32.mrb[0].mxu0
    %2933 = vmatprep.mubr.f32.mxu0 0.0
    %2934 = vmatmul.mubr.f32.gmra.mrb[0].mxu0 %v2816
    %v2935 = vpop.f32.mrb[0].mxu0
    %v2936 = vadd.f32 %v2804, %v2935
    %v2937 = vpop.f32.mrb[0].mxu0
    %2938 = vmatprep.mubr.f32.mxu0 0.0
    %2939 = vmatmul.mubr.f32.gmra.mrb[0].mxu0 %v2819
    %v2940 = vpop.f32.mrb[0].mxu0
    %v2941 = vadd.f32 %v2804, %v2940
    %v2942 = vpop.f32.mrb[0].mxu0
    %2943 = vmatprep.mubr.f32.mxu0 0.0
    %2944 = vmatmul.mubr.f32.gmra.mrb[0].mxu0 %v2822
    %v2945 = vpop.f32.mrb[0].mxu0
    %v2946 = vadd.f32 %v2804, %v2945
    %v2947 = vpop.f32.mrb[0].mxu0
    %2948 = vmatprep.mubr.f32.mxu0 0.0
    %2949 = vmatmul.mubr.f32.gmra.mrb[0].mxu0 %v2825
    %v2950 = vpop.f32.mrb[0].mxu0
    %v2951 = vadd.f32 %v2804, %v2950
    %v2952 = vpop.f32.mrb[0].mxu0
    %2953 = vmatprep.mubr.f32.mxu0 0.0
    %2954 = vmatmul.mubr.f32.gmra.mrb[0].mxu0 %v2828
    %v2955 = vpop.f32.mrb[0].mxu0
    %v2956 = vadd.f32 %v2804, %v2955
    %v2957 = vpop.f32.mrb[0].mxu0
    %2958 = vmatprep.mubr.f32.mxu0 0.0
    %2959 = vmatmul.mubr.f32.gmra.mrb[0].mxu0 %v2831
    %v2960 = vpop.f32.mrb[0].mxu0
    %v2961 = vadd.f32 %v2804, %v2960
    %v2962 = vpop.f32.mrb[0].mxu0
    %2963 = vmatprep.mubr.f32.mxu0 0.0
    %2964 = vmatmul.mubr.f32.gmra.mrb[0].mxu0 %v2834
    %v2965 = vpop.f32.mrb[0].mxu0
    %v2966 = vadd.f32 %v2804, %v2965
    %v2967 = vpop.f32.mrb[0].mxu0
    %2968 = vmatprep.mubr.f32.mxu0 0.0
    %2969 = vmatmul.mubr.f32.gmra.mrb[0].mxu0 %v2837
    %v2970 = vpop.f32.mrb[0].mxu0
    %v2971 = vadd.f32 %v2804, %v2970
    %v2972 = vpop.f32.mrb[0].mxu0
    %2973 = vmatprep.mubr.f32.mxu0 0.0
    %2974 = vmatmul.mubr.f32.gmra.mrb[0].mxu0 %v2840
    %v2975 = vpop.f32.mrb[0].mxu0
    %v2976 = vadd.f32 %v2804, %v2975
    %v2977 = vpop.f32.mrb[0].mxu0
    %2978 = vmatprep.mubr.f32.mxu0 0.0
    %2979 = vmatmul.mubr.f32.gmra.mrb[0].mxu0 %v2843
    %v2980 = vpop.f32.mrb[0].mxu0
    %v2981 = vadd.f32 %v2804, %v2980
    %v2982 = vpop.f32.mrb[0].mxu0
    %2983 = vmatprep.mubr.f32.mxu0 0.0
    %2984 = vmatmul.mubr.f32.gmra.mrb[0].mxu0 %v2846
    %v2985 = vpop.f32.mrb[0].mxu0
    %v2986 = vadd.f32 %v2804, %v2985
    %v2987 = vpop.f32.mrb[0].mxu0
    %2988 = vmatprep.mubr.f32.mxu0 0.0
    %2989 = vmatmul.mubr.f32.gmra.mrb[0].mxu0 %v2849
    %v2990 = vpop.f32.mrb[0].mxu0
    %v2991 = vadd.f32 %v2804, %v2990
    %v2992 = vpop.f32.mrb[0].mxu0
    %2993 = vmatprep.mubr.f32.mxu0 0.0
    %2994 = vmatmul.mubr.f32.gmra.mrb[0].mxu0 %v2852
    %v2995 = vpop.f32.mrb[0].mxu0
    %v2996 = vadd.f32 %v2804, %v2995
    %v2997 = vpop.f32.mrb[0].mxu0
    %2998 = vdwg.mxu0
    %v2999 = vmul.f32 %v2921, %v2921
    %v3000 = vmul.f32 %v2926, %v2926
    %v3001 = vmul.f32 %v2931, %v2931
    %v3002 = vmul.f32 %v2936, %v2936
    %v3003 = vmul.f32 %v2941, %v2941
    %v3004 = vmul.f32 %v2946, %v2946
    %v3005 = vmul.f32 %v2951, %v2951
    %v3006 = vmul.f32 %v2956, %v2956
    %v3007 = vmul.f32 %v2961, %v2961
    %v3008 = vmul.f32 %v2966, %v2966
    %v3009 = vmul.f32 %v2971, %v2971
    %v3010 = vmul.f32 %v2976, %v2976
    %v3011 = vmul.f32 %v2981, %v2981
    %v3012 = vmul.f32 %v2986, %v2986
    %v3013 = vmul.f32 %v2991, %v2991
    %v3014 = vmul.f32 %v2996, %v2996
    %v3015 = vmul.f32 %v2921, %v2999
    %v3016 = vmul.f32 %v2926, %v3000
    %v3017 = vmul.f32 %v2931, %v3001
    %v3018 = vmul.f32 %v2936, %v3002
    %v3019 = vmul.f32 %v2941, %v3003
    %v3020 = vmul.f32 %v2946, %v3004
    %v3021 = vmul.f32 %v2951, %v3005
    %v3022 = vmul.f32 %v2956, %v3006
    %v3023 = vmul.f32 %v2961, %v3007
    %v3024 = vmul.f32 %v2966, %v3008
    %v3025 = vmul.f32 %v2971, %v3009
    %v3026 = vmul.f32 %v2976, %v3010
    %v3027 = vmul.f32 %v2981, %v3011
    %v3028 = vmul.f32 %v2986, %v3012
    %v3029 = vmul.f32 %v2991, %v3013
    %v3030 = vmul.f32 %v2996, %v3014
    %v3031 = vmul.f32 %v3015, 0.044715
    %v3032 = vmul.f32 %v3016, 0.044715
    %v3033 = vmul.f32 %v3017, 0.044715
    %v3034 = vmul.f32 %v3018, 0.044715
    %v3035 = vmul.f32 %v3019, 0.044715
    %v3036 = vmul.f32 %v3020, 0.044715
    %v3037 = vmul.f32 %v3021, 0.044715
    %v3038 = vmul.f32 %v3022, 0.044715
    %v3039 = vmul.f32 %v3023, 0.044715
    %v3040 = vmul.f32 %v3024, 0.044715
    %v3041 = vmul.f32 %v3025, 0.044715
    %v3042 = vmul.f32 %v3026, 0.044715
    %v3043 = vmul.f32 %v3027, 0.044715
    %v3044 = vmul.f32 %v3028, 0.044715
    %v3045 = vmul.f32 %v3029, 0.044715
    %v3046 = vmul.f32 %v3030, 0.044715
    %v3047 = vadd.f32 %v2921, %v3031
    %v3048 = vadd.f32 %v2926, %v3032
    %v3049 = vadd.f32 %v2931, %v3033
    %v3050 = vadd.f32 %v2936, %v3034
    %v3051 = vadd.f32 %v2941, %v3035
    %v3052 = vadd.f32 %v2946, %v3036
    %v3053 = vadd.f32 %v2951, %v3037
    %v3054 = vadd.f32 %v2956, %v3038
    %v3055 = vadd.f32 %v2961, %v3039
    %v3056 = vadd.f32 %v2966, %v3040
    %v3057 = vadd.f32 %v2971, %v3041
    %v3058 = vadd.f32 %v2976, %v3042
    %v3059 = vadd.f32 %v2981, %v3043
    %v3060 = vadd.f32 %v2986, %v3044
    %v3061 = vadd.f32 %v2991, %v3045
    %v3062 = vadd.f32 %v2996, %v3046
    %v3063 = vmul.f32 %v3047, 0.7978846
    %v3064 = vmul.f32 %v3048, 0.7978846
    %v3065 = vmul.f32 %v3049, 0.7978846
    %v3066 = vmul.f32 %v3050, 0.7978846
    %v3067 = vmul.f32 %v3051, 0.7978846
    %v3068 = vmul.f32 %v3052, 0.7978846
    %v3069 = vmul.f32 %v3053, 0.7978846
    %v3070 = vmul.f32 %v3054, 0.7978846
    %v3071 = vmul.f32 %v3055, 0.7978846
    %v3072 = vmul.f32 %v3056, 0.7978846
    %v3073 = vmul.f32 %v3057, 0.7978846
    %v3074 = vmul.f32 %v3058, 0.7978846
    %v3075 = vmul.f32 %v3059, 0.7978846
    %v3076 = vmul.f32 %v3060, 0.7978846
    %v3077 = vmul.f32 %v3061, 0.7978846
    %v3078 = vmul.f32 %v3062, 0.7978846
    %v3079 = vtanh.pop %v3063
    %v3080 = vtanh.pop %v3064
    %v3081 = vtanh.pop %v3065
    %v3082 = vtanh.pop %v3066
    %v3083 = vtanh.pop %v3067
    %v3084 = vtanh.pop %v3068
    %v3085 = vtanh.pop %v3069
    %v3086 = vtanh.pop %v3070
    %v3087 = vtanh.pop %v3071
    %v3088 = vtanh.pop %v3072
    %v3089 = vtanh.pop %v3073
    %v3090 = vtanh.pop %v3074
    %v3091 = vtanh.pop %v3075
    %v3092 = vtanh.pop %v3076
    %v3093 = vtanh.pop %v3077
    %v3094 = vtanh.pop %v3078
    %v3095 = vadd.f32 %v3079, 1.0
    %v3096 = vadd.f32 %v3080, 1.0
    %v3097 = vadd.f32 %v3081, 1.0
    %v3098 = vadd.f32 %v3082, 1.0
    %v3099 = vadd.f32 %v3083, 1.0
    %v3100 = vadd.f32 %v3084, 1.0
    %v3101 = vadd.f32 %v3085, 1.0
    %v3102 = vadd.f32 %v3086, 1.0
    %v3103 = vadd.f32 %v3087, 1.0
    %v3104 = vadd.f32 %v3088, 1.0
    %v3105 = vadd.f32 %v3089, 1.0
    %v3106 = vadd.f32 %v3090, 1.0
    %v3107 = vadd.f32 %v3091, 1.0
    %v3108 = vadd.f32 %v3092, 1.0
    %v3109 = vadd.f32 %v3093, 1.0
    %v3110 = vadd.f32 %v3094, 1.0
    %v3111 = vmul.f32 %v3095, 0.5
    %v3112 = vmul.f32 %v3096, 0.5
    %v3113 = vmul.f32 %v3097, 0.5
    %v3114 = vmul.f32 %v3098, 0.5
    %v3115 = vmul.f32 %v3099, 0.5
    %v3116 = vmul.f32 %v3100, 0.5
    %v3117 = vmul.f32 %v3101, 0.5
    %v3118 = vmul.f32 %v3102, 0.5
    %v3119 = vmul.f32 %v3103, 0.5
    %v3120 = vmul.f32 %v3104, 0.5
    %v3121 = vmul.f32 %v3105, 0.5
    %v3122 = vmul.f32 %v3106, 0.5
    %v3123 = vmul.f32 %v3107, 0.5
    %v3124 = vmul.f32 %v3108, 0.5
    %v3125 = vmul.f32 %v3109, 0.5
    %v3126 = vmul.f32 %v3110, 0.5
    %v3127 = vmul.f32 %v2921, %v3111
    %v3128 = vmul.f32 %v2926, %v3112
    %v3129 = vmul.f32 %v2931, %v3113
    %v3130 = vmul.f32 %v2936, %v3114
    %v3131 = vmul.f32 %v2941, %v3115
    %v3132 = vmul.f32 %v2946, %v3116
    %v3133 = vmul.f32 %v2951, %v3117
    %v3134 = vmul.f32 %v2956, %v3118
    %v3135 = vmul.f32 %v2961, %v3119
    %v3136 = vmul.f32 %v2966, %v3120
    %v3137 = vmul.f32 %v2971, %v3121
    %v3138 = vmul.f32 %v2976, %v3122
    %v3139 = vmul.f32 %v2981, %v3123
    %v3140 = vmul.f32 %v2986, %v3124
    %v3141 = vmul.f32 %v2991, %v3125
    %v3142 = vmul.f32 %v2996, %v3126
    %v3143 = vld [vmem:[%s10] sm:$0xff]
    %v3144 = vld [vmem:[%s10 + $0x8] sm:$0xff]
    %v3145 = vld [vmem:[%s10 + $0x10] sm:$0xff]
    %v3146 = vld [vmem:[%s10 + $0x18] sm:$0xff]
    %v3147 = vld [vmem:[%s10 + $0x20] sm:$0xff]
    %v3148 = vld [vmem:[%s10 + $0x28] sm:$0xff]
    %v3149 = vld [vmem:[%s10 + $0x30] sm:$0xff]
    %v3150 = vld [vmem:[%s10 + $0x38] sm:$0xff]
    %v3151 = vld [vmem:[%s10 + $0x40] sm:$0xff]
    %v3152 = vld [vmem:[%s10 + $0x48] sm:$0xff]
    %v3153 = vld [vmem:[%s10 + $0x50] sm:$0xff]
    %v3154 = vld [vmem:[%s10 + $0x58] sm:$0xff]
    %v3155 = vld [vmem:[%s10 + $0x60] sm:$0xff]
    %v3156 = vld [vmem:[%s10 + $0x68] sm:$0xff]
    %v3157 = vld [vmem:[%s10 + $0x70] sm:$0xff]
    %v3158 = vld [vmem:[%s10 + $0x78] sm:$0xff]
    %v3159 = vld [vmem:[%s11] sm:$0x1]
    %v3161 = vlaneseq
    %v3162 = vshrl.u32 %v3161, 7
    %v3163 = vsub.s32 0, %v3162
    %v3164 = vrot.slane %v3159, %v3163
    %3166 = vmatprep.subr.mxu0 0.0
    %3167 = vmatpush1.msra.mxu0 %v3143
    %3168 = vmatprep.subr.mxu0 0.0
    %3169 = vmatpush1.msra.mxu0 %v3144
    %3170 = vmatprep.subr.mxu0 0.0
    %3171 = vmatpush1.msra.mxu0 %v3145
    %3172 = vmatprep.subr.mxu0 0.0
    %3173 = vmatpush1.msra.mxu0 %v3146
    %3174 = vmatprep.subr.mxu0 0.0
    %3175 = vmatpush1.msra.mxu0 %v3147
    %3176 = vmatprep.subr.mxu0 0.0
    %3177 = vmatpush1.msra.mxu0 %v3148
    %3178 = vmatprep.subr.mxu0 0.0
    %3179 = vmatpush1.msra.mxu0 %v3149
    %3180 = vmatprep.subr.mxu0 0.0
    %3181 = vmatpush1.msra.mxu0 %v3150
    %3182 = vmatprep.subr.mxu0 0.0
    %3183 = vmatpush1.msra.mxu0 %v3151
    %3184 = vmatprep.subr.mxu0 0.0
    %3185 = vmatpush1.msra.mxu0 %v3152
    %3186 = vmatprep.subr.mxu0 0.0
    %3187 = vmatpush1.msra.mxu0 %v3153
    %3188 = vmatprep.subr.mxu0 0.0
    %3189 = vmatpush1.msra.mxu0 %v3154
    %3190 = vmatprep.subr.mxu0 0.0
    %3191 = vmatpush1.msra.mxu0 %v3155
    %3192 = vmatprep.subr.mxu0 0.0
    %3193 = vmatpush1.msra.mxu0 %v3156
    %3194 = vmatprep.subr.mxu0 0.0
    %3195 = vmatpush1.msra.mxu0 %v3157
    %3196 = vmatprep.subr.mxu0 0.0
    %3197 = vmatpush1.msra.mxu0 %v3158
    %3198 = vmatprep.subr.mxu0 0.0
    %3199 = vmatpush1.msra.mxu0 0.0
    %3200 = vmatprep.subr.mxu0 0.0
    %3201 = vmatpush1.msra.mxu0 0.0
    %3202 = vmatprep.subr.mxu0 0.0
    %3203 = vmatpush1.msra.mxu0 0.0
    %3204 = vmatprep.subr.mxu0 0.0
    %3205 = vmatpush1.msra.mxu0 0.0
    %3206 = vmatprep.subr.mxu0 0.0
    %3207 = vmatpush1.msra.mxu0 0.0
    %3208 = vmatprep.subr.mxu0 0.0
    %3209 = vmatpush1.msra.mxu0 0.0
    %3210 = vmatprep.subr.mxu0 0.0
    %3211 = vmatpush1.msra.mxu0 0.0
    %3212 = vmatprep.subr.mxu0 0.0
    %3213 = vmatpush1.msra.mxu0 0.0
    %3214 = vmatprep.subr.mxu0 0.0
    %3215 = vmatpush1.msra.mxu0 0.0
    %3216 = vmatprep.subr.mxu0 0.0
    %3217 = vmatpush1.msra.mxu0 0.0
    %3218 = vmatprep.subr.mxu0 0.0
    %3219 = vmatpush1.msra.mxu0 0.0
    %3220 = vmatprep.subr.mxu0 0.0
    %3221 = vmatpush1.msra.mxu0 0.0
    %3222 = vmatprep.subr.mxu0 0.0
    %3223 = vmatpush1.msra.mxu0 0.0
    %3224 = vmatprep.subr.mxu0 0.0
    %3225 = vmatpush1.msra.mxu0 0.0
    %3226 = vmatprep.subr.mxu0 0.0
    %3227 = vmatpush1.msra.mxu0 0.0
    %3228 = vmatprep.subr.mxu0 0.0
    %3229 = vmatpush1.msra.mxu0 0.0
    %3230 = vmatprep.mubr.f32.mxu0 0.0
    %3231 = vmatmul.mubr.f32.gmra.mrb[0].mxu0 %v3127
    %v3232 = vpop.f32.mrb[0].mxu0
    %v3233 = vadd.f32 %v3164, %v3232
    %v3234 = vpop.f32.mrb[0].mxu0
    %3235 = vmatprep.mubr.f32.mxu0 0.0
    %3236 = vmatmul.mubr.f32.gmra.mrb[0].mxu0 %v3128
    %v3237 = vpop.f32.mrb[0].mxu0
    %v3238 = vadd.f32 %v3164, %v3237
    %v3239 = vpop.f32.mrb[0].mxu0
    %3240 = vmatprep.mubr.f32.mxu0 0.0
    %3241 = vmatmul.mubr.f32.gmra.mrb[0].mxu0 %v3129
    %v3242 = vpop.f32.mrb[0].mxu0
    %v3243 = vadd.f32 %v3164, %v3242
    %v3244 = vpop.f32.mrb[0].mxu0
    %3245 = vmatprep.mubr.f32.mxu0 0.0
    %3246 = vmatmul.mubr.f32.gmra.mrb[0].mxu0 %v3130
    %v3247 = vpop.f32.mrb[0].mxu0
    %v3248 = vadd.f32 %v3164, %v3247
    %v3249 = vpop.f32.mrb[0].mxu0
    %3250 = vmatprep.mubr.f32.mxu0 0.0
    %3251 = vmatmul.mubr.f32.gmra.mrb[0].mxu0 %v3131
    %v3252 = vpop.f32.mrb[0].mxu0
    %v3253 = vadd.f32 %v3164, %v3252
    %v3254 = vpop.f32.mrb[0].mxu0
    %3255 = vmatprep.mubr.f32.mxu0 0.0
    %3256 = vmatmul.mubr.f32.gmra.mrb[0].mxu0 %v3132
    %v3257 = vpop.f32.mrb[0].mxu0
    %v3258 = vadd.f32 %v3164, %v3257
    %v3259 = vpop.f32.mrb[0].mxu0
    %3260 = vmatprep.mubr.f32.mxu0 0.0
    %3261 = vmatmul.mubr.f32.gmra.mrb[0].mxu0 %v3133
    %v3262 = vpop.f32.mrb[0].mxu0
    %v3263 = vadd.f32 %v3164, %v3262
    %v3264 = vpop.f32.mrb[0].mxu0
    %3265 = vmatprep.mubr.f32.mxu0 0.0
    %3266 = vmatmul.mubr.f32.gmra.mrb[0].mxu0 %v3134
    %v3267 = vpop.f32.mrb[0].mxu0
    %v3268 = vadd.f32 %v3164, %v3267
    %v3269 = vpop.f32.mrb[0].mxu0
    %3270 = vmatprep.mubr.f32.mxu0 0.0
    %3271 = vmatmul.mubr.f32.gmra.mrb[0].mxu0 %v3135
    %v3272 = vpop.f32.mrb[0].mxu0
    %v3273 = vadd.f32 %v3164, %v3272
    %v3274 = vpop.f32.mrb[0].mxu0
    %3275 = vmatprep.mubr.f32.mxu0 0.0
    %3276 = vmatmul.mubr.f32.gmra.mrb[0].mxu0 %v3136
    %v3277 = vpop.f32.mrb[0].mxu0
    %v3278 = vadd.f32 %v3164, %v3277
    %v3279 = vpop.f32.mrb[0].mxu0
    %3280 = vmatprep.mubr.f32.mxu0 0.0
    %3281 = vmatmul.mubr.f32.gmra.mrb[0].mxu0 %v3137
    %v3282 = vpop.f32.mrb[0].mxu0
    %v3283 = vadd.f32 %v3164, %v3282
    %v3284 = vpop.f32.mrb[0].mxu0
    %3285 = vmatprep.mubr.f32.mxu0 0.0
    %3286 = vmatmul.mubr.f32.gmra.mrb[0].mxu0 %v3138
    %v3287 = vpop.f32.mrb[0].mxu0
    %v3288 = vadd.f32 %v3164, %v3287
    %v3289 = vpop.f32.mrb[0].mxu0
    %3290 = vmatprep.mubr.f32.mxu0 0.0
    %3291 = vmatmul.mubr.f32.gmra.mrb[0].mxu0 %v3139
    %v3292 = vpop.f32.mrb[0].mxu0
    %v3293 = vadd.f32 %v3164, %v3292
    %v3294 = vpop.f32.mrb[0].mxu0
    %3295 = vmatprep.mubr.f32.mxu0 0.0
    %3296 = vmatmul.mubr.f32.gmra.mrb[0].mxu0 %v3140
    %v3297 = vpop.f32.mrb[0].mxu0
    %v3298 = vadd.f32 %v3164, %v3297
    %v3299 = vpop.f32.mrb[0].mxu0
    %3300 = vmatprep.mubr.f32.mxu0 0.0
    %3301 = vmatmul.mubr.f32.gmra.mrb[0].mxu0 %v3141
    %v3302 = vpop.f32.mrb[0].mxu0
    %v3303 = vadd.f32 %v3164, %v3302
    %v3304 = vpop.f32.mrb[0].mxu0
    %3305 = vmatprep.mubr.f32.mxu0 0.0
    %3306 = vmatmul.mubr.f32.gmra.mrb[0].mxu0 %v3142
    %v3307 = vpop.f32.mrb[0].mxu0
    %v3308 = vadd.f32 %v3164, %v3307
    %v3309 = vpop.f32.mrb[0].mxu0
    %3310 = vdwg.mxu0
    %v3311 = vadd.f32 %v2531, %v3233
    %v3312 = vadd.f32 %v2532, %v3238
    %v3313 = vadd.f32 %v2533, %v3243
    %v3314 = vadd.f32 %v2534, %v3248
    %v3315 = vadd.f32 %v2535, %v3253
    %v3316 = vadd.f32 %v2536, %v3258
    %v3317 = vadd.f32 %v2537, %v3263
    %v3318 = vadd.f32 %v2538, %v3268
    %v3319 = vadd.f32 %v2539, %v3273
    %v3320 = vadd.f32 %v2540, %v3278
    %v3321 = vadd.f32 %v2541, %v3283
    %v3322 = vadd.f32 %v2542, %v3288
    %v3323 = vadd.f32 %v2543, %v3293
    %v3324 = vadd.f32 %v2544, %v3298
    %v3325 = vadd.f32 %v2545, %v3303
    %v3326 = vadd.f32 %v2546, %v3308
    %s3327 = scalar_lea.vmem %s3, 4
    %v3328 = vld [vmem:[%s3327] sm:$0xf]
    %v3329 = vsel %vm272, %v3311, 0.0
    %3330 = vadd.xlane.f32.xlu0 %v3329
    %v3331 = vpop.xlane.xlu0 %3330
    %v3332 = vsel %vm272, %v3312, 0.0
    %3333 = vadd.xlane.f32.xlu0 %v3332
    %v3334 = vpop.xlane.xlu0 %3333
    %v3335 = vsel %vm272, %v3313, 0.0
    %3336 = vadd.xlane.f32.xlu0 %v3335
    %v3337 = vpop.xlane.xlu0 %3336
    %v3338 = vsel %vm272, %v3314, 0.0
    %3339 = vadd.xlane.f32.xlu0 %v3338
    %v3340 = vpop.xlane.xlu0 %3339
    %v3341 = vsel %vm272, %v3315, 0.0
    %3342 = vadd.xlane.f32.xlu0 %v3341
    %v3343 = vpop.xlane.xlu0 %3342
    %v3344 = vsel %vm272, %v3316, 0.0
    %3345 = vadd.xlane.f32.xlu0 %v3344
    %v3346 = vpop.xlane.xlu0 %3345
    %v3347 = vsel %vm272, %v3317, 0.0
    %3348 = vadd.xlane.f32.xlu0 %v3347
    %v3349 = vpop.xlane.xlu0 %3348
    %v3350 = vsel %vm272, %v3318, 0.0
    %3351 = vadd.xlane.f32.xlu0 %v3350
    %v3352 = vpop.xlane.xlu0 %3351
    %v3353 = vsel %vm272, %v3319, 0.0
    %3354 = vadd.xlane.f32.xlu0 %v3353
    %v3355 = vpop.xlane.xlu0 %3354
    %v3356 = vsel %vm272, %v3320, 0.0
    %3357 = vadd.xlane.f32.xlu0 %v3356
    %v3358 = vpop.xlane.xlu0 %3357
    %v3359 = vsel %vm272, %v3321, 0.0
    %3360 = vadd.xlane.f32.xlu0 %v3359
    %v3361 = vpop.xlane.xlu0 %3360
    %v3362 = vsel %vm272, %v3322, 0.0
    %3363 = vadd.xlane.f32.xlu0 %v3362
    %v3364 = vpop.xlane.xlu0 %3363
    %v3365 = vsel %vm272, %v3323, 0.0
    %3366 = vadd.xlane.f32.xlu0 %v3365
    %v3367 = vpop.xlane.xlu0 %3366
    %v3368 = vsel %vm272, %v3324, 0.0
    %3369 = vadd.xlane.f32.xlu0 %v3368
    %v3370 = vpop.xlane.xlu0 %3369
    %v3371 = vsel %vm272, %v3325, 0.0
    %3372 = vadd.xlane.f32.xlu0 %v3371
    %v3373 = vpop.xlane.xlu0 %3372
    %v3374 = vsel %vm272, %v3326, 0.0
    %3375 = vadd.xlane.f32.xlu0 %v3374
    %v3376 = vpop.xlane.xlu0 %3375
    %v3377 = vmul.f32 %v3331, %v321
    %v3378 = vmul.f32 %v3334, %v321
    %v3379 = vmul.f32 %v3337, %v321
    %v3380 = vmul.f32 %v3340, %v321
    %v3381 = vmul.f32 %v3343, %v321
    %v3382 = vmul.f32 %v3346, %v321
    %v3383 = vmul.f32 %v3349, %v321
    %v3384 = vmul.f32 %v3352, %v321
    %v3385 = vmul.f32 %v3355, %v321
    %v3386 = vmul.f32 %v3358, %v321
    %v3387 = vmul.f32 %v3361, %v321
    %v3388 = vmul.f32 %v3364, %v321
    %v3389 = vmul.f32 %v3367, %v321
    %v3390 = vmul.f32 %v3370, %v321
    %v3391 = vmul.f32 %v3373, %v321
    %v3392 = vmul.f32 %v3376, %v321
    %v3393 = vsub.f32 %v3311, %v3377
    %v3394 = vsub.f32 %v3312, %v3378
    %v3395 = vsub.f32 %v3313, %v3379
    %v3396 = vsub.f32 %v3314, %v3380
    %v3397 = vsub.f32 %v3315, %v3381
    %v3398 = vsub.f32 %v3316, %v3382
    %v3399 = vsub.f32 %v3317, %v3383
    %v3400 = vsub.f32 %v3318, %v3384
    %v3401 = vsub.f32 %v3319, %v3385
    %v3402 = vsub.f32 %v3320, %v3386
    %v3403 = vsub.f32 %v3321, %v3387
    %v3404 = vsub.f32 %v3322, %v3388
    %v3405 = vsub.f32 %v3323, %v3389
    %v3406 = vsub.f32 %v3324, %v3390
    %v3407 = vsub.f32 %v3325, %v3391
    %v3408 = vsub.f32 %v3326, %v3392
    %v3409 = vmul.f32 %v3393, %v3393
    %v3410 = vmul.f32 %v3394, %v3394
    %v3411 = vmul.f32 %v3395, %v3395
    %v3412 = vmul.f32 %v3396, %v3396
    %v3413 = vmul.f32 %v3397, %v3397
    %v3414 = vmul.f32 %v3398, %v3398
    %v3415 = vmul.f32 %v3399, %v3399
    %v3416 = vmul.f32 %v3400, %v3400
    %v3417 = vmul.f32 %v3401, %v3401
    %v3418 = vmul.f32 %v3402, %v3402
    %v3419 = vmul.f32 %v3403, %v3403
    %v3420 = vmul.f32 %v3404, %v3404
    %v3421 = vmul.f32 %v3405, %v3405
    %v3422 = vmul.f32 %v3406, %v3406
    %v3423 = vmul.f32 %v3407, %v3407
    %v3424 = vmul.f32 %v3408, %v3408
    %v3425 = vsel %vm272, %v3409, 0.0
    %3426 = vadd.xlane.f32.xlu0 %v3425
    %v3427 = vpop.xlane.xlu0 %3426
    %v3428 = vsel %vm272, %v3410, 0.0
    %3429 = vadd.xlane.f32.xlu0 %v3428
    %v3430 = vpop.xlane.xlu0 %3429
    %v3431 = vsel %vm272, %v3411, 0.0
    %3432 = vadd.xlane.f32.xlu0 %v3431
    %v3433 = vpop.xlane.xlu0 %3432
    %v3434 = vsel %vm272, %v3412, 0.0
    %3435 = vadd.xlane.f32.xlu0 %v3434
    %v3436 = vpop.xlane.xlu0 %3435
    %v3437 = vsel %vm272, %v3413, 0.0
    %3438 = vadd.xlane.f32.xlu0 %v3437
    %v3439 = vpop.xlane.xlu0 %3438
    %v3440 = vsel %vm272, %v3414, 0.0
    %3441 = vadd.xlane.f32.xlu0 %v3440
    %v3442 = vpop.xlane.xlu0 %3441
    %v3443 = vsel %vm272, %v3415, 0.0
    %3444 = vadd.xlane.f32.xlu0 %v3443
    %v3445 = vpop.xlane.xlu0 %3444
    %v3446 = vsel %vm272, %v3416, 0.0
    %3447 = vadd.xlane.f32.xlu0 %v3446
    %v3448 = vpop.xlane.xlu0 %3447
    %v3449 = vsel %vm272, %v3417, 0.0
    %3450 = vadd.xlane.f32.xlu0 %v3449
    %v3451 = vpop.xlane.xlu0 %3450
    %v3452 = vsel %vm272, %v3418, 0.0
    %3453 = vadd.xlane.f32.xlu0 %v3452
    %v3454 = vpop.xlane.xlu0 %3453
    %v3455 = vsel %vm272, %v3419, 0.0
    %3456 = vadd.xlane.f32.xlu0 %v3455
    %v3457 = vpop.xlane.xlu0 %3456
    %v3458 = vsel %vm272, %v3420, 0.0
    %3459 = vadd.xlane.f32.xlu0 %v3458
    %v3460 = vpop.xlane.xlu0 %3459
    %v3461 = vsel %vm272, %v3421, 0.0
    %3462 = vadd.xlane.f32.xlu0 %v3461
    %v3463 = vpop.xlane.xlu0 %3462
    %v3464 = vsel %vm272, %v3422, 0.0
    %3465 = vadd.xlane.f32.xlu0 %v3464
    %v3466 = vpop.xlane.xlu0 %3465
    %v3467 = vsel %vm272, %v3423, 0.0
    %3468 = vadd.xlane.f32.xlu0 %v3467
    %v3469 = vpop.xlane.xlu0 %3468
    %v3470 = vsel %vm272, %v3424, 0.0
    %3471 = vadd.xlane.f32.xlu0 %v3470
    %v3472 = vpop.xlane.xlu0 %3471
    %v3473 = vmul.f32 %v3427, %v321
    %v3474 = vmul.f32 %v3430, %v321
    %v3475 = vmul.f32 %v3433, %v321
    %v3476 = vmul.f32 %v3436, %v321
    %v3477 = vmul.f32 %v3439, %v321
    %v3478 = vmul.f32 %v3442, %v321
    %v3479 = vmul.f32 %v3445, %v321
    %v3480 = vmul.f32 %v3448, %v321
    %v3481 = vmul.f32 %v3451, %v321
    %v3482 = vmul.f32 %v3454, %v321
    %v3483 = vmul.f32 %v3457, %v321
    %v3484 = vmul.f32 %v3460, %v321
    %v3485 = vmul.f32 %v3463, %v321
    %v3486 = vmul.f32 %v3466, %v321
    %v3487 = vmul.f32 %v3469, %v321
    %v3488 = vmul.f32 %v3472, %v321
    %v3489 = vadd.f32 %v3473, 1e-06
    %v3490 = vadd.f32 %v3474, 1e-06
    %v3491 = vadd.f32 %v3475, 1e-06
    %v3492 = vadd.f32 %v3476, 1e-06
    %v3493 = vadd.f32 %v3477, 1e-06
    %v3494 = vadd.f32 %v3478, 1e-06
    %v3495 = vadd.f32 %v3479, 1e-06
    %v3496 = vadd.f32 %v3480, 1e-06
    %v3497 = vadd.f32 %v3481, 1e-06
    %v3498 = vadd.f32 %v3482, 1e-06
    %v3499 = vadd.f32 %v3483, 1e-06
    %v3500 = vadd.f32 %v3484, 1e-06
    %v3501 = vadd.f32 %v3485, 1e-06
    %v3502 = vadd.f32 %v3486, 1e-06
    %v3503 = vadd.f32 %v3487, 1e-06
    %v3504 = vadd.f32 %v3488, 1e-06
    %v3505 = vrsqrt.pop %v3489
    %v3506 = vrsqrt.pop %v3490
    %v3507 = vrsqrt.pop %v3491
    %v3508 = vrsqrt.pop %v3492
    %v3509 = vrsqrt.pop %v3493
    %v3510 = vrsqrt.pop %v3494
    %v3511 = vrsqrt.pop %v3495
    %v3512 = vrsqrt.pop %v3496
    %v3513 = vrsqrt.pop %v3497
    %v3514 = vrsqrt.pop %v3498
    %v3515 = vrsqrt.pop %v3499
    %v3516 = vrsqrt.pop %v3500
    %v3517 = vrsqrt.pop %v3501
    %v3518 = vrsqrt.pop %v3502
    %v3519 = vrsqrt.pop %v3503
    %v3520 = vrsqrt.pop %v3504
    %v3521 = vmul.f32 %v3393, %v3505
    %v3522 = vmul.f32 %v3394, %v3506
    %v3523 = vmul.f32 %v3395, %v3507
    %v3524 = vmul.f32 %v3396, %v3508
    %v3525 = vmul.f32 %v3397, %v3509
    %v3526 = vmul.f32 %v3398, %v3510
    %v3527 = vmul.f32 %v3399, %v3511
    %v3528 = vmul.f32 %v3400, %v3512
    %v3529 = vmul.f32 %v3401, %v3513
    %v3530 = vmul.f32 %v3402, %v3514
    %v3531 = vmul.f32 %v3403, %v3515
    %v3532 = vmul.f32 %v3404, %v3516
    %v3533 = vmul.f32 %v3405, %v3517
    %v3534 = vmul.f32 %v3406, %v3518
    %v3535 = vmul.f32 %v3407, %v3519
    %v3536 = vmul.f32 %v3408, %v3520
    %v3537 = vlaneseq
    %v3538 = vshrl.u32 %v3537, 7
    %v3539 = vsub.s32 0, %v3538
    %v3540 = vrot.slane %v3328, %v3539
    %v3541 = vmul.f32 %v3521, %v3540
    %v3542 = vmul.f32 %v3522, %v3540
    %v3543 = vmul.f32 %v3523, %v3540
    %v3544 = vmul.f32 %v3524, %v3540
    %v3545 = vmul.f32 %v3525, %v3540
    %v3546 = vmul.f32 %v3526, %v3540
    %v3547 = vmul.f32 %v3527, %v3540
    %v3548 = vmul.f32 %v3528, %v3540
    %v3549 = vmul.f32 %v3529, %v3540
    %v3550 = vmul.f32 %v3530, %v3540
    %v3551 = vmul.f32 %v3531, %v3540
    %v3552 = vmul.f32 %v3532, %v3540
    %v3553 = vmul.f32 %v3533, %v3540
    %v3554 = vmul.f32 %v3534, %v3540
    %v3555 = vmul.f32 %v3535, %v3540
    %v3556 = vmul.f32 %v3536, %v3540
    %v3557 = vlaneseq
    %v3558 = vshrl.u32 %v3557, 7
    %v3559 = vsub.s32 1, %v3558
    %v3560 = vrot.slane %v3328, %v3559
    %v3561 = vadd.f32 %v3541, %v3560
    %v3562 = vadd.f32 %v3542, %v3560
    %v3563 = vadd.f32 %v3543, %v3560
    %v3564 = vadd.f32 %v3544, %v3560
    %v3565 = vadd.f32 %v3545, %v3560
    %v3566 = vadd.f32 %v3546, %v3560
    %v3567 = vadd.f32 %v3547, %v3560
    %v3568 = vadd.f32 %v3548, %v3560
    %v3569 = vadd.f32 %v3549, %v3560
    %v3570 = vadd.f32 %v3550, %v3560
    %v3571 = vadd.f32 %v3551, %v3560
    %v3572 = vadd.f32 %v3552, %v3560
    %v3573 = vadd.f32 %v3553, %v3560
    %v3574 = vadd.f32 %v3554, %v3560
    %v3575 = vadd.f32 %v3555, %v3560
    %v3576 = vadd.f32 %v3556, %v3560
    %s3577 = scalar_lea.vmem %s4, 32
    %v3578 = vld [vmem:[%s3577] sm:$0xff]
    %v3579 = vld [vmem:[%s3577 + $0x8] sm:$0xff]
    %v3580 = vld [vmem:[%s3577 + $0x10] sm:$0xff]
    %v3581 = vld [vmem:[%s3577 + $0x18] sm:$0xff]
    %s3582 = scalar_lea.vmem %s5, 1
    %v3583 = vld [vmem:[%s3582] sm:$0x1]
    %v3585 = vlaneseq
    %v3586 = vshrl.u32 %v3585, 7
    %v3587 = vsub.s32 0, %v3586
    %v3588 = vrot.slane %v3583, %v3587
    %v3591 = vsel %vm272, %v3561, 0
    %v3594 = vsel %vm272, %v3562, 0
    %v3597 = vsel %vm272, %v3563, 0
    %v3600 = vsel %vm272, %v3564, 0
    %v3603 = vsel %vm272, %v3565, 0
    %v3606 = vsel %vm272, %v3566, 0
    %v3609 = vsel %vm272, %v3567, 0
    %v3612 = vsel %vm272, %v3568, 0
    %v3615 = vsel %vm272, %v3569, 0
    %v3618 = vsel %vm272, %v3570, 0
    %v3621 = vsel %vm272, %v3571, 0
    %v3624 = vsel %vm272, %v3572, 0
    %v3627 = vsel %vm272, %v3573, 0
    %v3630 = vsel %vm272, %v3574, 0
    %v3633 = vsel %vm272, %v3575, 0
    %v3636 = vsel %vm272, %v3576, 0
    %3638 = vmatprep.subr.mxu0 0.0
    %3639 = vmatpush1.msra.mxu0 %v3578
    %3640 = vmatprep.subr.mxu0 0.0
    %3641 = vmatpush1.msra.mxu0 %v3579
    %3642 = vmatprep.subr.mxu0 0.0
    %3643 = vmatpush1.msra.mxu0 %v3580
    %3644 = vmatprep.subr.mxu0 0.0
    %3645 = vmatpush1.msra.mxu0 %v3581
    %3646 = vmatprep.subr.mxu0 0.0
    %3647 = vmatpush1.msra.mxu0 0.0
    %3648 = vmatprep.subr.mxu0 0.0
    %3649 = vmatpush1.msra.mxu0 0.0
    %3650 = vmatprep.subr.mxu0 0.0
    %3651 = vmatpush1.msra.mxu0 0.0
    %3652 = vmatprep.subr.mxu0 0.0
    %3653 = vmatpush1.msra.mxu0 0.0
    %3654 = vmatprep.subr.mxu0 0.0
    %3655 = vmatpush1.msra.mxu0 0.0
    %3656 = vmatprep.subr.mxu0 0.0
    %3657 = vmatpush1.msra.mxu0 0.0
    %3658 = vmatprep.subr.mxu0 0.0
    %3659 = vmatpush1.msra.mxu0 0.0
    %3660 = vmatprep.subr.mxu0 0.0
    %3661 = vmatpush1.msra.mxu0 0.0
    %3662 = vmatprep.subr.mxu0 0.0
    %3663 = vmatpush1.msra.mxu0 0.0
    %3664 = vmatprep.subr.mxu0 0.0
    %3665 = vmatpush1.msra.mxu0 0.0
    %3666 = vmatprep.subr.mxu0 0.0
    %3667 = vmatpush1.msra.mxu0 0.0
    %3668 = vmatprep.subr.mxu0 0.0
    %3669 = vmatpush1.msra.mxu0 0.0
    %3670 = vmatprep.subr.mxu0 0.0
    %3671 = vmatpush1.msra.mxu0 0.0
    %3672 = vmatprep.subr.mxu0 0.0
    %3673 = vmatpush1.msra.mxu0 0.0
    %3674 = vmatprep.subr.mxu0 0.0
    %3675 = vmatpush1.msra.mxu0 0.0
    %3676 = vmatprep.subr.mxu0 0.0
    %3677 = vmatpush1.msra.mxu0 0.0
    %3678 = vmatprep.subr.mxu0 0.0
    %3679 = vmatpush1.msra.mxu0 0.0
    %3680 = vmatprep.subr.mxu0 0.0
    %3681 = vmatpush1.msra.mxu0 0.0
    %3682 = vmatprep.subr.mxu0 0.0
    %3683 = vmatpush1.msra.mxu0 0.0
    %3684 = vmatprep.subr.mxu0 0.0
    %3685 = vmatpush1.msra.mxu0 0.0
    %3686 = vmatprep.subr.mxu0 0.0
    %3687 = vmatpush1.msra.mxu0 0.0
    %3688 = vmatprep.subr.mxu0 0.0
    %3689 = vmatpush1.msra.mxu0 0.0
    %3690 = vmatprep.subr.mxu0 0.0
    %3691 = vmatpush1.msra.mxu0 0.0
    %3692 = vmatprep.subr.mxu0 0.0
    %3693 = vmatpush1.msra.mxu0 0.0
    %3694 = vmatprep.subr.mxu0 0.0
    %3695 = vmatpush1.msra.mxu0 0.0
    %3696 = vmatprep.subr.mxu0 0.0
    %3697 = vmatpush1.msra.mxu0 0.0
    %3698 = vmatprep.subr.mxu0 0.0
    %3699 = vmatpush1.msra.mxu0 0.0
    %3700 = vmatprep.subr.mxu0 0.0
    %3701 = vmatpush1.msra.mxu0 0.0
    %3702 = vmatprep.mubr.f32.mxu0 0.0
    %3703 = vmatmul.mubr.f32.gmra.mrb[0].mxu0 %v3591
    %v3704 = vpop.f32.mrb[0].mxu0
    %v3705 = vadd.f32 %v3588, %v3704
    %v3706 = vpop.f32.mrb[0].mxu0
    %3707 = vmatprep.mubr.f32.mxu0 0.0
    %3708 = vmatmul.mubr.f32.gmra.mrb[0].mxu0 %v3594
    %v3709 = vpop.f32.mrb[0].mxu0
    %v3710 = vadd.f32 %v3588, %v3709
    %v3711 = vpop.f32.mrb[0].mxu0
    %3712 = vmatprep.mubr.f32.mxu0 0.0
    %3713 = vmatmul.mubr.f32.gmra.mrb[0].mxu0 %v3597
    %v3714 = vpop.f32.mrb[0].mxu0
    %v3715 = vadd.f32 %v3588, %v3714
    %v3716 = vpop.f32.mrb[0].mxu0
    %3717 = vmatprep.mubr.f32.mxu0 0.0
    %3718 = vmatmul.mubr.f32.gmra.mrb[0].mxu0 %v3600
    %v3719 = vpop.f32.mrb[0].mxu0
    %v3720 = vadd.f32 %v3588, %v3719
    %v3721 = vpop.f32.mrb[0].mxu0
    %3722 = vmatprep.mubr.f32.mxu0 0.0
    %3723 = vmatmul.mubr.f32.gmra.mrb[0].mxu0 %v3603
    %v3724 = vpop.f32.mrb[0].mxu0
    %v3725 = vadd.f32 %v3588, %v3724
    %v3726 = vpop.f32.mrb[0].mxu0
    %3727 = vmatprep.mubr.f32.mxu0 0.0
    %3728 = vmatmul.mubr.f32.gmra.mrb[0].mxu0 %v3606
    %v3729 = vpop.f32.mrb[0].mxu0
    %v3730 = vadd.f32 %v3588, %v3729
    %v3731 = vpop.f32.mrb[0].mxu0
    %3732 = vmatprep.mubr.f32.mxu0 0.0
    %3733 = vmatmul.mubr.f32.gmra.mrb[0].mxu0 %v3609
    %v3734 = vpop.f32.mrb[0].mxu0
    %v3735 = vadd.f32 %v3588, %v3734
    %v3736 = vpop.f32.mrb[0].mxu0
    %3737 = vmatprep.mubr.f32.mxu0 0.0
    %3738 = vmatmul.mubr.f32.gmra.mrb[0].mxu0 %v3612
    %v3739 = vpop.f32.mrb[0].mxu0
    %v3740 = vadd.f32 %v3588, %v3739
    %v3741 = vpop.f32.mrb[0].mxu0
    %3742 = vmatprep.mubr.f32.mxu0 0.0
    %3743 = vmatmul.mubr.f32.gmra.mrb[0].mxu0 %v3615
    %v3744 = vpop.f32.mrb[0].mxu0
    %v3745 = vadd.f32 %v3588, %v3744
    %v3746 = vpop.f32.mrb[0].mxu0
    %3747 = vmatprep.mubr.f32.mxu0 0.0
    %3748 = vmatmul.mubr.f32.gmra.mrb[0].mxu0 %v3618
    %v3749 = vpop.f32.mrb[0].mxu0
    %v3750 = vadd.f32 %v3588, %v3749
    %v3751 = vpop.f32.mrb[0].mxu0
    %3752 = vmatprep.mubr.f32.mxu0 0.0
    %3753 = vmatmul.mubr.f32.gmra.mrb[0].mxu0 %v3621
    %v3754 = vpop.f32.mrb[0].mxu0
    %v3755 = vadd.f32 %v3588, %v3754
    %v3756 = vpop.f32.mrb[0].mxu0
    %3757 = vmatprep.mubr.f32.mxu0 0.0
    %3758 = vmatmul.mubr.f32.gmra.mrb[0].mxu0 %v3624
    %v3759 = vpop.f32.mrb[0].mxu0
    %v3760 = vadd.f32 %v3588, %v3759
    %v3761 = vpop.f32.mrb[0].mxu0
    %3762 = vmatprep.mubr.f32.mxu0 0.0
    %3763 = vmatmul.mubr.f32.gmra.mrb[0].mxu0 %v3627
    %v3764 = vpop.f32.mrb[0].mxu0
    %v3765 = vadd.f32 %v3588, %v3764
    %v3766 = vpop.f32.mrb[0].mxu0
    %3767 = vmatprep.mubr.f32.mxu0 0.0
    %3768 = vmatmul.mubr.f32.gmra.mrb[0].mxu0 %v3630
    %v3769 = vpop.f32.mrb[0].mxu0
    %v3770 = vadd.f32 %v3588, %v3769
    %v3771 = vpop.f32.mrb[0].mxu0
    %3772 = vmatprep.mubr.f32.mxu0 0.0
    %3773 = vmatmul.mubr.f32.gmra.mrb[0].mxu0 %v3633
    %v3774 = vpop.f32.mrb[0].mxu0
    %v3775 = vadd.f32 %v3588, %v3774
    %v3776 = vpop.f32.mrb[0].mxu0
    %3777 = vmatprep.mubr.f32.mxu0 0.0
    %3778 = vmatmul.mubr.f32.gmra.mrb[0].mxu0 %v3636
    %v3779 = vpop.f32.mrb[0].mxu0
    %v3780 = vadd.f32 %v3588, %v3779
    %v3781 = vpop.f32.mrb[0].mxu0
    %3782 = vdwg.mxu0
    %3785 = vrot.lane.b32.xlu0 %v3705, 96
    %v3786 = vpop.permute.xlu0 %3785
    %3787 = vrot.lane.b32.xlu0 %v3710, 96
    %v3788 = vpop.permute.xlu0 %3787
    %v3789 = vsel %vm272, %v3705, 0
    %v3791 = vsel %vm272, %v3710, 0
    %v3793 = vsel %vm272, %v3786, 0
    %v3795 = vsel %vm272, %v3788, 0
    %3797 = vmatprep.subr.mxu0 0.0
    %3798 = vmatpush1.xpose.msra.mxu0 %v3793
    %3799 = vmatprep.subr.mxu0 0.0
    %3800 = vmatpush1.xpose.msra.mxu0 %v3795
    %3801 = vmatprep.subr.mxu0 0.0
    %3802 = vmatpush1.xpose.msra.mxu0 0.0
    %3803 = vmatprep.subr.mxu0 0.0
    %3804 = vmatpush1.xpose.msra.mxu0 0.0
    %3805 = vmatprep.subr.mxu0 0.0
    %3806 = vmatpush1.xpose.msra.mxu0 0.0
    %3807 = vmatprep.subr.mxu0 0.0
    %3808 = vmatpush1.xpose.msra.mxu0 0.0
    %3809 = vmatprep.subr.mxu0 0.0
    %3810 = vmatpush1.xpose.msra.mxu0 0.0
    %3811 = vmatprep.subr.mxu0 0.0
    %3812 = vmatpush1.xpose.msra.mxu0 0.0
    %3813 = vmatprep.subr.mxu0 0.0
    %3814 = vmatpush1.xpose.msra.mxu0 0.0
    %3815 = vmatprep.subr.mxu0 0.0
    %3816 = vmatpush1.xpose.msra.mxu0 0.0
    %3817 = vmatprep.subr.mxu0 0.0
    %3818 = vmatpush1.xpose.msra.mxu0 0.0
    %3819 = vmatprep.subr.mxu0 0.0
    %3820 = vmatpush1.xpose.msra.mxu0 0.0
    %3821 = vmatprep.subr.mxu0 0.0
    %3822 = vmatpush1.xpose.msra.mxu0 0.0
    %3823 = vmatprep.subr.mxu0 0.0
    %3824 = vmatpush1.xpose.msra.mxu0 0.0
    %3825 = vmatprep.subr.mxu0 0.0
    %3826 = vmatpush1.xpose.msra.mxu0 0.0
    %3827 = vmatprep.subr.mxu0 0.0
    %3828 = vmatpush1.xpose.msra.mxu0 0.0
    %3829 = vmatprep.subr.mxu0 0.0
    %3830 = vmatpush1.xpose.msra.mxu0 0.0
    %3831 = vmatprep.subr.mxu0 0.0
    %3832 = vmatpush1.xpose.msra.mxu0 0.0
    %3833 = vmatprep.subr.mxu0 0.0
    %3834 = vmatpush1.xpose.msra.mxu0 0.0
    %3835 = vmatprep.subr.mxu0 0.0
    %3836 = vmatpush1.xpose.msra.mxu0 0.0
    %3837 = vmatprep.subr.mxu0 0.0
    %3838 = vmatpush1.xpose.msra.mxu0 0.0
    %3839 = vmatprep.subr.mxu0 0.0
    %3840 = vmatpush1.xpose.msra.mxu0 0.0
    %3841 = vmatprep.subr.mxu0 0.0
    %3842 = vmatpush1.xpose.msra.mxu0 0.0
    %3843 = vmatprep.subr.mxu0 0.0
    %3844 = vmatpush1.xpose.msra.mxu0 0.0
    %3845 = vmatprep.subr.mxu0 0.0
    %3846 = vmatpush1.xpose.msra.mxu0 0.0
    %3847 = vmatprep.subr.mxu0 0.0
    %3848 = vmatpush1.xpose.msra.mxu0 0.0
    %3849 = vmatprep.subr.mxu0 0.0
    %3850 = vmatpush1.xpose.msra.mxu0 0.0
    %3851 = vmatprep.subr.mxu0 0.0
    %3852 = vmatpush1.xpose.msra.mxu0 0.0
    %3853 = vmatprep.subr.mxu0 0.0
    %3854 = vmatpush1.xpose.msra.mxu0 0.0
    %3855 = vmatprep.subr.mxu0 0.0
    %3856 = vmatpush1.xpose.msra.mxu0 0.0
    %3857 = vmatprep.subr.mxu0 0.0
    %3858 = vmatpush1.xpose.msra.mxu0 0.0
    %3859 = vmatprep.subr.mxu0 0.0
    %3860 = vmatpush1.xpose.msra.mxu0 0.0
    %3861 = vmatprep.mubr.f32.mxu0 0.0
    %3862 = vmatmul.mubr.f32.gmra.mrb[0].mxu0 %v3789
    %v3863 = vpop.f32.mrb[0].mxu0
    %v3864 = vadd.f32 0.0, %v3863
    %v3865 = vpop.f32.mrb[0].mxu0
    %3866 = vmatprep.mubr.f32.mxu0 0.0
    %3867 = vmatmul.mubr.f32.gmra.mrb[0].mxu0 %v3791
    %v3868 = vpop.f32.mrb[0].mxu0
    %v3869 = vadd.f32 0.0, %v3868
    %v3870 = vpop.f32.mrb[0].mxu0
    %3871 = vdwg.mxu0
    %3874 = vrot.lane.b32.xlu0 %v3715, 96
    %v3875 = vpop.permute.xlu0 %3874
    %3876 = vrot.lane.b32.xlu0 %v3720, 96
    %v3877 = vpop.permute.xlu0 %3876
    %v3878 = vsel %vm272, %v3715, 0
    %v3880 = vsel %vm272, %v3720, 0
    %v3882 = vsel %vm272, %v3875, 0
    %v3884 = vsel %vm272, %v3877, 0
    %3886 = vmatprep.subr.mxu0 0.0
    %3887 = vmatpush1.xpose.msra.mxu0 %v3882
    %3888 = vmatprep.subr.mxu0 0.0
    %3889 = vmatpush1.xpose.msra.mxu0 %v3884
    %3890 = vmatprep.subr.mxu0 0.0
    %3891 = vmatpush1.xpose.msra.mxu0 0.0
    %3892 = vmatprep.subr.mxu0 0.0
    %3893 = vmatpush1.xpose.msra.mxu0 0.0
    %3894 = vmatprep.subr.mxu0 0.0
    %3895 = vmatpush1.xpose.msra.mxu0 0.0
    %3896 = vmatprep.subr.mxu0 0.0
    %3897 = vmatpush1.xpose.msra.mxu0 0.0
    %3898 = vmatprep.subr.mxu0 0.0
    %3899 = vmatpush1.xpose.msra.mxu0 0.0
    %3900 = vmatprep.subr.mxu0 0.0
    %3901 = vmatpush1.xpose.msra.mxu0 0.0
    %3902 = vmatprep.subr.mxu0 0.0
    %3903 = vmatpush1.xpose.msra.mxu0 0.0
    %3904 = vmatprep.subr.mxu0 0.0
    %3905 = vmatpush1.xpose.msra.mxu0 0.0
    %3906 = vmatprep.subr.mxu0 0.0
    %3907 = vmatpush1.xpose.msra.mxu0 0.0
    %3908 = vmatprep.subr.mxu0 0.0
    %3909 = vmatpush1.xpose.msra.mxu0 0.0
    %3910 = vmatprep.subr.mxu0 0.0
    %3911 = vmatpush1.xpose.msra.mxu0 0.0
    %3912 = vmatprep.subr.mxu0 0.0
    %3913 = vmatpush1.xpose.msra.mxu0 0.0
    %3914 = vmatprep.subr.mxu0 0.0
    %3915 = vmatpush1.xpose.msra.mxu0 0.0
    %3916 = vmatprep.subr.mxu0 0.0
    %3917 = vmatpush1.xpose.msra.mxu0 0.0
    %3918 = vmatprep.subr.mxu0 0.0
    %3919 = vmatpush1.xpose.msra.mxu0 0.0
    %3920 = vmatprep.subr.mxu0 0.0
    %3921 = vmatpush1.xpose.msra.mxu0 0.0
    %3922 = vmatprep.subr.mxu0 0.0
    %3923 = vmatpush1.xpose.msra.mxu0 0.0
    %3924 = vmatprep.subr.mxu0 0.0
    %3925 = vmatpush1.xpose.msra.mxu0 0.0
    %3926 = vmatprep.subr.mxu0 0.0
    %3927 = vmatpush1.xpose.msra.mxu0 0.0
    %3928 = vmatprep.subr.mxu0 0.0
    %3929 = vmatpush1.xpose.msra.mxu0 0.0
    %3930 = vmatprep.subr.mxu0 0.0
    %3931 = vmatpush1.xpose.msra.mxu0 0.0
    %3932 = vmatprep.subr.mxu0 0.0
    %3933 = vmatpush1.xpose.msra.mxu0 0.0
    %3934 = vmatprep.subr.mxu0 0.0
    %3935 = vmatpush1.xpose.msra.mxu0 0.0
    %3936 = vmatprep.subr.mxu0 0.0
    %3937 = vmatpush1.xpose.msra.mxu0 0.0
    %3938 = vmatprep.subr.mxu0 0.0
    %3939 = vmatpush1.xpose.msra.mxu0 0.0
    %3940 = vmatprep.subr.mxu0 0.0
    %3941 = vmatpush1.xpose.msra.mxu0 0.0
    %3942 = vmatprep.subr.mxu0 0.0
    %3943 = vmatpush1.xpose.msra.mxu0 0.0
    %3944 = vmatprep.subr.mxu0 0.0
    %3945 = vmatpush1.xpose.msra.mxu0 0.0
    %3946 = vmatprep.subr.mxu0 0.0
    %3947 = vmatpush1.xpose.msra.mxu0 0.0
    %3948 = vmatprep.subr.mxu0 0.0
    %3949 = vmatpush1.xpose.msra.mxu0 0.0
    %3950 = vmatprep.mubr.f32.mxu0 0.0
    %3951 = vmatmul.mubr.f32.gmra.mrb[0].mxu0 %v3878
    %v3952 = vpop.f32.mrb[0].mxu0
    %v3953 = vadd.f32 0.0, %v3952
    %v3954 = vpop.f32.mrb[0].mxu0
    %3955 = vmatprep.mubr.f32.mxu0 0.0
    %3956 = vmatmul.mubr.f32.gmra.mrb[0].mxu0 %v3880
    %v3957 = vpop.f32.mrb[0].mxu0
    %v3958 = vadd.f32 0.0, %v3957
    %v3959 = vpop.f32.mrb[0].mxu0
    %3960 = vdwg.mxu0
    %3963 = vrot.lane.b32.xlu0 %v3725, 96
    %v3964 = vpop.permute.xlu0 %3963
    %3965 = vrot.lane.b32.xlu0 %v3730, 96
    %v3966 = vpop.permute.xlu0 %3965
    %v3967 = vsel %vm272, %v3725, 0
    %v3969 = vsel %vm272, %v3730, 0
    %v3971 = vsel %vm272, %v3964, 0
    %v3973 = vsel %vm272, %v3966, 0
    %3975 = vmatprep.subr.mxu0 0.0
    %3976 = vmatpush1.xpose.msra.mxu0 %v3971
    %3977 = vmatprep.subr.mxu0 0.0
    %3978 = vmatpush1.xpose.msra.mxu0 %v3973
    %3979 = vmatprep.subr.mxu0 0.0
    %3980 = vmatpush1.xpose.msra.mxu0 0.0
    %3981 = vmatprep.subr.mxu0 0.0
    %3982 = vmatpush1.xpose.msra.mxu0 0.0
    %3983 = vmatprep.subr.mxu0 0.0
    %3984 = vmatpush1.xpose.msra.mxu0 0.0
    %3985 = vmatprep.subr.mxu0 0.0
    %3986 = vmatpush1.xpose.msra.mxu0 0.0
    %3987 = vmatprep.subr.mxu0 0.0
    %3988 = vmatpush1.xpose.msra.mxu0 0.0
    %3989 = vmatprep.subr.mxu0 0.0
    %3990 = vmatpush1.xpose.msra.mxu0 0.0
    %3991 = vmatprep.subr.mxu0 0.0
    %3992 = vmatpush1.xpose.msra.mxu0 0.0
    %3993 = vmatprep.subr.mxu0 0.0
    %3994 = vmatpush1.xpose.msra.mxu0 0.0
    %3995 = vmatprep.subr.mxu0 0.0
    %3996 = vmatpush1.xpose.msra.mxu0 0.0
    %3997 = vmatprep.subr.mxu0 0.0
    %3998 = vmatpush1.xpose.msra.mxu0 0.0
    %3999 = vmatprep.subr.mxu0 0.0
    %4000 = vmatpush1.xpose.msra.mxu0 0.0
    %4001 = vmatprep.subr.mxu0 0.0
    %4002 = vmatpush1.xpose.msra.mxu0 0.0
    %4003 = vmatprep.subr.mxu0 0.0
    %4004 = vmatpush1.xpose.msra.mxu0 0.0
    %4005 = vmatprep.subr.mxu0 0.0
    %4006 = vmatpush1.xpose.msra.mxu0 0.0
    %4007 = vmatprep.subr.mxu0 0.0
    %4008 = vmatpush1.xpose.msra.mxu0 0.0
    %4009 = vmatprep.subr.mxu0 0.0
    %4010 = vmatpush1.xpose.msra.mxu0 0.0
    %4011 = vmatprep.subr.mxu0 0.0
    %4012 = vmatpush1.xpose.msra.mxu0 0.0
    %4013 = vmatprep.subr.mxu0 0.0
    %4014 = vmatpush1.xpose.msra.mxu0 0.0
    %4015 = vmatprep.subr.mxu0 0.0
    %4016 = vmatpush1.xpose.msra.mxu0 0.0
    %4017 = vmatprep.subr.mxu0 0.0
    %4018 = vmatpush1.xpose.msra.mxu0 0.0
    %4019 = vmatprep.subr.mxu0 0.0
    %4020 = vmatpush1.xpose.msra.mxu0 0.0
    %4021 = vmatprep.subr.mxu0 0.0
    %4022 = vmatpush1.xpose.msra.mxu0 0.0
    %4023 = vmatprep.subr.mxu0 0.0
    %4024 = vmatpush1.xpose.msra.mxu0 0.0
    %4025 = vmatprep.subr.mxu0 0.0
    %4026 = vmatpush1.xpose.msra.mxu0 0.0
    %4027 = vmatprep.subr.mxu0 0.0
    %4028 = vmatpush1.xpose.msra.mxu0 0.0
    %4029 = vmatprep.subr.mxu0 0.0
    %4030 = vmatpush1.xpose.msra.mxu0 0.0
    %4031 = vmatprep.subr.mxu0 0.0
    %4032 = vmatpush1.xpose.msra.mxu0 0.0
    %4033 = vmatprep.subr.mxu0 0.0
    %4034 = vmatpush1.xpose.msra.mxu0 0.0
    %4035 = vmatprep.subr.mxu0 0.0
    %4036 = vmatpush1.xpose.msra.mxu0 0.0
    %4037 = vmatprep.subr.mxu0 0.0
    %4038 = vmatpush1.xpose.msra.mxu0 0.0
    %4039 = vmatprep.mubr.f32.mxu0 0.0
    %4040 = vmatmul.mubr.f32.gmra.mrb[0].mxu0 %v3967
    %v4041 = vpop.f32.mrb[0].mxu0
    %v4042 = vadd.f32 0.0, %v4041
    %v4043 = vpop.f32.mrb[0].mxu0
    %4044 = vmatprep.mubr.f32.mxu0 0.0
    %4045 = vmatmul.mubr.f32.gmra.mrb[0].mxu0 %v3969
    %v4046 = vpop.f32.mrb[0].mxu0
    %v4047 = vadd.f32 0.0, %v4046
    %v4048 = vpop.f32.mrb[0].mxu0
    %4049 = vdwg.mxu0
    %4052 = vrot.lane.b32.xlu0 %v3735, 96
    %v4053 = vpop.permute.xlu0 %4052
    %4054 = vrot.lane.b32.xlu0 %v3740, 96
    %v4055 = vpop.permute.xlu0 %4054
    %v4056 = vsel %vm272, %v3735, 0
    %v4058 = vsel %vm272, %v3740, 0
    %v4060 = vsel %vm272, %v4053, 0
    %v4062 = vsel %vm272, %v4055, 0
    %4064 = vmatprep.subr.mxu0 0.0
    %4065 = vmatpush1.xpose.msra.mxu0 %v4060
    %4066 = vmatprep.subr.mxu0 0.0
    %4067 = vmatpush1.xpose.msra.mxu0 %v4062
    %4068 = vmatprep.subr.mxu0 0.0
    %4069 = vmatpush1.xpose.msra.mxu0 0.0
    %4070 = vmatprep.subr.mxu0 0.0
    %4071 = vmatpush1.xpose.msra.mxu0 0.0
    %4072 = vmatprep.subr.mxu0 0.0
    %4073 = vmatpush1.xpose.msra.mxu0 0.0
    %4074 = vmatprep.subr.mxu0 0.0
    %4075 = vmatpush1.xpose.msra.mxu0 0.0
    %4076 = vmatprep.subr.mxu0 0.0
    %4077 = vmatpush1.xpose.msra.mxu0 0.0
    %4078 = vmatprep.subr.mxu0 0.0
    %4079 = vmatpush1.xpose.msra.mxu0 0.0
    %4080 = vmatprep.subr.mxu0 0.0
    %4081 = vmatpush1.xpose.msra.mxu0 0.0
    %4082 = vmatprep.subr.mxu0 0.0
    %4083 = vmatpush1.xpose.msra.mxu0 0.0
    %4084 = vmatprep.subr.mxu0 0.0
    %4085 = vmatpush1.xpose.msra.mxu0 0.0
    %4086 = vmatprep.subr.mxu0 0.0
    %4087 = vmatpush1.xpose.msra.mxu0 0.0
    %4088 = vmatprep.subr.mxu0 0.0
    %4089 = vmatpush1.xpose.msra.mxu0 0.0
    %4090 = vmatprep.subr.mxu0 0.0
    %4091 = vmatpush1.xpose.msra.mxu0 0.0
    %4092 = vmatprep.subr.mxu0 0.0
    %4093 = vmatpush1.xpose.msra.mxu0 0.0
    %4094 = vmatprep.subr.mxu0 0.0
    %4095 = vmatpush1.xpose.msra.mxu0 0.0
    %4096 = vmatprep.subr.mxu0 0.0
    %4097 = vmatpush1.xpose.msra.mxu0 0.0
    %4098 = vmatprep.subr.mxu0 0.0
    %4099 = vmatpush1.xpose.msra.mxu0 0.0
    %4100 = vmatprep.subr.mxu0 0.0
    %4101 = vmatpush1.xpose.msra.mxu0 0.0
    %4102 = vmatprep.subr.mxu0 0.0
    %4103 = vmatpush1.xpose.msra.mxu0 0.0
    %4104 = vmatprep.subr.mxu0 0.0
    %4105 = vmatpush1.xpose.msra.mxu0 0.0
    %4106 = vmatprep.subr.mxu0 0.0
    %4107 = vmatpush1.xpose.msra.mxu0 0.0
    %4108 = vmatprep.subr.mxu0 0.0
    %4109 = vmatpush1.xpose.msra.mxu0 0.0
    %4110 = vmatprep.subr.mxu0 0.0
    %4111 = vmatpush1.xpose.msra.mxu0 0.0
    %4112 = vmatprep.subr.mxu0 0.0
    %4113 = vmatpush1.xpose.msra.mxu0 0.0
    %4114 = vmatprep.subr.mxu0 0.0
    %4115 = vmatpush1.xpose.msra.mxu0 0.0
    %4116 = vmatprep.subr.mxu0 0.0
    %4117 = vmatpush1.xpose.msra.mxu0 0.0
    %4118 = vmatprep.subr.mxu0 0.0
    %4119 = vmatpush1.xpose.msra.mxu0 0.0
    %4120 = vmatprep.subr.mxu0 0.0
    %4121 = vmatpush1.xpose.msra.mxu0 0.0
    %4122 = vmatprep.subr.mxu0 0.0
    %4123 = vmatpush1.xpose.msra.mxu0 0.0
    %4124 = vmatprep.subr.mxu0 0.0
    %4125 = vmatpush1.xpose.msra.mxu0 0.0
    %4126 = vmatprep.subr.mxu0 0.0
    %4127 = vmatpush1.xpose.msra.mxu0 0.0
    %4128 = vmatprep.mubr.f32.mxu0 0.0
    %4129 = vmatmul.mubr.f32.gmra.mrb[0].mxu0 %v4056
    %v4130 = vpop.f32.mrb[0].mxu0
    %v4131 = vadd.f32 0.0, %v4130
    %v4132 = vpop.f32.mrb[0].mxu0
    %4133 = vmatprep.mubr.f32.mxu0 0.0
    %4134 = vmatmul.mubr.f32.gmra.mrb[0].mxu0 %v4058
    %v4135 = vpop.f32.mrb[0].mxu0
    %v4136 = vadd.f32 0.0, %v4135
    %v4137 = vpop.f32.mrb[0].mxu0
    %4138 = vdwg.mxu0
    %4141 = vrot.lane.b32.xlu0 %v3745, 96
    %v4142 = vpop.permute.xlu0 %4141
    %4143 = vrot.lane.b32.xlu0 %v3750, 96
    %v4144 = vpop.permute.xlu0 %4143
    %v4145 = vsel %vm272, %v3745, 0
    %v4147 = vsel %vm272, %v3750, 0
    %v4149 = vsel %vm272, %v4142, 0
    %v4151 = vsel %vm272, %v4144, 0
    %4153 = vmatprep.subr.mxu0 0.0
    %4154 = vmatpush1.xpose.msra.mxu0 %v4149
    %4155 = vmatprep.subr.mxu0 0.0
    %4156 = vmatpush1.xpose.msra.mxu0 %v4151
    %4157 = vmatprep.subr.mxu0 0.0
    %4158 = vmatpush1.xpose.msra.mxu0 0.0
    %4159 = vmatprep.subr.mxu0 0.0
    %4160 = vmatpush1.xpose.msra.mxu0 0.0
    %4161 = vmatprep.subr.mxu0 0.0
    %4162 = vmatpush1.xpose.msra.mxu0 0.0
    %4163 = vmatprep.subr.mxu0 0.0
    %4164 = vmatpush1.xpose.msra.mxu0 0.0
    %4165 = vmatprep.subr.mxu0 0.0
    %4166 = vmatpush1.xpose.msra.mxu0 0.0
    %4167 = vmatprep.subr.mxu0 0.0
    %4168 = vmatpush1.xpose.msra.mxu0 0.0
    %4169 = vmatprep.subr.mxu0 0.0
    %4170 = vmatpush1.xpose.msra.mxu0 0.0
    %4171 = vmatprep.subr.mxu0 0.0
    %4172 = vmatpush1.xpose.msra.mxu0 0.0
    %4173 = vmatprep.subr.mxu0 0.0
    %4174 = vmatpush1.xpose.msra.mxu0 0.0
    %4175 = vmatprep.subr.mxu0 0.0
    %4176 = vmatpush1.xpose.msra.mxu0 0.0
    %4177 = vmatprep.subr.mxu0 0.0
    %4178 = vmatpush1.xpose.msra.mxu0 0.0
    %4179 = vmatprep.subr.mxu0 0.0
    %4180 = vmatpush1.xpose.msra.mxu0 0.0
    %4181 = vmatprep.subr.mxu0 0.0
    %4182 = vmatpush1.xpose.msra.mxu0 0.0
    %4183 = vmatprep.subr.mxu0 0.0
    %4184 = vmatpush1.xpose.msra.mxu0 0.0
    %4185 = vmatprep.subr.mxu0 0.0
    %4186 = vmatpush1.xpose.msra.mxu0 0.0
    %4187 = vmatprep.subr.mxu0 0.0
    %4188 = vmatpush1.xpose.msra.mxu0 0.0
    %4189 = vmatprep.subr.mxu0 0.0
    %4190 = vmatpush1.xpose.msra.mxu0 0.0
    %4191 = vmatprep.subr.mxu0 0.0
    %4192 = vmatpush1.xpose.msra.mxu0 0.0
    %4193 = vmatprep.subr.mxu0 0.0
    %4194 = vmatpush1.xpose.msra.mxu0 0.0
    %4195 = vmatprep.subr.mxu0 0.0
    %4196 = vmatpush1.xpose.msra.mxu0 0.0
    %4197 = vmatprep.subr.mxu0 0.0
    %4198 = vmatpush1.xpose.msra.mxu0 0.0
    %4199 = vmatprep.subr.mxu0 0.0
    %4200 = vmatpush1.xpose.msra.mxu0 0.0
    %4201 = vmatprep.subr.mxu0 0.0
    %4202 = vmatpush1.xpose.msra.mxu0 0.0
    %4203 = vmatprep.subr.mxu0 0.0
    %4204 = vmatpush1.xpose.msra.mxu0 0.0
    %4205 = vmatprep.subr.mxu0 0.0
    %4206 = vmatpush1.xpose.msra.mxu0 0.0
    %4207 = vmatprep.subr.mxu0 0.0
    %4208 = vmatpush1.xpose.msra.mxu0 0.0
    %4209 = vmatprep.subr.mxu0 0.0
    %4210 = vmatpush1.xpose.msra.mxu0 0.0
    %4211 = vmatprep.subr.mxu0 0.0
    %4212 = vmatpush1.xpose.msra.mxu0 0.0
    %4213 = vmatprep.subr.mxu0 0.0
    %4214 = vmatpush1.xpose.msra.mxu0 0.0
    %4215 = vmatprep.subr.mxu0 0.0
    %4216 = vmatpush1.xpose.msra.mxu0 0.0
    %4217 = vmatprep.mubr.f32.mxu0 0.0
    %4218 = vmatmul.mubr.f32.gmra.mrb[0].mxu0 %v4145
    %v4219 = vpop.f32.mrb[0].mxu0
    %v4220 = vadd.f32 0.0, %v4219
    %v4221 = vpop.f32.mrb[0].mxu0
    %4222 = vmatprep.mubr.f32.mxu0 0.0
    %4223 = vmatmul.mubr.f32.gmra.mrb[0].mxu0 %v4147
    %v4224 = vpop.f32.mrb[0].mxu0
    %v4225 = vadd.f32 0.0, %v4224
    %v4226 = vpop.f32.mrb[0].mxu0
    %4227 = vdwg.mxu0
    %4230 = vrot.lane.b32.xlu0 %v3755, 96
    %v4231 = vpop.permute.xlu0 %4230
    %4232 = vrot.lane.b32.xlu0 %v3760, 96
    %v4233 = vpop.permute.xlu0 %4232
    %v4234 = vsel %vm272, %v3755, 0
    %v4236 = vsel %vm272, %v3760, 0
    %v4238 = vsel %vm272, %v4231, 0
    %v4240 = vsel %vm272, %v4233, 0
    %4242 = vmatprep.subr.mxu0 0.0
    %4243 = vmatpush1.xpose.msra.mxu0 %v4238
    %4244 = vmatprep.subr.mxu0 0.0
    %4245 = vmatpush1.xpose.msra.mxu0 %v4240
    %4246 = vmatprep.subr.mxu0 0.0
    %4247 = vmatpush1.xpose.msra.mxu0 0.0
    %4248 = vmatprep.subr.mxu0 0.0
    %4249 = vmatpush1.xpose.msra.mxu0 0.0
    %4250 = vmatprep.subr.mxu0 0.0
    %4251 = vmatpush1.xpose.msra.mxu0 0.0
    %4252 = vmatprep.subr.mxu0 0.0
    %4253 = vmatpush1.xpose.msra.mxu0 0.0
    %4254 = vmatprep.subr.mxu0 0.0
    %4255 = vmatpush1.xpose.msra.mxu0 0.0
    %4256 = vmatprep.subr.mxu0 0.0
    %4257 = vmatpush1.xpose.msra.mxu0 0.0
    %4258 = vmatprep.subr.mxu0 0.0
    %4259 = vmatpush1.xpose.msra.mxu0 0.0
    %4260 = vmatprep.subr.mxu0 0.0
    %4261 = vmatpush1.xpose.msra.mxu0 0.0
    %4262 = vmatprep.subr.mxu0 0.0
    %4263 = vmatpush1.xpose.msra.mxu0 0.0
    %4264 = vmatprep.subr.mxu0 0.0
    %4265 = vmatpush1.xpose.msra.mxu0 0.0
    %4266 = vmatprep.subr.mxu0 0.0
    %4267 = vmatpush1.xpose.msra.mxu0 0.0
    %4268 = vmatprep.subr.mxu0 0.0
    %4269 = vmatpush1.xpose.msra.mxu0 0.0
    %4270 = vmatprep.subr.mxu0 0.0
    %4271 = vmatpush1.xpose.msra.mxu0 0.0
    %4272 = vmatprep.subr.mxu0 0.0
    %4273 = vmatpush1.xpose.msra.mxu0 0.0
    %4274 = vmatprep.subr.mxu0 0.0
    %4275 = vmatpush1.xpose.msra.mxu0 0.0
    %4276 = vmatprep.subr.mxu0 0.0
    %4277 = vmatpush1.xpose.msra.mxu0 0.0
    %4278 = vmatprep.subr.mxu0 0.0
    %4279 = vmatpush1.xpose.msra.mxu0 0.0
    %4280 = vmatprep.subr.mxu0 0.0
    %4281 = vmatpush1.xpose.msra.mxu0 0.0
    %4282 = vmatprep.subr.mxu0 0.0
    %4283 = vmatpush1.xpose.msra.mxu0 0.0
    %4284 = vmatprep.subr.mxu0 0.0
    %4285 = vmatpush1.xpose.msra.mxu0 0.0
    %4286 = vmatprep.subr.mxu0 0.0
    %4287 = vmatpush1.xpose.msra.mxu0 0.0
    %4288 = vmatprep.subr.mxu0 0.0
    %4289 = vmatpush1.xpose.msra.mxu0 0.0
    %4290 = vmatprep.subr.mxu0 0.0
    %4291 = vmatpush1.xpose.msra.mxu0 0.0
    %4292 = vmatprep.subr.mxu0 0.0
    %4293 = vmatpush1.xpose.msra.mxu0 0.0
    %4294 = vmatprep.subr.mxu0 0.0
    %4295 = vmatpush1.xpose.msra.mxu0 0.0
    %4296 = vmatprep.subr.mxu0 0.0
    %4297 = vmatpush1.xpose.msra.mxu0 0.0
    %4298 = vmatprep.subr.mxu0 0.0
    %4299 = vmatpush1.xpose.msra.mxu0 0.0
    %4300 = vmatprep.subr.mxu0 0.0
    %4301 = vmatpush1.xpose.msra.mxu0 0.0
    %4302 = vmatprep.subr.mxu0 0.0
    %4303 = vmatpush1.xpose.msra.mxu0 0.0
    %4304 = vmatprep.subr.mxu0 0.0
    %4305 = vmatpush1.xpose.msra.mxu0 0.0
    %4306 = vmatprep.mubr.f32.mxu0 0.0
    %4307 = vmatmul.mubr.f32.gmra.mrb[0].mxu0 %v4234
    %v4308 = vpop.f32.mrb[0].mxu0
    %v4309 = vadd.f32 0.0, %v4308
    %v4310 = vpop.f32.mrb[0].mxu0
    %4311 = vmatprep.mubr.f32.mxu0 0.0
    %4312 = vmatmul.mubr.f32.gmra.mrb[0].mxu0 %v4236
    %v4313 = vpop.f32.mrb[0].mxu0
    %v4314 = vadd.f32 0.0, %v4313
    %v4315 = vpop.f32.mrb[0].mxu0
    %4316 = vdwg.mxu0
    %4319 = vrot.lane.b32.xlu0 %v3765, 96
    %v4320 = vpop.permute.xlu0 %4319
    %4321 = vrot.lane.b32.xlu0 %v3770, 96
    %v4322 = vpop.permute.xlu0 %4321
    %v4323 = vsel %vm272, %v3765, 0
    %v4325 = vsel %vm272, %v3770, 0
    %v4327 = vsel %vm272, %v4320, 0
    %v4329 = vsel %vm272, %v4322, 0
    %4331 = vmatprep.subr.mxu0 0.0
    %4332 = vmatpush1.xpose.msra.mxu0 %v4327
    %4333 = vmatprep.subr.mxu0 0.0
    %4334 = vmatpush1.xpose.msra.mxu0 %v4329
    %4335 = vmatprep.subr.mxu0 0.0
    %4336 = vmatpush1.xpose.msra.mxu0 0.0
    %4337 = vmatprep.subr.mxu0 0.0
    %4338 = vmatpush1.xpose.msra.mxu0 0.0
    %4339 = vmatprep.subr.mxu0 0.0
    %4340 = vmatpush1.xpose.msra.mxu0 0.0
    %4341 = vmatprep.subr.mxu0 0.0
    %4342 = vmatpush1.xpose.msra.mxu0 0.0
    %4343 = vmatprep.subr.mxu0 0.0
    %4344 = vmatpush1.xpose.msra.mxu0 0.0
    %4345 = vmatprep.subr.mxu0 0.0
    %4346 = vmatpush1.xpose.msra.mxu0 0.0
    %4347 = vmatprep.subr.mxu0 0.0
    %4348 = vmatpush1.xpose.msra.mxu0 0.0
    %4349 = vmatprep.subr.mxu0 0.0
    %4350 = vmatpush1.xpose.msra.mxu0 0.0
    %4351 = vmatprep.subr.mxu0 0.0
    %4352 = vmatpush1.xpose.msra.mxu0 0.0
    %4353 = vmatprep.subr.mxu0 0.0
    %4354 = vmatpush1.xpose.msra.mxu0 0.0
    %4355 = vmatprep.subr.mxu0 0.0
    %4356 = vmatpush1.xpose.msra.mxu0 0.0
    %4357 = vmatprep.subr.mxu0 0.0
    %4358 = vmatpush1.xpose.msra.mxu0 0.0
    %4359 = vmatprep.subr.mxu0 0.0
    %4360 = vmatpush1.xpose.msra.mxu0 0.0
    %4361 = vmatprep.subr.mxu0 0.0
    %4362 = vmatpush1.xpose.msra.mxu0 0.0
    %4363 = vmatprep.subr.mxu0 0.0
    %4364 = vmatpush1.xpose.msra.mxu0 0.0
    %4365 = vmatprep.subr.mxu0 0.0
    %4366 = vmatpush1.xpose.msra.mxu0 0.0
    %4367 = vmatprep.subr.mxu0 0.0
    %4368 = vmatpush1.xpose.msra.mxu0 0.0
    %4369 = vmatprep.subr.mxu0 0.0
    %4370 = vmatpush1.xpose.msra.mxu0 0.0
    %4371 = vmatprep.subr.mxu0 0.0
    %4372 = vmatpush1.xpose.msra.mxu0 0.0
    %4373 = vmatprep.subr.mxu0 0.0
    %4374 = vmatpush1.xpose.msra.mxu0 0.0
    %4375 = vmatprep.subr.mxu0 0.0
    %4376 = vmatpush1.xpose.msra.mxu0 0.0
    %4377 = vmatprep.subr.mxu0 0.0
    %4378 = vmatpush1.xpose.msra.mxu0 0.0
    %4379 = vmatprep.subr.mxu0 0.0
    %4380 = vmatpush1.xpose.msra.mxu0 0.0
    %4381 = vmatprep.subr.mxu0 0.0
    %4382 = vmatpush1.xpose.msra.mxu0 0.0
    %4383 = vmatprep.subr.mxu0 0.0
    %4384 = vmatpush1.xpose.msra.mxu0 0.0
    %4385 = vmatprep.subr.mxu0 0.0
    %4386 = vmatpush1.xpose.msra.mxu0 0.0
    %4387 = vmatprep.subr.mxu0 0.0
    %4388 = vmatpush1.xpose.msra.mxu0 0.0
    %4389 = vmatprep.subr.mxu0 0.0
    %4390 = vmatpush1.xpose.msra.mxu0 0.0
    %4391 = vmatprep.subr.mxu0 0.0
    %4392 = vmatpush1.xpose.msra.mxu0 0.0
    %4393 = vmatprep.subr.mxu0 0.0
    %4394 = vmatpush1.xpose.msra.mxu0 0.0
    %4395 = vmatprep.mubr.f32.mxu0 0.0
    %4396 = vmatmul.mubr.f32.gmra.mrb[0].mxu0 %v4323
    %v4397 = vpop.f32.mrb[0].mxu0
    %v4398 = vadd.f32 0.0, %v4397
    %v4399 = vpop.f32.mrb[0].mxu0
    %4400 = vmatprep.mubr.f32.mxu0 0.0
    %4401 = vmatmul.mubr.f32.gmra.mrb[0].mxu0 %v4325
    %v4402 = vpop.f32.mrb[0].mxu0
    %v4403 = vadd.f32 0.0, %v4402
    %v4404 = vpop.f32.mrb[0].mxu0
    %4405 = vdwg.mxu0
    %4408 = vrot.lane.b32.xlu0 %v3775, 96
    %v4409 = vpop.permute.xlu0 %4408
    %4410 = vrot.lane.b32.xlu0 %v3780, 96
    %v4411 = vpop.permute.xlu0 %4410
    %v4412 = vsel %vm272, %v3775, 0
    %v4414 = vsel %vm272, %v3780, 0
    %v4416 = vsel %vm272, %v4409, 0
    %v4418 = vsel %vm272, %v4411, 0
    %4420 = vmatprep.subr.mxu0 0.0
    %4421 = vmatpush1.xpose.msra.mxu0 %v4416
    %4422 = vmatprep.subr.mxu0 0.0
    %4423 = vmatpush1.xpose.msra.mxu0 %v4418
    %4424 = vmatprep.subr.mxu0 0.0
    %4425 = vmatpush1.xpose.msra.mxu0 0.0
    %4426 = vmatprep.subr.mxu0 0.0
    %4427 = vmatpush1.xpose.msra.mxu0 0.0
    %4428 = vmatprep.subr.mxu0 0.0
    %4429 = vmatpush1.xpose.msra.mxu0 0.0
    %4430 = vmatprep.subr.mxu0 0.0
    %4431 = vmatpush1.xpose.msra.mxu0 0.0
    %4432 = vmatprep.subr.mxu0 0.0
    %4433 = vmatpush1.xpose.msra.mxu0 0.0
    %4434 = vmatprep.subr.mxu0 0.0
    %4435 = vmatpush1.xpose.msra.mxu0 0.0
    %4436 = vmatprep.subr.mxu0 0.0
    %4437 = vmatpush1.xpose.msra.mxu0 0.0
    %4438 = vmatprep.subr.mxu0 0.0
    %4439 = vmatpush1.xpose.msra.mxu0 0.0
    %4440 = vmatprep.subr.mxu0 0.0
    %4441 = vmatpush1.xpose.msra.mxu0 0.0
    %4442 = vmatprep.subr.mxu0 0.0
    %4443 = vmatpush1.xpose.msra.mxu0 0.0
    %4444 = vmatprep.subr.mxu0 0.0
    %4445 = vmatpush1.xpose.msra.mxu0 0.0
    %4446 = vmatprep.subr.mxu0 0.0
    %4447 = vmatpush1.xpose.msra.mxu0 0.0
    %4448 = vmatprep.subr.mxu0 0.0
    %4449 = vmatpush1.xpose.msra.mxu0 0.0
    %4450 = vmatprep.subr.mxu0 0.0
    %4451 = vmatpush1.xpose.msra.mxu0 0.0
    %4452 = vmatprep.subr.mxu0 0.0
    %4453 = vmatpush1.xpose.msra.mxu0 0.0
    %4454 = vmatprep.subr.mxu0 0.0
    %4455 = vmatpush1.xpose.msra.mxu0 0.0
    %4456 = vmatprep.subr.mxu0 0.0
    %4457 = vmatpush1.xpose.msra.mxu0 0.0
    %4458 = vmatprep.subr.mxu0 0.0
    %4459 = vmatpush1.xpose.msra.mxu0 0.0
    %4460 = vmatprep.subr.mxu0 0.0
    %4461 = vmatpush1.xpose.msra.mxu0 0.0
    %4462 = vmatprep.subr.mxu0 0.0
    %4463 = vmatpush1.xpose.msra.mxu0 0.0
    %4464 = vmatprep.subr.mxu0 0.0
    %4465 = vmatpush1.xpose.msra.mxu0 0.0
    %4466 = vmatprep.subr.mxu0 0.0
    %4467 = vmatpush1.xpose.msra.mxu0 0.0
    %4468 = vmatprep.subr.mxu0 0.0
    %4469 = vmatpush1.xpose.msra.mxu0 0.0
    %4470 = vmatprep.subr.mxu0 0.0
    %4471 = vmatpush1.xpose.msra.mxu0 0.0
    %4472 = vmatprep.subr.mxu0 0.0
    %4473 = vmatpush1.xpose.msra.mxu0 0.0
    %4474 = vmatprep.subr.mxu0 0.0
    %4475 = vmatpush1.xpose.msra.mxu0 0.0
    %4476 = vmatprep.subr.mxu0 0.0
    %4477 = vmatpush1.xpose.msra.mxu0 0.0
    %4478 = vmatprep.subr.mxu0 0.0
    %4479 = vmatpush1.xpose.msra.mxu0 0.0
    %4480 = vmatprep.subr.mxu0 0.0
    %4481 = vmatpush1.xpose.msra.mxu0 0.0
    %4482 = vmatprep.subr.mxu0 0.0
    %4483 = vmatpush1.xpose.msra.mxu0 0.0
    %4484 = vmatprep.mubr.f32.mxu0 0.0
    %4485 = vmatmul.mubr.f32.gmra.mrb[0].mxu0 %v4412
    %v4486 = vpop.f32.mrb[0].mxu0
    %v4487 = vadd.f32 0.0, %v4486
    %v4488 = vpop.f32.mrb[0].mxu0
    %4489 = vmatprep.mubr.f32.mxu0 0.0
    %4490 = vmatmul.mubr.f32.gmra.mrb[0].mxu0 %v4414
    %v4491 = vpop.f32.mrb[0].mxu0
    %v4492 = vadd.f32 0.0, %v4491
    %v4493 = vpop.f32.mrb[0].mxu0
    %4494 = vdwg.mxu0
    %v4495 = vmul.f32 %v3864, 0.17677669
    %v4496 = vmul.f32 %v3869, 0.17677669
    %v4497 = vmul.f32 %v3953, 0.17677669
    %v4498 = vmul.f32 %v3958, 0.17677669
    %v4499 = vmul.f32 %v4042, 0.17677669
    %v4500 = vmul.f32 %v4047, 0.17677669
    %v4501 = vmul.f32 %v4131, 0.17677669
    %v4502 = vmul.f32 %v4136, 0.17677669
    %v4503 = vmul.f32 %v4220, 0.17677669
    %v4504 = vmul.f32 %v4225, 0.17677669
    %v4505 = vmul.f32 %v4309, 0.17677669
    %v4506 = vmul.f32 %v4314, 0.17677669
    %v4507 = vmul.f32 %v4398, 0.17677669
    %v4508 = vmul.f32 %v4403, 0.17677669
    %v4509 = vmul.f32 %v4487, 0.17677669
    %v4510 = vmul.f32 %v4492, 0.17677669
    %v4511 = vsel %vm1454, %v4495, -inf
    %4512 = vmax.xlane.f32.xlu0 %v4511
    %v4513 = vpop.xlane.xlu0 %4512
    %v4514 = vsel %vm1454, %v4496, -inf
    %4515 = vmax.xlane.f32.xlu0 %v4514
    %v4516 = vpop.xlane.xlu0 %4515
    %v4517 = vsel %vm1454, %v4497, -inf
    %4518 = vmax.xlane.f32.xlu0 %v4517
    %v4519 = vpop.xlane.xlu0 %4518
    %v4520 = vsel %vm1454, %v4498, -inf
    %4521 = vmax.xlane.f32.xlu0 %v4520
    %v4522 = vpop.xlane.xlu0 %4521
    %v4523 = vsel %vm1454, %v4499, -inf
    %4524 = vmax.xlane.f32.xlu0 %v4523
    %v4525 = vpop.xlane.xlu0 %4524
    %v4526 = vsel %vm1454, %v4500, -inf
    %4527 = vmax.xlane.f32.xlu0 %v4526
    %v4528 = vpop.xlane.xlu0 %4527
    %v4529 = vsel %vm1454, %v4501, -inf
    %4530 = vmax.xlane.f32.xlu0 %v4529
    %v4531 = vpop.xlane.xlu0 %4530
    %v4532 = vsel %vm1454, %v4502, -inf
    %4533 = vmax.xlane.f32.xlu0 %v4532
    %v4534 = vpop.xlane.xlu0 %4533
    %v4535 = vsel %vm1454, %v4503, -inf
    %4536 = vmax.xlane.f32.xlu0 %v4535
    %v4537 = vpop.xlane.xlu0 %4536
    %v4538 = vsel %vm1454, %v4504, -inf
    %4539 = vmax.xlane.f32.xlu0 %v4538
    %v4540 = vpop.xlane.xlu0 %4539
    %v4541 = vsel %vm1454, %v4505, -inf
    %4542 = vmax.xlane.f32.xlu0 %v4541
    %v4543 = vpop.xlane.xlu0 %4542
    %v4544 = vsel %vm1454, %v4506, -inf
    %4545 = vmax.xlane.f32.xlu0 %v4544
    %v4546 = vpop.xlane.xlu0 %4545
    %v4547 = vsel %vm1454, %v4507, -inf
    %4548 = vmax.xlane.f32.xlu0 %v4547
    %v4549 = vpop.xlane.xlu0 %4548
    %v4550 = vsel %vm1454, %v4508, -inf
    %4551 = vmax.xlane.f32.xlu0 %v4550
    %v4552 = vpop.xlane.xlu0 %4551
    %v4553 = vsel %vm1454, %v4509, -inf
    %4554 = vmax.xlane.f32.xlu0 %v4553
    %v4555 = vpop.xlane.xlu0 %4554
    %v4556 = vsel %vm1454, %v4510, -inf
    %4557 = vmax.xlane.f32.xlu0 %v4556
    %v4558 = vpop.xlane.xlu0 %4557
    %v4559 = vsub.f32 %v4495, %v4513
    %v4560 = vsub.f32 %v4496, %v4516
    %v4561 = vsub.f32 %v4497, %v4519
    %v4562 = vsub.f32 %v4498, %v4522
    %v4563 = vsub.f32 %v4499, %v4525
    %v4564 = vsub.f32 %v4500, %v4528
    %v4565 = vsub.f32 %v4501, %v4531
    %v4566 = vsub.f32 %v4502, %v4534
    %v4567 = vsub.f32 %v4503, %v4537
    %v4568 = vsub.f32 %v4504, %v4540
    %v4569 = vsub.f32 %v4505, %v4543
    %v4570 = vsub.f32 %v4506, %v4546
    %v4571 = vsub.f32 %v4507, %v4549
    %v4572 = vsub.f32 %v4508, %v4552
    %v4573 = vsub.f32 %v4509, %v4555
    %v4574 = vsub.f32 %v4510, %v4558
    %v4575 = vmul.f32 %v4559, 1.442695
    %v4576 = vpow.pop %v4575
    %v4577 = vmul.f32 %v4560, 1.442695
    %v4578 = vpow.pop %v4577
    %v4579 = vmul.f32 %v4561, 1.442695
    %v4580 = vpow.pop %v4579
    %v4581 = vmul.f32 %v4562, 1.442695
    %v4582 = vpow.pop %v4581
    %v4583 = vmul.f32 %v4563, 1.442695
    %v4584 = vpow.pop %v4583
    %v4585 = vmul.f32 %v4564, 1.442695
    %v4586 = vpow.pop %v4585
    %v4587 = vmul.f32 %v4565, 1.442695
    %v4588 = vpow.pop %v4587
    %v4589 = vmul.f32 %v4566, 1.442695
    %v4590 = vpow.pop %v4589
    %v4591 = vmul.f32 %v4567, 1.442695
    %v4592 = vpow.pop %v4591
    %v4593 = vmul.f32 %v4568, 1.442695
    %v4594 = vpow.pop %v4593
    %v4595 = vmul.f32 %v4569, 1.442695
    %v4596 = vpow.pop %v4595
    %v4597 = vmul.f32 %v4570, 1.442695
    %v4598 = vpow.pop %v4597
    %v4599 = vmul.f32 %v4571, 1.442695
    %v4600 = vpow.pop %v4599
    %v4601 = vmul.f32 %v4572, 1.442695
    %v4602 = vpow.pop %v4601
    %v4603 = vmul.f32 %v4573, 1.442695
    %v4604 = vpow.pop %v4603
    %v4605 = vmul.f32 %v4574, 1.442695
    %v4606 = vpow.pop %v4605
    %v4607 = vsel %vm1454, %v4576, 0.0
    %4608 = vadd.xlane.f32.xlu0 %v4607
    %v4609 = vpop.xlane.xlu0 %4608
    %v4610 = vsel %vm1454, %v4578, 0.0
    %4611 = vadd.xlane.f32.xlu0 %v4610
    %v4612 = vpop.xlane.xlu0 %4611
    %v4613 = vsel %vm1454, %v4580, 0.0
    %4614 = vadd.xlane.f32.xlu0 %v4613
    %v4615 = vpop.xlane.xlu0 %4614
    %v4616 = vsel %vm1454, %v4582, 0.0
    %4617 = vadd.xlane.f32.xlu0 %v4616
    %v4618 = vpop.xlane.xlu0 %4617
    %v4619 = vsel %vm1454, %v4584, 0.0
    %4620 = vadd.xlane.f32.xlu0 %v4619
    %v4621 = vpop.xlane.xlu0 %4620
    %v4622 = vsel %vm1454, %v4586, 0.0
    %4623 = vadd.xlane.f32.xlu0 %v4622
    %v4624 = vpop.xlane.xlu0 %4623
    %v4625 = vsel %vm1454, %v4588, 0.0
    %4626 = vadd.xlane.f32.xlu0 %v4625
    %v4627 = vpop.xlane.xlu0 %4626
    %v4628 = vsel %vm1454, %v4590, 0.0
    %4629 = vadd.xlane.f32.xlu0 %v4628
    %v4630 = vpop.xlane.xlu0 %4629
    %v4631 = vsel %vm1454, %v4592, 0.0
    %4632 = vadd.xlane.f32.xlu0 %v4631
    %v4633 = vpop.xlane.xlu0 %4632
    %v4634 = vsel %vm1454, %v4594, 0.0
    %4635 = vadd.xlane.f32.xlu0 %v4634
    %v4636 = vpop.xlane.xlu0 %4635
    %v4637 = vsel %vm1454, %v4596, 0.0
    %4638 = vadd.xlane.f32.xlu0 %v4637
    %v4639 = vpop.xlane.xlu0 %4638
    %v4640 = vsel %vm1454, %v4598, 0.0
    %4641 = vadd.xlane.f32.xlu0 %v4640
    %v4642 = vpop.xlane.xlu0 %4641
    %v4643 = vsel %vm1454, %v4600, 0.0
    %4644 = vadd.xlane.f32.xlu0 %v4643
    %v4645 = vpop.xlane.xlu0 %4644
    %v4646 = vsel %vm1454, %v4602, 0.0
    %4647 = vadd.xlane.f32.xlu0 %v4646
    %v4648 = vpop.xlane.xlu0 %4647
    %v4649 = vsel %vm1454, %v4604, 0.0
    %4650 = vadd.xlane.f32.xlu0 %v4649
    %v4651 = vpop.xlane.xlu0 %4650
    %v4652 = vsel %vm1454, %v4606, 0.0
    %4653 = vadd.xlane.f32.xlu0 %v4652
    %v4654 = vpop.xlane.xlu0 %4653
    %v4655 = vrcp.pop %v4609
    %v4656 = vrcp.pop %v4612
    %v4657 = vrcp.pop %v4615
    %v4658 = vrcp.pop %v4618
    %v4659 = vrcp.pop %v4621
    %v4660 = vrcp.pop %v4624
    %v4661 = vrcp.pop %v4627
    %v4662 = vrcp.pop %v4630
    %v4663 = vrcp.pop %v4633
    %v4664 = vrcp.pop %v4636
    %v4665 = vrcp.pop %v4639
    %v4666 = vrcp.pop %v4642
    %v4667 = vrcp.pop %v4645
    %v4668 = vrcp.pop %v4648
    %v4669 = vrcp.pop %v4651
    %v4670 = vrcp.pop %v4654
    %v4671 = vmul.f32 %v4576, %v4655
    %v4672 = vmul.f32 %v4578, %v4656
    %v4673 = vmul.f32 %v4580, %v4657
    %v4674 = vmul.f32 %v4582, %v4658
    %v4675 = vmul.f32 %v4584, %v4659
    %v4676 = vmul.f32 %v4586, %v4660
    %v4677 = vmul.f32 %v4588, %v4661
    %v4678 = vmul.f32 %v4590, %v4662
    %v4679 = vmul.f32 %v4592, %v4663
    %v4680 = vmul.f32 %v4594, %v4664
    %v4681 = vmul.f32 %v4596, %v4665
    %v4682 = vmul.f32 %v4598, %v4666
    %v4683 = vmul.f32 %v4600, %v4667
    %v4684 = vmul.f32 %v4602, %v4668
    %v4685 = vmul.f32 %v4604, %v4669
    %v4686 = vmul.f32 %v4606, %v4670
    %4687 = vrot.lane.b32.xlu0 %v3705, 64
    %v4688 = vpop.permute.xlu0 %4687
    %4689 = vrot.lane.b32.xlu0 %v3710, 64
    %v4690 = vpop.permute.xlu0 %4689
    %v4694 = vsel %vm1454, %v4671, 0
    %v4697 = vsel %vm1454, %v4672, 0
    %4699 = vmatprep.subr.mxu0 0.0
    %4700 = vmatpush1.msra.mxu0 %v4688
    %4701 = vmatprep.subr.mxu0 0.0
    %4702 = vmatpush1.msra.mxu0 %v4690
    %4703 = vmatprep.subr.mxu0 0.0
    %4704 = vmatpush1.msra.mxu0 0.0
    %4705 = vmatprep.subr.mxu0 0.0
    %4706 = vmatpush1.msra.mxu0 0.0
    %4707 = vmatprep.subr.mxu0 0.0
    %4708 = vmatpush1.msra.mxu0 0.0
    %4709 = vmatprep.subr.mxu0 0.0
    %4710 = vmatpush1.msra.mxu0 0.0
    %4711 = vmatprep.subr.mxu0 0.0
    %4712 = vmatpush1.msra.mxu0 0.0
    %4713 = vmatprep.subr.mxu0 0.0
    %4714 = vmatpush1.msra.mxu0 0.0
    %4715 = vmatprep.subr.mxu0 0.0
    %4716 = vmatpush1.msra.mxu0 0.0
    %4717 = vmatprep.subr.mxu0 0.0
    %4718 = vmatpush1.msra.mxu0 0.0
    %4719 = vmatprep.subr.mxu0 0.0
    %4720 = vmatpush1.msra.mxu0 0.0
    %4721 = vmatprep.subr.mxu0 0.0
    %4722 = vmatpush1.msra.mxu0 0.0
    %4723 = vmatprep.subr.mxu0 0.0
    %4724 = vmatpush1.msra.mxu0 0.0
    %4725 = vmatprep.subr.mxu0 0.0
    %4726 = vmatpush1.msra.mxu0 0.0
    %4727 = vmatprep.subr.mxu0 0.0
    %4728 = vmatpush1.msra.mxu0 0.0
    %4729 = vmatprep.subr.mxu0 0.0
    %4730 = vmatpush1.msra.mxu0 0.0
    %4731 = vmatprep.subr.mxu0 0.0
    %4732 = vmatpush1.msra.mxu0 0.0
    %4733 = vmatprep.subr.mxu0 0.0
    %4734 = vmatpush1.msra.mxu0 0.0
    %4735 = vmatprep.subr.mxu0 0.0
    %4736 = vmatpush1.msra.mxu0 0.0
    %4737 = vmatprep.subr.mxu0 0.0
    %4738 = vmatpush1.msra.mxu0 0.0
    %4739 = vmatprep.subr.mxu0 0.0
    %4740 = vmatpush1.msra.mxu0 0.0
    %4741 = vmatprep.subr.mxu0 0.0
    %4742 = vmatpush1.msra.mxu0 0.0
    %4743 = vmatprep.subr.mxu0 0.0
    %4744 = vmatpush1.msra.mxu0 0.0
    %4745 = vmatprep.subr.mxu0 0.0
    %4746 = vmatpush1.msra.mxu0 0.0
    %4747 = vmatprep.subr.mxu0 0.0
    %4748 = vmatpush1.msra.mxu0 0.0
    %4749 = vmatprep.subr.mxu0 0.0
    %4750 = vmatpush1.msra.mxu0 0.0
    %4751 = vmatprep.subr.mxu0 0.0
    %4752 = vmatpush1.msra.mxu0 0.0
    %4753 = vmatprep.subr.mxu0 0.0
    %4754 = vmatpush1.msra.mxu0 0.0
    %4755 = vmatprep.subr.mxu0 0.0
    %4756 = vmatpush1.msra.mxu0 0.0
    %4757 = vmatprep.subr.mxu0 0.0
    %4758 = vmatpush1.msra.mxu0 0.0
    %4759 = vmatprep.subr.mxu0 0.0
    %4760 = vmatpush1.msra.mxu0 0.0
    %4761 = vmatprep.subr.mxu0 0.0
    %4762 = vmatpush1.msra.mxu0 0.0
    %4763 = vmatprep.mubr.f32.mxu0 0.0
    %4764 = vmatmul.mubr.f32.gmra.mrb[0].mxu0 %v4694
    %v4765 = vpop.f32.mrb[0].mxu0
    %v4766 = vadd.f32 %v3705, %v4765
    %v4767 = vpop.f32.mrb[0].mxu0
    %4768 = vmatprep.mubr.f32.mxu0 0.0
    %4769 = vmatmul.mubr.f32.gmra.mrb[0].mxu0 %v4697
    %v4770 = vpop.f32.mrb[0].mxu0
    %v4771 = vadd.f32 %v3710, %v4770
    %v4772 = vpop.f32.mrb[0].mxu0
    %4773 = vdwg.mxu0
    %4774 = vrot.lane.b32.xlu0 %v3715, 64
    %v4775 = vpop.permute.xlu0 %4774
    %4776 = vrot.lane.b32.xlu0 %v3720, 64
    %v4777 = vpop.permute.xlu0 %4776
    %v4781 = vsel %vm1454, %v4673, 0
    %v4784 = vsel %vm1454, %v4674, 0
    %4786 = vmatprep.subr.mxu0 0.0
    %4787 = vmatpush1.msra.mxu0 %v4775
    %4788 = vmatprep.subr.mxu0 0.0
    %4789 = vmatpush1.msra.mxu0 %v4777
    %4790 = vmatprep.subr.mxu0 0.0
    %4791 = vmatpush1.msra.mxu0 0.0
    %4792 = vmatprep.subr.mxu0 0.0
    %4793 = vmatpush1.msra.mxu0 0.0
    %4794 = vmatprep.subr.mxu0 0.0
    %4795 = vmatpush1.msra.mxu0 0.0
    %4796 = vmatprep.subr.mxu0 0.0
    %4797 = vmatpush1.msra.mxu0 0.0
    %4798 = vmatprep.subr.mxu0 0.0
    %4799 = vmatpush1.msra.mxu0 0.0
    %4800 = vmatprep.subr.mxu0 0.0
    %4801 = vmatpush1.msra.mxu0 0.0
    %4802 = vmatprep.subr.mxu0 0.0
    %4803 = vmatpush1.msra.mxu0 0.0
    %4804 = vmatprep.subr.mxu0 0.0
    %4805 = vmatpush1.msra.mxu0 0.0
    %4806 = vmatprep.subr.mxu0 0.0
    %4807 = vmatpush1.msra.mxu0 0.0
    %4808 = vmatprep.subr.mxu0 0.0
    %4809 = vmatpush1.msra.mxu0 0.0
    %4810 = vmatprep.subr.mxu0 0.0
    %4811 = vmatpush1.msra.mxu0 0.0
    %4812 = vmatprep.subr.mxu0 0.0
    %4813 = vmatpush1.msra.mxu0 0.0
    %4814 = vmatprep.subr.mxu0 0.0
    %4815 = vmatpush1.msra.mxu0 0.0
    %4816 = vmatprep.subr.mxu0 0.0
    %4817 = vmatpush1.msra.mxu0 0.0
    %4818 = vmatprep.subr.mxu0 0.0
    %4819 = vmatpush1.msra.mxu0 0.0
    %4820 = vmatprep.subr.mxu0 0.0
    %4821 = vmatpush1.msra.mxu0 0.0
    %4822 = vmatprep.subr.mxu0 0.0
    %4823 = vmatpush1.msra.mxu0 0.0
    %4824 = vmatprep.subr.mxu0 0.0
    %4825 = vmatpush1.msra.mxu0 0.0
    %4826 = vmatprep.subr.mxu0 0.0
    %4827 = vmatpush1.msra.mxu0 0.0
    %4828 = vmatprep.subr.mxu0 0.0
    %4829 = vmatpush1.msra.mxu0 0.0
    %4830 = vmatprep.subr.mxu0 0.0
    %4831 = vmatpush1.msra.mxu0 0.0
    %4832 = vmatprep.subr.mxu0 0.0
    %4833 = vmatpush1.msra.mxu0 0.0
    %4834 = vmatprep.subr.mxu0 0.0
    %4835 = vmatpush1.msra.mxu0 0.0
    %4836 = vmatprep.subr.mxu0 0.0
    %4837 = vmatpush1.msra.mxu0 0.0
    %4838 = vmatprep.subr.mxu0 0.0
    %4839 = vmatpush1.msra.mxu0 0.0
    %4840 = vmatprep.subr.mxu0 0.0
    %4841 = vmatpush1.msra.mxu0 0.0
    %4842 = vmatprep.subr.mxu0 0.0
    %4843 = vmatpush1.msra.mxu0 0.0
    %4844 = vmatprep.subr.mxu0 0.0
    %4845 = vmatpush1.msra.mxu0 0.0
    %4846 = vmatprep.subr.mxu0 0.0
    %4847 = vmatpush1.msra.mxu0 0.0
    %4848 = vmatprep.subr.mxu0 0.0
    %4849 = vmatpush1.msra.mxu0 0.0
    %4850 = vmatprep.mubr.f32.mxu0 0.0
    %4851 = vmatmul.mubr.f32.gmra.mrb[0].mxu0 %v4781
    %v4852 = vpop.f32.mrb[0].mxu0
    %v4853 = vadd.f32 %v3715, %v4852
    %v4854 = vpop.f32.mrb[0].mxu0
    %4855 = vmatprep.mubr.f32.mxu0 0.0
    %4856 = vmatmul.mubr.f32.gmra.mrb[0].mxu0 %v4784
    %v4857 = vpop.f32.mrb[0].mxu0
    %v4858 = vadd.f32 %v3720, %v4857
    %v4859 = vpop.f32.mrb[0].mxu0
    %4860 = vdwg.mxu0
    %4861 = vrot.lane.b32.xlu0 %v3725, 64
    %v4862 = vpop.permute.xlu0 %4861
    %4863 = vrot.lane.b32.xlu0 %v3730, 64
    %v4864 = vpop.permute.xlu0 %4863
    %v4868 = vsel %vm1454, %v4675, 0
    %v4871 = vsel %vm1454, %v4676, 0
    %4873 = vmatprep.subr.mxu0 0.0
    %4874 = vmatpush1.msra.mxu0 %v4862
    %4875 = vmatprep.subr.mxu0 0.0
    %4876 = vmatpush1.msra.mxu0 %v4864
    %4877 = vmatprep.subr.mxu0 0.0
    %4878 = vmatpush1.msra.mxu0 0.0
    %4879 = vmatprep.subr.mxu0 0.0
    %4880 = vmatpush1.msra.mxu0 0.0
    %4881 = vmatprep.subr.mxu0 0.0
    %4882 = vmatpush1.msra.mxu0 0.0
    %4883 = vmatprep.subr.mxu0 0.0
    %4884 = vmatpush1.msra.mxu0 0.0
    %4885 = vmatprep.subr.mxu0 0.0
    %4886 = vmatpush1.msra.mxu0 0.0
    %4887 = vmatprep.subr.mxu0 0.0
    %4888 = vmatpush1.msra.mxu0 0.0
    %4889 = vmatprep.subr.mxu0 0.0
    %4890 = vmatpush1.msra.mxu0 0.0
    %4891 = vmatprep.subr.mxu0 0.0
    %4892 = vmatpush1.msra.mxu0 0.0
    %4893 = vmatprep.subr.mxu0 0.0
    %4894 = vmatpush1.msra.mxu0 0.0
    %4895 = vmatprep.subr.mxu0 0.0
    %4896 = vmatpush1.msra.mxu0 0.0
    %4897 = vmatprep.subr.mxu0 0.0
    %4898 = vmatpush1.msra.mxu0 0.0
    %4899 = vmatprep.subr.mxu0 0.0
    %4900 = vmatpush1.msra.mxu0 0.0
    %4901 = vmatprep.subr.mxu0 0.0
    %4902 = vmatpush1.msra.mxu0 0.0
    %4903 = vmatprep.subr.mxu0 0.0
    %4904 = vmatpush1.msra.mxu0 0.0
    %4905 = vmatprep.subr.mxu0 0.0
    %4906 = vmatpush1.msra.mxu0 0.0
    %4907 = vmatprep.subr.mxu0 0.0
    %4908 = vmatpush1.msra.mxu0 0.0
    %4909 = vmatprep.subr.mxu0 0.0
    %4910 = vmatpush1.msra.mxu0 0.0
    %4911 = vmatprep.subr.mxu0 0.0
    %4912 = vmatpush1.msra.mxu0 0.0
    %4913 = vmatprep.subr.mxu0 0.0
    %4914 = vmatpush1.msra.mxu0 0.0
    %4915 = vmatprep.subr.mxu0 0.0
    %4916 = vmatpush1.msra.mxu0 0.0
    %4917 = vmatprep.subr.mxu0 0.0
    %4918 = vmatpush1.msra.mxu0 0.0
    %4919 = vmatprep.subr.mxu0 0.0
    %4920 = vmatpush1.msra.mxu0 0.0
    %4921 = vmatprep.subr.mxu0 0.0
    %4922 = vmatpush1.msra.mxu0 0.0
    %4923 = vmatprep.subr.mxu0 0.0
    %4924 = vmatpush1.msra.mxu0 0.0
    %4925 = vmatprep.subr.mxu0 0.0
    %4926 = vmatpush1.msra.mxu0 0.0
    %4927 = vmatprep.subr.mxu0 0.0
    %4928 = vmatpush1.msra.mxu0 0.0
    %4929 = vmatprep.subr.mxu0 0.0
    %4930 = vmatpush1.msra.mxu0 0.0
    %4931 = vmatprep.subr.mxu0 0.0
    %4932 = vmatpush1.msra.mxu0 0.0
    %4933 = vmatprep.subr.mxu0 0.0
    %4934 = vmatpush1.msra.mxu0 0.0
    %4935 = vmatprep.subr.mxu0 0.0
    %4936 = vmatpush1.msra.mxu0 0.0
    %4937 = vmatprep.mubr.f32.mxu0 0.0
    %4938 = vmatmul.mubr.f32.gmra.mrb[0].mxu0 %v4868
    %v4939 = vpop.f32.mrb[0].mxu0
    %v4940 = vadd.f32 %v3725, %v4939
    %v4941 = vpop.f32.mrb[0].mxu0
    %4942 = vmatprep.mubr.f32.mxu0 0.0
    %4943 = vmatmul.mubr.f32.gmra.mrb[0].mxu0 %v4871
    %v4944 = vpop.f32.mrb[0].mxu0
    %v4945 = vadd.f32 %v3730, %v4944
    %v4946 = vpop.f32.mrb[0].mxu0
    %4947 = vdwg.mxu0
    %4948 = vrot.lane.b32.xlu0 %v3735, 64
    %v4949 = vpop.permute.xlu0 %4948
    %4950 = vrot.lane.b32.xlu0 %v3740, 64
    %v4951 = vpop.permute.xlu0 %4950
    %v4955 = vsel %vm1454, %v4677, 0
    %v4958 = vsel %vm1454, %v4678, 0
    %4960 = vmatprep.subr.mxu0 0.0
    %4961 = vmatpush1.msra.mxu0 %v4949
    %4962 = vmatprep.subr.mxu0 0.0
    %4963 = vmatpush1.msra.mxu0 %v4951
    %4964 = vmatprep.subr.mxu0 0.0
    %4965 = vmatpush1.msra.mxu0 0.0
    %4966 = vmatprep.subr.mxu0 0.0
    %4967 = vmatpush1.msra.mxu0 0.0
    %4968 = vmatprep.subr.mxu0 0.0
    %4969 = vmatpush1.msra.mxu0 0.0
    %4970 = vmatprep.subr.mxu0 0.0
    %4971 = vmatpush1.msra.mxu0 0.0
    %4972 = vmatprep.subr.mxu0 0.0
    %4973 = vmatpush1.msra.mxu0 0.0
    %4974 = vmatprep.subr.mxu0 0.0
    %4975 = vmatpush1.msra.mxu0 0.0
    %4976 = vmatprep.subr.mxu0 0.0
    %4977 = vmatpush1.msra.mxu0 0.0
    %4978 = vmatprep.subr.mxu0 0.0
    %4979 = vmatpush1.msra.mxu0 0.0
    %4980 = vmatprep.subr.mxu0 0.0
    %4981 = vmatpush1.msra.mxu0 0.0
    %4982 = vmatprep.subr.mxu0 0.0
    %4983 = vmatpush1.msra.mxu0 0.0
    %4984 = vmatprep.subr.mxu0 0.0
    %4985 = vmatpush1.msra.mxu0 0.0
    %4986 = vmatprep.subr.mxu0 0.0
    %4987 = vmatpush1.msra.mxu0 0.0
    %4988 = vmatprep.subr.mxu0 0.0
    %4989 = vmatpush1.msra.mxu0 0.0
    %4990 = vmatprep.subr.mxu0 0.0
    %4991 = vmatpush1.msra.mxu0 0.0
    %4992 = vmatprep.subr.mxu0 0.0
    %4993 = vmatpush1.msra.mxu0 0.0
    %4994 = vmatprep.subr.mxu0 0.0
    %4995 = vmatpush1.msra.mxu0 0.0
    %4996 = vmatprep.subr.mxu0 0.0
    %4997 = vmatpush1.msra.mxu0 0.0
    %4998 = vmatprep.subr.mxu0 0.0
    %4999 = vmatpush1.msra.mxu0 0.0
    %5000 = vmatprep.subr.mxu0 0.0
    %5001 = vmatpush1.msra.mxu0 0.0
    %5002 = vmatprep.subr.mxu0 0.0
    %5003 = vmatpush1.msra.mxu0 0.0
    %5004 = vmatprep.subr.mxu0 0.0
    %5005 = vmatpush1.msra.mxu0 0.0
    %5006 = vmatprep.subr.mxu0 0.0
    %5007 = vmatpush1.msra.mxu0 0.0
    %5008 = vmatprep.subr.mxu0 0.0
    %5009 = vmatpush1.msra.mxu0 0.0
    %5010 = vmatprep.subr.mxu0 0.0
    %5011 = vmatpush1.msra.mxu0 0.0
    %5012 = vmatprep.subr.mxu0 0.0
    %5013 = vmatpush1.msra.mxu0 0.0
    %5014 = vmatprep.subr.mxu0 0.0
    %5015 = vmatpush1.msra.mxu0 0.0
    %5016 = vmatprep.subr.mxu0 0.0
    %5017 = vmatpush1.msra.mxu0 0.0
    %5018 = vmatprep.subr.mxu0 0.0
    %5019 = vmatpush1.msra.mxu0 0.0
    %5020 = vmatprep.subr.mxu0 0.0
    %5021 = vmatpush1.msra.mxu0 0.0
    %5022 = vmatprep.subr.mxu0 0.0
    %5023 = vmatpush1.msra.mxu0 0.0
    %5024 = vmatprep.mubr.f32.mxu0 0.0
    %5025 = vmatmul.mubr.f32.gmra.mrb[0].mxu0 %v4955
    %v5026 = vpop.f32.mrb[0].mxu0
    %v5027 = vadd.f32 %v3735, %v5026
    %v5028 = vpop.f32.mrb[0].mxu0
    %5029 = vmatprep.mubr.f32.mxu0 0.0
    %5030 = vmatmul.mubr.f32.gmra.mrb[0].mxu0 %v4958
    %v5031 = vpop.f32.mrb[0].mxu0
    %v5032 = vadd.f32 %v3740, %v5031
    %v5033 = vpop.f32.mrb[0].mxu0
    %5034 = vdwg.mxu0
    %5035 = vrot.lane.b32.xlu0 %v3745, 64
    %v5036 = vpop.permute.xlu0 %5035
    %5037 = vrot.lane.b32.xlu0 %v3750, 64
    %v5038 = vpop.permute.xlu0 %5037
    %v5042 = vsel %vm1454, %v4679, 0
    %v5045 = vsel %vm1454, %v4680, 0
    %5047 = vmatprep.subr.mxu0 0.0
    %5048 = vmatpush1.msra.mxu0 %v5036
    %5049 = vmatprep.subr.mxu0 0.0
    %5050 = vmatpush1.msra.mxu0 %v5038
    %5051 = vmatprep.subr.mxu0 0.0
    %5052 = vmatpush1.msra.mxu0 0.0
    %5053 = vmatprep.subr.mxu0 0.0
    %5054 = vmatpush1.msra.mxu0 0.0
    %5055 = vmatprep.subr.mxu0 0.0
    %5056 = vmatpush1.msra.mxu0 0.0
    %5057 = vmatprep.subr.mxu0 0.0
    %5058 = vmatpush1.msra.mxu0 0.0
    %5059 = vmatprep.subr.mxu0 0.0
    %5060 = vmatpush1.msra.mxu0 0.0
    %5061 = vmatprep.subr.mxu0 0.0
    %5062 = vmatpush1.msra.mxu0 0.0
    %5063 = vmatprep.subr.mxu0 0.0
    %5064 = vmatpush1.msra.mxu0 0.0
    %5065 = vmatprep.subr.mxu0 0.0
    %5066 = vmatpush1.msra.mxu0 0.0
    %5067 = vmatprep.subr.mxu0 0.0
    %5068 = vmatpush1.msra.mxu0 0.0
    %5069 = vmatprep.subr.mxu0 0.0
    %5070 = vmatpush1.msra.mxu0 0.0
    %5071 = vmatprep.subr.mxu0 0.0
    %5072 = vmatpush1.msra.mxu0 0.0
    %5073 = vmatprep.subr.mxu0 0.0
    %5074 = vmatpush1.msra.mxu0 0.0
    %5075 = vmatprep.subr.mxu0 0.0
    %5076 = vmatpush1.msra.mxu0 0.0
    %5077 = vmatprep.subr.mxu0 0.0
    %5078 = vmatpush1.msra.mxu0 0.0
    %5079 = vmatprep.subr.mxu0 0.0
    %5080 = vmatpush1.msra.mxu0 0.0
    %5081 = vmatprep.subr.mxu0 0.0
    %5082 = vmatpush1.msra.mxu0 0.0
    %5083 = vmatprep.subr.mxu0 0.0
    %5084 = vmatpush1.msra.mxu0 0.0
    %5085 = vmatprep.subr.mxu0 0.0
    %5086 = vmatpush1.msra.mxu0 0.0
    %5087 = vmatprep.subr.mxu0 0.0
    %5088 = vmatpush1.msra.mxu0 0.0
    %5089 = vmatprep.subr.mxu0 0.0
    %5090 = vmatpush1.msra.mxu0 0.0
    %5091 = vmatprep.subr.mxu0 0.0
    %5092 = vmatpush1.msra.mxu0 0.0
    %5093 = vmatprep.subr.mxu0 0.0
    %5094 = vmatpush1.msra.mxu0 0.0
    %5095 = vmatprep.subr.mxu0 0.0
    %5096 = vmatpush1.msra.mxu0 0.0
    %5097 = vmatprep.subr.mxu0 0.0
    %5098 = vmatpush1.msra.mxu0 0.0
    %5099 = vmatprep.subr.mxu0 0.0
    %5100 = vmatpush1.msra.mxu0 0.0
    %5101 = vmatprep.subr.mxu0 0.0
    %5102 = vmatpush1.msra.mxu0 0.0
    %5103 = vmatprep.subr.mxu0 0.0
    %5104 = vmatpush1.msra.mxu0 0.0
    %5105 = vmatprep.subr.mxu0 0.0
    %5106 = vmatpush1.msra.mxu0 0.0
    %5107 = vmatprep.subr.mxu0 0.0
    %5108 = vmatpush1.msra.mxu0 0.0
    %5109 = vmatprep.subr.mxu0 0.0
    %5110 = vmatpush1.msra.mxu0 0.0
    %5111 = vmatprep.mubr.f32.mxu0 0.0
    %5112 = vmatmul.mubr.f32.gmra.mrb[0].mxu0 %v5042
    %v5113 = vpop.f32.mrb[0].mxu0
    %v5114 = vadd.f32 %v3745, %v5113
    %v5115 = vpop.f32.mrb[0].mxu0
    %5116 = vmatprep.mubr.f32.mxu0 0.0
    %5117 = vmatmul.mubr.f32.gmra.mrb[0].mxu0 %v5045
    %v5118 = vpop.f32.mrb[0].mxu0
    %v5119 = vadd.f32 %v3750, %v5118
    %v5120 = vpop.f32.mrb[0].mxu0
    %5121 = vdwg.mxu0
    %5122 = vrot.lane.b32.xlu0 %v3755, 64
    %v5123 = vpop.permute.xlu0 %5122
    %5124 = vrot.lane.b32.xlu0 %v3760, 64
    %v5125 = vpop.permute.xlu0 %5124
    %v5129 = vsel %vm1454, %v4681, 0
    %v5132 = vsel %vm1454, %v4682, 0
    %5134 = vmatprep.subr.mxu0 0.0
    %5135 = vmatpush1.msra.mxu0 %v5123
    %5136 = vmatprep.subr.mxu0 0.0
    %5137 = vmatpush1.msra.mxu0 %v5125
    %5138 = vmatprep.subr.mxu0 0.0
    %5139 = vmatpush1.msra.mxu0 0.0
    %5140 = vmatprep.subr.mxu0 0.0
    %5141 = vmatpush1.msra.mxu0 0.0
    %5142 = vmatprep.subr.mxu0 0.0
    %5143 = vmatpush1.msra.mxu0 0.0
    %5144 = vmatprep.subr.mxu0 0.0
    %5145 = vmatpush1.msra.mxu0 0.0
    %5146 = vmatprep.subr.mxu0 0.0
    %5147 = vmatpush1.msra.mxu0 0.0
    %5148 = vmatprep.subr.mxu0 0.0
    %5149 = vmatpush1.msra.mxu0 0.0
    %5150 = vmatprep.subr.mxu0 0.0
    %5151 = vmatpush1.msra.mxu0 0.0
    %5152 = vmatprep.subr.mxu0 0.0
    %5153 = vmatpush1.msra.mxu0 0.0
    %5154 = vmatprep.subr.mxu0 0.0
    %5155 = vmatpush1.msra.mxu0 0.0
    %5156 = vmatprep.subr.mxu0 0.0
    %5157 = vmatpush1.msra.mxu0 0.0
    %5158 = vmatprep.subr.mxu0 0.0
    %5159 = vmatpush1.msra.mxu0 0.0
    %5160 = vmatprep.subr.mxu0 0.0
    %5161 = vmatpush1.msra.mxu0 0.0
    %5162 = vmatprep.subr.mxu0 0.0
    %5163 = vmatpush1.msra.mxu0 0.0
    %5164 = vmatprep.subr.mxu0 0.0
    %5165 = vmatpush1.msra.mxu0 0.0
    %5166 = vmatprep.subr.mxu0 0.0
    %5167 = vmatpush1.msra.mxu0 0.0
    %5168 = vmatprep.subr.mxu0 0.0
    %5169 = vmatpush1.msra.mxu0 0.0
    %5170 = vmatprep.subr.mxu0 0.0
    %5171 = vmatpush1.msra.mxu0 0.0
    %5172 = vmatprep.subr.mxu0 0.0
    %5173 = vmatpush1.msra.mxu0 0.0
    %5174 = vmatprep.subr.mxu0 0.0
    %5175 = vmatpush1.msra.mxu0 0.0
    %5176 = vmatprep.subr.mxu0 0.0
    %5177 = vmatpush1.msra.mxu0 0.0
    %5178 = vmatprep.subr.mxu0 0.0
    %5179 = vmatpush1.msra.mxu0 0.0
    %5180 = vmatprep.subr.mxu0 0.0
    %5181 = vmatpush1.msra.mxu0 0.0
    %5182 = vmatprep.subr.mxu0 0.0
    %5183 = vmatpush1.msra.mxu0 0.0
    %5184 = vmatprep.subr.mxu0 0.0
    %5185 = vmatpush1.msra.mxu0 0.0
    %5186 = vmatprep.subr.mxu0 0.0
    %5187 = vmatpush1.msra.mxu0 0.0
    %5188 = vmatprep.subr.mxu0 0.0
    %5189 = vmatpush1.msra.mxu0 0.0
    %5190 = vmatprep.subr.mxu0 0.0
    %5191 = vmatpush1.msra.mxu0 0.0
    %5192 = vmatprep.subr.mxu0 0.0
    %5193 = vmatpush1.msra.mxu0 0.0
    %5194 = vmatprep.subr.mxu0 0.0
    %5195 = vmatpush1.msra.mxu0 0.0
    %5196 = vmatprep.subr.mxu0 0.0
    %5197 = vmatpush1.msra.mxu0 0.0
    %5198 = vmatprep.mubr.f32.mxu0 0.0
    %5199 = vmatmul.mubr.f32.gmra.mrb[0].mxu0 %v5129
    %v5200 = vpop.f32.mrb[0].mxu0
    %v5201 = vadd.f32 %v3755, %v5200
    %v5202 = vpop.f32.mrb[0].mxu0
    %5203 = vmatprep.mubr.f32.mxu0 0.0
    %5204 = vmatmul.mubr.f32.gmra.mrb[0].mxu0 %v5132
    %v5205 = vpop.f32.mrb[0].mxu0
    %v5206 = vadd.f32 %v3760, %v5205
    %v5207 = vpop.f32.mrb[0].mxu0
    %5208 = vdwg.mxu0
    %5209 = vrot.lane.b32.xlu0 %v3765, 64
    %v5210 = vpop.permute.xlu0 %5209
    %5211 = vrot.lane.b32.xlu0 %v3770, 64
    %v5212 = vpop.permute.xlu0 %5211
    %v5216 = vsel %vm1454, %v4683, 0
    %v5219 = vsel %vm1454, %v4684, 0
    %5221 = vmatprep.subr.mxu0 0.0
    %5222 = vmatpush1.msra.mxu0 %v5210
    %5223 = vmatprep.subr.mxu0 0.0
    %5224 = vmatpush1.msra.mxu0 %v5212
    %5225 = vmatprep.subr.mxu0 0.0
    %5226 = vmatpush1.msra.mxu0 0.0
    %5227 = vmatprep.subr.mxu0 0.0
    %5228 = vmatpush1.msra.mxu0 0.0
    %5229 = vmatprep.subr.mxu0 0.0
    %5230 = vmatpush1.msra.mxu0 0.0
    %5231 = vmatprep.subr.mxu0 0.0
    %5232 = vmatpush1.msra.mxu0 0.0
    %5233 = vmatprep.subr.mxu0 0.0
    %5234 = vmatpush1.msra.mxu0 0.0
    %5235 = vmatprep.subr.mxu0 0.0
    %5236 = vmatpush1.msra.mxu0 0.0
    %5237 = vmatprep.subr.mxu0 0.0
    %5238 = vmatpush1.msra.mxu0 0.0
    %5239 = vmatprep.subr.mxu0 0.0
    %5240 = vmatpush1.msra.mxu0 0.0
    %5241 = vmatprep.subr.mxu0 0.0
    %5242 = vmatpush1.msra.mxu0 0.0
    %5243 = vmatprep.subr.mxu0 0.0
    %5244 = vmatpush1.msra.mxu0 0.0
    %5245 = vmatprep.subr.mxu0 0.0
    %5246 = vmatpush1.msra.mxu0 0.0
    %5247 = vmatprep.subr.mxu0 0.0
    %5248 = vmatpush1.msra.mxu0 0.0
    %5249 = vmatprep.subr.mxu0 0.0
    %5250 = vmatpush1.msra.mxu0 0.0
    %5251 = vmatprep.subr.mxu0 0.0
    %5252 = vmatpush1.msra.mxu0 0.0
    %5253 = vmatprep.subr.mxu0 0.0
    %5254 = vmatpush1.msra.mxu0 0.0
    %5255 = vmatprep.subr.mxu0 0.0
    %5256 = vmatpush1.msra.mxu0 0.0
    %5257 = vmatprep.subr.mxu0 0.0
    %5258 = vmatpush1.msra.mxu0 0.0
    %5259 = vmatprep.subr.mxu0 0.0
    %5260 = vmatpush1.msra.mxu0 0.0
    %5261 = vmatprep.subr.mxu0 0.0
    %5262 = vmatpush1.msra.mxu0 0.0
    %5263 = vmatprep.subr.mxu0 0.0
    %5264 = vmatpush1.msra.mxu0 0.0
    %5265 = vmatprep.subr.mxu0 0.0
    %5266 = vmatpush1.msra.mxu0 0.0
    %5267 = vmatprep.subr.mxu0 0.0
    %5268 = vmatpush1.msra.mxu0 0.0
    %5269 = vmatprep.subr.mxu0 0.0
    %5270 = vmatpush1.msra.mxu0 0.0
    %5271 = vmatprep.subr.mxu0 0.0
    %5272 = vmatpush1.msra.mxu0 0.0
    %5273 = vmatprep.subr.mxu0 0.0
    %5274 = vmatpush1.msra.mxu0 0.0
    %5275 = vmatprep.subr.mxu0 0.0
    %5276 = vmatpush1.msra.mxu0 0.0
    %5277 = vmatprep.subr.mxu0 0.0
    %5278 = vmatpush1.msra.mxu0 0.0
    %5279 = vmatprep.subr.mxu0 0.0
    %5280 = vmatpush1.msra.mxu0 0.0
    %5281 = vmatprep.subr.mxu0 0.0
    %5282 = vmatpush1.msra.mxu0 0.0
    %5283 = vmatprep.subr.mxu0 0.0
    %5284 = vmatpush1.msra.mxu0 0.0
    %5285 = vmatprep.mubr.f32.mxu0 0.0
    %5286 = vmatmul.mubr.f32.gmra.mrb[0].mxu0 %v5216
    %v5287 = vpop.f32.mrb[0].mxu0
    %v5288 = vadd.f32 %v3765, %v5287
    %v5289 = vpop.f32.mrb[0].mxu0
    %5290 = vmatprep.mubr.f32.mxu0 0.0
    %5291 = vmatmul.mubr.f32.gmra.mrb[0].mxu0 %v5219
    %v5292 = vpop.f32.mrb[0].mxu0
    %v5293 = vadd.f32 %v3770, %v5292
    %v5294 = vpop.f32.mrb[0].mxu0
    %5295 = vdwg.mxu0
    %5296 = vrot.lane.b32.xlu0 %v3775, 64
    %v5297 = vpop.permute.xlu0 %5296
    %5298 = vrot.lane.b32.xlu0 %v3780, 64
    %v5299 = vpop.permute.xlu0 %5298
    %v5303 = vsel %vm1454, %v4685, 0
    %v5306 = vsel %vm1454, %v4686, 0
    %5308 = vmatprep.subr.mxu0 0.0
    %5309 = vmatpush1.msra.mxu0 %v5297
    %5310 = vmatprep.subr.mxu0 0.0
    %5311 = vmatpush1.msra.mxu0 %v5299
    %5312 = vmatprep.subr.mxu0 0.0
    %5313 = vmatpush1.msra.mxu0 0.0
    %5314 = vmatprep.subr.mxu0 0.0
    %5315 = vmatpush1.msra.mxu0 0.0
    %5316 = vmatprep.subr.mxu0 0.0
    %5317 = vmatpush1.msra.mxu0 0.0
    %5318 = vmatprep.subr.mxu0 0.0
    %5319 = vmatpush1.msra.mxu0 0.0
    %5320 = vmatprep.subr.mxu0 0.0
    %5321 = vmatpush1.msra.mxu0 0.0
    %5322 = vmatprep.subr.mxu0 0.0
    %5323 = vmatpush1.msra.mxu0 0.0
    %5324 = vmatprep.subr.mxu0 0.0
    %5325 = vmatpush1.msra.mxu0 0.0
    %5326 = vmatprep.subr.mxu0 0.0
    %5327 = vmatpush1.msra.mxu0 0.0
    %5328 = vmatprep.subr.mxu0 0.0
    %5329 = vmatpush1.msra.mxu0 0.0
    %5330 = vmatprep.subr.mxu0 0.0
    %5331 = vmatpush1.msra.mxu0 0.0
    %5332 = vmatprep.subr.mxu0 0.0
    %5333 = vmatpush1.msra.mxu0 0.0
    %5334 = vmatprep.subr.mxu0 0.0
    %5335 = vmatpush1.msra.mxu0 0.0
    %5336 = vmatprep.subr.mxu0 0.0
    %5337 = vmatpush1.msra.mxu0 0.0
    %5338 = vmatprep.subr.mxu0 0.0
    %5339 = vmatpush1.msra.mxu0 0.0
    %5340 = vmatprep.subr.mxu0 0.0
    %5341 = vmatpush1.msra.mxu0 0.0
    %5342 = vmatprep.subr.mxu0 0.0
    %5343 = vmatpush1.msra.mxu0 0.0
    %5344 = vmatprep.subr.mxu0 0.0
    %5345 = vmatpush1.msra.mxu0 0.0
    %5346 = vmatprep.subr.mxu0 0.0
    %5347 = vmatpush1.msra.mxu0 0.0
    %5348 = vmatprep.subr.mxu0 0.0
    %5349 = vmatpush1.msra.mxu0 0.0
    %5350 = vmatprep.subr.mxu0 0.0
    %5351 = vmatpush1.msra.mxu0 0.0
    %5352 = vmatprep.subr.mxu0 0.0
    %5353 = vmatpush1.msra.mxu0 0.0
    %5354 = vmatprep.subr.mxu0 0.0
    %5355 = vmatpush1.msra.mxu0 0.0
    %5356 = vmatprep.subr.mxu0 0.0
    %5357 = vmatpush1.msra.mxu0 0.0
    %5358 = vmatprep.subr.mxu0 0.0
    %5359 = vmatpush1.msra.mxu0 0.0
    %5360 = vmatprep.subr.mxu0 0.0
    %5361 = vmatpush1.msra.mxu0 0.0
    %5362 = vmatprep.subr.mxu0 0.0
    %5363 = vmatpush1.msra.mxu0 0.0
    %5364 = vmatprep.subr.mxu0 0.0
    %5365 = vmatpush1.msra.mxu0 0.0
    %5366 = vmatprep.subr.mxu0 0.0
    %5367 = vmatpush1.msra.mxu0 0.0
    %5368 = vmatprep.subr.mxu0 0.0
    %5369 = vmatpush1.msra.mxu0 0.0
    %5370 = vmatprep.subr.mxu0 0.0
    %5371 = vmatpush1.msra.mxu0 0.0
    %5372 = vmatprep.mubr.f32.mxu0 0.0
    %5373 = vmatmul.mubr.f32.gmra.mrb[0].mxu0 %v5303
    %v5374 = vpop.f32.mrb[0].mxu0
    %v5375 = vadd.f32 %v3775, %v5374
    %v5376 = vpop.f32.mrb[0].mxu0
    %5377 = vmatprep.mubr.f32.mxu0 0.0
    %5378 = vmatmul.mubr.f32.gmra.mrb[0].mxu0 %v5306
    %v5379 = vpop.f32.mrb[0].mxu0
    %v5380 = vadd.f32 %v3780, %v5379
    %v5381 = vpop.f32.mrb[0].mxu0
    %5382 = vdwg.mxu0
    %s5383 = scalar_lea.vmem %s6, 32
    %v5384 = vld [vmem:[%s5383] sm:$0xff]
    %v5385 = vld [vmem:[%s5383 + $0x8] sm:$0xff]
    %v5386 = vld [vmem:[%s5383 + $0x10] sm:$0xff]
    %v5387 = vld [vmem:[%s5383 + $0x18] sm:$0xff]
    %s5388 = scalar_lea.vmem %s7, 1
    %v5389 = vld [vmem:[%s5388] sm:$0x1]
    %v5391 = vlaneseq
    %v5392 = vshrl.u32 %v5391, 7
    %v5393 = vsub.s32 0, %v5392
    %v5394 = vrot.slane %v5389, %v5393
    %v5397 = vsel %vm272, %v4766, 0
    %v5400 = vsel %vm272, %v4771, 0
    %v5403 = vsel %vm272, %v4853, 0
    %v5406 = vsel %vm272, %v4858, 0
    %v5409 = vsel %vm272, %v4940, 0
    %v5412 = vsel %vm272, %v4945, 0
    %v5415 = vsel %vm272, %v5027, 0
    %v5418 = vsel %vm272, %v5032, 0
    %v5421 = vsel %vm272, %v5114, 0
    %v5424 = vsel %vm272, %v5119, 0
    %v5427 = vsel %vm272, %v5201, 0
    %v5430 = vsel %vm272, %v5206, 0
    %v5433 = vsel %vm272, %v5288, 0
    %v5436 = vsel %vm272, %v5293, 0
    %v5439 = vsel %vm272, %v5375, 0
    %v5442 = vsel %vm272, %v5380, 0
    %5444 = vmatprep.subr.mxu0 0.0
    %5445 = vmatpush1.msra.mxu0 %v5384
    %5446 = vmatprep.subr.mxu0 0.0
    %5447 = vmatpush1.msra.mxu0 %v5385
    %5448 = vmatprep.subr.mxu0 0.0
    %5449 = vmatpush1.msra.mxu0 %v5386
    %5450 = vmatprep.subr.mxu0 0.0
    %5451 = vmatpush1.msra.mxu0 %v5387
    %5452 = vmatprep.subr.mxu0 0.0
    %5453 = vmatpush1.msra.mxu0 0.0
    %5454 = vmatprep.subr.mxu0 0.0
    %5455 = vmatpush1.msra.mxu0 0.0
    %5456 = vmatprep.subr.mxu0 0.0
    %5457 = vmatpush1.msra.mxu0 0.0
    %5458 = vmatprep.subr.mxu0 0.0
    %5459 = vmatpush1.msra.mxu0 0.0
    %5460 = vmatprep.subr.mxu0 0.0
    %5461 = vmatpush1.msra.mxu0 0.0
    %5462 = vmatprep.subr.mxu0 0.0
    %5463 = vmatpush1.msra.mxu0 0.0
    %5464 = vmatprep.subr.mxu0 0.0
    %5465 = vmatpush1.msra.mxu0 0.0
    %5466 = vmatprep.subr.mxu0 0.0
    %5467 = vmatpush1.msra.mxu0 0.0
    %5468 = vmatprep.subr.mxu0 0.0
    %5469 = vmatpush1.msra.mxu0 0.0
    %5470 = vmatprep.subr.mxu0 0.0
    %5471 = vmatpush1.msra.mxu0 0.0
    %5472 = vmatprep.subr.mxu0 0.0
    %5473 = vmatpush1.msra.mxu0 0.0
    %5474 = vmatprep.subr.mxu0 0.0
    %5475 = vmatpush1.msra.mxu0 0.0
    %5476 = vmatprep.subr.mxu0 0.0
    %5477 = vmatpush1.msra.mxu0 0.0
    %5478 = vmatprep.subr.mxu0 0.0
    %5479 = vmatpush1.msra.mxu0 0.0
    %5480 = vmatprep.subr.mxu0 0.0
    %5481 = vmatpush1.msra.mxu0 0.0
    %5482 = vmatprep.subr.mxu0 0.0
    %5483 = vmatpush1.msra.mxu0 0.0
    %5484 = vmatprep.subr.mxu0 0.0
    %5485 = vmatpush1.msra.mxu0 0.0
    %5486 = vmatprep.subr.mxu0 0.0
    %5487 = vmatpush1.msra.mxu0 0.0
    %5488 = vmatprep.subr.mxu0 0.0
    %5489 = vmatpush1.msra.mxu0 0.0
    %5490 = vmatprep.subr.mxu0 0.0
    %5491 = vmatpush1.msra.mxu0 0.0
    %5492 = vmatprep.subr.mxu0 0.0
    %5493 = vmatpush1.msra.mxu0 0.0
    %5494 = vmatprep.subr.mxu0 0.0
    %5495 = vmatpush1.msra.mxu0 0.0
    %5496 = vmatprep.subr.mxu0 0.0
    %5497 = vmatpush1.msra.mxu0 0.0
    %5498 = vmatprep.subr.mxu0 0.0
    %5499 = vmatpush1.msra.mxu0 0.0
    %5500 = vmatprep.subr.mxu0 0.0
    %5501 = vmatpush1.msra.mxu0 0.0
    %5502 = vmatprep.subr.mxu0 0.0
    %5503 = vmatpush1.msra.mxu0 0.0
    %5504 = vmatprep.subr.mxu0 0.0
    %5505 = vmatpush1.msra.mxu0 0.0
    %5506 = vmatprep.subr.mxu0 0.0
    %5507 = vmatpush1.msra.mxu0 0.0
    %5508 = vmatprep.mubr.f32.mxu0 0.0
    %5509 = vmatmul.mubr.f32.gmra.mrb[0].mxu0 %v5397
    %v5510 = vpop.f32.mrb[0].mxu0
    %v5511 = vadd.f32 %v5394, %v5510
    %v5512 = vpop.f32.mrb[0].mxu0
    %5513 = vmatprep.mubr.f32.mxu0 0.0
    %5514 = vmatmul.mubr.f32.gmra.mrb[0].mxu0 %v5400
    %v5515 = vpop.f32.mrb[0].mxu0
    %v5516 = vadd.f32 %v5394, %v5515
    %v5517 = vpop.f32.mrb[0].mxu0
    %5518 = vmatprep.mubr.f32.mxu0 0.0
    %5519 = vmatmul.mubr.f32.gmra.mrb[0].mxu0 %v5403
    %v5520 = vpop.f32.mrb[0].mxu0
    %v5521 = vadd.f32 %v5394, %v5520
    %v5522 = vpop.f32.mrb[0].mxu0
    %5523 = vmatprep.mubr.f32.mxu0 0.0
    %5524 = vmatmul.mubr.f32.gmra.mrb[0].mxu0 %v5406
    %v5525 = vpop.f32.mrb[0].mxu0
    %v5526 = vadd.f32 %v5394, %v5525
    %v5527 = vpop.f32.mrb[0].mxu0
    %5528 = vmatprep.mubr.f32.mxu0 0.0
    %5529 = vmatmul.mubr.f32.gmra.mrb[0].mxu0 %v5409
    %v5530 = vpop.f32.mrb[0].mxu0
    %v5531 = vadd.f32 %v5394, %v5530
    %v5532 = vpop.f32.mrb[0].mxu0
    %5533 = vmatprep.mubr.f32.mxu0 0.0
    %5534 = vmatmul.mubr.f32.gmra.mrb[0].mxu0 %v5412
    %v5535 = vpop.f32.mrb[0].mxu0
    %v5536 = vadd.f32 %v5394, %v5535
    %v5537 = vpop.f32.mrb[0].mxu0
    %5538 = vmatprep.mubr.f32.mxu0 0.0
    %5539 = vmatmul.mubr.f32.gmra.mrb[0].mxu0 %v5415
    %v5540 = vpop.f32.mrb[0].mxu0
    %v5541 = vadd.f32 %v5394, %v5540
    %v5542 = vpop.f32.mrb[0].mxu0
    %5543 = vmatprep.mubr.f32.mxu0 0.0
    %5544 = vmatmul.mubr.f32.gmra.mrb[0].mxu0 %v5418
    %v5545 = vpop.f32.mrb[0].mxu0
    %v5546 = vadd.f32 %v5394, %v5545
    %v5547 = vpop.f32.mrb[0].mxu0
    %5548 = vmatprep.mubr.f32.mxu0 0.0
    %5549 = vmatmul.mubr.f32.gmra.mrb[0].mxu0 %v5421
    %v5550 = vpop.f32.mrb[0].mxu0
    %v5551 = vadd.f32 %v5394, %v5550
    %v5552 = vpop.f32.mrb[0].mxu0
    %5553 = vmatprep.mubr.f32.mxu0 0.0
    %5554 = vmatmul.mubr.f32.gmra.mrb[0].mxu0 %v5424
    %v5555 = vpop.f32.mrb[0].mxu0
    %v5556 = vadd.f32 %v5394, %v5555
    %v5557 = vpop.f32.mrb[0].mxu0
    %5558 = vmatprep.mubr.f32.mxu0 0.0
    %5559 = vmatmul.mubr.f32.gmra.mrb[0].mxu0 %v5427
    %v5560 = vpop.f32.mrb[0].mxu0
    %v5561 = vadd.f32 %v5394, %v5560
    %v5562 = vpop.f32.mrb[0].mxu0
    %5563 = vmatprep.mubr.f32.mxu0 0.0
    %5564 = vmatmul.mubr.f32.gmra.mrb[0].mxu0 %v5430
    %v5565 = vpop.f32.mrb[0].mxu0
    %v5566 = vadd.f32 %v5394, %v5565
    %v5567 = vpop.f32.mrb[0].mxu0
    %5568 = vmatprep.mubr.f32.mxu0 0.0
    %5569 = vmatmul.mubr.f32.gmra.mrb[0].mxu0 %v5433
    %v5570 = vpop.f32.mrb[0].mxu0
    %v5571 = vadd.f32 %v5394, %v5570
    %v5572 = vpop.f32.mrb[0].mxu0
    %5573 = vmatprep.mubr.f32.mxu0 0.0
    %5574 = vmatmul.mubr.f32.gmra.mrb[0].mxu0 %v5436
    %v5575 = vpop.f32.mrb[0].mxu0
    %v5576 = vadd.f32 %v5394, %v5575
    %v5577 = vpop.f32.mrb[0].mxu0
    %5578 = vmatprep.mubr.f32.mxu0 0.0
    %5579 = vmatmul.mubr.f32.gmra.mrb[0].mxu0 %v5439
    %v5580 = vpop.f32.mrb[0].mxu0
    %v5581 = vadd.f32 %v5394, %v5580
    %v5582 = vpop.f32.mrb[0].mxu0
    %5583 = vmatprep.mubr.f32.mxu0 0.0
    %5584 = vmatmul.mubr.f32.gmra.mrb[0].mxu0 %v5442
    %v5585 = vpop.f32.mrb[0].mxu0
    %v5586 = vadd.f32 %v5394, %v5585
    %v5587 = vpop.f32.mrb[0].mxu0
    %5588 = vdwg.mxu0
    %v5589 = vadd.f32 %v3311, %v5511
    %v5590 = vadd.f32 %v3312, %v5516
    %v5591 = vadd.f32 %v3313, %v5521
    %v5592 = vadd.f32 %v3314, %v5526
    %v5593 = vadd.f32 %v3315, %v5531
    %v5594 = vadd.f32 %v3316, %v5536
    %v5595 = vadd.f32 %v3317, %v5541
    %v5596 = vadd.f32 %v3318, %v5546
    %v5597 = vadd.f32 %v3319, %v5551
    %v5598 = vadd.f32 %v3320, %v5556
    %v5599 = vadd.f32 %v3321, %v5561
    %v5600 = vadd.f32 %v3322, %v5566
    %v5601 = vadd.f32 %v3323, %v5571
    %v5602 = vadd.f32 %v3324, %v5576
    %v5603 = vadd.f32 %v3325, %v5581
    %v5604 = vadd.f32 %v3326, %v5586
    %v5605 = vsel %vm272, %v5589, 0.0
    %5606 = vadd.xlane.f32.xlu0 %v5605
    %v5607 = vpop.xlane.xlu0 %5606
    %v5608 = vsel %vm272, %v5590, 0.0
    %5609 = vadd.xlane.f32.xlu0 %v5608
    %v5610 = vpop.xlane.xlu0 %5609
    %v5611 = vsel %vm272, %v5591, 0.0
    %5612 = vadd.xlane.f32.xlu0 %v5611
    %v5613 = vpop.xlane.xlu0 %5612
    %v5614 = vsel %vm272, %v5592, 0.0
    %5615 = vadd.xlane.f32.xlu0 %v5614
    %v5616 = vpop.xlane.xlu0 %5615
    %v5617 = vsel %vm272, %v5593, 0.0
    %5618 = vadd.xlane.f32.xlu0 %v5617
    %v5619 = vpop.xlane.xlu0 %5618
    %v5620 = vsel %vm272, %v5594, 0.0
    %5621 = vadd.xlane.f32.xlu0 %v5620
    %v5622 = vpop.xlane.xlu0 %5621
    %v5623 = vsel %vm272, %v5595, 0.0
    %5624 = vadd.xlane.f32.xlu0 %v5623
    %v5625 = vpop.xlane.xlu0 %5624
    %v5626 = vsel %vm272, %v5596, 0.0
    %5627 = vadd.xlane.f32.xlu0 %v5626
    %v5628 = vpop.xlane.xlu0 %5627
    %v5629 = vsel %vm272, %v5597, 0.0
    %5630 = vadd.xlane.f32.xlu0 %v5629
    %v5631 = vpop.xlane.xlu0 %5630
    %v5632 = vsel %vm272, %v5598, 0.0
    %5633 = vadd.xlane.f32.xlu0 %v5632
    %v5634 = vpop.xlane.xlu0 %5633
    %v5635 = vsel %vm272, %v5599, 0.0
    %5636 = vadd.xlane.f32.xlu0 %v5635
    %v5637 = vpop.xlane.xlu0 %5636
    %v5638 = vsel %vm272, %v5600, 0.0
    %5639 = vadd.xlane.f32.xlu0 %v5638
    %v5640 = vpop.xlane.xlu0 %5639
    %v5641 = vsel %vm272, %v5601, 0.0
    %5642 = vadd.xlane.f32.xlu0 %v5641
    %v5643 = vpop.xlane.xlu0 %5642
    %v5644 = vsel %vm272, %v5602, 0.0
    %5645 = vadd.xlane.f32.xlu0 %v5644
    %v5646 = vpop.xlane.xlu0 %5645
    %v5647 = vsel %vm272, %v5603, 0.0
    %5648 = vadd.xlane.f32.xlu0 %v5647
    %v5649 = vpop.xlane.xlu0 %5648
    %v5650 = vsel %vm272, %v5604, 0.0
    %5651 = vadd.xlane.f32.xlu0 %v5650
    %v5652 = vpop.xlane.xlu0 %5651
    %v5653 = vmul.f32 %v5607, %v321
    %v5654 = vmul.f32 %v5610, %v321
    %v5655 = vmul.f32 %v5613, %v321
    %v5656 = vmul.f32 %v5616, %v321
    %v5657 = vmul.f32 %v5619, %v321
    %v5658 = vmul.f32 %v5622, %v321
    %v5659 = vmul.f32 %v5625, %v321
    %v5660 = vmul.f32 %v5628, %v321
    %v5661 = vmul.f32 %v5631, %v321
    %v5662 = vmul.f32 %v5634, %v321
    %v5663 = vmul.f32 %v5637, %v321
    %v5664 = vmul.f32 %v5640, %v321
    %v5665 = vmul.f32 %v5643, %v321
    %v5666 = vmul.f32 %v5646, %v321
    %v5667 = vmul.f32 %v5649, %v321
    %v5668 = vmul.f32 %v5652, %v321
    %v5669 = vsub.f32 %v5589, %v5653
    %v5670 = vsub.f32 %v5590, %v5654
    %v5671 = vsub.f32 %v5591, %v5655
    %v5672 = vsub.f32 %v5592, %v5656
    %v5673 = vsub.f32 %v5593, %v5657
    %v5674 = vsub.f32 %v5594, %v5658
    %v5675 = vsub.f32 %v5595, %v5659
    %v5676 = vsub.f32 %v5596, %v5660
    %v5677 = vsub.f32 %v5597, %v5661
    %v5678 = vsub.f32 %v5598, %v5662
    %v5679 = vsub.f32 %v5599, %v5663
    %v5680 = vsub.f32 %v5600, %v5664
    %v5681 = vsub.f32 %v5601, %v5665
    %v5682 = vsub.f32 %v5602, %v5666
    %v5683 = vsub.f32 %v5603, %v5667
    %v5684 = vsub.f32 %v5604, %v5668
    %v5685 = vmul.f32 %v5669, %v5669
    %v5686 = vmul.f32 %v5670, %v5670
    %v5687 = vmul.f32 %v5671, %v5671
    %v5688 = vmul.f32 %v5672, %v5672
    %v5689 = vmul.f32 %v5673, %v5673
    %v5690 = vmul.f32 %v5674, %v5674
    %v5691 = vmul.f32 %v5675, %v5675
    %v5692 = vmul.f32 %v5676, %v5676
    %v5693 = vmul.f32 %v5677, %v5677
    %v5694 = vmul.f32 %v5678, %v5678
    %v5695 = vmul.f32 %v5679, %v5679
    %v5696 = vmul.f32 %v5680, %v5680
    %v5697 = vmul.f32 %v5681, %v5681
    %v5698 = vmul.f32 %v5682, %v5682
    %v5699 = vmul.f32 %v5683, %v5683
    %v5700 = vmul.f32 %v5684, %v5684
    %v5701 = vsel %vm272, %v5685, 0.0
    %5702 = vadd.xlane.f32.xlu0 %v5701
    %v5703 = vpop.xlane.xlu0 %5702
    %v5704 = vsel %vm272, %v5686, 0.0
    %5705 = vadd.xlane.f32.xlu0 %v5704
    %v5706 = vpop.xlane.xlu0 %5705
    %v5707 = vsel %vm272, %v5687, 0.0
    %5708 = vadd.xlane.f32.xlu0 %v5707
    %v5709 = vpop.xlane.xlu0 %5708
    %v5710 = vsel %vm272, %v5688, 0.0
    %5711 = vadd.xlane.f32.xlu0 %v5710
    %v5712 = vpop.xlane.xlu0 %5711
    %v5713 = vsel %vm272, %v5689, 0.0
    %5714 = vadd.xlane.f32.xlu0 %v5713
    %v5715 = vpop.xlane.xlu0 %5714
    %v5716 = vsel %vm272, %v5690, 0.0
    %5717 = vadd.xlane.f32.xlu0 %v5716
    %v5718 = vpop.xlane.xlu0 %5717
    %v5719 = vsel %vm272, %v5691, 0.0
    %5720 = vadd.xlane.f32.xlu0 %v5719
    %v5721 = vpop.xlane.xlu0 %5720
    %v5722 = vsel %vm272, %v5692, 0.0
    %5723 = vadd.xlane.f32.xlu0 %v5722
    %v5724 = vpop.xlane.xlu0 %5723
    %v5725 = vsel %vm272, %v5693, 0.0
    %5726 = vadd.xlane.f32.xlu0 %v5725
    %v5727 = vpop.xlane.xlu0 %5726
    %v5728 = vsel %vm272, %v5694, 0.0
    %5729 = vadd.xlane.f32.xlu0 %v5728
    %v5730 = vpop.xlane.xlu0 %5729
    %v5731 = vsel %vm272, %v5695, 0.0
    %5732 = vadd.xlane.f32.xlu0 %v5731
    %v5733 = vpop.xlane.xlu0 %5732
    %v5734 = vsel %vm272, %v5696, 0.0
    %5735 = vadd.xlane.f32.xlu0 %v5734
    %v5736 = vpop.xlane.xlu0 %5735
    %v5737 = vsel %vm272, %v5697, 0.0
    %5738 = vadd.xlane.f32.xlu0 %v5737
    %v5739 = vpop.xlane.xlu0 %5738
    %v5740 = vsel %vm272, %v5698, 0.0
    %5741 = vadd.xlane.f32.xlu0 %v5740
    %v5742 = vpop.xlane.xlu0 %5741
    %v5743 = vsel %vm272, %v5699, 0.0
    %5744 = vadd.xlane.f32.xlu0 %v5743
    %v5745 = vpop.xlane.xlu0 %5744
    %v5746 = vsel %vm272, %v5700, 0.0
    %5747 = vadd.xlane.f32.xlu0 %v5746
    %v5748 = vpop.xlane.xlu0 %5747
    %v5749 = vmul.f32 %v5703, %v321
    %v5750 = vmul.f32 %v5706, %v321
    %v5751 = vmul.f32 %v5709, %v321
    %v5752 = vmul.f32 %v5712, %v321
    %v5753 = vmul.f32 %v5715, %v321
    %v5754 = vmul.f32 %v5718, %v321
    %v5755 = vmul.f32 %v5721, %v321
    %v5756 = vmul.f32 %v5724, %v321
    %v5757 = vmul.f32 %v5727, %v321
    %v5758 = vmul.f32 %v5730, %v321
    %v5759 = vmul.f32 %v5733, %v321
    %v5760 = vmul.f32 %v5736, %v321
    %v5761 = vmul.f32 %v5739, %v321
    %v5762 = vmul.f32 %v5742, %v321
    %v5763 = vmul.f32 %v5745, %v321
    %v5764 = vmul.f32 %v5748, %v321
    %v5765 = vadd.f32 %v5749, 1e-06
    %v5766 = vadd.f32 %v5750, 1e-06
    %v5767 = vadd.f32 %v5751, 1e-06
    %v5768 = vadd.f32 %v5752, 1e-06
    %v5769 = vadd.f32 %v5753, 1e-06
    %v5770 = vadd.f32 %v5754, 1e-06
    %v5771 = vadd.f32 %v5755, 1e-06
    %v5772 = vadd.f32 %v5756, 1e-06
    %v5773 = vadd.f32 %v5757, 1e-06
    %v5774 = vadd.f32 %v5758, 1e-06
    %v5775 = vadd.f32 %v5759, 1e-06
    %v5776 = vadd.f32 %v5760, 1e-06
    %v5777 = vadd.f32 %v5761, 1e-06
    %v5778 = vadd.f32 %v5762, 1e-06
    %v5779 = vadd.f32 %v5763, 1e-06
    %v5780 = vadd.f32 %v5764, 1e-06
    %v5781 = vrsqrt.pop %v5765
    %v5782 = vrsqrt.pop %v5766
    %v5783 = vrsqrt.pop %v5767
    %v5784 = vrsqrt.pop %v5768
    %v5785 = vrsqrt.pop %v5769
    %v5786 = vrsqrt.pop %v5770
    %v5787 = vrsqrt.pop %v5771
    %v5788 = vrsqrt.pop %v5772
    %v5789 = vrsqrt.pop %v5773
    %v5790 = vrsqrt.pop %v5774
    %v5791 = vrsqrt.pop %v5775
    %v5792 = vrsqrt.pop %v5776
    %v5793 = vrsqrt.pop %v5777
    %v5794 = vrsqrt.pop %v5778
    %v5795 = vrsqrt.pop %v5779
    %v5796 = vrsqrt.pop %v5780
    %v5797 = vmul.f32 %v5669, %v5781
    %v5798 = vmul.f32 %v5670, %v5782
    %v5799 = vmul.f32 %v5671, %v5783
    %v5800 = vmul.f32 %v5672, %v5784
    %v5801 = vmul.f32 %v5673, %v5785
    %v5802 = vmul.f32 %v5674, %v5786
    %v5803 = vmul.f32 %v5675, %v5787
    %v5804 = vmul.f32 %v5676, %v5788
    %v5805 = vmul.f32 %v5677, %v5789
    %v5806 = vmul.f32 %v5678, %v5790
    %v5807 = vmul.f32 %v5679, %v5791
    %v5808 = vmul.f32 %v5680, %v5792
    %v5809 = vmul.f32 %v5681, %v5793
    %v5810 = vmul.f32 %v5682, %v5794
    %v5811 = vmul.f32 %v5683, %v5795
    %v5812 = vmul.f32 %v5684, %v5796
    %v5813 = vlaneseq
    %v5814 = vshrl.u32 %v5813, 7
    %v5815 = vsub.s32 2, %v5814
    %v5816 = vrot.slane %v3328, %v5815
    %v5817 = vmul.f32 %v5797, %v5816
    %v5818 = vmul.f32 %v5798, %v5816
    %v5819 = vmul.f32 %v5799, %v5816
    %v5820 = vmul.f32 %v5800, %v5816
    %v5821 = vmul.f32 %v5801, %v5816
    %v5822 = vmul.f32 %v5802, %v5816
    %v5823 = vmul.f32 %v5803, %v5816
    %v5824 = vmul.f32 %v5804, %v5816
    %v5825 = vmul.f32 %v5805, %v5816
    %v5826 = vmul.f32 %v5806, %v5816
    %v5827 = vmul.f32 %v5807, %v5816
    %v5828 = vmul.f32 %v5808, %v5816
    %v5829 = vmul.f32 %v5809, %v5816
    %v5830 = vmul.f32 %v5810, %v5816
    %v5831 = vmul.f32 %v5811, %v5816
    %v5832 = vmul.f32 %v5812, %v5816
    %v5833 = vlaneseq
    %v5834 = vshrl.u32 %v5833, 7
    %v5835 = vsub.s32 3, %v5834
    %v5836 = vrot.slane %v3328, %v5835
    %v5837 = vadd.f32 %v5817, %v5836
    %v5838 = vadd.f32 %v5818, %v5836
    %v5839 = vadd.f32 %v5819, %v5836
    %v5840 = vadd.f32 %v5820, %v5836
    %v5841 = vadd.f32 %v5821, %v5836
    %v5842 = vadd.f32 %v5822, %v5836
    %v5843 = vadd.f32 %v5823, %v5836
    %v5844 = vadd.f32 %v5824, %v5836
    %v5845 = vadd.f32 %v5825, %v5836
    %v5846 = vadd.f32 %v5826, %v5836
    %v5847 = vadd.f32 %v5827, %v5836
    %v5848 = vadd.f32 %v5828, %v5836
    %v5849 = vadd.f32 %v5829, %v5836
    %v5850 = vadd.f32 %v5830, %v5836
    %v5851 = vadd.f32 %v5831, %v5836
    %v5852 = vadd.f32 %v5832, %v5836
    %s5853 = scalar_lea.vmem %s8, 32
    %v5854 = vld [vmem:[%s5853] sm:$0xff]
    %v5855 = vld [vmem:[%s5853 + $0x8] sm:$0xff]
    %v5856 = vld [vmem:[%s5853 + $0x10] sm:$0xff]
    %v5857 = vld [vmem:[%s5853 + $0x18] sm:$0xff]
    %s5858 = scalar_lea.vmem %s9, 1
    %v5859 = vld [vmem:[%s5858] sm:$0x1]
    %v5861 = vlaneseq
    %v5862 = vshrl.u32 %v5861, 7
    %v5863 = vsub.s32 0, %v5862
    %v5864 = vrot.slane %v5859, %v5863
    %v5867 = vsel %vm272, %v5837, 0
    %v5870 = vsel %vm272, %v5838, 0
    %v5873 = vsel %vm272, %v5839, 0
    %v5876 = vsel %vm272, %v5840, 0
    %v5879 = vsel %vm272, %v5841, 0
    %v5882 = vsel %vm272, %v5842, 0
    %v5885 = vsel %vm272, %v5843, 0
    %v5888 = vsel %vm272, %v5844, 0
    %v5891 = vsel %vm272, %v5845, 0
    %v5894 = vsel %vm272, %v5846, 0
    %v5897 = vsel %vm272, %v5847, 0
    %v5900 = vsel %vm272, %v5848, 0
    %v5903 = vsel %vm272, %v5849, 0
    %v5906 = vsel %vm272, %v5850, 0
    %v5909 = vsel %vm272, %v5851, 0
    %v5912 = vsel %vm272, %v5852, 0
    %5914 = vmatprep.subr.mxu0 0.0
    %5915 = vmatpush1.msra.mxu0 %v5854
    %5916 = vmatprep.subr.mxu0 0.0
    %5917 = vmatpush1.msra.mxu0 %v5855
    %5918 = vmatprep.subr.mxu0 0.0
    %5919 = vmatpush1.msra.mxu0 %v5856
    %5920 = vmatprep.subr.mxu0 0.0
    %5921 = vmatpush1.msra.mxu0 %v5857
    %5922 = vmatprep.subr.mxu0 0.0
    %5923 = vmatpush1.msra.mxu0 0.0
    %5924 = vmatprep.subr.mxu0 0.0
    %5925 = vmatpush1.msra.mxu0 0.0
    %5926 = vmatprep.subr.mxu0 0.0
    %5927 = vmatpush1.msra.mxu0 0.0
    %5928 = vmatprep.subr.mxu0 0.0
    %5929 = vmatpush1.msra.mxu0 0.0
    %5930 = vmatprep.subr.mxu0 0.0
    %5931 = vmatpush1.msra.mxu0 0.0
    %5932 = vmatprep.subr.mxu0 0.0
    %5933 = vmatpush1.msra.mxu0 0.0
    %5934 = vmatprep.subr.mxu0 0.0
    %5935 = vmatpush1.msra.mxu0 0.0
    %5936 = vmatprep.subr.mxu0 0.0
    %5937 = vmatpush1.msra.mxu0 0.0
    %5938 = vmatprep.subr.mxu0 0.0
    %5939 = vmatpush1.msra.mxu0 0.0
    %5940 = vmatprep.subr.mxu0 0.0
    %5941 = vmatpush1.msra.mxu0 0.0
    %5942 = vmatprep.subr.mxu0 0.0
    %5943 = vmatpush1.msra.mxu0 0.0
    %5944 = vmatprep.subr.mxu0 0.0
    %5945 = vmatpush1.msra.mxu0 0.0
    %5946 = vmatprep.subr.mxu0 0.0
    %5947 = vmatpush1.msra.mxu0 0.0
    %5948 = vmatprep.subr.mxu0 0.0
    %5949 = vmatpush1.msra.mxu0 0.0
    %5950 = vmatprep.subr.mxu0 0.0
    %5951 = vmatpush1.msra.mxu0 0.0
    %5952 = vmatprep.subr.mxu0 0.0
    %5953 = vmatpush1.msra.mxu0 0.0
    %5954 = vmatprep.subr.mxu0 0.0
    %5955 = vmatpush1.msra.mxu0 0.0
    %5956 = vmatprep.subr.mxu0 0.0
    %5957 = vmatpush1.msra.mxu0 0.0
    %5958 = vmatprep.subr.mxu0 0.0
    %5959 = vmatpush1.msra.mxu0 0.0
    %5960 = vmatprep.subr.mxu0 0.0
    %5961 = vmatpush1.msra.mxu0 0.0
    %5962 = vmatprep.subr.mxu0 0.0
    %5963 = vmatpush1.msra.mxu0 0.0
    %5964 = vmatprep.subr.mxu0 0.0
    %5965 = vmatpush1.msra.mxu0 0.0
    %5966 = vmatprep.subr.mxu0 0.0
    %5967 = vmatpush1.msra.mxu0 0.0
    %5968 = vmatprep.subr.mxu0 0.0
    %5969 = vmatpush1.msra.mxu0 0.0
    %5970 = vmatprep.subr.mxu0 0.0
    %5971 = vmatpush1.msra.mxu0 0.0
    %5972 = vmatprep.subr.mxu0 0.0
    %5973 = vmatpush1.msra.mxu0 0.0
    %5974 = vmatprep.subr.mxu0 0.0
    %5975 = vmatpush1.msra.mxu0 0.0
    %5976 = vmatprep.subr.mxu0 0.0
    %5977 = vmatpush1.msra.mxu0 0.0
    %5978 = vmatprep.mubr.f32.mxu0 0.0
    %5979 = vmatmul.mubr.f32.gmra.mrb[0].mxu0 %v5867
    %v5980 = vpop.f32.mrb[0].mxu0
    %v5981 = vadd.f32 %v5864, %v5980
    %v5982 = vpop.f32.mrb[0].mxu0
    %5983 = vmatprep.mubr.f32.mxu0 0.0
    %5984 = vmatmul.mubr.f32.gmra.mrb[0].mxu0 %v5870
    %v5985 = vpop.f32.mrb[0].mxu0
    %v5986 = vadd.f32 %v5864, %v5985
    %v5987 = vpop.f32.mrb[0].mxu0
    %5988 = vmatprep.mubr.f32.mxu0 0.0
    %5989 = vmatmul.mubr.f32.gmra.mrb[0].mxu0 %v5873
    %v5990 = vpop.f32.mrb[0].mxu0
    %v5991 = vadd.f32 %v5864, %v5990
    %v5992 = vpop.f32.mrb[0].mxu0
    %5993 = vmatprep.mubr.f32.mxu0 0.0
    %5994 = vmatmul.mubr.f32.gmra.mrb[0].mxu0 %v5876
    %v5995 = vpop.f32.mrb[0].mxu0
    %v5996 = vadd.f32 %v5864, %v5995
    %v5997 = vpop.f32.mrb[0].mxu0
    %5998 = vmatprep.mubr.f32.mxu0 0.0
    %5999 = vmatmul.mubr.f32.gmra.mrb[0].mxu0 %v5879
    %v6000 = vpop.f32.mrb[0].mxu0
    %v6001 = vadd.f32 %v5864, %v6000
    %v6002 = vpop.f32.mrb[0].mxu0
    %6003 = vmatprep.mubr.f32.mxu0 0.0
    %6004 = vmatmul.mubr.f32.gmra.mrb[0].mxu0 %v5882
    %v6005 = vpop.f32.mrb[0].mxu0
    %v6006 = vadd.f32 %v5864, %v6005
    %v6007 = vpop.f32.mrb[0].mxu0
    %6008 = vmatprep.mubr.f32.mxu0 0.0
    %6009 = vmatmul.mubr.f32.gmra.mrb[0].mxu0 %v5885
    %v6010 = vpop.f32.mrb[0].mxu0
    %v6011 = vadd.f32 %v5864, %v6010
    %v6012 = vpop.f32.mrb[0].mxu0
    %6013 = vmatprep.mubr.f32.mxu0 0.0
    %6014 = vmatmul.mubr.f32.gmra.mrb[0].mxu0 %v5888
    %v6015 = vpop.f32.mrb[0].mxu0
    %v6016 = vadd.f32 %v5864, %v6015
    %v6017 = vpop.f32.mrb[0].mxu0
    %6018 = vmatprep.mubr.f32.mxu0 0.0
    %6019 = vmatmul.mubr.f32.gmra.mrb[0].mxu0 %v5891
    %v6020 = vpop.f32.mrb[0].mxu0
    %v6021 = vadd.f32 %v5864, %v6020
    %v6022 = vpop.f32.mrb[0].mxu0
    %6023 = vmatprep.mubr.f32.mxu0 0.0
    %6024 = vmatmul.mubr.f32.gmra.mrb[0].mxu0 %v5894
    %v6025 = vpop.f32.mrb[0].mxu0
    %v6026 = vadd.f32 %v5864, %v6025
    %v6027 = vpop.f32.mrb[0].mxu0
    %6028 = vmatprep.mubr.f32.mxu0 0.0
    %6029 = vmatmul.mubr.f32.gmra.mrb[0].mxu0 %v5897
    %v6030 = vpop.f32.mrb[0].mxu0
    %v6031 = vadd.f32 %v5864, %v6030
    %v6032 = vpop.f32.mrb[0].mxu0
    %6033 = vmatprep.mubr.f32.mxu0 0.0
    %6034 = vmatmul.mubr.f32.gmra.mrb[0].mxu0 %v5900
    %v6035 = vpop.f32.mrb[0].mxu0
    %v6036 = vadd.f32 %v5864, %v6035
    %v6037 = vpop.f32.mrb[0].mxu0
    %6038 = vmatprep.mubr.f32.mxu0 0.0
    %6039 = vmatmul.mubr.f32.gmra.mrb[0].mxu0 %v5903
    %v6040 = vpop.f32.mrb[0].mxu0
    %v6041 = vadd.f32 %v5864, %v6040
    %v6042 = vpop.f32.mrb[0].mxu0
    %6043 = vmatprep.mubr.f32.mxu0 0.0
    %6044 = vmatmul.mubr.f32.gmra.mrb[0].mxu0 %v5906
    %v6045 = vpop.f32.mrb[0].mxu0
    %v6046 = vadd.f32 %v5864, %v6045
    %v6047 = vpop.f32.mrb[0].mxu0
    %6048 = vmatprep.mubr.f32.mxu0 0.0
    %6049 = vmatmul.mubr.f32.gmra.mrb[0].mxu0 %v5909
    %v6050 = vpop.f32.mrb[0].mxu0
    %v6051 = vadd.f32 %v5864, %v6050
    %v6052 = vpop.f32.mrb[0].mxu0
    %6053 = vmatprep.mubr.f32.mxu0 0.0
    %6054 = vmatmul.mubr.f32.gmra.mrb[0].mxu0 %v5912
    %v6055 = vpop.f32.mrb[0].mxu0
    %v6056 = vadd.f32 %v5864, %v6055
    %v6057 = vpop.f32.mrb[0].mxu0
    %6058 = vdwg.mxu0
    %v6059 = vmul.f32 %v5981, %v5981
    %v6060 = vmul.f32 %v5986, %v5986
    %v6061 = vmul.f32 %v5991, %v5991
    %v6062 = vmul.f32 %v5996, %v5996
    %v6063 = vmul.f32 %v6001, %v6001
    %v6064 = vmul.f32 %v6006, %v6006
    %v6065 = vmul.f32 %v6011, %v6011
    %v6066 = vmul.f32 %v6016, %v6016
    %v6067 = vmul.f32 %v6021, %v6021
    %v6068 = vmul.f32 %v6026, %v6026
    %v6069 = vmul.f32 %v6031, %v6031
    %v6070 = vmul.f32 %v6036, %v6036
    %v6071 = vmul.f32 %v6041, %v6041
    %v6072 = vmul.f32 %v6046, %v6046
    %v6073 = vmul.f32 %v6051, %v6051
    %v6074 = vmul.f32 %v6056, %v6056
    %v6075 = vmul.f32 %v5981, %v6059
    %v6076 = vmul.f32 %v5986, %v6060
    %v6077 = vmul.f32 %v5991, %v6061
    %v6078 = vmul.f32 %v5996, %v6062
    %v6079 = vmul.f32 %v6001, %v6063
    %v6080 = vmul.f32 %v6006, %v6064
    %v6081 = vmul.f32 %v6011, %v6065
    %v6082 = vmul.f32 %v6016, %v6066
    %v6083 = vmul.f32 %v6021, %v6067
    %v6084 = vmul.f32 %v6026, %v6068
    %v6085 = vmul.f32 %v6031, %v6069
    %v6086 = vmul.f32 %v6036, %v6070
    %v6087 = vmul.f32 %v6041, %v6071
    %v6088 = vmul.f32 %v6046, %v6072
    %v6089 = vmul.f32 %v6051, %v6073
    %v6090 = vmul.f32 %v6056, %v6074
    %v6091 = vmul.f32 %v6075, 0.044715
    %v6092 = vmul.f32 %v6076, 0.044715
    %v6093 = vmul.f32 %v6077, 0.044715
    %v6094 = vmul.f32 %v6078, 0.044715
    %v6095 = vmul.f32 %v6079, 0.044715
    %v6096 = vmul.f32 %v6080, 0.044715
    %v6097 = vmul.f32 %v6081, 0.044715
    %v6098 = vmul.f32 %v6082, 0.044715
    %v6099 = vmul.f32 %v6083, 0.044715
    %v6100 = vmul.f32 %v6084, 0.044715
    %v6101 = vmul.f32 %v6085, 0.044715
    %v6102 = vmul.f32 %v6086, 0.044715
    %v6103 = vmul.f32 %v6087, 0.044715
    %v6104 = vmul.f32 %v6088, 0.044715
    %v6105 = vmul.f32 %v6089, 0.044715
    %v6106 = vmul.f32 %v6090, 0.044715
    %v6107 = vadd.f32 %v5981, %v6091
    %v6108 = vadd.f32 %v5986, %v6092
    %v6109 = vadd.f32 %v5991, %v6093
    %v6110 = vadd.f32 %v5996, %v6094
    %v6111 = vadd.f32 %v6001, %v6095
    %v6112 = vadd.f32 %v6006, %v6096
    %v6113 = vadd.f32 %v6011, %v6097
    %v6114 = vadd.f32 %v6016, %v6098
    %v6115 = vadd.f32 %v6021, %v6099
    %v6116 = vadd.f32 %v6026, %v6100
    %v6117 = vadd.f32 %v6031, %v6101
    %v6118 = vadd.f32 %v6036, %v6102
    %v6119 = vadd.f32 %v6041, %v6103
    %v6120 = vadd.f32 %v6046, %v6104
    %v6121 = vadd.f32 %v6051, %v6105
    %v6122 = vadd.f32 %v6056, %v6106
    %v6123 = vmul.f32 %v6107, 0.7978846
    %v6124 = vmul.f32 %v6108, 0.7978846
    %v6125 = vmul.f32 %v6109, 0.7978846
    %v6126 = vmul.f32 %v6110, 0.7978846
    %v6127 = vmul.f32 %v6111, 0.7978846
    %v6128 = vmul.f32 %v6112, 0.7978846
    %v6129 = vmul.f32 %v6113, 0.7978846
    %v6130 = vmul.f32 %v6114, 0.7978846
    %v6131 = vmul.f32 %v6115, 0.7978846
    %v6132 = vmul.f32 %v6116, 0.7978846
    %v6133 = vmul.f32 %v6117, 0.7978846
    %v6134 = vmul.f32 %v6118, 0.7978846
    %v6135 = vmul.f32 %v6119, 0.7978846
    %v6136 = vmul.f32 %v6120, 0.7978846
    %v6137 = vmul.f32 %v6121, 0.7978846
    %v6138 = vmul.f32 %v6122, 0.7978846
    %v6139 = vtanh.pop %v6123
    %v6140 = vtanh.pop %v6124
    %v6141 = vtanh.pop %v6125
    %v6142 = vtanh.pop %v6126
    %v6143 = vtanh.pop %v6127
    %v6144 = vtanh.pop %v6128
    %v6145 = vtanh.pop %v6129
    %v6146 = vtanh.pop %v6130
    %v6147 = vtanh.pop %v6131
    %v6148 = vtanh.pop %v6132
    %v6149 = vtanh.pop %v6133
    %v6150 = vtanh.pop %v6134
    %v6151 = vtanh.pop %v6135
    %v6152 = vtanh.pop %v6136
    %v6153 = vtanh.pop %v6137
    %v6154 = vtanh.pop %v6138
    %v6155 = vadd.f32 %v6139, 1.0
    %v6156 = vadd.f32 %v6140, 1.0
    %v6157 = vadd.f32 %v6141, 1.0
    %v6158 = vadd.f32 %v6142, 1.0
    %v6159 = vadd.f32 %v6143, 1.0
    %v6160 = vadd.f32 %v6144, 1.0
    %v6161 = vadd.f32 %v6145, 1.0
    %v6162 = vadd.f32 %v6146, 1.0
    %v6163 = vadd.f32 %v6147, 1.0
    %v6164 = vadd.f32 %v6148, 1.0
    %v6165 = vadd.f32 %v6149, 1.0
    %v6166 = vadd.f32 %v6150, 1.0
    %v6167 = vadd.f32 %v6151, 1.0
    %v6168 = vadd.f32 %v6152, 1.0
    %v6169 = vadd.f32 %v6153, 1.0
    %v6170 = vadd.f32 %v6154, 1.0
    %v6171 = vmul.f32 %v6155, 0.5
    %v6172 = vmul.f32 %v6156, 0.5
    %v6173 = vmul.f32 %v6157, 0.5
    %v6174 = vmul.f32 %v6158, 0.5
    %v6175 = vmul.f32 %v6159, 0.5
    %v6176 = vmul.f32 %v6160, 0.5
    %v6177 = vmul.f32 %v6161, 0.5
    %v6178 = vmul.f32 %v6162, 0.5
    %v6179 = vmul.f32 %v6163, 0.5
    %v6180 = vmul.f32 %v6164, 0.5
    %v6181 = vmul.f32 %v6165, 0.5
    %v6182 = vmul.f32 %v6166, 0.5
    %v6183 = vmul.f32 %v6167, 0.5
    %v6184 = vmul.f32 %v6168, 0.5
    %v6185 = vmul.f32 %v6169, 0.5
    %v6186 = vmul.f32 %v6170, 0.5
    %v6187 = vmul.f32 %v5981, %v6171
    %v6188 = vmul.f32 %v5986, %v6172
    %v6189 = vmul.f32 %v5991, %v6173
    %v6190 = vmul.f32 %v5996, %v6174
    %v6191 = vmul.f32 %v6001, %v6175
    %v6192 = vmul.f32 %v6006, %v6176
    %v6193 = vmul.f32 %v6011, %v6177
    %v6194 = vmul.f32 %v6016, %v6178
    %v6195 = vmul.f32 %v6021, %v6179
    %v6196 = vmul.f32 %v6026, %v6180
    %v6197 = vmul.f32 %v6031, %v6181
    %v6198 = vmul.f32 %v6036, %v6182
    %v6199 = vmul.f32 %v6041, %v6183
    %v6200 = vmul.f32 %v6046, %v6184
    %v6201 = vmul.f32 %v6051, %v6185
    %v6202 = vmul.f32 %v6056, %v6186
    %s6203 = scalar_lea.vmem %s10, 128
    %v6204 = vld [vmem:[%s6203] sm:$0xff]
    %v6205 = vld [vmem:[%s6203 + $0x8] sm:$0xff]
    %v6206 = vld [vmem:[%s6203 + $0x10] sm:$0xff]
    %v6207 = vld [vmem:[%s6203 + $0x18] sm:$0xff]
    %v6208 = vld [vmem:[%s6203 + $0x20] sm:$0xff]
    %v6209 = vld [vmem:[%s6203 + $0x28] sm:$0xff]
    %v6210 = vld [vmem:[%s6203 + $0x30] sm:$0xff]
    %v6211 = vld [vmem:[%s6203 + $0x38] sm:$0xff]
    %v6212 = vld [vmem:[%s6203 + $0x40] sm:$0xff]
    %v6213 = vld [vmem:[%s6203 + $0x48] sm:$0xff]
    %v6214 = vld [vmem:[%s6203 + $0x50] sm:$0xff]
    %v6215 = vld [vmem:[%s6203 + $0x58] sm:$0xff]
    %v6216 = vld [vmem:[%s6203 + $0x60] sm:$0xff]
    %v6217 = vld [vmem:[%s6203 + $0x68] sm:$0xff]
    %v6218 = vld [vmem:[%s6203 + $0x70] sm:$0xff]
    %v6219 = vld [vmem:[%s6203 + $0x78] sm:$0xff]
    %s6220 = scalar_lea.vmem %s11, 1
    %v6221 = vld [vmem:[%s6220] sm:$0x1]
    %v6223 = vlaneseq
    %v6224 = vshrl.u32 %v6223, 7
    %v6225 = vsub.s32 0, %v6224
    %v6226 = vrot.slane %v6221, %v6225
    %6228 = vmatprep.subr.mxu0 0.0
    %6229 = vmatpush1.msra.mxu0 %v6204
    %6230 = vmatprep.subr.mxu0 0.0
    %6231 = vmatpush1.msra.mxu0 %v6205
    %6232 = vmatprep.subr.mxu0 0.0
    %6233 = vmatpush1.msra.mxu0 %v6206
    %6234 = vmatprep.subr.mxu0 0.0
    %6235 = vmatpush1.msra.mxu0 %v6207
    %6236 = vmatprep.subr.mxu0 0.0
    %6237 = vmatpush1.msra.mxu0 %v6208
    %6238 = vmatprep.subr.mxu0 0.0
    %6239 = vmatpush1.msra.mxu0 %v6209
    %6240 = vmatprep.subr.mxu0 0.0
    %6241 = vmatpush1.msra.mxu0 %v6210
    %6242 = vmatprep.subr.mxu0 0.0
    %6243 = vmatpush1.msra.mxu0 %v6211
    %6244 = vmatprep.subr.mxu0 0.0
    %6245 = vmatpush1.msra.mxu0 %v6212
    %6246 = vmatprep.subr.mxu0 0.0
    %6247 = vmatpush1.msra.mxu0 %v6213
    %6248 = vmatprep.subr.mxu0 0.0
    %6249 = vmatpush1.msra.mxu0 %v6214
    %6250 = vmatprep.subr.mxu0 0.0
    %6251 = vmatpush1.msra.mxu0 %v6215
    %6252 = vmatprep.subr.mxu0 0.0
    %6253 = vmatpush1.msra.mxu0 %v6216
    %6254 = vmatprep.subr.mxu0 0.0
    %6255 = vmatpush1.msra.mxu0 %v6217
    %6256 = vmatprep.subr.mxu0 0.0
    %6257 = vmatpush1.msra.mxu0 %v6218
    %6258 = vmatprep.subr.mxu0 0.0
    %6259 = vmatpush1.msra.mxu0 %v6219
    %6260 = vmatprep.subr.mxu0 0.0
    %6261 = vmatpush1.msra.mxu0 0.0
    %6262 = vmatprep.subr.mxu0 0.0
    %6263 = vmatpush1.msra.mxu0 0.0
    %6264 = vmatprep.subr.mxu0 0.0
    %6265 = vmatpush1.msra.mxu0 0.0
    %6266 = vmatprep.subr.mxu0 0.0
    %6267 = vmatpush1.msra.mxu0 0.0
    %6268 = vmatprep.subr.mxu0 0.0
    %6269 = vmatpush1.msra.mxu0 0.0
    %6270 = vmatprep.subr.mxu0 0.0
    %6271 = vmatpush1.msra.mxu0 0.0
    %6272 = vmatprep.subr.mxu0 0.0
    %6273 = vmatpush1.msra.mxu0 0.0
    %6274 = vmatprep.subr.mxu0 0.0
    %6275 = vmatpush1.msra.mxu0 0.0
    %6276 = vmatprep.subr.mxu0 0.0
    %6277 = vmatpush1.msra.mxu0 0.0
    %6278 = vmatprep.subr.mxu0 0.0
    %6279 = vmatpush1.msra.mxu0 0.0
    %6280 = vmatprep.subr.mxu0 0.0
    %6281 = vmatpush1.msra.mxu0 0.0
    %6282 = vmatprep.subr.mxu0 0.0
    %6283 = vmatpush1.msra.mxu0 0.0
    %6284 = vmatprep.subr.mxu0 0.0
    %6285 = vmatpush1.msra.mxu0 0.0
    %6286 = vmatprep.subr.mxu0 0.0
    %6287 = vmatpush1.msra.mxu0 0.0
    %6288 = vmatprep.subr.mxu0 0.0
    %6289 = vmatpush1.msra.mxu0 0.0
    %6290 = vmatprep.subr.mxu0 0.0
    %6291 = vmatpush1.msra.mxu0 0.0
    %6292 = vmatprep.mubr.f32.mxu0 0.0
    %6293 = vmatmul.mubr.f32.gmra.mrb[0].mxu0 %v6187
    %v6294 = vpop.f32.mrb[0].mxu0
    %v6295 = vadd.f32 %v6226, %v6294
    %v6296 = vpop.f32.mrb[0].mxu0
    %6297 = vmatprep.mubr.f32.mxu0 0.0
    %6298 = vmatmul.mubr.f32.gmra.mrb[0].mxu0 %v6188
    %v6299 = vpop.f32.mrb[0].mxu0
    %v6300 = vadd.f32 %v6226, %v6299
    %v6301 = vpop.f32.mrb[0].mxu0
    %6302 = vmatprep.mubr.f32.mxu0 0.0
    %6303 = vmatmul.mubr.f32.gmra.mrb[0].mxu0 %v6189
    %v6304 = vpop.f32.mrb[0].mxu0
    %v6305 = vadd.f32 %v6226, %v6304
    %v6306 = vpop.f32.mrb[0].mxu0
    %6307 = vmatprep.mubr.f32.mxu0 0.0
    %6308 = vmatmul.mubr.f32.gmra.mrb[0].mxu0 %v6190
    %v6309 = vpop.f32.mrb[0].mxu0
    %v6310 = vadd.f32 %v6226, %v6309
    %v6311 = vpop.f32.mrb[0].mxu0
    %6312 = vmatprep.mubr.f32.mxu0 0.0
    %6313 = vmatmul.mubr.f32.gmra.mrb[0].mxu0 %v6191
    %v6314 = vpop.f32.mrb[0].mxu0
    %v6315 = vadd.f32 %v6226, %v6314
    %v6316 = vpop.f32.mrb[0].mxu0
    %6317 = vmatprep.mubr.f32.mxu0 0.0
    %6318 = vmatmul.mubr.f32.gmra.mrb[0].mxu0 %v6192
    %v6319 = vpop.f32.mrb[0].mxu0
    %v6320 = vadd.f32 %v6226, %v6319
    %v6321 = vpop.f32.mrb[0].mxu0
    %6322 = vmatprep.mubr.f32.mxu0 0.0
    %6323 = vmatmul.mubr.f32.gmra.mrb[0].mxu0 %v6193
    %v6324 = vpop.f32.mrb[0].mxu0
    %v6325 = vadd.f32 %v6226, %v6324
    %v6326 = vpop.f32.mrb[0].mxu0
    %6327 = vmatprep.mubr.f32.mxu0 0.0
    %6328 = vmatmul.mubr.f32.gmra.mrb[0].mxu0 %v6194
    %v6329 = vpop.f32.mrb[0].mxu0
    %v6330 = vadd.f32 %v6226, %v6329
    %v6331 = vpop.f32.mrb[0].mxu0
    %6332 = vmatprep.mubr.f32.mxu0 0.0
    %6333 = vmatmul.mubr.f32.gmra.mrb[0].mxu0 %v6195
    %v6334 = vpop.f32.mrb[0].mxu0
    %v6335 = vadd.f32 %v6226, %v6334
    %v6336 = vpop.f32.mrb[0].mxu0
    %6337 = vmatprep.mubr.f32.mxu0 0.0
    %6338 = vmatmul.mubr.f32.gmra.mrb[0].mxu0 %v6196
    %v6339 = vpop.f32.mrb[0].mxu0
    %v6340 = vadd.f32 %v6226, %v6339
    %v6341 = vpop.f32.mrb[0].mxu0
    %6342 = vmatprep.mubr.f32.mxu0 0.0
    %6343 = vmatmul.mubr.f32.gmra.mrb[0].mxu0 %v6197
    %v6344 = vpop.f32.mrb[0].mxu0
    %v6345 = vadd.f32 %v6226, %v6344
    %v6346 = vpop.f32.mrb[0].mxu0
    %6347 = vmatprep.mubr.f32.mxu0 0.0
    %6348 = vmatmul.mubr.f32.gmra.mrb[0].mxu0 %v6198
    %v6349 = vpop.f32.mrb[0].mxu0
    %v6350 = vadd.f32 %v6226, %v6349
    %v6351 = vpop.f32.mrb[0].mxu0
    %6352 = vmatprep.mubr.f32.mxu0 0.0
    %6353 = vmatmul.mubr.f32.gmra.mrb[0].mxu0 %v6199
    %v6354 = vpop.f32.mrb[0].mxu0
    %v6355 = vadd.f32 %v6226, %v6354
    %v6356 = vpop.f32.mrb[0].mxu0
    %6357 = vmatprep.mubr.f32.mxu0 0.0
    %6358 = vmatmul.mubr.f32.gmra.mrb[0].mxu0 %v6200
    %v6359 = vpop.f32.mrb[0].mxu0
    %v6360 = vadd.f32 %v6226, %v6359
    %v6361 = vpop.f32.mrb[0].mxu0
    %6362 = vmatprep.mubr.f32.mxu0 0.0
    %6363 = vmatmul.mubr.f32.gmra.mrb[0].mxu0 %v6201
    %v6364 = vpop.f32.mrb[0].mxu0
    %v6365 = vadd.f32 %v6226, %v6364
    %v6366 = vpop.f32.mrb[0].mxu0
    %6367 = vmatprep.mubr.f32.mxu0 0.0
    %6368 = vmatmul.mubr.f32.gmra.mrb[0].mxu0 %v6202
    %v6369 = vpop.f32.mrb[0].mxu0
    %v6370 = vadd.f32 %v6226, %v6369
    %v6371 = vpop.f32.mrb[0].mxu0
    %6372 = vdwg.mxu0
    %v6373 = vadd.f32 %v5589, %v6295
    %v6374 = vadd.f32 %v5590, %v6300
    %v6375 = vadd.f32 %v5591, %v6305
    %v6376 = vadd.f32 %v5592, %v6310
    %v6377 = vadd.f32 %v5593, %v6315
    %v6378 = vadd.f32 %v5594, %v6320
    %v6379 = vadd.f32 %v5595, %v6325
    %v6380 = vadd.f32 %v5596, %v6330
    %v6381 = vadd.f32 %v5597, %v6335
    %v6382 = vadd.f32 %v5598, %v6340
    %v6383 = vadd.f32 %v5599, %v6345
    %v6384 = vadd.f32 %v5600, %v6350
    %v6385 = vadd.f32 %v5601, %v6355
    %v6386 = vadd.f32 %v5602, %v6360
    %v6387 = vadd.f32 %v5603, %v6365
    %v6388 = vadd.f32 %v5604, %v6370
    %v6389 = vld [vmem:[%s12] sm:$0x1]
    %v6390 = vld [vmem:[%s13] sm:$0x1]
    %v6391 = vsel %vm272, %v6373, 0.0
    %6392 = vadd.xlane.f32.xlu0 %v6391
    %v6393 = vpop.xlane.xlu0 %6392
    %v6394 = vsel %vm272, %v6374, 0.0
    %6395 = vadd.xlane.f32.xlu0 %v6394
    %v6396 = vpop.xlane.xlu0 %6395
    %v6397 = vsel %vm272, %v6375, 0.0
    %6398 = vadd.xlane.f32.xlu0 %v6397
    %v6399 = vpop.xlane.xlu0 %6398
    %v6400 = vsel %vm272, %v6376, 0.0
    %6401 = vadd.xlane.f32.xlu0 %v6400
    %v6402 = vpop.xlane.xlu0 %6401
    %v6403 = vsel %vm272, %v6377, 0.0
    %6404 = vadd.xlane.f32.xlu0 %v6403
    %v6405 = vpop.xlane.xlu0 %6404
    %v6406 = vsel %vm272, %v6378, 0.0
    %6407 = vadd.xlane.f32.xlu0 %v6406
    %v6408 = vpop.xlane.xlu0 %6407
    %v6409 = vsel %vm272, %v6379, 0.0
    %6410 = vadd.xlane.f32.xlu0 %v6409
    %v6411 = vpop.xlane.xlu0 %6410
    %v6412 = vsel %vm272, %v6380, 0.0
    %6413 = vadd.xlane.f32.xlu0 %v6412
    %v6414 = vpop.xlane.xlu0 %6413
    %v6415 = vsel %vm272, %v6381, 0.0
    %6416 = vadd.xlane.f32.xlu0 %v6415
    %v6417 = vpop.xlane.xlu0 %6416
    %v6418 = vsel %vm272, %v6382, 0.0
    %6419 = vadd.xlane.f32.xlu0 %v6418
    %v6420 = vpop.xlane.xlu0 %6419
    %v6421 = vsel %vm272, %v6383, 0.0
    %6422 = vadd.xlane.f32.xlu0 %v6421
    %v6423 = vpop.xlane.xlu0 %6422
    %v6424 = vsel %vm272, %v6384, 0.0
    %6425 = vadd.xlane.f32.xlu0 %v6424
    %v6426 = vpop.xlane.xlu0 %6425
    %v6427 = vsel %vm272, %v6385, 0.0
    %6428 = vadd.xlane.f32.xlu0 %v6427
    %v6429 = vpop.xlane.xlu0 %6428
    %v6430 = vsel %vm272, %v6386, 0.0
    %6431 = vadd.xlane.f32.xlu0 %v6430
    %v6432 = vpop.xlane.xlu0 %6431
    %v6433 = vsel %vm272, %v6387, 0.0
    %6434 = vadd.xlane.f32.xlu0 %v6433
    %v6435 = vpop.xlane.xlu0 %6434
    %v6436 = vsel %vm272, %v6388, 0.0
    %6437 = vadd.xlane.f32.xlu0 %v6436
    %v6438 = vpop.xlane.xlu0 %6437
    %v6439 = vmul.f32 %v6393, %v321
    %v6440 = vmul.f32 %v6396, %v321
    %v6441 = vmul.f32 %v6399, %v321
    %v6442 = vmul.f32 %v6402, %v321
    %v6443 = vmul.f32 %v6405, %v321
    %v6444 = vmul.f32 %v6408, %v321
    %v6445 = vmul.f32 %v6411, %v321
    %v6446 = vmul.f32 %v6414, %v321
    %v6447 = vmul.f32 %v6417, %v321
    %v6448 = vmul.f32 %v6420, %v321
    %v6449 = vmul.f32 %v6423, %v321
    %v6450 = vmul.f32 %v6426, %v321
    %v6451 = vmul.f32 %v6429, %v321
    %v6452 = vmul.f32 %v6432, %v321
    %v6453 = vmul.f32 %v6435, %v321
    %v6454 = vmul.f32 %v6438, %v321
    %v6455 = vsub.f32 %v6373, %v6439
    %v6456 = vsub.f32 %v6374, %v6440
    %v6457 = vsub.f32 %v6375, %v6441
    %v6458 = vsub.f32 %v6376, %v6442
    %v6459 = vsub.f32 %v6377, %v6443
    %v6460 = vsub.f32 %v6378, %v6444
    %v6461 = vsub.f32 %v6379, %v6445
    %v6462 = vsub.f32 %v6380, %v6446
    %v6463 = vsub.f32 %v6381, %v6447
    %v6464 = vsub.f32 %v6382, %v6448
    %v6465 = vsub.f32 %v6383, %v6449
    %v6466 = vsub.f32 %v6384, %v6450
    %v6467 = vsub.f32 %v6385, %v6451
    %v6468 = vsub.f32 %v6386, %v6452
    %v6469 = vsub.f32 %v6387, %v6453
    %v6470 = vsub.f32 %v6388, %v6454
    %v6471 = vmul.f32 %v6455, %v6455
    %v6472 = vmul.f32 %v6456, %v6456
    %v6473 = vmul.f32 %v6457, %v6457
    %v6474 = vmul.f32 %v6458, %v6458
    %v6475 = vmul.f32 %v6459, %v6459
    %v6476 = vmul.f32 %v6460, %v6460
    %v6477 = vmul.f32 %v6461, %v6461
    %v6478 = vmul.f32 %v6462, %v6462
    %v6479 = vmul.f32 %v6463, %v6463
    %v6480 = vmul.f32 %v6464, %v6464
    %v6481 = vmul.f32 %v6465, %v6465
    %v6482 = vmul.f32 %v6466, %v6466
    %v6483 = vmul.f32 %v6467, %v6467
    %v6484 = vmul.f32 %v6468, %v6468
    %v6485 = vmul.f32 %v6469, %v6469
    %v6486 = vmul.f32 %v6470, %v6470
    %v6487 = vsel %vm272, %v6471, 0.0
    %6488 = vadd.xlane.f32.xlu0 %v6487
    %v6489 = vpop.xlane.xlu0 %6488
    %v6490 = vsel %vm272, %v6472, 0.0
    %6491 = vadd.xlane.f32.xlu0 %v6490
    %v6492 = vpop.xlane.xlu0 %6491
    %v6493 = vsel %vm272, %v6473, 0.0
    %6494 = vadd.xlane.f32.xlu0 %v6493
    %v6495 = vpop.xlane.xlu0 %6494
    %v6496 = vsel %vm272, %v6474, 0.0
    %6497 = vadd.xlane.f32.xlu0 %v6496
    %v6498 = vpop.xlane.xlu0 %6497
    %v6499 = vsel %vm272, %v6475, 0.0
    %6500 = vadd.xlane.f32.xlu0 %v6499
    %v6501 = vpop.xlane.xlu0 %6500
    %v6502 = vsel %vm272, %v6476, 0.0
    %6503 = vadd.xlane.f32.xlu0 %v6502
    %v6504 = vpop.xlane.xlu0 %6503
    %v6505 = vsel %vm272, %v6477, 0.0
    %6506 = vadd.xlane.f32.xlu0 %v6505
    %v6507 = vpop.xlane.xlu0 %6506
    %v6508 = vsel %vm272, %v6478, 0.0
    %6509 = vadd.xlane.f32.xlu0 %v6508
    %v6510 = vpop.xlane.xlu0 %6509
    %v6511 = vsel %vm272, %v6479, 0.0
    %6512 = vadd.xlane.f32.xlu0 %v6511
    %v6513 = vpop.xlane.xlu0 %6512
    %v6514 = vsel %vm272, %v6480, 0.0
    %6515 = vadd.xlane.f32.xlu0 %v6514
    %v6516 = vpop.xlane.xlu0 %6515
    %v6517 = vsel %vm272, %v6481, 0.0
    %6518 = vadd.xlane.f32.xlu0 %v6517
    %v6519 = vpop.xlane.xlu0 %6518
    %v6520 = vsel %vm272, %v6482, 0.0
    %6521 = vadd.xlane.f32.xlu0 %v6520
    %v6522 = vpop.xlane.xlu0 %6521
    %v6523 = vsel %vm272, %v6483, 0.0
    %6524 = vadd.xlane.f32.xlu0 %v6523
    %v6525 = vpop.xlane.xlu0 %6524
    %v6526 = vsel %vm272, %v6484, 0.0
    %6527 = vadd.xlane.f32.xlu0 %v6526
    %v6528 = vpop.xlane.xlu0 %6527
    %v6529 = vsel %vm272, %v6485, 0.0
    %6530 = vadd.xlane.f32.xlu0 %v6529
    %v6531 = vpop.xlane.xlu0 %6530
    %v6532 = vsel %vm272, %v6486, 0.0
    %6533 = vadd.xlane.f32.xlu0 %v6532
    %v6534 = vpop.xlane.xlu0 %6533
    %v6535 = vmul.f32 %v6489, %v321
    %v6536 = vmul.f32 %v6492, %v321
    %v6537 = vmul.f32 %v6495, %v321
    %v6538 = vmul.f32 %v6498, %v321
    %v6539 = vmul.f32 %v6501, %v321
    %v6540 = vmul.f32 %v6504, %v321
    %v6541 = vmul.f32 %v6507, %v321
    %v6542 = vmul.f32 %v6510, %v321
    %v6543 = vmul.f32 %v6513, %v321
    %v6544 = vmul.f32 %v6516, %v321
    %v6545 = vmul.f32 %v6519, %v321
    %v6546 = vmul.f32 %v6522, %v321
    %v6547 = vmul.f32 %v6525, %v321
    %v6548 = vmul.f32 %v6528, %v321
    %v6549 = vmul.f32 %v6531, %v321
    %v6550 = vmul.f32 %v6534, %v321
    %v6551 = vadd.f32 %v6535, 1e-06
    %v6552 = vadd.f32 %v6536, 1e-06
    %v6553 = vadd.f32 %v6537, 1e-06
    %v6554 = vadd.f32 %v6538, 1e-06
    %v6555 = vadd.f32 %v6539, 1e-06
    %v6556 = vadd.f32 %v6540, 1e-06
    %v6557 = vadd.f32 %v6541, 1e-06
    %v6558 = vadd.f32 %v6542, 1e-06
    %v6559 = vadd.f32 %v6543, 1e-06
    %v6560 = vadd.f32 %v6544, 1e-06
    %v6561 = vadd.f32 %v6545, 1e-06
    %v6562 = vadd.f32 %v6546, 1e-06
    %v6563 = vadd.f32 %v6547, 1e-06
    %v6564 = vadd.f32 %v6548, 1e-06
    %v6565 = vadd.f32 %v6549, 1e-06
    %v6566 = vadd.f32 %v6550, 1e-06
    %v6567 = vrsqrt.pop %v6551
    %v6568 = vrsqrt.pop %v6552
    %v6569 = vrsqrt.pop %v6553
    %v6570 = vrsqrt.pop %v6554
    %v6571 = vrsqrt.pop %v6555
    %v6572 = vrsqrt.pop %v6556
    %v6573 = vrsqrt.pop %v6557
    %v6574 = vrsqrt.pop %v6558
    %v6575 = vrsqrt.pop %v6559
    %v6576 = vrsqrt.pop %v6560
    %v6577 = vrsqrt.pop %v6561
    %v6578 = vrsqrt.pop %v6562
    %v6579 = vrsqrt.pop %v6563
    %v6580 = vrsqrt.pop %v6564
    %v6581 = vrsqrt.pop %v6565
    %v6582 = vrsqrt.pop %v6566
    %v6583 = vmul.f32 %v6455, %v6567
    %v6584 = vmul.f32 %v6456, %v6568
    %v6585 = vmul.f32 %v6457, %v6569
    %v6586 = vmul.f32 %v6458, %v6570
    %v6587 = vmul.f32 %v6459, %v6571
    %v6588 = vmul.f32 %v6460, %v6572
    %v6589 = vmul.f32 %v6461, %v6573
    %v6590 = vmul.f32 %v6462, %v6574
    %v6591 = vmul.f32 %v6463, %v6575
    %v6592 = vmul.f32 %v6464, %v6576
    %v6593 = vmul.f32 %v6465, %v6577
    %v6594 = vmul.f32 %v6466, %v6578
    %v6595 = vmul.f32 %v6467, %v6579
    %v6596 = vmul.f32 %v6468, %v6580
    %v6597 = vmul.f32 %v6469, %v6581
    %v6598 = vmul.f32 %v6470, %v6582
    %v6600 = vlaneseq
    %v6601 = vshrl.u32 %v6600, 7
    %v6602 = vsub.s32 0, %v6601
    %v6603 = vrot.slane %v6389, %v6602
    %v6605 = vmul.f32 %v6583, %v6603
    %v6606 = vmul.f32 %v6584, %v6603
    %v6607 = vmul.f32 %v6585, %v6603
    %v6608 = vmul.f32 %v6586, %v6603
    %v6609 = vmul.f32 %v6587, %v6603
    %v6610 = vmul.f32 %v6588, %v6603
    %v6611 = vmul.f32 %v6589, %v6603
    %v6612 = vmul.f32 %v6590, %v6603
    %v6613 = vmul.f32 %v6591, %v6603
    %v6614 = vmul.f32 %v6592, %v6603
    %v6615 = vmul.f32 %v6593, %v6603
    %v6616 = vmul.f32 %v6594, %v6603
    %v6617 = vmul.f32 %v6595, %v6603
    %v6618 = vmul.f32 %v6596, %v6603
    %v6619 = vmul.f32 %v6597, %v6603
    %v6620 = vmul.f32 %v6598, %v6603
    %v6622 = vlaneseq
    %v6623 = vshrl.u32 %v6622, 7
    %v6624 = vsub.s32 0, %v6623
    %v6625 = vrot.slane %v6390, %v6624
    %v6627 = vadd.f32 %v6605, %v6625
    %v6628 = vadd.f32 %v6606, %v6625
    %v6629 = vadd.f32 %v6607, %v6625
    %v6630 = vadd.f32 %v6608, %v6625
    %v6631 = vadd.f32 %v6609, %v6625
    %v6632 = vadd.f32 %v6610, %v6625
    %v6633 = vadd.f32 %v6611, %v6625
    %v6634 = vadd.f32 %v6612, %v6625
    %v6635 = vadd.f32 %v6613, %v6625
    %v6636 = vadd.f32 %v6614, %v6625
    %v6637 = vadd.f32 %v6615, %v6625
    %v6638 = vadd.f32 %v6616, %v6625
    %v6639 = vadd.f32 %v6617, %v6625
    %v6640 = vadd.f32 %v6618, %v6625
    %v6641 = vadd.f32 %v6619, %v6625
    %v6642 = vadd.f32 %v6620, %v6625
    %v6643 = vsel %vm272, %v6627, 0.0
    %v6644 = vsel %vm272, %v6628, 0.0
    %v6645 = vadd.f32 %v6643, %v6644
    %v6646 = vsel %vm272, %v6629, 0.0
    %v6647 = vadd.f32 %v6645, %v6646
    %v6648 = vsel %vm272, %v6630, 0.0
    %v6649 = vadd.f32 %v6647, %v6648
    %v6650 = vsel %vm272, %v6631, 0.0
    %v6651 = vadd.f32 %v6649, %v6650
    %v6652 = vsel %vm272, %v6632, 0.0
    %v6653 = vadd.f32 %v6651, %v6652
    %v6654 = vsel %vm272, %v6633, 0.0
    %v6655 = vadd.f32 %v6653, %v6654
    %v6656 = vsel %vm272, %v6634, 0.0
    %v6657 = vadd.f32 %v6655, %v6656
    %v6658 = vrot.slane %v6657, 4
    %v6659 = vadd.f32 %v6657, %v6658
    %v6660 = vrot.slane %v6659, 2
    %v6661 = vadd.f32 %v6659, %v6660
    %v6662 = vrot.slane %v6661, 1
    %v6663 = vadd.f32 %v6661, %v6662
    %v6664 = vsel %vm272, %v6635, 0.0
    %v6665 = vsel %vm272, %v6636, 0.0
    %v6666 = vadd.f32 %v6664, %v6665
    %v6667 = vsel %vm272, %v6637, 0.0
    %v6668 = vadd.f32 %v6666, %v6667
    %v6669 = vsel %vm272, %v6638, 0.0
    %v6670 = vadd.f32 %v6668, %v6669
    %v6671 = vsel %vm272, %v6639, 0.0
    %v6672 = vadd.f32 %v6670, %v6671
    %v6673 = vsel %vm272, %v6640, 0.0
    %v6674 = vadd.f32 %v6672, %v6673
    %v6675 = vsel %vm272, %v6641, 0.0
    %v6676 = vadd.f32 %v6674, %v6675
    %v6677 = vsel %vm272, %v6642, 0.0
    %v6678 = vadd.f32 %v6676, %v6677
    %v6679 = vrot.slane %v6678, 4
    %v6680 = vadd.f32 %v6678, %v6679
    %v6681 = vrot.slane %v6680, 2
    %v6682 = vadd.f32 %v6680, %v6681
    %v6683 = vrot.slane %v6682, 1
    %v6684 = vadd.f32 %v6682, %v6683
    %v6685 = vmul.f32 %v6663, 0.015625
    %v6686 = vmul.f32 %v6684, 0.015625
    %vm6689 = vcmask 1041409
    %v6690 = vsel %vm6689, %v6686, %v6685
    %vm6692 = vcmask 254976
    %6693 = vst.msk [vmem:[#allocation2] sm:$0x3] %vm6692, %v6690
    // Predicated region
    $region58: #{tpu_custom_call.1} parent=1 // pred_check
      _
    $region59: #{tpu_custom_call.1} parent=1 // pred_check_branch
      %6695 = sbr.rel (0) target = $region61
    $region60: #{tpu_custom_call.1} parent=1 // pred_region
      %s6697 = ssub.s32 32, 32
      %6698 = vsyncadd [#allocation3], %s6697
      %s6700 = sshll.u32 [#allocation2], 4
      %s6701 = int_to_ptr.vmem [resolvable:$true] %s6700
      %6703 = dma.vmem_to_hbm [thread:$0]  %s6701, 32, %s14, [#allocation3]
    $region61: #{tpu_custom_call.1} parent=1 // pred_fallthru
      _
    // Predicated region
    $region62: #{tpu_custom_call.1} parent=1 // pred_check
      _
    $region63: #{tpu_custom_call.1} parent=1 // pred_check_branch
      %6705 = sbr.rel (0) target = $region65
    $region64: #{tpu_custom_call.1} parent=1 // pred_region
      %6706 = dma.done [#allocation3], 32
    $region65: #{tpu_custom_call.1} parent=1 // pred_fallthru
      _
    %6707 = vsyncpa [#allocation3], 1

</llo_original>
